<compile_context>
chip_gen: v7x
topology: tpu7x:2x2x1
jax: 0.10.0
libtpu: 0.0.40
codegen_flags: <defaults>
</compile_context>

<pallas_src>
import functools

import jax
import jax.numpy as jnp
from jax.experimental import pallas as pl
from jax.experimental.pallas import tpu as pltpu

C_IN = 3          # conv1 in-channels
C_MID = 512       # conv1/conv2 out-channels
C_OUT = 6         # conv3 out-channels
C_IN_PAD = 8      # pad input channels to a sublane-friendly size
C_OUT_STORE = 8   # compact stored channels (6 valid + 2 zero pad)
C_OUT_MXU = 128   # conv3 matmul width (lane-dense MXU path)


def _round_up(x, m):
    return ((x + m - 1) // m) * m


def _fused_mlp_kernel(x_ref, w1_ref, b1_ref, w2_ref, b2_ref, w3_ref, b3_ref,
                      o_ref):
    x = x_ref[...]                                   # (tm, C_IN_PAD) f32
    w1 = w1_ref[...]                                 # (C_IN_PAD, 512) f32

    # conv1 (1x1, K=3): rank-1 updates on the VPU in f32 (works on all gens).
    h1 = b1_ref[...]                                 # (1, 512) broadcasts
    h1 = h1 + x[:, 0:1] * w1[0:1, :]
    h1 = h1 + x[:, 1:2] * w1[1:2, :]
    h1 = h1 + x[:, 2:3] * w1[2:3, :]
    h1 = jnp.maximum(h1, 0.0)                        # relu ("- 0.0" is a no-op)

    # conv2 (1x1): bf16 MXU matmul, f32 accumulation.
    h2 = jnp.dot(h1.astype(jnp.bfloat16), w2_ref[...],
                 preferred_element_type=jnp.float32)
    h2 = jnp.maximum(h2 + b2_ref[...], 0.0)

    # conv3 (1x1): bf16 MXU matmul at lane-dense N=128, but only the 8 valid
    # channel lanes are stored -> 16x less HBM output traffic.  The masked
    # narrow store and the contiguous (tm, 8) DMA hide under the MXU.
    out = jnp.dot(h2.astype(jnp.bfloat16), w3_ref[...],
                  preferred_element_type=jnp.float32)
    out = out + b3_ref[...]
    o_ref[...] = out[:, :C_OUT_STORE].astype(o_ref.dtype)


@functools.partial(jax.jit, static_argnames=("tm",))
def model_forward(x_nchw, w1, b1, w2, b2, w3, b3, *, tm=2048):
    N, C, H, W = x_nchw.shape
    assert C == C_IN
    M = N * H * W

    # Effective row tile; pad the row count to a multiple of it.
    tm_eff = min(tm, _round_up(M, 8))
    m_pad = _round_up(M, tm_eff)

    # NCHW -> NHWC -> (M, C_IN); zero-pad channels to C_IN_PAD and rows to m_pad.
    x2d = jnp.transpose(x_nchw, (0, 2, 3, 1)).reshape(M, C_IN)
    x2d = jnp.pad(x2d, ((0, m_pad - M), (0, C_IN_PAD - C_IN)))

    # Weight prep: (C_in, C_out) matrices.  W1 stays f32 (VPU path); W2/W3 go
    # bf16 for the MXU.  W3/b3 are padded to 128 columns for the matmul.
    w1p = jnp.pad(w1, ((0, C_IN_PAD - C_IN), (0, 0)))                 # (8, 512) f32
    w2b = w2.astype(jnp.bfloat16)                                     # (512, 512)
    w3p = jnp.pad(w3, ((0, 0), (0, C_OUT_MXU - C_OUT))).astype(jnp.bfloat16)
    b1r = b1.reshape(1, C_MID)
    b2r = b2.reshape(1, C_MID)
    b3r = jnp.pad(b3.reshape(1, C_OUT), ((0, 0), (0, C_OUT_MXU - C_OUT)))

    grid = (m_pad // tm_eff,)

    # Advisory cost hint so XLA schedules the surrounding layout ops sensibly.
    flops = 2 * m_pad * C_MID * (C_IN + C_MID + C_OUT_MXU)
    bytes_accessed = (x2d.size * 4 + w1p.size * 4 + w2b.size * 2 +
                      w3p.size * 2 + (b1r.size + b2r.size) * 4 + b3r.size * 4 +
                      m_pad * C_OUT_STORE * 4)

    out2d = pl.pallas_call(
        _fused_mlp_kernel,
        out_shape=jax.ShapeDtypeStruct((m_pad, C_OUT_STORE), jnp.float32),
        grid_spec=pltpu.PrefetchScalarGridSpec(
            num_scalar_prefetch=0,
            grid=grid,
            in_specs=[
                pl.BlockSpec((tm_eff, C_IN_PAD), lambda i: (i, 0)),     # x rows
                pl.BlockSpec((C_IN_PAD, C_MID), lambda i: (0, 0)),      # W1 (f32)
                pl.BlockSpec((1, C_MID), lambda i: (0, 0)),             # b1
                pl.BlockSpec((C_MID, C_MID), lambda i: (0, 0)),         # W2 (bf16)
                pl.BlockSpec((1, C_MID), lambda i: (0, 0)),             # b2
                pl.BlockSpec((C_MID, C_OUT_MXU), lambda i: (0, 0)),     # W3 (bf16)
                pl.BlockSpec((1, C_OUT_MXU), lambda i: (0, 0)),         # b3
            ],
            out_specs=pl.BlockSpec((tm_eff, C_OUT_STORE), lambda i: (i, 0)),
        ),
        compiler_params=pltpu.CompilerParams(
            dimension_semantics=("parallel",),
            vmem_limit_bytes=64 * 1024 * 1024),
        cost_estimate=pl.CostEstimate(
            flops=flops, transcendentals=0, bytes_accessed=bytes_accessed),
    )(x2d, w1p, b1r, w2b, b2r, w3p, b3r)

    # Compact (m_pad, 8) -> (M, 6) -> NHWC -> NCHW (cheap: ~8 MiB at 512x512).
    out = out2d[:M, :C_OUT].reshape(N, H, W, C_OUT)
    return jnp.transpose(out, (0, 3, 1, 2))


def _init_conv_params(key, c_in, c_out):
    """Deterministic PyTorch-style Conv2d(k=1) init: U(-1/sqrt(fan_in), +)."""
    kw, kb = jax.random.split(key)
    bound = 1.0 / jnp.sqrt(jnp.float32(c_in))
    # store weight as (C_in, C_out) so forward is x @ W
    w = jax.random.uniform(kw, (c_in, c_out), jnp.float32, -bound, bound)
    b = jax.random.uniform(kb, (c_out,), jnp.float32, -bound, bound)
    return w, b


def _reference_forward(x_nchw, w1, b1, w2, b2, w3, b3):
    N, C, H, W = x_nchw.shape
    x2d = jnp.transpose(x_nchw, (0, 2, 3, 1)).reshape(-1, C)
    h1 = jnp.maximum(x2d @ w1 + b1, 0.0)
    h2 = jnp.maximum(h1 @ w2 + b2, 0.0)
    out = h2 @ w3 + b3
    return jnp.transpose(out.reshape(N, H, W, -1), (0, 3, 1, 2))


if __name__ == "__main__":
    key = jax.random.PRNGKey(0)
    kx, k1, k2, k3 = jax.random.split(key, 4)

    # Small spatial size (module uses 512x512; channels are fixed by module).
    N, H, W = 1, 32, 32
    x = jax.random.normal(kx, (N, C_IN, H, W), jnp.float32)

    w1, b1 = _init_conv_params(k1, C_IN, C_MID)
    w2, b2 = _init_conv_params(k2, C_MID, C_MID)
    w3, b3 = _init_conv_params(k3, C_MID, C_OUT)

    out = model_forward(x, w1, b1, w2, b2, w3, b3)
    out = jax.block_until_ready(out)

    ref = _reference_forward(x, w1, b1, w2, b2, w3, b3)
    assert out.shape == (N, C_OUT, H, W), out.shape
    # bf16 MXU inputs with f32 accumulation -> relaxed tolerance vs f32 reference.
    assert jnp.allclose(out, ref, atol=5e-2, rtol=5e-2), "mismatch vs reference"

    print("KERNEL_OK")
</pallas_src>

<mosaic_0001>
module attributes {stable_mosaic.version = 11 : i64} {
  func.func @_fused_mlp_kernel(%arg0: i32, %arg1: memref<1024x8xf32, #tpu.memory_space<vmem>>, %arg2: memref<8x512xf32, #tpu.memory_space<vmem>>, %arg3: memref<1x512xf32, #tpu.memory_space<vmem>>, %arg4: memref<512x512xbf16, #tpu.memory_space<vmem>>, %arg5: memref<1x512xf32, #tpu.memory_space<vmem>>, %arg6: memref<512x128xbf16, #tpu.memory_space<vmem>>, %arg7: memref<1x128xf32, #tpu.memory_space<vmem>>, %arg8: memref<1024x8xf32, #tpu.memory_space<vmem>>) attributes {dimension_semantics = [#tpu.dimension_semantics<parallel>], iteration_bounds = array<i64: 1>, scalar_prefetch = 0 : i64, scratch_operands = 0 : i64, tpu.core_type = #tpu.core_type<tc>, window_params = [{transform_indices = @transform_0, window_bounds = array<i64: 1024, 8>}, {pipeline_mode = #tpu.pipeline_mode<synchronous>, transform_indices = @transform_1, window_bounds = array<i64: 8, 512>}, {pipeline_mode = #tpu.pipeline_mode<synchronous>, transform_indices = @transform_2, window_bounds = array<i64: 1, 512>}, {pipeline_mode = #tpu.pipeline_mode<synchronous>, transform_indices = @transform_3, window_bounds = array<i64: 512, 512>}, {pipeline_mode = #tpu.pipeline_mode<synchronous>, transform_indices = @transform_4, window_bounds = array<i64: 1, 512>}, {pipeline_mode = #tpu.pipeline_mode<synchronous>, transform_indices = @transform_5, window_bounds = array<i64: 512, 128>}, {pipeline_mode = #tpu.pipeline_mode<synchronous>, transform_indices = @transform_6, window_bounds = array<i64: 1, 128>}, {transform_indices = @transform_7, window_bounds = array<i64: 1024, 8>}]} {
    %c0 = arith.constant 0 : index
    %c0_0 = arith.constant 0 : index
    %0 = vector.load %arg1[%c0, %c0_0] : memref<1024x8xf32, #tpu.memory_space<vmem>>, vector<1024x8xf32>
    %c0_1 = arith.constant 0 : index
    %c0_2 = arith.constant 0 : index
    %1 = vector.load %arg2[%c0_1, %c0_2] : memref<8x512xf32, #tpu.memory_space<vmem>>, vector<8x512xf32>
    %c0_3 = arith.constant 0 : index
    %c0_4 = arith.constant 0 : index
    %2 = vector.load %arg3[%c0_3, %c0_4] : memref<1x512xf32, #tpu.memory_space<vmem>>, vector<1x512xf32>
    %3 = vector.extract_strided_slice %0 {offsets = [0, 0], sizes = [1024, 1], strides = [1, 1]} : vector<1024x8xf32> to vector<1024x1xf32>
    %4 = vector.extract_strided_slice %1 {offsets = [0, 0], sizes = [1, 512], strides = [1, 1]} : vector<8x512xf32> to vector<1x512xf32>
    %5 = vector.broadcast %3 : vector<1024x1xf32> to vector<1024x512xf32>
    %6 = vector.broadcast %4 : vector<1x512xf32> to vector<1024x512xf32>
    %7 = arith.mulf %5, %6 : vector<1024x512xf32>
    %8 = vector.broadcast %2 : vector<1x512xf32> to vector<1024x512xf32>
    %9 = arith.addf %8, %7 : vector<1024x512xf32>
    %10 = vector.extract_strided_slice %0 {offsets = [0, 1], sizes = [1024, 1], strides = [1, 1]} : vector<1024x8xf32> to vector<1024x1xf32>
    %11 = vector.extract_strided_slice %1 {offsets = [1, 0], sizes = [1, 512], strides = [1, 1]} : vector<8x512xf32> to vector<1x512xf32>
    %12 = vector.broadcast %10 : vector<1024x1xf32> to vector<1024x512xf32>
    %13 = vector.broadcast %11 : vector<1x512xf32> to vector<1024x512xf32>
    %14 = arith.mulf %12, %13 : vector<1024x512xf32>
    %15 = arith.addf %9, %14 : vector<1024x512xf32>
    %16 = vector.extract_strided_slice %0 {offsets = [0, 2], sizes = [1024, 1], strides = [1, 1]} : vector<1024x8xf32> to vector<1024x1xf32>
    %17 = vector.extract_strided_slice %1 {offsets = [2, 0], sizes = [1, 512], strides = [1, 1]} : vector<8x512xf32> to vector<1x512xf32>
    %18 = vector.broadcast %16 : vector<1024x1xf32> to vector<1024x512xf32>
    %19 = vector.broadcast %17 : vector<1x512xf32> to vector<1024x512xf32>
    %20 = arith.mulf %18, %19 : vector<1024x512xf32>
    %21 = arith.addf %15, %20 : vector<1024x512xf32>
    %cst = arith.constant 0.000000e+00 : f32
    %22 = vector.broadcast %cst : f32 to vector<1024x512xf32>
    %23 = arith.maximumf %21, %22 : vector<1024x512xf32>
    %24 = arith.truncf %23 : vector<1024x512xf32> to vector<1024x512xbf16>
    %c0_5 = arith.constant 0 : index
    %c0_6 = arith.constant 0 : index
    %25 = vector.load %arg4[%c0_5, %c0_6] : memref<512x512xbf16, #tpu.memory_space<vmem>>, vector<512x512xbf16>
    %cst_7 = arith.constant dense<0.000000e+00> : vector<1024x512xf32>
    %26 = tpu.matmul %24, %25, %cst_7 {dimension_numbers = #tpu.dot_dimension_numbers<[1], [0], [0], [1], [0, 0, 1, 1], [], []>} : vector<1024x512xbf16>, vector<512x512xbf16>, vector<1024x512xf32> -> vector<1024x512xf32>
    %c0_8 = arith.constant 0 : index
    %c0_9 = arith.constant 0 : index
    %27 = vector.load %arg5[%c0_8, %c0_9] : memref<1x512xf32, #tpu.memory_space<vmem>>, vector<1x512xf32>
    %28 = vector.broadcast %27 : vector<1x512xf32> to vector<1024x512xf32>
    %29 = arith.addf %26, %28 : vector<1024x512xf32>
    %cst_10 = arith.constant 0.000000e+00 : f32
    %30 = vector.broadcast %cst_10 : f32 to vector<1024x512xf32>
    %31 = arith.maximumf %29, %30 : vector<1024x512xf32>
    %32 = arith.truncf %31 : vector<1024x512xf32> to vector<1024x512xbf16>
    %c0_11 = arith.constant 0 : index
    %c0_12 = arith.constant 0 : index
    %33 = vector.load %arg6[%c0_11, %c0_12] : memref<512x128xbf16, #tpu.memory_space<vmem>>, vector<512x128xbf16>
    %cst_13 = arith.constant dense<0.000000e+00> : vector<1024x128xf32>
    %34 = tpu.matmul %32, %33, %cst_13 {dimension_numbers = #tpu.dot_dimension_numbers<[1], [0], [0], [1], [0, 0, 1, 1], [], []>} : vector<1024x512xbf16>, vector<512x128xbf16>, vector<1024x128xf32> -> vector<1024x128xf32>
    %c0_14 = arith.constant 0 : index
    %c0_15 = arith.constant 0 : index
    %35 = vector.load %arg7[%c0_14, %c0_15] : memref<1x128xf32, #tpu.memory_space<vmem>>, vector<1x128xf32>
    %36 = vector.broadcast %35 : vector<1x128xf32> to vector<1024x128xf32>
    %37 = arith.addf %34, %36 : vector<1024x128xf32>
    %38 = vector.extract_strided_slice %37 {offsets = [0, 0], sizes = [1024, 8], strides = [1, 1]} : vector<1024x128xf32> to vector<1024x8xf32>
    %c0_16 = arith.constant 0 : index
    %c0_17 = arith.constant 0 : index
    %39 = vector.load %arg8[%c0_16, %c0_17] : memref<1024x8xf32, #tpu.memory_space<vmem>>, vector<1024x8xf32>
    tpu.vector_store %arg8[%c0_16, %c0_17], %38 {strides = array<i32>} : memref<1024x8xf32, #tpu.memory_space<vmem>>, vector<1024x8xf32>,
    return
  }
  func.func @transform_0(%arg0: i32) -> (i32, i32) {
    %c0_i32 = arith.constant 0 : i32
    %c0_i32_0 = arith.constant 0 : i32
    return %arg0, %c0_i32 : i32, i32
  }
  func.func @transform_1(%arg0: i32) -> (i32, i32) {
    %c0_i32 = arith.constant 0 : i32
    %c0_i32_0 = arith.constant 0 : i32
    %c0_i32_1 = arith.constant 0 : i32
    return %c0_i32, %c0_i32_0 : i32, i32
  }
  func.func @transform_2(%arg0: i32) -> (i32, i32) {
    %c0_i32 = arith.constant 0 : i32
    %c0_i32_0 = arith.constant 0 : i32
    %c0_i32_1 = arith.constant 0 : i32
    return %c0_i32, %c0_i32_0 : i32, i32
  }
  func.func @transform_3(%arg0: i32) -> (i32, i32) {
    %c0_i32 = arith.constant 0 : i32
    %c0_i32_0 = arith.constant 0 : i32
    %c0_i32_1 = arith.constant 0 : i32
    return %c0_i32, %c0_i32_0 : i32, i32
  }
  func.func @transform_4(%arg0: i32) -> (i32, i32) {
    %c0_i32 = arith.constant 0 : i32
    %c0_i32_0 = arith.constant 0 : i32
    %c0_i32_1 = arith.constant 0 : i32
    return %c0_i32, %c0_i32_0 : i32, i32
  }
  func.func @transform_5(%arg0: i32) -> (i32, i32) {
    %c0_i32 = arith.constant 0 : i32
    %c0_i32_0 = arith.constant 0 : i32
    %c0_i32_1 = arith.constant 0 : i32
    return %c0_i32, %c0_i32_0 : i32, i32
  }
  func.func @transform_6(%arg0: i32) -> (i32, i32) {
    %c0_i32 = arith.constant 0 : i32
    %c0_i32_0 = arith.constant 0 : i32
    %c0_i32_1 = arith.constant 0 : i32
    return %c0_i32, %c0_i32_0 : i32, i32
  }
  func.func @transform_7(%arg0: i32) -> (i32, i32) {
    %c0_i32 = arith.constant 0 : i32
    %c0_i32_0 = arith.constant 0 : i32
    return %arg0, %c0_i32 : i32, i32
  }
}

</mosaic_0001>

<llo_original>
// kernel: model_forward.1
$region0: #{model_forward.1}
  #allocation0 [shape = 'u32[]', space=smem, size = 0x4, offset = 0x4, fixed_abs, tag = 'smem constant byte address 0x4 - core index']
  #allocation1 [shape = 'u32[144,128]{1,0:T(1,128)}', space=vmem, size = 0x12000, scoped, tag = 'internal scratch']
  %s0 = inlined_call_operand.hbm [shape: f32[1024,8], index: 0, kind: input, shape index: {}]
  %s1 = inlined_call_operand.hbm [shape: f32[8,512], index: 1, kind: input, shape index: {}]
  %s2 = inlined_call_operand.hbm [shape: f32[1,512], index: 2, kind: input, shape index: {}]
  %s3 = inlined_call_operand.hbm [shape: bf16[512,512], index: 3, kind: input, shape index: {}]
  %s4 = inlined_call_operand.hbm [shape: f32[1,512], index: 4, kind: input, shape index: {}]
  %s5 = inlined_call_operand.hbm [shape: bf16[512,128], index: 5, kind: input, shape index: {}]
  %s6 = inlined_call_operand.hbm [shape: f32[1,128], index: 6, kind: input, shape index: {}]
  %s7 = inlined_call_operand.hbm [shape: f32[1024,8], index: 7, kind: output, shape index: {}]
  %s8 = sld [smem:[#allocation0]]
  $region66: #{model_forward.1} parent=0
    _
  %s10 = ssub.s32 1, %s8
  %s11 = scalar_select 0, %s10, %s8
  $region1: #{model_forward.1} parent=0
    #allocation2 [shape = 'u8[524288]{0}', space=vmem, size = 0x80000, scoped, tag = 'input window, operand 0, single buffered']
    #allocation3 [shape = 's32[1]{0}', space=sflag, size = 0x4, scoped, tag = 'scoped memory for model_forward.1']
    #allocation4 [shape = 's32[1]{0}', space=sflag, size = 0x4, scoped, tag = 'scoped memory for model_forward.1']
    #allocation5 [shape = 'u8[16384]{0}', space=vmem, size = 0x4000, scoped, tag = 'input window, operand 1, single buffered']
    #allocation6 [shape = 's32[1]{0}', space=sflag, size = 0x4, scoped, tag = 'scoped memory for model_forward.1']
    #allocation7 [shape = 'u8[2048]{0}', space=vmem, size = 0x800, scoped, tag = 'input window, operand 2, single buffered']
    #allocation8 [shape = 'u8[524288]{0}', space=vmem, size = 0x80000, scoped, tag = 'input window, operand 3, single buffered']
    #allocation9 [shape = 's32[1]{0}', space=sflag, size = 0x4, scoped, tag = 'scoped memory for model_forward.1']
    #allocation10 [shape = 'u8[2048]{0}', space=vmem, size = 0x800, scoped, tag = 'input window, operand 4, single buffered']
    #allocation11 [shape = 'u8[131072]{0}', space=vmem, size = 0x20000, scoped, tag = 'input window, operand 5, single buffered']
    #allocation12 [shape = 's32[1]{0}', space=sflag, size = 0x4, scoped, tag = 'scoped memory for model_forward.1']
    #allocation13 [shape = 'u8[512]{0}', space=vmem, size = 0x400, scoped, tag = 'input window, operand 6, single buffered']
    #allocation14 [shape = 'u8[524288]{0}', space=vmem, size = 0x80000, scoped, tag = 'output window, operand 0, single buffered']
    %12 = vsyncpa [#allocation3], 0
    %13 = vsyncpa [#allocation6], 0
    %14 = vsyncpa [#allocation9], 0
    %15 = vsyncpa [#allocation12], 0
    %16 = vsyncpa [#allocation4], 0
    // Predicated region
    $region2: #{model_forward.1} parent=1 // pred_check
      _
    $region3: #{model_forward.1} parent=1 // pred_check_branch
      %18 = sbr.rel (0) target = $region5
    $region4: #{model_forward.1} parent=1 // pred_region
      %s20 = ssub.s32 16384, 16384
      %21 = vsyncadd [#allocation3], %s20
      %s22 = sshll.u32 [#allocation2], 4
      %s23 = int_to_ptr.vmem [resolvable:$true] %s22
      %28 = dma.hbm_to_vmem [thread:$0]  %s0, 16384, %s23, [#allocation3], 128, 128, 8
    $region5: #{model_forward.1} parent=1 // pred_fallthru
      _
    // Predicated region
    $region6: #{model_forward.1} parent=1 // pred_check
      _
    $region7: #{model_forward.1} parent=1 // pred_check_branch
      %30 = sbr.rel (0) target = $region9
    $region8: #{model_forward.1} parent=1 // pred_region
      %s32 = ssub.s32 512, 512
      %33 = vsyncadd [#allocation6], %s32
      %s35 = sshll.u32 [#allocation5], 4
      %s36 = int_to_ptr.vmem [resolvable:$true] %s35
      %38 = dma.hbm_to_vmem [thread:$0]  %s1, 512, %s36, [#allocation6]
    $region9: #{model_forward.1} parent=1 // pred_fallthru
      _
    // Predicated region
    $region10: #{model_forward.1} parent=1 // pred_check
      _
    $region11: #{model_forward.1} parent=1 // pred_check_branch
      %40 = sbr.rel (0) target = $region13
    $region12: #{model_forward.1} parent=1 // pred_region
      %s42 = ssub.s32 64, 64
      %43 = vsyncadd [#allocation6], %s42
      %s45 = sshll.u32 [#allocation7], 4
      %s46 = int_to_ptr.vmem [resolvable:$true] %s45
      %48 = dma.hbm_to_vmem [thread:$0]  %s2, 64, %s46, [#allocation6]
    $region13: #{model_forward.1} parent=1 // pred_fallthru
      _
    // Predicated region
    $region14: #{model_forward.1} parent=1 // pred_check
      _
    $region15: #{model_forward.1} parent=1 // pred_check_branch
      %50 = sbr.rel (0) target = $region17
    $region16: #{model_forward.1} parent=1 // pred_region
      %s52 = ssub.s32 16384, 16384
      %53 = vsyncadd [#allocation9], %s52
      %s54 = sshll.u32 [#allocation8], 4
      %s55 = int_to_ptr.vmem [resolvable:$true] %s54
      %60 = dma.hbm_to_vmem [thread:$0]  %s3, 16384, %s55, [#allocation9], 256, 256, 16
    $region17: #{model_forward.1} parent=1 // pred_fallthru
      _
    // Predicated region
    $region18: #{model_forward.1} parent=1 // pred_check
      _
    $region19: #{model_forward.1} parent=1 // pred_check_branch
      %62 = sbr.rel (0) target = $region21
    $region20: #{model_forward.1} parent=1 // pred_region
      %s64 = ssub.s32 64, 64
      %65 = vsyncadd [#allocation9], %s64
      %s67 = sshll.u32 [#allocation10], 4
      %s68 = int_to_ptr.vmem [resolvable:$true] %s67
      %70 = dma.hbm_to_vmem [thread:$0]  %s4, 64, %s68, [#allocation9]
    $region21: #{model_forward.1} parent=1 // pred_fallthru
      _
    // Predicated region
    $region22: #{model_forward.1} parent=1 // pred_check
      _
    $region23: #{model_forward.1} parent=1 // pred_check_branch
      %72 = sbr.rel (0) target = $region25
    $region24: #{model_forward.1} parent=1 // pred_region
      %s74 = ssub.s32 4096, 4096
      %75 = vsyncadd [#allocation12], %s74
      %s76 = sshll.u32 [#allocation11], 4
      %s77 = int_to_ptr.vmem [resolvable:$true] %s76
      %82 = dma.hbm_to_vmem [thread:$0]  %s5, 4096, %s77, [#allocation12], 64, 64, 4
    $region25: #{model_forward.1} parent=1 // pred_fallthru
      _
    // Predicated region
    $region26: #{model_forward.1} parent=1 // pred_check
      _
    $region27: #{model_forward.1} parent=1 // pred_check_branch
      %84 = sbr.rel (0) target = $region29
    $region28: #{model_forward.1} parent=1 // pred_region
      %s86 = ssub.s32 16, 16
      %87 = vsyncadd [#allocation12], %s86
      %s89 = sshll.u32 [#allocation13], 4
      %s90 = int_to_ptr.vmem [resolvable:$true] %s89
      %92 = dma.hbm_to_vmem [thread:$0]  %s6, 16, %s90, [#allocation12]
    $region29: #{model_forward.1} parent=1 // pred_fallthru
      _
    // Predicated region
    $region30: #{model_forward.1} parent=1 // pred_check
      _
    $region31: #{model_forward.1} parent=1 // pred_check_branch
      %94 = sbr.rel (0) target = $region33
    $region32: #{model_forward.1} parent=1 // pred_region
      %95 = dma.done [#allocation3], 16384
    $region33: #{model_forward.1} parent=1 // pred_fallthru
      _
    // Predicated region
    $region34: #{model_forward.1} parent=1 // pred_check
      _
    $region35: #{model_forward.1} parent=1 // pred_check_branch
      %97 = sbr.rel (0) target = $region37
    $region36: #{model_forward.1} parent=1 // pred_region
      %98 = dma.done [#allocation6], 512
    $region37: #{model_forward.1} parent=1 // pred_fallthru
      _
    // Predicated region
    $region38: #{model_forward.1} parent=1 // pred_check
      _
    $region39: #{model_forward.1} parent=1 // pred_check_branch
      %100 = sbr.rel (0) target = $region41
    $region40: #{model_forward.1} parent=1 // pred_region
      %101 = dma.done [#allocation6], 64
    $region41: #{model_forward.1} parent=1 // pred_fallthru
      _
    // Predicated region
    $region42: #{model_forward.1} parent=1 // pred_check
      _
    $region43: #{model_forward.1} parent=1 // pred_check_branch
      %103 = sbr.rel (0) target = $region45
    $region44: #{model_forward.1} parent=1 // pred_region
      %104 = dma.done [#allocation9], 16384
    $region45: #{model_forward.1} parent=1 // pred_fallthru
      _
    // Predicated region
    $region46: #{model_forward.1} parent=1 // pred_check
      _
    $region47: #{model_forward.1} parent=1 // pred_check_branch
      %106 = sbr.rel (0) target = $region49
    $region48: #{model_forward.1} parent=1 // pred_region
      %107 = dma.done [#allocation9], 64
    $region49: #{model_forward.1} parent=1 // pred_fallthru
      _
    // Predicated region
    $region50: #{model_forward.1} parent=1 // pred_check
      _
    $region51: #{model_forward.1} parent=1 // pred_check_branch
      %109 = sbr.rel (0) target = $region53
    $region52: #{model_forward.1} parent=1 // pred_region
      %110 = dma.done [#allocation12], 4096
    $region53: #{model_forward.1} parent=1 // pred_fallthru
      _
    // Predicated region
    $region54: #{model_forward.1} parent=1 // pred_check
      _
    $region55: #{model_forward.1} parent=1 // pred_check_branch
      %112 = sbr.rel (0) target = $region57
    $region56: #{model_forward.1} parent=1 // pred_region
      %113 = dma.done [#allocation12], 16
    $region57: #{model_forward.1} parent=1 // pred_fallthru
      _
    %v115 = vld [vmem:[#allocation2] sm:$0xff]
    %v116 = vld [vmem:[#allocation2 + $0x8] sm:$0xff]
    %v117 = vld [vmem:[#allocation2 + $0x10] sm:$0xff]
    %v118 = vld [vmem:[#allocation2 + $0x18] sm:$0xff]
    %v119 = vld [vmem:[#allocation2 + $0x20] sm:$0xff]
    %v120 = vld [vmem:[#allocation2 + $0x28] sm:$0xff]
    %v121 = vld [vmem:[#allocation2 + $0x30] sm:$0xff]
    %v122 = vld [vmem:[#allocation2 + $0x38] sm:$0xff]
    %v123 = vld [vmem:[#allocation2 + $0x40] sm:$0xff]
    %v124 = vld [vmem:[#allocation2 + $0x48] sm:$0xff]
    %v125 = vld [vmem:[#allocation2 + $0x50] sm:$0xff]
    %v126 = vld [vmem:[#allocation2 + $0x58] sm:$0xff]
    %v127 = vld [vmem:[#allocation2 + $0x60] sm:$0xff]
    %v128 = vld [vmem:[#allocation2 + $0x68] sm:$0xff]
    %v129 = vld [vmem:[#allocation2 + $0x70] sm:$0xff]
    %v130 = vld [vmem:[#allocation2 + $0x78] sm:$0xff]
    %v131 = vld [vmem:[#allocation2 + $0x80] sm:$0xff]
    %v132 = vld [vmem:[#allocation2 + $0x88] sm:$0xff]
    %v133 = vld [vmem:[#allocation2 + $0x90] sm:$0xff]
    %v134 = vld [vmem:[#allocation2 + $0x98] sm:$0xff]
    %v135 = vld [vmem:[#allocation2 + $0xa0] sm:$0xff]
    %v136 = vld [vmem:[#allocation2 + $0xa8] sm:$0xff]
    %v137 = vld [vmem:[#allocation2 + $0xb0] sm:$0xff]
    %v138 = vld [vmem:[#allocation2 + $0xb8] sm:$0xff]
    %v139 = vld [vmem:[#allocation2 + $0xc0] sm:$0xff]
    %v140 = vld [vmem:[#allocation2 + $0xc8] sm:$0xff]
    %v141 = vld [vmem:[#allocation2 + $0xd0] sm:$0xff]
    %v142 = vld [vmem:[#allocation2 + $0xd8] sm:$0xff]
    %v143 = vld [vmem:[#allocation2 + $0xe0] sm:$0xff]
    %v144 = vld [vmem:[#allocation2 + $0xe8] sm:$0xff]
    %v145 = vld [vmem:[#allocation2 + $0xf0] sm:$0xff]
    %v146 = vld [vmem:[#allocation2 + $0xf8] sm:$0xff]
    %v147 = vld [vmem:[#allocation2 + $0x100] sm:$0xff]
    %v148 = vld [vmem:[#allocation2 + $0x108] sm:$0xff]
    %v149 = vld [vmem:[#allocation2 + $0x110] sm:$0xff]
    %v150 = vld [vmem:[#allocation2 + $0x118] sm:$0xff]
    %v151 = vld [vmem:[#allocation2 + $0x120] sm:$0xff]
    %v152 = vld [vmem:[#allocation2 + $0x128] sm:$0xff]
    %v153 = vld [vmem:[#allocation2 + $0x130] sm:$0xff]
    %v154 = vld [vmem:[#allocation2 + $0x138] sm:$0xff]
    %v155 = vld [vmem:[#allocation2 + $0x140] sm:$0xff]
    %v156 = vld [vmem:[#allocation2 + $0x148] sm:$0xff]
    %v157 = vld [vmem:[#allocation2 + $0x150] sm:$0xff]
    %v158 = vld [vmem:[#allocation2 + $0x158] sm:$0xff]
    %v159 = vld [vmem:[#allocation2 + $0x160] sm:$0xff]
    %v160 = vld [vmem:[#allocation2 + $0x168] sm:$0xff]
    %v161 = vld [vmem:[#allocation2 + $0x170] sm:$0xff]
    %v162 = vld [vmem:[#allocation2 + $0x178] sm:$0xff]
    %v163 = vld [vmem:[#allocation2 + $0x180] sm:$0xff]
    %v164 = vld [vmem:[#allocation2 + $0x188] sm:$0xff]
    %v165 = vld [vmem:[#allocation2 + $0x190] sm:$0xff]
    %v166 = vld [vmem:[#allocation2 + $0x198] sm:$0xff]
    %v167 = vld [vmem:[#allocation2 + $0x1a0] sm:$0xff]
    %v168 = vld [vmem:[#allocation2 + $0x1a8] sm:$0xff]
    %v169 = vld [vmem:[#allocation2 + $0x1b0] sm:$0xff]
    %v170 = vld [vmem:[#allocation2 + $0x1b8] sm:$0xff]
    %v171 = vld [vmem:[#allocation2 + $0x1c0] sm:$0xff]
    %v172 = vld [vmem:[#allocation2 + $0x1c8] sm:$0xff]
    %v173 = vld [vmem:[#allocation2 + $0x1d0] sm:$0xff]
    %v174 = vld [vmem:[#allocation2 + $0x1d8] sm:$0xff]
    %v175 = vld [vmem:[#allocation2 + $0x1e0] sm:$0xff]
    %v176 = vld [vmem:[#allocation2 + $0x1e8] sm:$0xff]
    %v177 = vld [vmem:[#allocation2 + $0x1f0] sm:$0xff]
    %v178 = vld [vmem:[#allocation2 + $0x1f8] sm:$0xff]
    %v179 = vld [vmem:[#allocation2 + $0x200] sm:$0xff]
    %v180 = vld [vmem:[#allocation2 + $0x208] sm:$0xff]
    %v181 = vld [vmem:[#allocation2 + $0x210] sm:$0xff]
    %v182 = vld [vmem:[#allocation2 + $0x218] sm:$0xff]
    %v183 = vld [vmem:[#allocation2 + $0x220] sm:$0xff]
    %v184 = vld [vmem:[#allocation2 + $0x228] sm:$0xff]
    %v185 = vld [vmem:[#allocation2 + $0x230] sm:$0xff]
    %v186 = vld [vmem:[#allocation2 + $0x238] sm:$0xff]
    %v187 = vld [vmem:[#allocation2 + $0x240] sm:$0xff]
    %v188 = vld [vmem:[#allocation2 + $0x248] sm:$0xff]
    %v189 = vld [vmem:[#allocation2 + $0x250] sm:$0xff]
    %v190 = vld [vmem:[#allocation2 + $0x258] sm:$0xff]
    %v191 = vld [vmem:[#allocation2 + $0x260] sm:$0xff]
    %v192 = vld [vmem:[#allocation2 + $0x268] sm:$0xff]
    %v193 = vld [vmem:[#allocation2 + $0x270] sm:$0xff]
    %v194 = vld [vmem:[#allocation2 + $0x278] sm:$0xff]
    %v195 = vld [vmem:[#allocation2 + $0x280] sm:$0xff]
    %v196 = vld [vmem:[#allocation2 + $0x288] sm:$0xff]
    %v197 = vld [vmem:[#allocation2 + $0x290] sm:$0xff]
    %v198 = vld [vmem:[#allocation2 + $0x298] sm:$0xff]
    %v199 = vld [vmem:[#allocation2 + $0x2a0] sm:$0xff]
    %v200 = vld [vmem:[#allocation2 + $0x2a8] sm:$0xff]
    %v201 = vld [vmem:[#allocation2 + $0x2b0] sm:$0xff]
    %v202 = vld [vmem:[#allocation2 + $0x2b8] sm:$0xff]
    %v203 = vld [vmem:[#allocation2 + $0x2c0] sm:$0xff]
    %v204 = vld [vmem:[#allocation2 + $0x2c8] sm:$0xff]
    %v205 = vld [vmem:[#allocation2 + $0x2d0] sm:$0xff]
    %v206 = vld [vmem:[#allocation2 + $0x2d8] sm:$0xff]
    %v207 = vld [vmem:[#allocation2 + $0x2e0] sm:$0xff]
    %v208 = vld [vmem:[#allocation2 + $0x2e8] sm:$0xff]
    %v209 = vld [vmem:[#allocation2 + $0x2f0] sm:$0xff]
    %v210 = vld [vmem:[#allocation2 + $0x2f8] sm:$0xff]
    %v211 = vld [vmem:[#allocation2 + $0x300] sm:$0xff]
    %v212 = vld [vmem:[#allocation2 + $0x308] sm:$0xff]
    %v213 = vld [vmem:[#allocation2 + $0x310] sm:$0xff]
    %v214 = vld [vmem:[#allocation2 + $0x318] sm:$0xff]
    %v215 = vld [vmem:[#allocation2 + $0x320] sm:$0xff]
    %v216 = vld [vmem:[#allocation2 + $0x328] sm:$0xff]
    %v217 = vld [vmem:[#allocation2 + $0x330] sm:$0xff]
    %v218 = vld [vmem:[#allocation2 + $0x338] sm:$0xff]
    %v219 = vld [vmem:[#allocation2 + $0x340] sm:$0xff]
    %v220 = vld [vmem:[#allocation2 + $0x348] sm:$0xff]
    %v221 = vld [vmem:[#allocation2 + $0x350] sm:$0xff]
    %v222 = vld [vmem:[#allocation2 + $0x358] sm:$0xff]
    %v223 = vld [vmem:[#allocation2 + $0x360] sm:$0xff]
    %v224 = vld [vmem:[#allocation2 + $0x368] sm:$0xff]
    %v225 = vld [vmem:[#allocation2 + $0x370] sm:$0xff]
    %v226 = vld [vmem:[#allocation2 + $0x378] sm:$0xff]
    %v227 = vld [vmem:[#allocation2 + $0x380] sm:$0xff]
    %v228 = vld [vmem:[#allocation2 + $0x388] sm:$0xff]
    %v229 = vld [vmem:[#allocation2 + $0x390] sm:$0xff]
    %v230 = vld [vmem:[#allocation2 + $0x398] sm:$0xff]
    %v231 = vld [vmem:[#allocation2 + $0x3a0] sm:$0xff]
    %v232 = vld [vmem:[#allocation2 + $0x3a8] sm:$0xff]
    %v233 = vld [vmem:[#allocation2 + $0x3b0] sm:$0xff]
    %v234 = vld [vmem:[#allocation2 + $0x3b8] sm:$0xff]
    %v235 = vld [vmem:[#allocation2 + $0x3c0] sm:$0xff]
    %v236 = vld [vmem:[#allocation2 + $0x3c8] sm:$0xff]
    %v237 = vld [vmem:[#allocation2 + $0x3d0] sm:$0xff]
    %v238 = vld [vmem:[#allocation2 + $0x3d8] sm:$0xff]
    %v239 = vld [vmem:[#allocation2 + $0x3e0] sm:$0xff]
    %v240 = vld [vmem:[#allocation2 + $0x3e8] sm:$0xff]
    %v241 = vld [vmem:[#allocation2 + $0x3f0] sm:$0xff]
    %v242 = vld [vmem:[#allocation2 + $0x3f8] sm:$0xff]
    %v243 = vld [vmem:[#allocation5] sm:$0xff]
    %v244 = vld [vmem:[#allocation5 + $0x8] sm:$0xff]
    %v245 = vld [vmem:[#allocation5 + $0x10] sm:$0xff]
    %v246 = vld [vmem:[#allocation5 + $0x18] sm:$0xff]
    %v247 = vld [vmem:[#allocation7] sm:$0xf]
    %249 = vset.pattern.permute.xlu0 0
    %250 = vperm.xlu0 %249, %v115
    %v251 = vpop.permute.xlu0 %250
    %254 = vset.pattern.permute.xlu0 0
    %255 = vperm.xlu0 %254, %v116
    %v256 = vpop.permute.xlu0 %255
    %259 = vset.pattern.permute.xlu0 0
    %260 = vperm.xlu0 %259, %v117
    %v261 = vpop.permute.xlu0 %260
    %264 = vset.pattern.permute.xlu0 0
    %265 = vperm.xlu0 %264, %v118
    %v266 = vpop.permute.xlu0 %265
    %269 = vset.pattern.permute.xlu0 0
    %270 = vperm.xlu0 %269, %v119
    %v271 = vpop.permute.xlu0 %270
    %274 = vset.pattern.permute.xlu0 0
    %275 = vperm.xlu0 %274, %v120
    %v276 = vpop.permute.xlu0 %275
    %279 = vset.pattern.permute.xlu0 0
    %280 = vperm.xlu0 %279, %v121
    %v281 = vpop.permute.xlu0 %280
    %284 = vset.pattern.permute.xlu0 0
    %285 = vperm.xlu0 %284, %v122
    %v286 = vpop.permute.xlu0 %285
    %289 = vset.pattern.permute.xlu0 0
    %290 = vperm.xlu0 %289, %v123
    %v291 = vpop.permute.xlu0 %290
    %294 = vset.pattern.permute.xlu0 0
    %295 = vperm.xlu0 %294, %v124
    %v296 = vpop.permute.xlu0 %295
    %299 = vset.pattern.permute.xlu0 0
    %300 = vperm.xlu0 %299, %v125
    %v301 = vpop.permute.xlu0 %300
    %304 = vset.pattern.permute.xlu0 0
    %305 = vperm.xlu0 %304, %v126
    %v306 = vpop.permute.xlu0 %305
    %309 = vset.pattern.permute.xlu0 0
    %310 = vperm.xlu0 %309, %v127
    %v311 = vpop.permute.xlu0 %310
    %314 = vset.pattern.permute.xlu0 0
    %315 = vperm.xlu0 %314, %v128
    %v316 = vpop.permute.xlu0 %315
    %319 = vset.pattern.permute.xlu0 0
    %320 = vperm.xlu0 %319, %v129
    %v321 = vpop.permute.xlu0 %320
    %324 = vset.pattern.permute.xlu0 0
    %325 = vperm.xlu0 %324, %v130
    %v326 = vpop.permute.xlu0 %325
    %329 = vset.pattern.permute.xlu0 0
    %330 = vperm.xlu0 %329, %v131
    %v331 = vpop.permute.xlu0 %330
    %334 = vset.pattern.permute.xlu0 0
    %335 = vperm.xlu0 %334, %v132
    %v336 = vpop.permute.xlu0 %335
    %339 = vset.pattern.permute.xlu0 0
    %340 = vperm.xlu0 %339, %v133
    %v341 = vpop.permute.xlu0 %340
    %344 = vset.pattern.permute.xlu0 0
    %345 = vperm.xlu0 %344, %v134
    %v346 = vpop.permute.xlu0 %345
    %349 = vset.pattern.permute.xlu0 0
    %350 = vperm.xlu0 %349, %v135
    %v351 = vpop.permute.xlu0 %350
    %354 = vset.pattern.permute.xlu0 0
    %355 = vperm.xlu0 %354, %v136
    %v356 = vpop.permute.xlu0 %355
    %359 = vset.pattern.permute.xlu0 0
    %360 = vperm.xlu0 %359, %v137
    %v361 = vpop.permute.xlu0 %360
    %364 = vset.pattern.permute.xlu0 0
    %365 = vperm.xlu0 %364, %v138
    %v366 = vpop.permute.xlu0 %365
    %369 = vset.pattern.permute.xlu0 0
    %370 = vperm.xlu0 %369, %v139
    %v371 = vpop.permute.xlu0 %370
    %374 = vset.pattern.permute.xlu0 0
    %375 = vperm.xlu0 %374, %v140
    %v376 = vpop.permute.xlu0 %375
    %379 = vset.pattern.permute.xlu0 0
    %380 = vperm.xlu0 %379, %v141
    %v381 = vpop.permute.xlu0 %380
    %384 = vset.pattern.permute.xlu0 0
    %385 = vperm.xlu0 %384, %v142
    %v386 = vpop.permute.xlu0 %385
    %389 = vset.pattern.permute.xlu0 0
    %390 = vperm.xlu0 %389, %v143
    %v391 = vpop.permute.xlu0 %390
    %394 = vset.pattern.permute.xlu0 0
    %395 = vperm.xlu0 %394, %v144
    %v396 = vpop.permute.xlu0 %395
    %399 = vset.pattern.permute.xlu0 0
    %400 = vperm.xlu0 %399, %v145
    %v401 = vpop.permute.xlu0 %400
    %404 = vset.pattern.permute.xlu0 0
    %405 = vperm.xlu0 %404, %v146
    %v406 = vpop.permute.xlu0 %405
    %409 = vset.pattern.permute.xlu0 0
    %410 = vperm.xlu0 %409, %v147
    %v411 = vpop.permute.xlu0 %410
    %414 = vset.pattern.permute.xlu0 0
    %415 = vperm.xlu0 %414, %v148
    %v416 = vpop.permute.xlu0 %415
    %419 = vset.pattern.permute.xlu0 0
    %420 = vperm.xlu0 %419, %v149
    %v421 = vpop.permute.xlu0 %420
    %424 = vset.pattern.permute.xlu0 0
    %425 = vperm.xlu0 %424, %v150
    %v426 = vpop.permute.xlu0 %425
    %429 = vset.pattern.permute.xlu0 0
    %430 = vperm.xlu0 %429, %v151
    %v431 = vpop.permute.xlu0 %430
    %434 = vset.pattern.permute.xlu0 0
    %435 = vperm.xlu0 %434, %v152
    %v436 = vpop.permute.xlu0 %435
    %439 = vset.pattern.permute.xlu0 0
    %440 = vperm.xlu0 %439, %v153
    %v441 = vpop.permute.xlu0 %440
    %444 = vset.pattern.permute.xlu0 0
    %445 = vperm.xlu0 %444, %v154
    %v446 = vpop.permute.xlu0 %445
    %449 = vset.pattern.permute.xlu0 0
    %450 = vperm.xlu0 %449, %v155
    %v451 = vpop.permute.xlu0 %450
    %454 = vset.pattern.permute.xlu0 0
    %455 = vperm.xlu0 %454, %v156
    %v456 = vpop.permute.xlu0 %455
    %459 = vset.pattern.permute.xlu0 0
    %460 = vperm.xlu0 %459, %v157
    %v461 = vpop.permute.xlu0 %460
    %464 = vset.pattern.permute.xlu0 0
    %465 = vperm.xlu0 %464, %v158
    %v466 = vpop.permute.xlu0 %465
    %469 = vset.pattern.permute.xlu0 0
    %470 = vperm.xlu0 %469, %v159
    %v471 = vpop.permute.xlu0 %470
    %474 = vset.pattern.permute.xlu0 0
    %475 = vperm.xlu0 %474, %v160
    %v476 = vpop.permute.xlu0 %475
    %479 = vset.pattern.permute.xlu0 0
    %480 = vperm.xlu0 %479, %v161
    %v481 = vpop.permute.xlu0 %480
    %484 = vset.pattern.permute.xlu0 0
    %485 = vperm.xlu0 %484, %v162
    %v486 = vpop.permute.xlu0 %485
    %489 = vset.pattern.permute.xlu0 0
    %490 = vperm.xlu0 %489, %v163
    %v491 = vpop.permute.xlu0 %490
    %494 = vset.pattern.permute.xlu0 0
    %495 = vperm.xlu0 %494, %v164
    %v496 = vpop.permute.xlu0 %495
    %499 = vset.pattern.permute.xlu0 0
    %500 = vperm.xlu0 %499, %v165
    %v501 = vpop.permute.xlu0 %500
    %504 = vset.pattern.permute.xlu0 0
    %505 = vperm.xlu0 %504, %v166
    %v506 = vpop.permute.xlu0 %505
    %509 = vset.pattern.permute.xlu0 0
    %510 = vperm.xlu0 %509, %v167
    %v511 = vpop.permute.xlu0 %510
    %514 = vset.pattern.permute.xlu0 0
    %515 = vperm.xlu0 %514, %v168
    %v516 = vpop.permute.xlu0 %515
    %519 = vset.pattern.permute.xlu0 0
    %520 = vperm.xlu0 %519, %v169
    %v521 = vpop.permute.xlu0 %520
    %524 = vset.pattern.permute.xlu0 0
    %525 = vperm.xlu0 %524, %v170
    %v526 = vpop.permute.xlu0 %525
    %529 = vset.pattern.permute.xlu0 0
    %530 = vperm.xlu0 %529, %v171
    %v531 = vpop.permute.xlu0 %530
    %534 = vset.pattern.permute.xlu0 0
    %535 = vperm.xlu0 %534, %v172
    %v536 = vpop.permute.xlu0 %535
    %539 = vset.pattern.permute.xlu0 0
    %540 = vperm.xlu0 %539, %v173
    %v541 = vpop.permute.xlu0 %540
    %544 = vset.pattern.permute.xlu0 0
    %545 = vperm.xlu0 %544, %v174
    %v546 = vpop.permute.xlu0 %545
    %549 = vset.pattern.permute.xlu0 0
    %550 = vperm.xlu0 %549, %v175
    %v551 = vpop.permute.xlu0 %550
    %554 = vset.pattern.permute.xlu0 0
    %555 = vperm.xlu0 %554, %v176
    %v556 = vpop.permute.xlu0 %555
    %559 = vset.pattern.permute.xlu0 0
    %560 = vperm.xlu0 %559, %v177
    %v561 = vpop.permute.xlu0 %560
    %564 = vset.pattern.permute.xlu0 0
    %565 = vperm.xlu0 %564, %v178
    %v566 = vpop.permute.xlu0 %565
    %569 = vset.pattern.permute.xlu0 0
    %570 = vperm.xlu0 %569, %v179
    %v571 = vpop.permute.xlu0 %570
    %574 = vset.pattern.permute.xlu0 0
    %575 = vperm.xlu0 %574, %v180
    %v576 = vpop.permute.xlu0 %575
    %579 = vset.pattern.permute.xlu0 0
    %580 = vperm.xlu0 %579, %v181
    %v581 = vpop.permute.xlu0 %580
    %584 = vset.pattern.permute.xlu0 0
    %585 = vperm.xlu0 %584, %v182
    %v586 = vpop.permute.xlu0 %585
    %589 = vset.pattern.permute.xlu0 0
    %590 = vperm.xlu0 %589, %v183
    %v591 = vpop.permute.xlu0 %590
    %594 = vset.pattern.permute.xlu0 0
    %595 = vperm.xlu0 %594, %v184
    %v596 = vpop.permute.xlu0 %595
    %599 = vset.pattern.permute.xlu0 0
    %600 = vperm.xlu0 %599, %v185
    %v601 = vpop.permute.xlu0 %600
    %604 = vset.pattern.permute.xlu0 0
    %605 = vperm.xlu0 %604, %v186
    %v606 = vpop.permute.xlu0 %605
    %609 = vset.pattern.permute.xlu0 0
    %610 = vperm.xlu0 %609, %v187
    %v611 = vpop.permute.xlu0 %610
    %614 = vset.pattern.permute.xlu0 0
    %615 = vperm.xlu0 %614, %v188
    %v616 = vpop.permute.xlu0 %615
    %619 = vset.pattern.permute.xlu0 0
    %620 = vperm.xlu0 %619, %v189
    %v621 = vpop.permute.xlu0 %620
    %624 = vset.pattern.permute.xlu0 0
    %625 = vperm.xlu0 %624, %v190
    %v626 = vpop.permute.xlu0 %625
    %629 = vset.pattern.permute.xlu0 0
    %630 = vperm.xlu0 %629, %v191
    %v631 = vpop.permute.xlu0 %630
    %634 = vset.pattern.permute.xlu0 0
    %635 = vperm.xlu0 %634, %v192
    %v636 = vpop.permute.xlu0 %635
    %639 = vset.pattern.permute.xlu0 0
    %640 = vperm.xlu0 %639, %v193
    %v641 = vpop.permute.xlu0 %640
    %644 = vset.pattern.permute.xlu0 0
    %645 = vperm.xlu0 %644, %v194
    %v646 = vpop.permute.xlu0 %645
    %649 = vset.pattern.permute.xlu0 0
    %650 = vperm.xlu0 %649, %v195
    %v651 = vpop.permute.xlu0 %650
    %654 = vset.pattern.permute.xlu0 0
    %655 = vperm.xlu0 %654, %v196
    %v656 = vpop.permute.xlu0 %655
    %659 = vset.pattern.permute.xlu0 0
    %660 = vperm.xlu0 %659, %v197
    %v661 = vpop.permute.xlu0 %660
    %664 = vset.pattern.permute.xlu0 0
    %665 = vperm.xlu0 %664, %v198
    %v666 = vpop.permute.xlu0 %665
    %669 = vset.pattern.permute.xlu0 0
    %670 = vperm.xlu0 %669, %v199
    %v671 = vpop.permute.xlu0 %670
    %674 = vset.pattern.permute.xlu0 0
    %675 = vperm.xlu0 %674, %v200
    %v676 = vpop.permute.xlu0 %675
    %679 = vset.pattern.permute.xlu0 0
    %680 = vperm.xlu0 %679, %v201
    %v681 = vpop.permute.xlu0 %680
    %684 = vset.pattern.permute.xlu0 0
    %685 = vperm.xlu0 %684, %v202
    %v686 = vpop.permute.xlu0 %685
    %689 = vset.pattern.permute.xlu0 0
    %690 = vperm.xlu0 %689, %v203
    %v691 = vpop.permute.xlu0 %690
    %694 = vset.pattern.permute.xlu0 0
    %695 = vperm.xlu0 %694, %v204
    %v696 = vpop.permute.xlu0 %695
    %699 = vset.pattern.permute.xlu0 0
    %700 = vperm.xlu0 %699, %v205
    %v701 = vpop.permute.xlu0 %700
    %704 = vset.pattern.permute.xlu0 0
    %705 = vperm.xlu0 %704, %v206
    %v706 = vpop.permute.xlu0 %705
    %709 = vset.pattern.permute.xlu0 0
    %710 = vperm.xlu0 %709, %v207
    %v711 = vpop.permute.xlu0 %710
    %714 = vset.pattern.permute.xlu0 0
    %715 = vperm.xlu0 %714, %v208
    %v716 = vpop.permute.xlu0 %715
    %719 = vset.pattern.permute.xlu0 0
    %720 = vperm.xlu0 %719, %v209
    %v721 = vpop.permute.xlu0 %720
    %724 = vset.pattern.permute.xlu0 0
    %725 = vperm.xlu0 %724, %v210
    %v726 = vpop.permute.xlu0 %725
    %729 = vset.pattern.permute.xlu0 0
    %730 = vperm.xlu0 %729, %v211
    %v731 = vpop.permute.xlu0 %730
    %734 = vset.pattern.permute.xlu0 0
    %735 = vperm.xlu0 %734, %v212
    %v736 = vpop.permute.xlu0 %735
    %739 = vset.pattern.permute.xlu0 0
    %740 = vperm.xlu0 %739, %v213
    %v741 = vpop.permute.xlu0 %740
    %744 = vset.pattern.permute.xlu0 0
    %745 = vperm.xlu0 %744, %v214
    %v746 = vpop.permute.xlu0 %745
    %749 = vset.pattern.permute.xlu0 0
    %750 = vperm.xlu0 %749, %v215
    %v751 = vpop.permute.xlu0 %750
    %754 = vset.pattern.permute.xlu0 0
    %755 = vperm.xlu0 %754, %v216
    %v756 = vpop.permute.xlu0 %755
    %759 = vset.pattern.permute.xlu0 0
    %760 = vperm.xlu0 %759, %v217
    %v761 = vpop.permute.xlu0 %760
    %764 = vset.pattern.permute.xlu0 0
    %765 = vperm.xlu0 %764, %v218
    %v766 = vpop.permute.xlu0 %765
    %769 = vset.pattern.permute.xlu0 0
    %770 = vperm.xlu0 %769, %v219
    %v771 = vpop.permute.xlu0 %770
    %774 = vset.pattern.permute.xlu0 0
    %775 = vperm.xlu0 %774, %v220
    %v776 = vpop.permute.xlu0 %775
    %779 = vset.pattern.permute.xlu0 0
    %780 = vperm.xlu0 %779, %v221
    %v781 = vpop.permute.xlu0 %780
    %784 = vset.pattern.permute.xlu0 0
    %785 = vperm.xlu0 %784, %v222
    %v786 = vpop.permute.xlu0 %785
    %789 = vset.pattern.permute.xlu0 0
    %790 = vperm.xlu0 %789, %v223
    %v791 = vpop.permute.xlu0 %790
    %794 = vset.pattern.permute.xlu0 0
    %795 = vperm.xlu0 %794, %v224
    %v796 = vpop.permute.xlu0 %795
    %799 = vset.pattern.permute.xlu0 0
    %800 = vperm.xlu0 %799, %v225
    %v801 = vpop.permute.xlu0 %800
    %804 = vset.pattern.permute.xlu0 0
    %805 = vperm.xlu0 %804, %v226
    %v806 = vpop.permute.xlu0 %805
    %809 = vset.pattern.permute.xlu0 0
    %810 = vperm.xlu0 %809, %v227
    %v811 = vpop.permute.xlu0 %810
    %814 = vset.pattern.permute.xlu0 0
    %815 = vperm.xlu0 %814, %v228
    %v816 = vpop.permute.xlu0 %815
    %819 = vset.pattern.permute.xlu0 0
    %820 = vperm.xlu0 %819, %v229
    %v821 = vpop.permute.xlu0 %820
    %824 = vset.pattern.permute.xlu0 0
    %825 = vperm.xlu0 %824, %v230
    %v826 = vpop.permute.xlu0 %825
    %829 = vset.pattern.permute.xlu0 0
    %830 = vperm.xlu0 %829, %v231
    %v831 = vpop.permute.xlu0 %830
    %834 = vset.pattern.permute.xlu0 0
    %835 = vperm.xlu0 %834, %v232
    %v836 = vpop.permute.xlu0 %835
    %839 = vset.pattern.permute.xlu0 0
    %840 = vperm.xlu0 %839, %v233
    %v841 = vpop.permute.xlu0 %840
    %844 = vset.pattern.permute.xlu0 0
    %845 = vperm.xlu0 %844, %v234
    %v846 = vpop.permute.xlu0 %845
    %849 = vset.pattern.permute.xlu0 0
    %850 = vperm.xlu0 %849, %v235
    %v851 = vpop.permute.xlu0 %850
    %854 = vset.pattern.permute.xlu0 0
    %855 = vperm.xlu0 %854, %v236
    %v856 = vpop.permute.xlu0 %855
    %859 = vset.pattern.permute.xlu0 0
    %860 = vperm.xlu0 %859, %v237
    %v861 = vpop.permute.xlu0 %860
    %864 = vset.pattern.permute.xlu0 0
    %865 = vperm.xlu0 %864, %v238
    %v866 = vpop.permute.xlu0 %865
    %869 = vset.pattern.permute.xlu0 0
    %870 = vperm.xlu0 %869, %v239
    %v871 = vpop.permute.xlu0 %870
    %874 = vset.pattern.permute.xlu0 0
    %875 = vperm.xlu0 %874, %v240
    %v876 = vpop.permute.xlu0 %875
    %879 = vset.pattern.permute.xlu0 0
    %880 = vperm.xlu0 %879, %v241
    %v881 = vpop.permute.xlu0 %880
    %884 = vset.pattern.permute.xlu0 0
    %885 = vperm.xlu0 %884, %v242
    %v886 = vpop.permute.xlu0 %885
    %v888 = vlaneseq
    %v889 = vshrl.u32 %v888, 7
    %v890 = vsub.s32 0, %v889
    %v891 = vrot.slane %v243, %v890
    %v892 = vlaneseq
    %v893 = vshrl.u32 %v892, 7
    %v894 = vsub.s32 0, %v893
    %v895 = vrot.slane %v244, %v894
    %v896 = vlaneseq
    %v897 = vshrl.u32 %v896, 7
    %v898 = vsub.s32 0, %v897
    %v899 = vrot.slane %v245, %v898
    %v900 = vlaneseq
    %v901 = vshrl.u32 %v900, 7
    %v902 = vsub.s32 0, %v901
    %v903 = vrot.slane %v246, %v902
    %v904 = vmul.f32 %v251, %v891
    %v905 = vmul.f32 %v251, %v895
    %v906 = vmul.f32 %v251, %v899
    %v907 = vmul.f32 %v251, %v903
    %v908 = vmul.f32 %v256, %v891
    %v909 = vmul.f32 %v256, %v895
    %v910 = vmul.f32 %v256, %v899
    %v911 = vmul.f32 %v256, %v903
    %v912 = vmul.f32 %v261, %v891
    %v913 = vmul.f32 %v261, %v895
    %v914 = vmul.f32 %v261, %v899
    %v915 = vmul.f32 %v261, %v903
    %v916 = vmul.f32 %v266, %v891
    %v917 = vmul.f32 %v266, %v895
    %v918 = vmul.f32 %v266, %v899
    %v919 = vmul.f32 %v266, %v903
    %v920 = vmul.f32 %v271, %v891
    %v921 = vmul.f32 %v271, %v895
    %v922 = vmul.f32 %v271, %v899
    %v923 = vmul.f32 %v271, %v903
    %v924 = vmul.f32 %v276, %v891
    %v925 = vmul.f32 %v276, %v895
    %v926 = vmul.f32 %v276, %v899
    %v927 = vmul.f32 %v276, %v903
    %v928 = vmul.f32 %v281, %v891
    %v929 = vmul.f32 %v281, %v895
    %v930 = vmul.f32 %v281, %v899
    %v931 = vmul.f32 %v281, %v903
    %v932 = vmul.f32 %v286, %v891
    %v933 = vmul.f32 %v286, %v895
    %v934 = vmul.f32 %v286, %v899
    %v935 = vmul.f32 %v286, %v903
    %v936 = vmul.f32 %v291, %v891
    %v937 = vmul.f32 %v291, %v895
    %v938 = vmul.f32 %v291, %v899
    %v939 = vmul.f32 %v291, %v903
    %v940 = vmul.f32 %v296, %v891
    %v941 = vmul.f32 %v296, %v895
    %v942 = vmul.f32 %v296, %v899
    %v943 = vmul.f32 %v296, %v903
    %v944 = vmul.f32 %v301, %v891
    %v945 = vmul.f32 %v301, %v895
    %v946 = vmul.f32 %v301, %v899
    %v947 = vmul.f32 %v301, %v903
    %v948 = vmul.f32 %v306, %v891
    %v949 = vmul.f32 %v306, %v895
    %v950 = vmul.f32 %v306, %v899
    %v951 = vmul.f32 %v306, %v903
    %v952 = vmul.f32 %v311, %v891
    %v953 = vmul.f32 %v311, %v895
    %v954 = vmul.f32 %v311, %v899
    %v955 = vmul.f32 %v311, %v903
    %v956 = vmul.f32 %v316, %v891
    %v957 = vmul.f32 %v316, %v895
    %v958 = vmul.f32 %v316, %v899
    %v959 = vmul.f32 %v316, %v903
    %v960 = vmul.f32 %v321, %v891
    %v961 = vmul.f32 %v321, %v895
    %v962 = vmul.f32 %v321, %v899
    %v963 = vmul.f32 %v321, %v903
    %v964 = vmul.f32 %v326, %v891
    %v965 = vmul.f32 %v326, %v895
    %v966 = vmul.f32 %v326, %v899
    %v967 = vmul.f32 %v326, %v903
    %v968 = vmul.f32 %v331, %v891
    %v969 = vmul.f32 %v331, %v895
    %v970 = vmul.f32 %v331, %v899
    %v971 = vmul.f32 %v331, %v903
    %v972 = vmul.f32 %v336, %v891
    %v973 = vmul.f32 %v336, %v895
    %v974 = vmul.f32 %v336, %v899
    %v975 = vmul.f32 %v336, %v903
    %v976 = vmul.f32 %v341, %v891
    %v977 = vmul.f32 %v341, %v895
    %v978 = vmul.f32 %v341, %v899
    %v979 = vmul.f32 %v341, %v903
    %v980 = vmul.f32 %v346, %v891
    %v981 = vmul.f32 %v346, %v895
    %v982 = vmul.f32 %v346, %v899
    %v983 = vmul.f32 %v346, %v903
    %v984 = vmul.f32 %v351, %v891
    %v985 = vmul.f32 %v351, %v895
    %v986 = vmul.f32 %v351, %v899
    %v987 = vmul.f32 %v351, %v903
    %v988 = vmul.f32 %v356, %v891
    %v989 = vmul.f32 %v356, %v895
    %v990 = vmul.f32 %v356, %v899
    %v991 = vmul.f32 %v356, %v903
    %v992 = vmul.f32 %v361, %v891
    %v993 = vmul.f32 %v361, %v895
    %v994 = vmul.f32 %v361, %v899
    %v995 = vmul.f32 %v361, %v903
    %v996 = vmul.f32 %v366, %v891
    %v997 = vmul.f32 %v366, %v895
    %v998 = vmul.f32 %v366, %v899
    %v999 = vmul.f32 %v366, %v903
    %v1000 = vmul.f32 %v371, %v891
    %v1001 = vmul.f32 %v371, %v895
    %v1002 = vmul.f32 %v371, %v899
    %v1003 = vmul.f32 %v371, %v903
    %v1004 = vmul.f32 %v376, %v891
    %v1005 = vmul.f32 %v376, %v895
    %v1006 = vmul.f32 %v376, %v899
    %v1007 = vmul.f32 %v376, %v903
    %v1008 = vmul.f32 %v381, %v891
    %v1009 = vmul.f32 %v381, %v895
    %v1010 = vmul.f32 %v381, %v899
    %v1011 = vmul.f32 %v381, %v903
    %v1012 = vmul.f32 %v386, %v891
    %v1013 = vmul.f32 %v386, %v895
    %v1014 = vmul.f32 %v386, %v899
    %v1015 = vmul.f32 %v386, %v903
    %v1016 = vmul.f32 %v391, %v891
    %v1017 = vmul.f32 %v391, %v895
    %v1018 = vmul.f32 %v391, %v899
    %v1019 = vmul.f32 %v391, %v903
    %v1020 = vmul.f32 %v396, %v891
    %v1021 = vmul.f32 %v396, %v895
    %v1022 = vmul.f32 %v396, %v899
    %v1023 = vmul.f32 %v396, %v903
    %v1024 = vmul.f32 %v401, %v891
    %v1025 = vmul.f32 %v401, %v895
    %v1026 = vmul.f32 %v401, %v899
    %v1027 = vmul.f32 %v401, %v903
    %v1028 = vmul.f32 %v406, %v891
    %v1029 = vmul.f32 %v406, %v895
    %v1030 = vmul.f32 %v406, %v899
    %v1031 = vmul.f32 %v406, %v903
    %v1032 = vmul.f32 %v411, %v891
    %v1033 = vmul.f32 %v411, %v895
    %v1034 = vmul.f32 %v411, %v899
    %v1035 = vmul.f32 %v411, %v903
    %v1036 = vmul.f32 %v416, %v891
    %v1037 = vmul.f32 %v416, %v895
    %v1038 = vmul.f32 %v416, %v899
    %v1039 = vmul.f32 %v416, %v903
    %v1040 = vmul.f32 %v421, %v891
    %v1041 = vmul.f32 %v421, %v895
    %v1042 = vmul.f32 %v421, %v899
    %v1043 = vmul.f32 %v421, %v903
    %v1044 = vmul.f32 %v426, %v891
    %v1045 = vmul.f32 %v426, %v895
    %v1046 = vmul.f32 %v426, %v899
    %v1047 = vmul.f32 %v426, %v903
    %v1048 = vmul.f32 %v431, %v891
    %v1049 = vmul.f32 %v431, %v895
    %v1050 = vmul.f32 %v431, %v899
    %v1051 = vmul.f32 %v431, %v903
    %v1052 = vmul.f32 %v436, %v891
    %v1053 = vmul.f32 %v436, %v895
    %v1054 = vmul.f32 %v436, %v899
    %v1055 = vmul.f32 %v436, %v903
    %v1056 = vmul.f32 %v441, %v891
    %v1057 = vmul.f32 %v441, %v895
    %v1058 = vmul.f32 %v441, %v899
    %v1059 = vmul.f32 %v441, %v903
    %v1060 = vmul.f32 %v446, %v891
    %v1061 = vmul.f32 %v446, %v895
    %v1062 = vmul.f32 %v446, %v899
    %v1063 = vmul.f32 %v446, %v903
    %v1064 = vmul.f32 %v451, %v891
    %v1065 = vmul.f32 %v451, %v895
    %v1066 = vmul.f32 %v451, %v899
    %v1067 = vmul.f32 %v451, %v903
    %v1068 = vmul.f32 %v456, %v891
    %v1069 = vmul.f32 %v456, %v895
    %v1070 = vmul.f32 %v456, %v899
    %v1071 = vmul.f32 %v456, %v903
    %v1072 = vmul.f32 %v461, %v891
    %v1073 = vmul.f32 %v461, %v895
    %v1074 = vmul.f32 %v461, %v899
    %v1075 = vmul.f32 %v461, %v903
    %v1076 = vmul.f32 %v466, %v891
    %v1077 = vmul.f32 %v466, %v895
    %v1078 = vmul.f32 %v466, %v899
    %v1079 = vmul.f32 %v466, %v903
    %v1080 = vmul.f32 %v471, %v891
    %v1081 = vmul.f32 %v471, %v895
    %v1082 = vmul.f32 %v471, %v899
    %v1083 = vmul.f32 %v471, %v903
    %v1084 = vmul.f32 %v476, %v891
    %v1085 = vmul.f32 %v476, %v895
    %v1086 = vmul.f32 %v476, %v899
    %v1087 = vmul.f32 %v476, %v903
    %v1088 = vmul.f32 %v481, %v891
    %v1089 = vmul.f32 %v481, %v895
    %v1090 = vmul.f32 %v481, %v899
    %v1091 = vmul.f32 %v481, %v903
    %v1092 = vmul.f32 %v486, %v891
    %v1093 = vmul.f32 %v486, %v895
    %v1094 = vmul.f32 %v486, %v899
    %v1095 = vmul.f32 %v486, %v903
    %v1096 = vmul.f32 %v491, %v891
    %v1097 = vmul.f32 %v491, %v895
    %v1098 = vmul.f32 %v491, %v899
    %v1099 = vmul.f32 %v491, %v903
    %v1100 = vmul.f32 %v496, %v891
    %v1101 = vmul.f32 %v496, %v895
    %v1102 = vmul.f32 %v496, %v899
    %v1103 = vmul.f32 %v496, %v903
    %v1104 = vmul.f32 %v501, %v891
    %v1105 = vmul.f32 %v501, %v895
    %v1106 = vmul.f32 %v501, %v899
    %v1107 = vmul.f32 %v501, %v903
    %v1108 = vmul.f32 %v506, %v891
    %v1109 = vmul.f32 %v506, %v895
    %v1110 = vmul.f32 %v506, %v899
    %v1111 = vmul.f32 %v506, %v903
    %v1112 = vmul.f32 %v511, %v891
    %v1113 = vmul.f32 %v511, %v895
    %v1114 = vmul.f32 %v511, %v899
    %v1115 = vmul.f32 %v511, %v903
    %v1116 = vmul.f32 %v516, %v891
    %v1117 = vmul.f32 %v516, %v895
    %v1118 = vmul.f32 %v516, %v899
    %v1119 = vmul.f32 %v516, %v903
    %v1120 = vmul.f32 %v521, %v891
    %v1121 = vmul.f32 %v521, %v895
    %v1122 = vmul.f32 %v521, %v899
    %v1123 = vmul.f32 %v521, %v903
    %v1124 = vmul.f32 %v526, %v891
    %v1125 = vmul.f32 %v526, %v895
    %v1126 = vmul.f32 %v526, %v899
    %v1127 = vmul.f32 %v526, %v903
    %v1128 = vmul.f32 %v531, %v891
    %v1129 = vmul.f32 %v531, %v895
    %v1130 = vmul.f32 %v531, %v899
    %v1131 = vmul.f32 %v531, %v903
    %v1132 = vmul.f32 %v536, %v891
    %v1133 = vmul.f32 %v536, %v895
    %v1134 = vmul.f32 %v536, %v899
    %v1135 = vmul.f32 %v536, %v903
    %v1136 = vmul.f32 %v541, %v891
    %v1137 = vmul.f32 %v541, %v895
    %v1138 = vmul.f32 %v541, %v899
    %v1139 = vmul.f32 %v541, %v903
    %v1140 = vmul.f32 %v546, %v891
    %v1141 = vmul.f32 %v546, %v895
    %v1142 = vmul.f32 %v546, %v899
    %v1143 = vmul.f32 %v546, %v903
    %v1144 = vmul.f32 %v551, %v891
    %v1145 = vmul.f32 %v551, %v895
    %v1146 = vmul.f32 %v551, %v899
    %v1147 = vmul.f32 %v551, %v903
    %v1148 = vmul.f32 %v556, %v891
    %v1149 = vmul.f32 %v556, %v895
    %v1150 = vmul.f32 %v556, %v899
    %v1151 = vmul.f32 %v556, %v903
    %v1152 = vmul.f32 %v561, %v891
    %v1153 = vmul.f32 %v561, %v895
    %v1154 = vmul.f32 %v561, %v899
    %v1155 = vmul.f32 %v561, %v903
    %v1156 = vmul.f32 %v566, %v891
    %v1157 = vmul.f32 %v566, %v895
    %v1158 = vmul.f32 %v566, %v899
    %v1159 = vmul.f32 %v566, %v903
    %v1160 = vmul.f32 %v571, %v891
    %v1161 = vmul.f32 %v571, %v895
    %v1162 = vmul.f32 %v571, %v899
    %v1163 = vmul.f32 %v571, %v903
    %v1164 = vmul.f32 %v576, %v891
    %v1165 = vmul.f32 %v576, %v895
    %v1166 = vmul.f32 %v576, %v899
    %v1167 = vmul.f32 %v576, %v903
    %v1168 = vmul.f32 %v581, %v891
    %v1169 = vmul.f32 %v581, %v895
    %v1170 = vmul.f32 %v581, %v899
    %v1171 = vmul.f32 %v581, %v903
    %v1172 = vmul.f32 %v586, %v891
    %v1173 = vmul.f32 %v586, %v895
    %v1174 = vmul.f32 %v586, %v899
    %v1175 = vmul.f32 %v586, %v903
    %v1176 = vmul.f32 %v591, %v891
    %v1177 = vmul.f32 %v591, %v895
    %v1178 = vmul.f32 %v591, %v899
    %v1179 = vmul.f32 %v591, %v903
    %v1180 = vmul.f32 %v596, %v891
    %v1181 = vmul.f32 %v596, %v895
    %v1182 = vmul.f32 %v596, %v899
    %v1183 = vmul.f32 %v596, %v903
    %v1184 = vmul.f32 %v601, %v891
    %v1185 = vmul.f32 %v601, %v895
    %v1186 = vmul.f32 %v601, %v899
    %v1187 = vmul.f32 %v601, %v903
    %v1188 = vmul.f32 %v606, %v891
    %v1189 = vmul.f32 %v606, %v895
    %v1190 = vmul.f32 %v606, %v899
    %v1191 = vmul.f32 %v606, %v903
    %v1192 = vmul.f32 %v611, %v891
    %v1193 = vmul.f32 %v611, %v895
    %v1194 = vmul.f32 %v611, %v899
    %v1195 = vmul.f32 %v611, %v903
    %v1196 = vmul.f32 %v616, %v891
    %v1197 = vmul.f32 %v616, %v895
    %v1198 = vmul.f32 %v616, %v899
    %v1199 = vmul.f32 %v616, %v903
    %v1200 = vmul.f32 %v621, %v891
    %v1201 = vmul.f32 %v621, %v895
    %v1202 = vmul.f32 %v621, %v899
    %v1203 = vmul.f32 %v621, %v903
    %v1204 = vmul.f32 %v626, %v891
    %v1205 = vmul.f32 %v626, %v895
    %v1206 = vmul.f32 %v626, %v899
    %v1207 = vmul.f32 %v626, %v903
    %v1208 = vmul.f32 %v631, %v891
    %v1209 = vmul.f32 %v631, %v895
    %v1210 = vmul.f32 %v631, %v899
    %v1211 = vmul.f32 %v631, %v903
    %v1212 = vmul.f32 %v636, %v891
    %v1213 = vmul.f32 %v636, %v895
    %v1214 = vmul.f32 %v636, %v899
    %v1215 = vmul.f32 %v636, %v903
    %v1216 = vmul.f32 %v641, %v891
    %v1217 = vmul.f32 %v641, %v895
    %v1218 = vmul.f32 %v641, %v899
    %v1219 = vmul.f32 %v641, %v903
    %v1220 = vmul.f32 %v646, %v891
    %v1221 = vmul.f32 %v646, %v895
    %v1222 = vmul.f32 %v646, %v899
    %v1223 = vmul.f32 %v646, %v903
    %v1224 = vmul.f32 %v651, %v891
    %v1225 = vmul.f32 %v651, %v895
    %v1226 = vmul.f32 %v651, %v899
    %v1227 = vmul.f32 %v651, %v903
    %v1228 = vmul.f32 %v656, %v891
    %v1229 = vmul.f32 %v656, %v895
    %v1230 = vmul.f32 %v656, %v899
    %v1231 = vmul.f32 %v656, %v903
    %v1232 = vmul.f32 %v661, %v891
    %v1233 = vmul.f32 %v661, %v895
    %v1234 = vmul.f32 %v661, %v899
    %v1235 = vmul.f32 %v661, %v903
    %v1236 = vmul.f32 %v666, %v891
    %v1237 = vmul.f32 %v666, %v895
    %v1238 = vmul.f32 %v666, %v899
    %v1239 = vmul.f32 %v666, %v903
    %v1240 = vmul.f32 %v671, %v891
    %v1241 = vmul.f32 %v671, %v895
    %v1242 = vmul.f32 %v671, %v899
    %v1243 = vmul.f32 %v671, %v903
    %v1244 = vmul.f32 %v676, %v891
    %v1245 = vmul.f32 %v676, %v895
    %v1246 = vmul.f32 %v676, %v899
    %v1247 = vmul.f32 %v676, %v903
    %v1248 = vmul.f32 %v681, %v891
    %v1249 = vmul.f32 %v681, %v895
    %v1250 = vmul.f32 %v681, %v899
    %v1251 = vmul.f32 %v681, %v903
    %v1252 = vmul.f32 %v686, %v891
    %v1253 = vmul.f32 %v686, %v895
    %v1254 = vmul.f32 %v686, %v899
    %v1255 = vmul.f32 %v686, %v903
    %v1256 = vmul.f32 %v691, %v891
    %v1257 = vmul.f32 %v691, %v895
    %v1258 = vmul.f32 %v691, %v899
    %v1259 = vmul.f32 %v691, %v903
    %v1260 = vmul.f32 %v696, %v891
    %v1261 = vmul.f32 %v696, %v895
    %v1262 = vmul.f32 %v696, %v899
    %v1263 = vmul.f32 %v696, %v903
    %v1264 = vmul.f32 %v701, %v891
    %v1265 = vmul.f32 %v701, %v895
    %v1266 = vmul.f32 %v701, %v899
    %v1267 = vmul.f32 %v701, %v903
    %v1268 = vmul.f32 %v706, %v891
    %v1269 = vmul.f32 %v706, %v895
    %v1270 = vmul.f32 %v706, %v899
    %v1271 = vmul.f32 %v706, %v903
    %v1272 = vmul.f32 %v711, %v891
    %v1273 = vmul.f32 %v711, %v895
    %v1274 = vmul.f32 %v711, %v899
    %v1275 = vmul.f32 %v711, %v903
    %v1276 = vmul.f32 %v716, %v891
    %v1277 = vmul.f32 %v716, %v895
    %v1278 = vmul.f32 %v716, %v899
    %v1279 = vmul.f32 %v716, %v903
    %v1280 = vmul.f32 %v721, %v891
    %v1281 = vmul.f32 %v721, %v895
    %v1282 = vmul.f32 %v721, %v899
    %v1283 = vmul.f32 %v721, %v903
    %v1284 = vmul.f32 %v726, %v891
    %v1285 = vmul.f32 %v726, %v895
    %v1286 = vmul.f32 %v726, %v899
    %v1287 = vmul.f32 %v726, %v903
    %v1288 = vmul.f32 %v731, %v891
    %v1289 = vmul.f32 %v731, %v895
    %v1290 = vmul.f32 %v731, %v899
    %v1291 = vmul.f32 %v731, %v903
    %v1292 = vmul.f32 %v736, %v891
    %v1293 = vmul.f32 %v736, %v895
    %v1294 = vmul.f32 %v736, %v899
    %v1295 = vmul.f32 %v736, %v903
    %v1296 = vmul.f32 %v741, %v891
    %v1297 = vmul.f32 %v741, %v895
    %v1298 = vmul.f32 %v741, %v899
    %v1299 = vmul.f32 %v741, %v903
    %v1300 = vmul.f32 %v746, %v891
    %v1301 = vmul.f32 %v746, %v895
    %v1302 = vmul.f32 %v746, %v899
    %v1303 = vmul.f32 %v746, %v903
    %v1304 = vmul.f32 %v751, %v891
    %v1305 = vmul.f32 %v751, %v895
    %v1306 = vmul.f32 %v751, %v899
    %v1307 = vmul.f32 %v751, %v903
    %v1308 = vmul.f32 %v756, %v891
    %v1309 = vmul.f32 %v756, %v895
    %v1310 = vmul.f32 %v756, %v899
    %v1311 = vmul.f32 %v756, %v903
    %v1312 = vmul.f32 %v761, %v891
    %v1313 = vmul.f32 %v761, %v895
    %v1314 = vmul.f32 %v761, %v899
    %v1315 = vmul.f32 %v761, %v903
    %v1316 = vmul.f32 %v766, %v891
    %v1317 = vmul.f32 %v766, %v895
    %v1318 = vmul.f32 %v766, %v899
    %v1319 = vmul.f32 %v766, %v903
    %v1320 = vmul.f32 %v771, %v891
    %v1321 = vmul.f32 %v771, %v895
    %v1322 = vmul.f32 %v771, %v899
    %v1323 = vmul.f32 %v771, %v903
    %v1324 = vmul.f32 %v776, %v891
    %v1325 = vmul.f32 %v776, %v895
    %v1326 = vmul.f32 %v776, %v899
    %v1327 = vmul.f32 %v776, %v903
    %v1328 = vmul.f32 %v781, %v891
    %v1329 = vmul.f32 %v781, %v895
    %v1330 = vmul.f32 %v781, %v899
    %v1331 = vmul.f32 %v781, %v903
    %v1332 = vmul.f32 %v786, %v891
    %v1333 = vmul.f32 %v786, %v895
    %v1334 = vmul.f32 %v786, %v899
    %v1335 = vmul.f32 %v786, %v903
    %v1336 = vmul.f32 %v791, %v891
    %v1337 = vmul.f32 %v791, %v895
    %v1338 = vmul.f32 %v791, %v899
    %v1339 = vmul.f32 %v791, %v903
    %v1340 = vmul.f32 %v796, %v891
    %v1341 = vmul.f32 %v796, %v895
    %v1342 = vmul.f32 %v796, %v899
    %v1343 = vmul.f32 %v796, %v903
    %v1344 = vmul.f32 %v801, %v891
    %v1345 = vmul.f32 %v801, %v895
    %v1346 = vmul.f32 %v801, %v899
    %v1347 = vmul.f32 %v801, %v903
    %v1348 = vmul.f32 %v806, %v891
    %v1349 = vmul.f32 %v806, %v895
    %v1350 = vmul.f32 %v806, %v899
    %v1351 = vmul.f32 %v806, %v903
    %v1352 = vmul.f32 %v811, %v891
    %v1353 = vmul.f32 %v811, %v895
    %v1354 = vmul.f32 %v811, %v899
    %v1355 = vmul.f32 %v811, %v903
    %v1356 = vmul.f32 %v816, %v891
    %v1357 = vmul.f32 %v816, %v895
    %v1358 = vmul.f32 %v816, %v899
    %v1359 = vmul.f32 %v816, %v903
    %v1360 = vmul.f32 %v821, %v891
    %v1361 = vmul.f32 %v821, %v895
    %v1362 = vmul.f32 %v821, %v899
    %v1363 = vmul.f32 %v821, %v903
    %v1364 = vmul.f32 %v826, %v891
    %v1365 = vmul.f32 %v826, %v895
    %v1366 = vmul.f32 %v826, %v899
    %v1367 = vmul.f32 %v826, %v903
    %v1368 = vmul.f32 %v831, %v891
    %v1369 = vmul.f32 %v831, %v895
    %v1370 = vmul.f32 %v831, %v899
    %v1371 = vmul.f32 %v831, %v903
    %v1372 = vmul.f32 %v836, %v891
    %v1373 = vmul.f32 %v836, %v895
    %v1374 = vmul.f32 %v836, %v899
    %v1375 = vmul.f32 %v836, %v903
    %v1376 = vmul.f32 %v841, %v891
    %v1377 = vmul.f32 %v841, %v895
    %v1378 = vmul.f32 %v841, %v899
    %v1379 = vmul.f32 %v841, %v903
    %v1380 = vmul.f32 %v846, %v891
    %v1381 = vmul.f32 %v846, %v895
    %v1382 = vmul.f32 %v846, %v899
    %v1383 = vmul.f32 %v846, %v903
    %v1384 = vmul.f32 %v851, %v891
    %v1385 = vmul.f32 %v851, %v895
    %v1386 = vmul.f32 %v851, %v899
    %v1387 = vmul.f32 %v851, %v903
    %v1388 = vmul.f32 %v856, %v891
    %v1389 = vmul.f32 %v856, %v895
    %v1390 = vmul.f32 %v856, %v899
    %v1391 = vmul.f32 %v856, %v903
    %v1392 = vmul.f32 %v861, %v891
    %v1393 = vmul.f32 %v861, %v895
    %v1394 = vmul.f32 %v861, %v899
    %v1395 = vmul.f32 %v861, %v903
    %v1396 = vmul.f32 %v866, %v891
    %v1397 = vmul.f32 %v866, %v895
    %v1398 = vmul.f32 %v866, %v899
    %v1399 = vmul.f32 %v866, %v903
    %v1400 = vmul.f32 %v871, %v891
    %v1401 = vmul.f32 %v871, %v895
    %v1402 = vmul.f32 %v871, %v899
    %v1403 = vmul.f32 %v871, %v903
    %v1404 = vmul.f32 %v876, %v891
    %v1405 = vmul.f32 %v876, %v895
    %v1406 = vmul.f32 %v876, %v899
    %v1407 = vmul.f32 %v876, %v903
    %v1408 = vmul.f32 %v881, %v891
    %v1409 = vmul.f32 %v881, %v895
    %v1410 = vmul.f32 %v881, %v899
    %v1411 = vmul.f32 %v881, %v903
    %v1412 = vmul.f32 %v886, %v891
    %v1413 = vmul.f32 %v886, %v895
    %v1414 = vmul.f32 %v886, %v899
    %v1415 = vmul.f32 %v886, %v903
    %v1417 = vlaneseq
    %v1418 = vshrl.u32 %v1417, 7
    %v1419 = vsub.s32 0, %v1418
    %v1420 = vrot.slane %v247, %v1419
    %v1421 = vlaneseq
    %v1422 = vshrl.u32 %v1421, 7
    %v1423 = vsub.s32 1, %v1422
    %v1424 = vrot.slane %v247, %v1423
    %v1425 = vlaneseq
    %v1426 = vshrl.u32 %v1425, 7
    %v1427 = vsub.s32 2, %v1426
    %v1428 = vrot.slane %v247, %v1427
    %v1429 = vlaneseq
    %v1430 = vshrl.u32 %v1429, 7
    %v1431 = vsub.s32 3, %v1430
    %v1432 = vrot.slane %v247, %v1431
    %v1437 = vadd.f32 %v1420, %v904
    %v1438 = vadd.f32 %v1424, %v905
    %v1439 = vadd.f32 %v1428, %v906
    %v1440 = vadd.f32 %v1432, %v907
    %v1441 = vadd.f32 %v1420, %v908
    %v1442 = vadd.f32 %v1424, %v909
    %v1443 = vadd.f32 %v1428, %v910
    %v1444 = vadd.f32 %v1432, %v911
    %v1445 = vadd.f32 %v1420, %v912
    %v1446 = vadd.f32 %v1424, %v913
    %v1447 = vadd.f32 %v1428, %v914
    %v1448 = vadd.f32 %v1432, %v915
    %v1449 = vadd.f32 %v1420, %v916
    %v1450 = vadd.f32 %v1424, %v917
    %v1451 = vadd.f32 %v1428, %v918
    %v1452 = vadd.f32 %v1432, %v919
    %v1453 = vadd.f32 %v1420, %v920
    %v1454 = vadd.f32 %v1424, %v921
    %v1455 = vadd.f32 %v1428, %v922
    %v1456 = vadd.f32 %v1432, %v923
    %v1457 = vadd.f32 %v1420, %v924
    %v1458 = vadd.f32 %v1424, %v925
    %v1459 = vadd.f32 %v1428, %v926
    %v1460 = vadd.f32 %v1432, %v927
    %v1461 = vadd.f32 %v1420, %v928
    %v1462 = vadd.f32 %v1424, %v929
    %v1463 = vadd.f32 %v1428, %v930
    %v1464 = vadd.f32 %v1432, %v931
    %v1465 = vadd.f32 %v1420, %v932
    %v1466 = vadd.f32 %v1424, %v933
    %v1467 = vadd.f32 %v1428, %v934
    %v1468 = vadd.f32 %v1432, %v935
    %v1469 = vadd.f32 %v1420, %v936
    %v1470 = vadd.f32 %v1424, %v937
    %v1471 = vadd.f32 %v1428, %v938
    %v1472 = vadd.f32 %v1432, %v939
    %v1473 = vadd.f32 %v1420, %v940
    %v1474 = vadd.f32 %v1424, %v941
    %v1475 = vadd.f32 %v1428, %v942
    %v1476 = vadd.f32 %v1432, %v943
    %v1477 = vadd.f32 %v1420, %v944
    %v1478 = vadd.f32 %v1424, %v945
    %v1479 = vadd.f32 %v1428, %v946
    %v1480 = vadd.f32 %v1432, %v947
    %v1481 = vadd.f32 %v1420, %v948
    %v1482 = vadd.f32 %v1424, %v949
    %v1483 = vadd.f32 %v1428, %v950
    %v1484 = vadd.f32 %v1432, %v951
    %v1485 = vadd.f32 %v1420, %v952
    %v1486 = vadd.f32 %v1424, %v953
    %v1487 = vadd.f32 %v1428, %v954
    %v1488 = vadd.f32 %v1432, %v955
    %v1489 = vadd.f32 %v1420, %v956
    %v1490 = vadd.f32 %v1424, %v957
    %v1491 = vadd.f32 %v1428, %v958
    %v1492 = vadd.f32 %v1432, %v959
    %v1493 = vadd.f32 %v1420, %v960
    %v1494 = vadd.f32 %v1424, %v961
    %v1495 = vadd.f32 %v1428, %v962
    %v1496 = vadd.f32 %v1432, %v963
    %v1497 = vadd.f32 %v1420, %v964
    %v1498 = vadd.f32 %v1424, %v965
    %v1499 = vadd.f32 %v1428, %v966
    %v1500 = vadd.f32 %v1432, %v967
    %v1501 = vadd.f32 %v1420, %v968
    %v1502 = vadd.f32 %v1424, %v969
    %v1503 = vadd.f32 %v1428, %v970
    %v1504 = vadd.f32 %v1432, %v971
    %v1505 = vadd.f32 %v1420, %v972
    %v1506 = vadd.f32 %v1424, %v973
    %v1507 = vadd.f32 %v1428, %v974
    %v1508 = vadd.f32 %v1432, %v975
    %v1509 = vadd.f32 %v1420, %v976
    %v1510 = vadd.f32 %v1424, %v977
    %v1511 = vadd.f32 %v1428, %v978
    %v1512 = vadd.f32 %v1432, %v979
    %v1513 = vadd.f32 %v1420, %v980
    %v1514 = vadd.f32 %v1424, %v981
    %v1515 = vadd.f32 %v1428, %v982
    %v1516 = vadd.f32 %v1432, %v983
    %v1517 = vadd.f32 %v1420, %v984
    %v1518 = vadd.f32 %v1424, %v985
    %v1519 = vadd.f32 %v1428, %v986
    %v1520 = vadd.f32 %v1432, %v987
    %v1521 = vadd.f32 %v1420, %v988
    %v1522 = vadd.f32 %v1424, %v989
    %v1523 = vadd.f32 %v1428, %v990
    %v1524 = vadd.f32 %v1432, %v991
    %v1525 = vadd.f32 %v1420, %v992
    %v1526 = vadd.f32 %v1424, %v993
    %v1527 = vadd.f32 %v1428, %v994
    %v1528 = vadd.f32 %v1432, %v995
    %v1529 = vadd.f32 %v1420, %v996
    %v1530 = vadd.f32 %v1424, %v997
    %v1531 = vadd.f32 %v1428, %v998
    %v1532 = vadd.f32 %v1432, %v999
    %v1533 = vadd.f32 %v1420, %v1000
    %v1534 = vadd.f32 %v1424, %v1001
    %v1535 = vadd.f32 %v1428, %v1002
    %v1536 = vadd.f32 %v1432, %v1003
    %v1537 = vadd.f32 %v1420, %v1004
    %v1538 = vadd.f32 %v1424, %v1005
    %v1539 = vadd.f32 %v1428, %v1006
    %v1540 = vadd.f32 %v1432, %v1007
    %v1541 = vadd.f32 %v1420, %v1008
    %v1542 = vadd.f32 %v1424, %v1009
    %v1543 = vadd.f32 %v1428, %v1010
    %v1544 = vadd.f32 %v1432, %v1011
    %v1545 = vadd.f32 %v1420, %v1012
    %v1546 = vadd.f32 %v1424, %v1013
    %v1547 = vadd.f32 %v1428, %v1014
    %v1548 = vadd.f32 %v1432, %v1015
    %v1549 = vadd.f32 %v1420, %v1016
    %v1550 = vadd.f32 %v1424, %v1017
    %v1551 = vadd.f32 %v1428, %v1018
    %v1552 = vadd.f32 %v1432, %v1019
    %v1553 = vadd.f32 %v1420, %v1020
    %v1554 = vadd.f32 %v1424, %v1021
    %v1555 = vadd.f32 %v1428, %v1022
    %v1556 = vadd.f32 %v1432, %v1023
    %v1557 = vadd.f32 %v1420, %v1024
    %v1558 = vadd.f32 %v1424, %v1025
    %v1559 = vadd.f32 %v1428, %v1026
    %v1560 = vadd.f32 %v1432, %v1027
    %v1561 = vadd.f32 %v1420, %v1028
    %v1562 = vadd.f32 %v1424, %v1029
    %v1563 = vadd.f32 %v1428, %v1030
    %v1564 = vadd.f32 %v1432, %v1031
    %v1565 = vadd.f32 %v1420, %v1032
    %v1566 = vadd.f32 %v1424, %v1033
    %v1567 = vadd.f32 %v1428, %v1034
    %v1568 = vadd.f32 %v1432, %v1035
    %v1569 = vadd.f32 %v1420, %v1036
    %v1570 = vadd.f32 %v1424, %v1037
    %v1571 = vadd.f32 %v1428, %v1038
    %v1572 = vadd.f32 %v1432, %v1039
    %v1573 = vadd.f32 %v1420, %v1040
    %v1574 = vadd.f32 %v1424, %v1041
    %v1575 = vadd.f32 %v1428, %v1042
    %v1576 = vadd.f32 %v1432, %v1043
    %v1577 = vadd.f32 %v1420, %v1044
    %v1578 = vadd.f32 %v1424, %v1045
    %v1579 = vadd.f32 %v1428, %v1046
    %v1580 = vadd.f32 %v1432, %v1047
    %v1581 = vadd.f32 %v1420, %v1048
    %v1582 = vadd.f32 %v1424, %v1049
    %v1583 = vadd.f32 %v1428, %v1050
    %v1584 = vadd.f32 %v1432, %v1051
    %v1585 = vadd.f32 %v1420, %v1052
    %v1586 = vadd.f32 %v1424, %v1053
    %v1587 = vadd.f32 %v1428, %v1054
    %v1588 = vadd.f32 %v1432, %v1055
    %v1589 = vadd.f32 %v1420, %v1056
    %v1590 = vadd.f32 %v1424, %v1057
    %v1591 = vadd.f32 %v1428, %v1058
    %v1592 = vadd.f32 %v1432, %v1059
    %v1593 = vadd.f32 %v1420, %v1060
    %v1594 = vadd.f32 %v1424, %v1061
    %v1595 = vadd.f32 %v1428, %v1062
    %v1596 = vadd.f32 %v1432, %v1063
    %v1597 = vadd.f32 %v1420, %v1064
    %v1598 = vadd.f32 %v1424, %v1065
    %v1599 = vadd.f32 %v1428, %v1066
    %v1600 = vadd.f32 %v1432, %v1067
    %v1601 = vadd.f32 %v1420, %v1068
    %v1602 = vadd.f32 %v1424, %v1069
    %v1603 = vadd.f32 %v1428, %v1070
    %v1604 = vadd.f32 %v1432, %v1071
    %v1605 = vadd.f32 %v1420, %v1072
    %v1606 = vadd.f32 %v1424, %v1073
    %v1607 = vadd.f32 %v1428, %v1074
    %v1608 = vadd.f32 %v1432, %v1075
    %v1609 = vadd.f32 %v1420, %v1076
    %v1610 = vadd.f32 %v1424, %v1077
    %v1611 = vadd.f32 %v1428, %v1078
    %v1612 = vadd.f32 %v1432, %v1079
    %v1613 = vadd.f32 %v1420, %v1080
    %v1614 = vadd.f32 %v1424, %v1081
    %v1615 = vadd.f32 %v1428, %v1082
    %v1616 = vadd.f32 %v1432, %v1083
    %v1617 = vadd.f32 %v1420, %v1084
    %v1618 = vadd.f32 %v1424, %v1085
    %v1619 = vadd.f32 %v1428, %v1086
    %v1620 = vadd.f32 %v1432, %v1087
    %v1621 = vadd.f32 %v1420, %v1088
    %v1622 = vadd.f32 %v1424, %v1089
    %v1623 = vadd.f32 %v1428, %v1090
    %v1624 = vadd.f32 %v1432, %v1091
    %v1625 = vadd.f32 %v1420, %v1092
    %v1626 = vadd.f32 %v1424, %v1093
    %v1627 = vadd.f32 %v1428, %v1094
    %v1628 = vadd.f32 %v1432, %v1095
    %v1629 = vadd.f32 %v1420, %v1096
    %v1630 = vadd.f32 %v1424, %v1097
    %v1631 = vadd.f32 %v1428, %v1098
    %v1632 = vadd.f32 %v1432, %v1099
    %v1633 = vadd.f32 %v1420, %v1100
    %v1634 = vadd.f32 %v1424, %v1101
    %v1635 = vadd.f32 %v1428, %v1102
    %v1636 = vadd.f32 %v1432, %v1103
    %v1637 = vadd.f32 %v1420, %v1104
    %v1638 = vadd.f32 %v1424, %v1105
    %v1639 = vadd.f32 %v1428, %v1106
    %v1640 = vadd.f32 %v1432, %v1107
    %v1641 = vadd.f32 %v1420, %v1108
    %v1642 = vadd.f32 %v1424, %v1109
    %v1643 = vadd.f32 %v1428, %v1110
    %v1644 = vadd.f32 %v1432, %v1111
    %v1645 = vadd.f32 %v1420, %v1112
    %v1646 = vadd.f32 %v1424, %v1113
    %v1647 = vadd.f32 %v1428, %v1114
    %v1648 = vadd.f32 %v1432, %v1115
    %v1649 = vadd.f32 %v1420, %v1116
    %v1650 = vadd.f32 %v1424, %v1117
    %v1651 = vadd.f32 %v1428, %v1118
    %v1652 = vadd.f32 %v1432, %v1119
    %v1653 = vadd.f32 %v1420, %v1120
    %v1654 = vadd.f32 %v1424, %v1121
    %v1655 = vadd.f32 %v1428, %v1122
    %v1656 = vadd.f32 %v1432, %v1123
    %v1657 = vadd.f32 %v1420, %v1124
    %v1658 = vadd.f32 %v1424, %v1125
    %v1659 = vadd.f32 %v1428, %v1126
    %v1660 = vadd.f32 %v1432, %v1127
    %v1661 = vadd.f32 %v1420, %v1128
    %v1662 = vadd.f32 %v1424, %v1129
    %v1663 = vadd.f32 %v1428, %v1130
    %v1664 = vadd.f32 %v1432, %v1131
    %v1665 = vadd.f32 %v1420, %v1132
    %v1666 = vadd.f32 %v1424, %v1133
    %v1667 = vadd.f32 %v1428, %v1134
    %v1668 = vadd.f32 %v1432, %v1135
    %v1669 = vadd.f32 %v1420, %v1136
    %v1670 = vadd.f32 %v1424, %v1137
    %v1671 = vadd.f32 %v1428, %v1138
    %v1672 = vadd.f32 %v1432, %v1139
    %v1673 = vadd.f32 %v1420, %v1140
    %v1674 = vadd.f32 %v1424, %v1141
    %v1675 = vadd.f32 %v1428, %v1142
    %v1676 = vadd.f32 %v1432, %v1143
    %v1677 = vadd.f32 %v1420, %v1144
    %v1678 = vadd.f32 %v1424, %v1145
    %v1679 = vadd.f32 %v1428, %v1146
    %v1680 = vadd.f32 %v1432, %v1147
    %v1681 = vadd.f32 %v1420, %v1148
    %v1682 = vadd.f32 %v1424, %v1149
    %v1683 = vadd.f32 %v1428, %v1150
    %v1684 = vadd.f32 %v1432, %v1151
    %v1685 = vadd.f32 %v1420, %v1152
    %v1686 = vadd.f32 %v1424, %v1153
    %v1687 = vadd.f32 %v1428, %v1154
    %v1688 = vadd.f32 %v1432, %v1155
    %v1689 = vadd.f32 %v1420, %v1156
    %v1690 = vadd.f32 %v1424, %v1157
    %v1691 = vadd.f32 %v1428, %v1158
    %v1692 = vadd.f32 %v1432, %v1159
    %v1693 = vadd.f32 %v1420, %v1160
    %v1694 = vadd.f32 %v1424, %v1161
    %v1695 = vadd.f32 %v1428, %v1162
    %v1696 = vadd.f32 %v1432, %v1163
    %v1697 = vadd.f32 %v1420, %v1164
    %v1698 = vadd.f32 %v1424, %v1165
    %v1699 = vadd.f32 %v1428, %v1166
    %v1700 = vadd.f32 %v1432, %v1167
    %v1701 = vadd.f32 %v1420, %v1168
    %v1702 = vadd.f32 %v1424, %v1169
    %v1703 = vadd.f32 %v1428, %v1170
    %v1704 = vadd.f32 %v1432, %v1171
    %v1705 = vadd.f32 %v1420, %v1172
    %v1706 = vadd.f32 %v1424, %v1173
    %v1707 = vadd.f32 %v1428, %v1174
    %v1708 = vadd.f32 %v1432, %v1175
    %v1709 = vadd.f32 %v1420, %v1176
    %v1710 = vadd.f32 %v1424, %v1177
    %v1711 = vadd.f32 %v1428, %v1178
    %v1712 = vadd.f32 %v1432, %v1179
    %v1713 = vadd.f32 %v1420, %v1180
    %v1714 = vadd.f32 %v1424, %v1181
    %v1715 = vadd.f32 %v1428, %v1182
    %v1716 = vadd.f32 %v1432, %v1183
    %v1717 = vadd.f32 %v1420, %v1184
    %v1718 = vadd.f32 %v1424, %v1185
    %v1719 = vadd.f32 %v1428, %v1186
    %v1720 = vadd.f32 %v1432, %v1187
    %v1721 = vadd.f32 %v1420, %v1188
    %v1722 = vadd.f32 %v1424, %v1189
    %v1723 = vadd.f32 %v1428, %v1190
    %v1724 = vadd.f32 %v1432, %v1191
    %v1725 = vadd.f32 %v1420, %v1192
    %v1726 = vadd.f32 %v1424, %v1193
    %v1727 = vadd.f32 %v1428, %v1194
    %v1728 = vadd.f32 %v1432, %v1195
    %v1729 = vadd.f32 %v1420, %v1196
    %v1730 = vadd.f32 %v1424, %v1197
    %v1731 = vadd.f32 %v1428, %v1198
    %v1732 = vadd.f32 %v1432, %v1199
    %v1733 = vadd.f32 %v1420, %v1200
    %v1734 = vadd.f32 %v1424, %v1201
    %v1735 = vadd.f32 %v1428, %v1202
    %v1736 = vadd.f32 %v1432, %v1203
    %v1737 = vadd.f32 %v1420, %v1204
    %v1738 = vadd.f32 %v1424, %v1205
    %v1739 = vadd.f32 %v1428, %v1206
    %v1740 = vadd.f32 %v1432, %v1207
    %v1741 = vadd.f32 %v1420, %v1208
    %v1742 = vadd.f32 %v1424, %v1209
    %v1743 = vadd.f32 %v1428, %v1210
    %v1744 = vadd.f32 %v1432, %v1211
    %v1745 = vadd.f32 %v1420, %v1212
    %v1746 = vadd.f32 %v1424, %v1213
    %v1747 = vadd.f32 %v1428, %v1214
    %v1748 = vadd.f32 %v1432, %v1215
    %v1749 = vadd.f32 %v1420, %v1216
    %v1750 = vadd.f32 %v1424, %v1217
    %v1751 = vadd.f32 %v1428, %v1218
    %v1752 = vadd.f32 %v1432, %v1219
    %v1753 = vadd.f32 %v1420, %v1220
    %v1754 = vadd.f32 %v1424, %v1221
    %v1755 = vadd.f32 %v1428, %v1222
    %v1756 = vadd.f32 %v1432, %v1223
    %v1757 = vadd.f32 %v1420, %v1224
    %v1758 = vadd.f32 %v1424, %v1225
    %v1759 = vadd.f32 %v1428, %v1226
    %v1760 = vadd.f32 %v1432, %v1227
    %v1761 = vadd.f32 %v1420, %v1228
    %v1762 = vadd.f32 %v1424, %v1229
    %v1763 = vadd.f32 %v1428, %v1230
    %v1764 = vadd.f32 %v1432, %v1231
    %v1765 = vadd.f32 %v1420, %v1232
    %v1766 = vadd.f32 %v1424, %v1233
    %v1767 = vadd.f32 %v1428, %v1234
    %v1768 = vadd.f32 %v1432, %v1235
    %v1769 = vadd.f32 %v1420, %v1236
    %v1770 = vadd.f32 %v1424, %v1237
    %v1771 = vadd.f32 %v1428, %v1238
    %v1772 = vadd.f32 %v1432, %v1239
    %v1773 = vadd.f32 %v1420, %v1240
    %v1774 = vadd.f32 %v1424, %v1241
    %v1775 = vadd.f32 %v1428, %v1242
    %v1776 = vadd.f32 %v1432, %v1243
    %v1777 = vadd.f32 %v1420, %v1244
    %v1778 = vadd.f32 %v1424, %v1245
    %v1779 = vadd.f32 %v1428, %v1246
    %v1780 = vadd.f32 %v1432, %v1247
    %v1781 = vadd.f32 %v1420, %v1248
    %v1782 = vadd.f32 %v1424, %v1249
    %v1783 = vadd.f32 %v1428, %v1250
    %v1784 = vadd.f32 %v1432, %v1251
    %v1785 = vadd.f32 %v1420, %v1252
    %v1786 = vadd.f32 %v1424, %v1253
    %v1787 = vadd.f32 %v1428, %v1254
    %v1788 = vadd.f32 %v1432, %v1255
    %v1789 = vadd.f32 %v1420, %v1256
    %v1790 = vadd.f32 %v1424, %v1257
    %v1791 = vadd.f32 %v1428, %v1258
    %v1792 = vadd.f32 %v1432, %v1259
    %v1793 = vadd.f32 %v1420, %v1260
    %v1794 = vadd.f32 %v1424, %v1261
    %v1795 = vadd.f32 %v1428, %v1262
    %v1796 = vadd.f32 %v1432, %v1263
    %v1797 = vadd.f32 %v1420, %v1264
    %v1798 = vadd.f32 %v1424, %v1265
    %v1799 = vadd.f32 %v1428, %v1266
    %v1800 = vadd.f32 %v1432, %v1267
    %v1801 = vadd.f32 %v1420, %v1268
    %v1802 = vadd.f32 %v1424, %v1269
    %v1803 = vadd.f32 %v1428, %v1270
    %v1804 = vadd.f32 %v1432, %v1271
    %v1805 = vadd.f32 %v1420, %v1272
    %v1806 = vadd.f32 %v1424, %v1273
    %v1807 = vadd.f32 %v1428, %v1274
    %v1808 = vadd.f32 %v1432, %v1275
    %v1809 = vadd.f32 %v1420, %v1276
    %v1810 = vadd.f32 %v1424, %v1277
    %v1811 = vadd.f32 %v1428, %v1278
    %v1812 = vadd.f32 %v1432, %v1279
    %v1813 = vadd.f32 %v1420, %v1280
    %v1814 = vadd.f32 %v1424, %v1281
    %v1815 = vadd.f32 %v1428, %v1282
    %v1816 = vadd.f32 %v1432, %v1283
    %v1817 = vadd.f32 %v1420, %v1284
    %v1818 = vadd.f32 %v1424, %v1285
    %v1819 = vadd.f32 %v1428, %v1286
    %v1820 = vadd.f32 %v1432, %v1287
    %v1821 = vadd.f32 %v1420, %v1288
    %v1822 = vadd.f32 %v1424, %v1289
    %v1823 = vadd.f32 %v1428, %v1290
    %v1824 = vadd.f32 %v1432, %v1291
    %v1825 = vadd.f32 %v1420, %v1292
    %v1826 = vadd.f32 %v1424, %v1293
    %v1827 = vadd.f32 %v1428, %v1294
    %v1828 = vadd.f32 %v1432, %v1295
    %v1829 = vadd.f32 %v1420, %v1296
    %v1830 = vadd.f32 %v1424, %v1297
    %v1831 = vadd.f32 %v1428, %v1298
    %v1832 = vadd.f32 %v1432, %v1299
    %v1833 = vadd.f32 %v1420, %v1300
    %v1834 = vadd.f32 %v1424, %v1301
    %v1835 = vadd.f32 %v1428, %v1302
    %v1836 = vadd.f32 %v1432, %v1303
    %v1837 = vadd.f32 %v1420, %v1304
    %v1838 = vadd.f32 %v1424, %v1305
    %v1839 = vadd.f32 %v1428, %v1306
    %v1840 = vadd.f32 %v1432, %v1307
    %v1841 = vadd.f32 %v1420, %v1308
    %v1842 = vadd.f32 %v1424, %v1309
    %v1843 = vadd.f32 %v1428, %v1310
    %v1844 = vadd.f32 %v1432, %v1311
    %v1845 = vadd.f32 %v1420, %v1312
    %v1846 = vadd.f32 %v1424, %v1313
    %v1847 = vadd.f32 %v1428, %v1314
    %v1848 = vadd.f32 %v1432, %v1315
    %v1849 = vadd.f32 %v1420, %v1316
    %v1850 = vadd.f32 %v1424, %v1317
    %v1851 = vadd.f32 %v1428, %v1318
    %v1852 = vadd.f32 %v1432, %v1319
    %v1853 = vadd.f32 %v1420, %v1320
    %v1854 = vadd.f32 %v1424, %v1321
    %v1855 = vadd.f32 %v1428, %v1322
    %v1856 = vadd.f32 %v1432, %v1323
    %v1857 = vadd.f32 %v1420, %v1324
    %v1858 = vadd.f32 %v1424, %v1325
    %v1859 = vadd.f32 %v1428, %v1326
    %v1860 = vadd.f32 %v1432, %v1327
    %v1861 = vadd.f32 %v1420, %v1328
    %v1862 = vadd.f32 %v1424, %v1329
    %v1863 = vadd.f32 %v1428, %v1330
    %v1864 = vadd.f32 %v1432, %v1331
    %v1865 = vadd.f32 %v1420, %v1332
    %v1866 = vadd.f32 %v1424, %v1333
    %v1867 = vadd.f32 %v1428, %v1334
    %v1868 = vadd.f32 %v1432, %v1335
    %v1869 = vadd.f32 %v1420, %v1336
    %v1870 = vadd.f32 %v1424, %v1337
    %v1871 = vadd.f32 %v1428, %v1338
    %v1872 = vadd.f32 %v1432, %v1339
    %v1873 = vadd.f32 %v1420, %v1340
    %v1874 = vadd.f32 %v1424, %v1341
    %v1875 = vadd.f32 %v1428, %v1342
    %v1876 = vadd.f32 %v1432, %v1343
    %v1877 = vadd.f32 %v1420, %v1344
    %v1878 = vadd.f32 %v1424, %v1345
    %v1879 = vadd.f32 %v1428, %v1346
    %v1880 = vadd.f32 %v1432, %v1347
    %v1881 = vadd.f32 %v1420, %v1348
    %v1882 = vadd.f32 %v1424, %v1349
    %v1883 = vadd.f32 %v1428, %v1350
    %v1884 = vadd.f32 %v1432, %v1351
    %v1885 = vadd.f32 %v1420, %v1352
    %v1886 = vadd.f32 %v1424, %v1353
    %v1887 = vadd.f32 %v1428, %v1354
    %v1888 = vadd.f32 %v1432, %v1355
    %v1889 = vadd.f32 %v1420, %v1356
    %v1890 = vadd.f32 %v1424, %v1357
    %v1891 = vadd.f32 %v1428, %v1358
    %v1892 = vadd.f32 %v1432, %v1359
    %v1893 = vadd.f32 %v1420, %v1360
    %v1894 = vadd.f32 %v1424, %v1361
    %v1895 = vadd.f32 %v1428, %v1362
    %v1896 = vadd.f32 %v1432, %v1363
    %v1897 = vadd.f32 %v1420, %v1364
    %v1898 = vadd.f32 %v1424, %v1365
    %v1899 = vadd.f32 %v1428, %v1366
    %v1900 = vadd.f32 %v1432, %v1367
    %v1901 = vadd.f32 %v1420, %v1368
    %v1902 = vadd.f32 %v1424, %v1369
    %v1903 = vadd.f32 %v1428, %v1370
    %v1904 = vadd.f32 %v1432, %v1371
    %v1905 = vadd.f32 %v1420, %v1372
    %v1906 = vadd.f32 %v1424, %v1373
    %v1907 = vadd.f32 %v1428, %v1374
    %v1908 = vadd.f32 %v1432, %v1375
    %v1909 = vadd.f32 %v1420, %v1376
    %v1910 = vadd.f32 %v1424, %v1377
    %v1911 = vadd.f32 %v1428, %v1378
    %v1912 = vadd.f32 %v1432, %v1379
    %v1913 = vadd.f32 %v1420, %v1380
    %v1914 = vadd.f32 %v1424, %v1381
    %v1915 = vadd.f32 %v1428, %v1382
    %v1916 = vadd.f32 %v1432, %v1383
    %v1917 = vadd.f32 %v1420, %v1384
    %v1918 = vadd.f32 %v1424, %v1385
    %v1919 = vadd.f32 %v1428, %v1386
    %v1920 = vadd.f32 %v1432, %v1387
    %v1921 = vadd.f32 %v1420, %v1388
    %v1922 = vadd.f32 %v1424, %v1389
    %v1923 = vadd.f32 %v1428, %v1390
    %v1924 = vadd.f32 %v1432, %v1391
    %v1925 = vadd.f32 %v1420, %v1392
    %v1926 = vadd.f32 %v1424, %v1393
    %v1927 = vadd.f32 %v1428, %v1394
    %v1928 = vadd.f32 %v1432, %v1395
    %v1929 = vadd.f32 %v1420, %v1396
    %v1930 = vadd.f32 %v1424, %v1397
    %v1931 = vadd.f32 %v1428, %v1398
    %v1932 = vadd.f32 %v1432, %v1399
    %v1933 = vadd.f32 %v1420, %v1400
    %v1934 = vadd.f32 %v1424, %v1401
    %v1935 = vadd.f32 %v1428, %v1402
    %v1936 = vadd.f32 %v1432, %v1403
    %v1937 = vadd.f32 %v1420, %v1404
    %v1938 = vadd.f32 %v1424, %v1405
    %v1939 = vadd.f32 %v1428, %v1406
    %v1940 = vadd.f32 %v1432, %v1407
    %v1941 = vadd.f32 %v1420, %v1408
    %v1942 = vadd.f32 %v1424, %v1409
    %v1943 = vadd.f32 %v1428, %v1410
    %v1944 = vadd.f32 %v1432, %v1411
    %v1945 = vadd.f32 %v1420, %v1412
    %v1946 = vadd.f32 %v1424, %v1413
    %v1947 = vadd.f32 %v1428, %v1414
    %v1948 = vadd.f32 %v1432, %v1415
    %1949 = vset.pattern.permute.xlu0 1
    %1950 = vperm.xlu0 %1949, %v115
    %v1951 = vpop.permute.xlu0 %1950
    %1953 = vset.pattern.permute.xlu0 1
    %1954 = vperm.xlu0 %1953, %v116
    %v1955 = vpop.permute.xlu0 %1954
    %1957 = vset.pattern.permute.xlu0 1
    %1958 = vperm.xlu0 %1957, %v117
    %v1959 = vpop.permute.xlu0 %1958
    %1961 = vset.pattern.permute.xlu0 1
    %1962 = vperm.xlu0 %1961, %v118
    %v1963 = vpop.permute.xlu0 %1962
    %1965 = vset.pattern.permute.xlu0 1
    %1966 = vperm.xlu0 %1965, %v119
    %v1967 = vpop.permute.xlu0 %1966
    %1969 = vset.pattern.permute.xlu0 1
    %1970 = vperm.xlu0 %1969, %v120
    %v1971 = vpop.permute.xlu0 %1970
    %1973 = vset.pattern.permute.xlu0 1
    %1974 = vperm.xlu0 %1973, %v121
    %v1975 = vpop.permute.xlu0 %1974
    %1977 = vset.pattern.permute.xlu0 1
    %1978 = vperm.xlu0 %1977, %v122
    %v1979 = vpop.permute.xlu0 %1978
    %1981 = vset.pattern.permute.xlu0 1
    %1982 = vperm.xlu0 %1981, %v123
    %v1983 = vpop.permute.xlu0 %1982
    %1985 = vset.pattern.permute.xlu0 1
    %1986 = vperm.xlu0 %1985, %v124
    %v1987 = vpop.permute.xlu0 %1986
    %1989 = vset.pattern.permute.xlu0 1
    %1990 = vperm.xlu0 %1989, %v125
    %v1991 = vpop.permute.xlu0 %1990
    %1993 = vset.pattern.permute.xlu0 1
    %1994 = vperm.xlu0 %1993, %v126
    %v1995 = vpop.permute.xlu0 %1994
    %1997 = vset.pattern.permute.xlu0 1
    %1998 = vperm.xlu0 %1997, %v127
    %v1999 = vpop.permute.xlu0 %1998
    %2001 = vset.pattern.permute.xlu0 1
    %2002 = vperm.xlu0 %2001, %v128
    %v2003 = vpop.permute.xlu0 %2002
    %2005 = vset.pattern.permute.xlu0 1
    %2006 = vperm.xlu0 %2005, %v129
    %v2007 = vpop.permute.xlu0 %2006
    %2009 = vset.pattern.permute.xlu0 1
    %2010 = vperm.xlu0 %2009, %v130
    %v2011 = vpop.permute.xlu0 %2010
    %2013 = vset.pattern.permute.xlu0 1
    %2014 = vperm.xlu0 %2013, %v131
    %v2015 = vpop.permute.xlu0 %2014
    %2017 = vset.pattern.permute.xlu0 1
    %2018 = vperm.xlu0 %2017, %v132
    %v2019 = vpop.permute.xlu0 %2018
    %2021 = vset.pattern.permute.xlu0 1
    %2022 = vperm.xlu0 %2021, %v133
    %v2023 = vpop.permute.xlu0 %2022
    %2025 = vset.pattern.permute.xlu0 1
    %2026 = vperm.xlu0 %2025, %v134
    %v2027 = vpop.permute.xlu0 %2026
    %2029 = vset.pattern.permute.xlu0 1
    %2030 = vperm.xlu0 %2029, %v135
    %v2031 = vpop.permute.xlu0 %2030
    %2033 = vset.pattern.permute.xlu0 1
    %2034 = vperm.xlu0 %2033, %v136
    %v2035 = vpop.permute.xlu0 %2034
    %2037 = vset.pattern.permute.xlu0 1
    %2038 = vperm.xlu0 %2037, %v137
    %v2039 = vpop.permute.xlu0 %2038
    %2041 = vset.pattern.permute.xlu0 1
    %2042 = vperm.xlu0 %2041, %v138
    %v2043 = vpop.permute.xlu0 %2042
    %2045 = vset.pattern.permute.xlu0 1
    %2046 = vperm.xlu0 %2045, %v139
    %v2047 = vpop.permute.xlu0 %2046
    %2049 = vset.pattern.permute.xlu0 1
    %2050 = vperm.xlu0 %2049, %v140
    %v2051 = vpop.permute.xlu0 %2050
    %2053 = vset.pattern.permute.xlu0 1
    %2054 = vperm.xlu0 %2053, %v141
    %v2055 = vpop.permute.xlu0 %2054
    %2057 = vset.pattern.permute.xlu0 1
    %2058 = vperm.xlu0 %2057, %v142
    %v2059 = vpop.permute.xlu0 %2058
    %2061 = vset.pattern.permute.xlu0 1
    %2062 = vperm.xlu0 %2061, %v143
    %v2063 = vpop.permute.xlu0 %2062
    %2065 = vset.pattern.permute.xlu0 1
    %2066 = vperm.xlu0 %2065, %v144
    %v2067 = vpop.permute.xlu0 %2066
    %2069 = vset.pattern.permute.xlu0 1
    %2070 = vperm.xlu0 %2069, %v145
    %v2071 = vpop.permute.xlu0 %2070
    %2073 = vset.pattern.permute.xlu0 1
    %2074 = vperm.xlu0 %2073, %v146
    %v2075 = vpop.permute.xlu0 %2074
    %2077 = vset.pattern.permute.xlu0 1
    %2078 = vperm.xlu0 %2077, %v147
    %v2079 = vpop.permute.xlu0 %2078
    %2081 = vset.pattern.permute.xlu0 1
    %2082 = vperm.xlu0 %2081, %v148
    %v2083 = vpop.permute.xlu0 %2082
    %2085 = vset.pattern.permute.xlu0 1
    %2086 = vperm.xlu0 %2085, %v149
    %v2087 = vpop.permute.xlu0 %2086
    %2089 = vset.pattern.permute.xlu0 1
    %2090 = vperm.xlu0 %2089, %v150
    %v2091 = vpop.permute.xlu0 %2090
    %2093 = vset.pattern.permute.xlu0 1
    %2094 = vperm.xlu0 %2093, %v151
    %v2095 = vpop.permute.xlu0 %2094
    %2097 = vset.pattern.permute.xlu0 1
    %2098 = vperm.xlu0 %2097, %v152
    %v2099 = vpop.permute.xlu0 %2098
    %2101 = vset.pattern.permute.xlu0 1
    %2102 = vperm.xlu0 %2101, %v153
    %v2103 = vpop.permute.xlu0 %2102
    %2105 = vset.pattern.permute.xlu0 1
    %2106 = vperm.xlu0 %2105, %v154
    %v2107 = vpop.permute.xlu0 %2106
    %2109 = vset.pattern.permute.xlu0 1
    %2110 = vperm.xlu0 %2109, %v155
    %v2111 = vpop.permute.xlu0 %2110
    %2113 = vset.pattern.permute.xlu0 1
    %2114 = vperm.xlu0 %2113, %v156
    %v2115 = vpop.permute.xlu0 %2114
    %2117 = vset.pattern.permute.xlu0 1
    %2118 = vperm.xlu0 %2117, %v157
    %v2119 = vpop.permute.xlu0 %2118
    %2121 = vset.pattern.permute.xlu0 1
    %2122 = vperm.xlu0 %2121, %v158
    %v2123 = vpop.permute.xlu0 %2122
    %2125 = vset.pattern.permute.xlu0 1
    %2126 = vperm.xlu0 %2125, %v159
    %v2127 = vpop.permute.xlu0 %2126
    %2129 = vset.pattern.permute.xlu0 1
    %2130 = vperm.xlu0 %2129, %v160
    %v2131 = vpop.permute.xlu0 %2130
    %2133 = vset.pattern.permute.xlu0 1
    %2134 = vperm.xlu0 %2133, %v161
    %v2135 = vpop.permute.xlu0 %2134
    %2137 = vset.pattern.permute.xlu0 1
    %2138 = vperm.xlu0 %2137, %v162
    %v2139 = vpop.permute.xlu0 %2138
    %2141 = vset.pattern.permute.xlu0 1
    %2142 = vperm.xlu0 %2141, %v163
    %v2143 = vpop.permute.xlu0 %2142
    %2145 = vset.pattern.permute.xlu0 1
    %2146 = vperm.xlu0 %2145, %v164
    %v2147 = vpop.permute.xlu0 %2146
    %2149 = vset.pattern.permute.xlu0 1
    %2150 = vperm.xlu0 %2149, %v165
    %v2151 = vpop.permute.xlu0 %2150
    %2153 = vset.pattern.permute.xlu0 1
    %2154 = vperm.xlu0 %2153, %v166
    %v2155 = vpop.permute.xlu0 %2154
    %2157 = vset.pattern.permute.xlu0 1
    %2158 = vperm.xlu0 %2157, %v167
    %v2159 = vpop.permute.xlu0 %2158
    %2161 = vset.pattern.permute.xlu0 1
    %2162 = vperm.xlu0 %2161, %v168
    %v2163 = vpop.permute.xlu0 %2162
    %2165 = vset.pattern.permute.xlu0 1
    %2166 = vperm.xlu0 %2165, %v169
    %v2167 = vpop.permute.xlu0 %2166
    %2169 = vset.pattern.permute.xlu0 1
    %2170 = vperm.xlu0 %2169, %v170
    %v2171 = vpop.permute.xlu0 %2170
    %2173 = vset.pattern.permute.xlu0 1
    %2174 = vperm.xlu0 %2173, %v171
    %v2175 = vpop.permute.xlu0 %2174
    %2177 = vset.pattern.permute.xlu0 1
    %2178 = vperm.xlu0 %2177, %v172
    %v2179 = vpop.permute.xlu0 %2178
    %2181 = vset.pattern.permute.xlu0 1
    %2182 = vperm.xlu0 %2181, %v173
    %v2183 = vpop.permute.xlu0 %2182
    %2185 = vset.pattern.permute.xlu0 1
    %2186 = vperm.xlu0 %2185, %v174
    %v2187 = vpop.permute.xlu0 %2186
    %2189 = vset.pattern.permute.xlu0 1
    %2190 = vperm.xlu0 %2189, %v175
    %v2191 = vpop.permute.xlu0 %2190
    %2193 = vset.pattern.permute.xlu0 1
    %2194 = vperm.xlu0 %2193, %v176
    %v2195 = vpop.permute.xlu0 %2194
    %2197 = vset.pattern.permute.xlu0 1
    %2198 = vperm.xlu0 %2197, %v177
    %v2199 = vpop.permute.xlu0 %2198
    %2201 = vset.pattern.permute.xlu0 1
    %2202 = vperm.xlu0 %2201, %v178
    %v2203 = vpop.permute.xlu0 %2202
    %2205 = vset.pattern.permute.xlu0 1
    %2206 = vperm.xlu0 %2205, %v179
    %v2207 = vpop.permute.xlu0 %2206
    %2209 = vset.pattern.permute.xlu0 1
    %2210 = vperm.xlu0 %2209, %v180
    %v2211 = vpop.permute.xlu0 %2210
    %2213 = vset.pattern.permute.xlu0 1
    %2214 = vperm.xlu0 %2213, %v181
    %v2215 = vpop.permute.xlu0 %2214
    %2217 = vset.pattern.permute.xlu0 1
    %2218 = vperm.xlu0 %2217, %v182
    %v2219 = vpop.permute.xlu0 %2218
    %2221 = vset.pattern.permute.xlu0 1
    %2222 = vperm.xlu0 %2221, %v183
    %v2223 = vpop.permute.xlu0 %2222
    %2225 = vset.pattern.permute.xlu0 1
    %2226 = vperm.xlu0 %2225, %v184
    %v2227 = vpop.permute.xlu0 %2226
    %2229 = vset.pattern.permute.xlu0 1
    %2230 = vperm.xlu0 %2229, %v185
    %v2231 = vpop.permute.xlu0 %2230
    %2233 = vset.pattern.permute.xlu0 1
    %2234 = vperm.xlu0 %2233, %v186
    %v2235 = vpop.permute.xlu0 %2234
    %2237 = vset.pattern.permute.xlu0 1
    %2238 = vperm.xlu0 %2237, %v187
    %v2239 = vpop.permute.xlu0 %2238
    %2241 = vset.pattern.permute.xlu0 1
    %2242 = vperm.xlu0 %2241, %v188
    %v2243 = vpop.permute.xlu0 %2242
    %2245 = vset.pattern.permute.xlu0 1
    %2246 = vperm.xlu0 %2245, %v189
    %v2247 = vpop.permute.xlu0 %2246
    %2249 = vset.pattern.permute.xlu0 1
    %2250 = vperm.xlu0 %2249, %v190
    %v2251 = vpop.permute.xlu0 %2250
    %2253 = vset.pattern.permute.xlu0 1
    %2254 = vperm.xlu0 %2253, %v191
    %v2255 = vpop.permute.xlu0 %2254
    %2257 = vset.pattern.permute.xlu0 1
    %2258 = vperm.xlu0 %2257, %v192
    %v2259 = vpop.permute.xlu0 %2258
    %2261 = vset.pattern.permute.xlu0 1
    %2262 = vperm.xlu0 %2261, %v193
    %v2263 = vpop.permute.xlu0 %2262
    %2265 = vset.pattern.permute.xlu0 1
    %2266 = vperm.xlu0 %2265, %v194
    %v2267 = vpop.permute.xlu0 %2266
    %2269 = vset.pattern.permute.xlu0 1
    %2270 = vperm.xlu0 %2269, %v195
    %v2271 = vpop.permute.xlu0 %2270
    %2273 = vset.pattern.permute.xlu0 1
    %2274 = vperm.xlu0 %2273, %v196
    %v2275 = vpop.permute.xlu0 %2274
    %2277 = vset.pattern.permute.xlu0 1
    %2278 = vperm.xlu0 %2277, %v197
    %v2279 = vpop.permute.xlu0 %2278
    %2281 = vset.pattern.permute.xlu0 1
    %2282 = vperm.xlu0 %2281, %v198
    %v2283 = vpop.permute.xlu0 %2282
    %2285 = vset.pattern.permute.xlu0 1
    %2286 = vperm.xlu0 %2285, %v199
    %v2287 = vpop.permute.xlu0 %2286
    %2289 = vset.pattern.permute.xlu0 1
    %2290 = vperm.xlu0 %2289, %v200
    %v2291 = vpop.permute.xlu0 %2290
    %2293 = vset.pattern.permute.xlu0 1
    %2294 = vperm.xlu0 %2293, %v201
    %v2295 = vpop.permute.xlu0 %2294
    %2297 = vset.pattern.permute.xlu0 1
    %2298 = vperm.xlu0 %2297, %v202
    %v2299 = vpop.permute.xlu0 %2298
    %2301 = vset.pattern.permute.xlu0 1
    %2302 = vperm.xlu0 %2301, %v203
    %v2303 = vpop.permute.xlu0 %2302
    %2305 = vset.pattern.permute.xlu0 1
    %2306 = vperm.xlu0 %2305, %v204
    %v2307 = vpop.permute.xlu0 %2306
    %2309 = vset.pattern.permute.xlu0 1
    %2310 = vperm.xlu0 %2309, %v205
    %v2311 = vpop.permute.xlu0 %2310
    %2313 = vset.pattern.permute.xlu0 1
    %2314 = vperm.xlu0 %2313, %v206
    %v2315 = vpop.permute.xlu0 %2314
    %2317 = vset.pattern.permute.xlu0 1
    %2318 = vperm.xlu0 %2317, %v207
    %v2319 = vpop.permute.xlu0 %2318
    %2321 = vset.pattern.permute.xlu0 1
    %2322 = vperm.xlu0 %2321, %v208
    %v2323 = vpop.permute.xlu0 %2322
    %2325 = vset.pattern.permute.xlu0 1
    %2326 = vperm.xlu0 %2325, %v209
    %v2327 = vpop.permute.xlu0 %2326
    %2329 = vset.pattern.permute.xlu0 1
    %2330 = vperm.xlu0 %2329, %v210
    %v2331 = vpop.permute.xlu0 %2330
    %2333 = vset.pattern.permute.xlu0 1
    %2334 = vperm.xlu0 %2333, %v211
    %v2335 = vpop.permute.xlu0 %2334
    %2337 = vset.pattern.permute.xlu0 1
    %2338 = vperm.xlu0 %2337, %v212
    %v2339 = vpop.permute.xlu0 %2338
    %2341 = vset.pattern.permute.xlu0 1
    %2342 = vperm.xlu0 %2341, %v213
    %v2343 = vpop.permute.xlu0 %2342
    %2345 = vset.pattern.permute.xlu0 1
    %2346 = vperm.xlu0 %2345, %v214
    %v2347 = vpop.permute.xlu0 %2346
    %2349 = vset.pattern.permute.xlu0 1
    %2350 = vperm.xlu0 %2349, %v215
    %v2351 = vpop.permute.xlu0 %2350
    %2353 = vset.pattern.permute.xlu0 1
    %2354 = vperm.xlu0 %2353, %v216
    %v2355 = vpop.permute.xlu0 %2354
    %2357 = vset.pattern.permute.xlu0 1
    %2358 = vperm.xlu0 %2357, %v217
    %v2359 = vpop.permute.xlu0 %2358
    %2361 = vset.pattern.permute.xlu0 1
    %2362 = vperm.xlu0 %2361, %v218
    %v2363 = vpop.permute.xlu0 %2362
    %2365 = vset.pattern.permute.xlu0 1
    %2366 = vperm.xlu0 %2365, %v219
    %v2367 = vpop.permute.xlu0 %2366
    %2369 = vset.pattern.permute.xlu0 1
    %2370 = vperm.xlu0 %2369, %v220
    %v2371 = vpop.permute.xlu0 %2370
    %2373 = vset.pattern.permute.xlu0 1
    %2374 = vperm.xlu0 %2373, %v221
    %v2375 = vpop.permute.xlu0 %2374
    %2377 = vset.pattern.permute.xlu0 1
    %2378 = vperm.xlu0 %2377, %v222
    %v2379 = vpop.permute.xlu0 %2378
    %2381 = vset.pattern.permute.xlu0 1
    %2382 = vperm.xlu0 %2381, %v223
    %v2383 = vpop.permute.xlu0 %2382
    %2385 = vset.pattern.permute.xlu0 1
    %2386 = vperm.xlu0 %2385, %v224
    %v2387 = vpop.permute.xlu0 %2386
    %2389 = vset.pattern.permute.xlu0 1
    %2390 = vperm.xlu0 %2389, %v225
    %v2391 = vpop.permute.xlu0 %2390
    %2393 = vset.pattern.permute.xlu0 1
    %2394 = vperm.xlu0 %2393, %v226
    %v2395 = vpop.permute.xlu0 %2394
    %2397 = vset.pattern.permute.xlu0 1
    %2398 = vperm.xlu0 %2397, %v227
    %v2399 = vpop.permute.xlu0 %2398
    %2401 = vset.pattern.permute.xlu0 1
    %2402 = vperm.xlu0 %2401, %v228
    %v2403 = vpop.permute.xlu0 %2402
    %2405 = vset.pattern.permute.xlu0 1
    %2406 = vperm.xlu0 %2405, %v229
    %v2407 = vpop.permute.xlu0 %2406
    %2409 = vset.pattern.permute.xlu0 1
    %2410 = vperm.xlu0 %2409, %v230
    %v2411 = vpop.permute.xlu0 %2410
    %2413 = vset.pattern.permute.xlu0 1
    %2414 = vperm.xlu0 %2413, %v231
    %v2415 = vpop.permute.xlu0 %2414
    %2417 = vset.pattern.permute.xlu0 1
    %2418 = vperm.xlu0 %2417, %v232
    %v2419 = vpop.permute.xlu0 %2418
    %2421 = vset.pattern.permute.xlu0 1
    %2422 = vperm.xlu0 %2421, %v233
    %v2423 = vpop.permute.xlu0 %2422
    %2425 = vset.pattern.permute.xlu0 1
    %2426 = vperm.xlu0 %2425, %v234
    %v2427 = vpop.permute.xlu0 %2426
    %2429 = vset.pattern.permute.xlu0 1
    %2430 = vperm.xlu0 %2429, %v235
    %v2431 = vpop.permute.xlu0 %2430
    %2433 = vset.pattern.permute.xlu0 1
    %2434 = vperm.xlu0 %2433, %v236
    %v2435 = vpop.permute.xlu0 %2434
    %2437 = vset.pattern.permute.xlu0 1
    %2438 = vperm.xlu0 %2437, %v237
    %v2439 = vpop.permute.xlu0 %2438
    %2441 = vset.pattern.permute.xlu0 1
    %2442 = vperm.xlu0 %2441, %v238
    %v2443 = vpop.permute.xlu0 %2442
    %2445 = vset.pattern.permute.xlu0 1
    %2446 = vperm.xlu0 %2445, %v239
    %v2447 = vpop.permute.xlu0 %2446
    %2449 = vset.pattern.permute.xlu0 1
    %2450 = vperm.xlu0 %2449, %v240
    %v2451 = vpop.permute.xlu0 %2450
    %2453 = vset.pattern.permute.xlu0 1
    %2454 = vperm.xlu0 %2453, %v241
    %v2455 = vpop.permute.xlu0 %2454
    %2457 = vset.pattern.permute.xlu0 1
    %2458 = vperm.xlu0 %2457, %v242
    %v2459 = vpop.permute.xlu0 %2458
    %v2461 = vlaneseq
    %v2462 = vshrl.u32 %v2461, 7
    %v2463 = vsub.s32 1, %v2462
    %v2464 = vrot.slane %v243, %v2463
    %v2465 = vlaneseq
    %v2466 = vshrl.u32 %v2465, 7
    %v2467 = vsub.s32 1, %v2466
    %v2468 = vrot.slane %v244, %v2467
    %v2469 = vlaneseq
    %v2470 = vshrl.u32 %v2469, 7
    %v2471 = vsub.s32 1, %v2470
    %v2472 = vrot.slane %v245, %v2471
    %v2473 = vlaneseq
    %v2474 = vshrl.u32 %v2473, 7
    %v2475 = vsub.s32 1, %v2474
    %v2476 = vrot.slane %v246, %v2475
    %v2477 = vmul.f32 %v1951, %v2464
    %v2478 = vmul.f32 %v1951, %v2468
    %v2479 = vmul.f32 %v1951, %v2472
    %v2480 = vmul.f32 %v1951, %v2476
    %v2481 = vmul.f32 %v1955, %v2464
    %v2482 = vmul.f32 %v1955, %v2468
    %v2483 = vmul.f32 %v1955, %v2472
    %v2484 = vmul.f32 %v1955, %v2476
    %v2485 = vmul.f32 %v1959, %v2464
    %v2486 = vmul.f32 %v1959, %v2468
    %v2487 = vmul.f32 %v1959, %v2472
    %v2488 = vmul.f32 %v1959, %v2476
    %v2489 = vmul.f32 %v1963, %v2464
    %v2490 = vmul.f32 %v1963, %v2468
    %v2491 = vmul.f32 %v1963, %v2472
    %v2492 = vmul.f32 %v1963, %v2476
    %v2493 = vmul.f32 %v1967, %v2464
    %v2494 = vmul.f32 %v1967, %v2468
    %v2495 = vmul.f32 %v1967, %v2472
    %v2496 = vmul.f32 %v1967, %v2476
    %v2497 = vmul.f32 %v1971, %v2464
    %v2498 = vmul.f32 %v1971, %v2468
    %v2499 = vmul.f32 %v1971, %v2472
    %v2500 = vmul.f32 %v1971, %v2476
    %v2501 = vmul.f32 %v1975, %v2464
    %v2502 = vmul.f32 %v1975, %v2468
    %v2503 = vmul.f32 %v1975, %v2472
    %v2504 = vmul.f32 %v1975, %v2476
    %v2505 = vmul.f32 %v1979, %v2464
    %v2506 = vmul.f32 %v1979, %v2468
    %v2507 = vmul.f32 %v1979, %v2472
    %v2508 = vmul.f32 %v1979, %v2476
    %v2509 = vmul.f32 %v1983, %v2464
    %v2510 = vmul.f32 %v1983, %v2468
    %v2511 = vmul.f32 %v1983, %v2472
    %v2512 = vmul.f32 %v1983, %v2476
    %v2513 = vmul.f32 %v1987, %v2464
    %v2514 = vmul.f32 %v1987, %v2468
    %v2515 = vmul.f32 %v1987, %v2472
    %v2516 = vmul.f32 %v1987, %v2476
    %v2517 = vmul.f32 %v1991, %v2464
    %v2518 = vmul.f32 %v1991, %v2468
    %v2519 = vmul.f32 %v1991, %v2472
    %v2520 = vmul.f32 %v1991, %v2476
    %v2521 = vmul.f32 %v1995, %v2464
    %v2522 = vmul.f32 %v1995, %v2468
    %v2523 = vmul.f32 %v1995, %v2472
    %v2524 = vmul.f32 %v1995, %v2476
    %v2525 = vmul.f32 %v1999, %v2464
    %v2526 = vmul.f32 %v1999, %v2468
    %v2527 = vmul.f32 %v1999, %v2472
    %v2528 = vmul.f32 %v1999, %v2476
    %v2529 = vmul.f32 %v2003, %v2464
    %v2530 = vmul.f32 %v2003, %v2468
    %v2531 = vmul.f32 %v2003, %v2472
    %v2532 = vmul.f32 %v2003, %v2476
    %v2533 = vmul.f32 %v2007, %v2464
    %v2534 = vmul.f32 %v2007, %v2468
    %v2535 = vmul.f32 %v2007, %v2472
    %v2536 = vmul.f32 %v2007, %v2476
    %v2537 = vmul.f32 %v2011, %v2464
    %v2538 = vmul.f32 %v2011, %v2468
    %v2539 = vmul.f32 %v2011, %v2472
    %v2540 = vmul.f32 %v2011, %v2476
    %v2541 = vmul.f32 %v2015, %v2464
    %v2542 = vmul.f32 %v2015, %v2468
    %v2543 = vmul.f32 %v2015, %v2472
    %v2544 = vmul.f32 %v2015, %v2476
    %v2545 = vmul.f32 %v2019, %v2464
    %v2546 = vmul.f32 %v2019, %v2468
    %v2547 = vmul.f32 %v2019, %v2472
    %v2548 = vmul.f32 %v2019, %v2476
    %v2549 = vmul.f32 %v2023, %v2464
    %v2550 = vmul.f32 %v2023, %v2468
    %v2551 = vmul.f32 %v2023, %v2472
    %v2552 = vmul.f32 %v2023, %v2476
    %v2553 = vmul.f32 %v2027, %v2464
    %v2554 = vmul.f32 %v2027, %v2468
    %v2555 = vmul.f32 %v2027, %v2472
    %v2556 = vmul.f32 %v2027, %v2476
    %v2557 = vmul.f32 %v2031, %v2464
    %v2558 = vmul.f32 %v2031, %v2468
    %v2559 = vmul.f32 %v2031, %v2472
    %v2560 = vmul.f32 %v2031, %v2476
    %v2561 = vmul.f32 %v2035, %v2464
    %v2562 = vmul.f32 %v2035, %v2468
    %v2563 = vmul.f32 %v2035, %v2472
    %v2564 = vmul.f32 %v2035, %v2476
    %v2565 = vmul.f32 %v2039, %v2464
    %v2566 = vmul.f32 %v2039, %v2468
    %v2567 = vmul.f32 %v2039, %v2472
    %v2568 = vmul.f32 %v2039, %v2476
    %v2569 = vmul.f32 %v2043, %v2464
    %v2570 = vmul.f32 %v2043, %v2468
    %v2571 = vmul.f32 %v2043, %v2472
    %v2572 = vmul.f32 %v2043, %v2476
    %v2573 = vmul.f32 %v2047, %v2464
    %v2574 = vmul.f32 %v2047, %v2468
    %v2575 = vmul.f32 %v2047, %v2472
    %v2576 = vmul.f32 %v2047, %v2476
    %v2577 = vmul.f32 %v2051, %v2464
    %v2578 = vmul.f32 %v2051, %v2468
    %v2579 = vmul.f32 %v2051, %v2472
    %v2580 = vmul.f32 %v2051, %v2476
    %v2581 = vmul.f32 %v2055, %v2464
    %v2582 = vmul.f32 %v2055, %v2468
    %v2583 = vmul.f32 %v2055, %v2472
    %v2584 = vmul.f32 %v2055, %v2476
    %v2585 = vmul.f32 %v2059, %v2464
    %v2586 = vmul.f32 %v2059, %v2468
    %v2587 = vmul.f32 %v2059, %v2472
    %v2588 = vmul.f32 %v2059, %v2476
    %v2589 = vmul.f32 %v2063, %v2464
    %v2590 = vmul.f32 %v2063, %v2468
    %v2591 = vmul.f32 %v2063, %v2472
    %v2592 = vmul.f32 %v2063, %v2476
    %v2593 = vmul.f32 %v2067, %v2464
    %v2594 = vmul.f32 %v2067, %v2468
    %v2595 = vmul.f32 %v2067, %v2472
    %v2596 = vmul.f32 %v2067, %v2476
    %v2597 = vmul.f32 %v2071, %v2464
    %v2598 = vmul.f32 %v2071, %v2468
    %v2599 = vmul.f32 %v2071, %v2472
    %v2600 = vmul.f32 %v2071, %v2476
    %v2601 = vmul.f32 %v2075, %v2464
    %v2602 = vmul.f32 %v2075, %v2468
    %v2603 = vmul.f32 %v2075, %v2472
    %v2604 = vmul.f32 %v2075, %v2476
    %v2605 = vmul.f32 %v2079, %v2464
    %v2606 = vmul.f32 %v2079, %v2468
    %v2607 = vmul.f32 %v2079, %v2472
    %v2608 = vmul.f32 %v2079, %v2476
    %v2609 = vmul.f32 %v2083, %v2464
    %v2610 = vmul.f32 %v2083, %v2468
    %v2611 = vmul.f32 %v2083, %v2472
    %v2612 = vmul.f32 %v2083, %v2476
    %v2613 = vmul.f32 %v2087, %v2464
    %v2614 = vmul.f32 %v2087, %v2468
    %v2615 = vmul.f32 %v2087, %v2472
    %v2616 = vmul.f32 %v2087, %v2476
    %v2617 = vmul.f32 %v2091, %v2464
    %v2618 = vmul.f32 %v2091, %v2468
    %v2619 = vmul.f32 %v2091, %v2472
    %v2620 = vmul.f32 %v2091, %v2476
    %v2621 = vmul.f32 %v2095, %v2464
    %v2622 = vmul.f32 %v2095, %v2468
    %v2623 = vmul.f32 %v2095, %v2472
    %v2624 = vmul.f32 %v2095, %v2476
    %v2625 = vmul.f32 %v2099, %v2464
    %v2626 = vmul.f32 %v2099, %v2468
    %v2627 = vmul.f32 %v2099, %v2472
    %v2628 = vmul.f32 %v2099, %v2476
    %v2629 = vmul.f32 %v2103, %v2464
    %v2630 = vmul.f32 %v2103, %v2468
    %v2631 = vmul.f32 %v2103, %v2472
    %v2632 = vmul.f32 %v2103, %v2476
    %v2633 = vmul.f32 %v2107, %v2464
    %v2634 = vmul.f32 %v2107, %v2468
    %v2635 = vmul.f32 %v2107, %v2472
    %v2636 = vmul.f32 %v2107, %v2476
    %v2637 = vmul.f32 %v2111, %v2464
    %v2638 = vmul.f32 %v2111, %v2468
    %v2639 = vmul.f32 %v2111, %v2472
    %v2640 = vmul.f32 %v2111, %v2476
    %v2641 = vmul.f32 %v2115, %v2464
    %v2642 = vmul.f32 %v2115, %v2468
    %v2643 = vmul.f32 %v2115, %v2472
    %v2644 = vmul.f32 %v2115, %v2476
    %v2645 = vmul.f32 %v2119, %v2464
    %v2646 = vmul.f32 %v2119, %v2468
    %v2647 = vmul.f32 %v2119, %v2472
    %v2648 = vmul.f32 %v2119, %v2476
    %v2649 = vmul.f32 %v2123, %v2464
    %v2650 = vmul.f32 %v2123, %v2468
    %v2651 = vmul.f32 %v2123, %v2472
    %v2652 = vmul.f32 %v2123, %v2476
    %v2653 = vmul.f32 %v2127, %v2464
    %v2654 = vmul.f32 %v2127, %v2468
    %v2655 = vmul.f32 %v2127, %v2472
    %v2656 = vmul.f32 %v2127, %v2476
    %v2657 = vmul.f32 %v2131, %v2464
    %v2658 = vmul.f32 %v2131, %v2468
    %v2659 = vmul.f32 %v2131, %v2472
    %v2660 = vmul.f32 %v2131, %v2476
    %v2661 = vmul.f32 %v2135, %v2464
    %v2662 = vmul.f32 %v2135, %v2468
    %v2663 = vmul.f32 %v2135, %v2472
    %v2664 = vmul.f32 %v2135, %v2476
    %v2665 = vmul.f32 %v2139, %v2464
    %v2666 = vmul.f32 %v2139, %v2468
    %v2667 = vmul.f32 %v2139, %v2472
    %v2668 = vmul.f32 %v2139, %v2476
    %v2669 = vmul.f32 %v2143, %v2464
    %v2670 = vmul.f32 %v2143, %v2468
    %v2671 = vmul.f32 %v2143, %v2472
    %v2672 = vmul.f32 %v2143, %v2476
    %v2673 = vmul.f32 %v2147, %v2464
    %v2674 = vmul.f32 %v2147, %v2468
    %v2675 = vmul.f32 %v2147, %v2472
    %v2676 = vmul.f32 %v2147, %v2476
    %v2677 = vmul.f32 %v2151, %v2464
    %v2678 = vmul.f32 %v2151, %v2468
    %v2679 = vmul.f32 %v2151, %v2472
    %v2680 = vmul.f32 %v2151, %v2476
    %v2681 = vmul.f32 %v2155, %v2464
    %v2682 = vmul.f32 %v2155, %v2468
    %v2683 = vmul.f32 %v2155, %v2472
    %v2684 = vmul.f32 %v2155, %v2476
    %v2685 = vmul.f32 %v2159, %v2464
    %v2686 = vmul.f32 %v2159, %v2468
    %v2687 = vmul.f32 %v2159, %v2472
    %v2688 = vmul.f32 %v2159, %v2476
    %v2689 = vmul.f32 %v2163, %v2464
    %v2690 = vmul.f32 %v2163, %v2468
    %v2691 = vmul.f32 %v2163, %v2472
    %v2692 = vmul.f32 %v2163, %v2476
    %v2693 = vmul.f32 %v2167, %v2464
    %v2694 = vmul.f32 %v2167, %v2468
    %v2695 = vmul.f32 %v2167, %v2472
    %v2696 = vmul.f32 %v2167, %v2476
    %v2697 = vmul.f32 %v2171, %v2464
    %v2698 = vmul.f32 %v2171, %v2468
    %v2699 = vmul.f32 %v2171, %v2472
    %v2700 = vmul.f32 %v2171, %v2476
    %v2701 = vmul.f32 %v2175, %v2464
    %v2702 = vmul.f32 %v2175, %v2468
    %v2703 = vmul.f32 %v2175, %v2472
    %v2704 = vmul.f32 %v2175, %v2476
    %v2705 = vmul.f32 %v2179, %v2464
    %v2706 = vmul.f32 %v2179, %v2468
    %v2707 = vmul.f32 %v2179, %v2472
    %v2708 = vmul.f32 %v2179, %v2476
    %v2709 = vmul.f32 %v2183, %v2464
    %v2710 = vmul.f32 %v2183, %v2468
    %v2711 = vmul.f32 %v2183, %v2472
    %v2712 = vmul.f32 %v2183, %v2476
    %v2713 = vmul.f32 %v2187, %v2464
    %v2714 = vmul.f32 %v2187, %v2468
    %v2715 = vmul.f32 %v2187, %v2472
    %v2716 = vmul.f32 %v2187, %v2476
    %v2717 = vmul.f32 %v2191, %v2464
    %v2718 = vmul.f32 %v2191, %v2468
    %v2719 = vmul.f32 %v2191, %v2472
    %v2720 = vmul.f32 %v2191, %v2476
    %v2721 = vmul.f32 %v2195, %v2464
    %v2722 = vmul.f32 %v2195, %v2468
    %v2723 = vmul.f32 %v2195, %v2472
    %v2724 = vmul.f32 %v2195, %v2476
    %v2725 = vmul.f32 %v2199, %v2464
    %v2726 = vmul.f32 %v2199, %v2468
    %v2727 = vmul.f32 %v2199, %v2472
    %v2728 = vmul.f32 %v2199, %v2476
    %v2729 = vmul.f32 %v2203, %v2464
    %v2730 = vmul.f32 %v2203, %v2468
    %v2731 = vmul.f32 %v2203, %v2472
    %v2732 = vmul.f32 %v2203, %v2476
    %v2733 = vmul.f32 %v2207, %v2464
    %v2734 = vmul.f32 %v2207, %v2468
    %v2735 = vmul.f32 %v2207, %v2472
    %v2736 = vmul.f32 %v2207, %v2476
    %v2737 = vmul.f32 %v2211, %v2464
    %v2738 = vmul.f32 %v2211, %v2468
    %v2739 = vmul.f32 %v2211, %v2472
    %v2740 = vmul.f32 %v2211, %v2476
    %v2741 = vmul.f32 %v2215, %v2464
    %v2742 = vmul.f32 %v2215, %v2468
    %v2743 = vmul.f32 %v2215, %v2472
    %v2744 = vmul.f32 %v2215, %v2476
    %v2745 = vmul.f32 %v2219, %v2464
    %v2746 = vmul.f32 %v2219, %v2468
    %v2747 = vmul.f32 %v2219, %v2472
    %v2748 = vmul.f32 %v2219, %v2476
    %v2749 = vmul.f32 %v2223, %v2464
    %v2750 = vmul.f32 %v2223, %v2468
    %v2751 = vmul.f32 %v2223, %v2472
    %v2752 = vmul.f32 %v2223, %v2476
    %v2753 = vmul.f32 %v2227, %v2464
    %v2754 = vmul.f32 %v2227, %v2468
    %v2755 = vmul.f32 %v2227, %v2472
    %v2756 = vmul.f32 %v2227, %v2476
    %v2757 = vmul.f32 %v2231, %v2464
    %v2758 = vmul.f32 %v2231, %v2468
    %v2759 = vmul.f32 %v2231, %v2472
    %v2760 = vmul.f32 %v2231, %v2476
    %v2761 = vmul.f32 %v2235, %v2464
    %v2762 = vmul.f32 %v2235, %v2468
    %v2763 = vmul.f32 %v2235, %v2472
    %v2764 = vmul.f32 %v2235, %v2476
    %v2765 = vmul.f32 %v2239, %v2464
    %v2766 = vmul.f32 %v2239, %v2468
    %v2767 = vmul.f32 %v2239, %v2472
    %v2768 = vmul.f32 %v2239, %v2476
    %v2769 = vmul.f32 %v2243, %v2464
    %v2770 = vmul.f32 %v2243, %v2468
    %v2771 = vmul.f32 %v2243, %v2472
    %v2772 = vmul.f32 %v2243, %v2476
    %v2773 = vmul.f32 %v2247, %v2464
    %v2774 = vmul.f32 %v2247, %v2468
    %v2775 = vmul.f32 %v2247, %v2472
    %v2776 = vmul.f32 %v2247, %v2476
    %v2777 = vmul.f32 %v2251, %v2464
    %v2778 = vmul.f32 %v2251, %v2468
    %v2779 = vmul.f32 %v2251, %v2472
    %v2780 = vmul.f32 %v2251, %v2476
    %v2781 = vmul.f32 %v2255, %v2464
    %v2782 = vmul.f32 %v2255, %v2468
    %v2783 = vmul.f32 %v2255, %v2472
    %v2784 = vmul.f32 %v2255, %v2476
    %v2785 = vmul.f32 %v2259, %v2464
    %v2786 = vmul.f32 %v2259, %v2468
    %v2787 = vmul.f32 %v2259, %v2472
    %v2788 = vmul.f32 %v2259, %v2476
    %v2789 = vmul.f32 %v2263, %v2464
    %v2790 = vmul.f32 %v2263, %v2468
    %v2791 = vmul.f32 %v2263, %v2472
    %v2792 = vmul.f32 %v2263, %v2476
    %v2793 = vmul.f32 %v2267, %v2464
    %v2794 = vmul.f32 %v2267, %v2468
    %v2795 = vmul.f32 %v2267, %v2472
    %v2796 = vmul.f32 %v2267, %v2476
    %v2797 = vmul.f32 %v2271, %v2464
    %v2798 = vmul.f32 %v2271, %v2468
    %v2799 = vmul.f32 %v2271, %v2472
    %v2800 = vmul.f32 %v2271, %v2476
    %v2801 = vmul.f32 %v2275, %v2464
    %v2802 = vmul.f32 %v2275, %v2468
    %v2803 = vmul.f32 %v2275, %v2472
    %v2804 = vmul.f32 %v2275, %v2476
    %v2805 = vmul.f32 %v2279, %v2464
    %v2806 = vmul.f32 %v2279, %v2468
    %v2807 = vmul.f32 %v2279, %v2472
    %v2808 = vmul.f32 %v2279, %v2476
    %v2809 = vmul.f32 %v2283, %v2464
    %v2810 = vmul.f32 %v2283, %v2468
    %v2811 = vmul.f32 %v2283, %v2472
    %v2812 = vmul.f32 %v2283, %v2476
    %v2813 = vmul.f32 %v2287, %v2464
    %v2814 = vmul.f32 %v2287, %v2468
    %v2815 = vmul.f32 %v2287, %v2472
    %v2816 = vmul.f32 %v2287, %v2476
    %v2817 = vmul.f32 %v2291, %v2464
    %v2818 = vmul.f32 %v2291, %v2468
    %v2819 = vmul.f32 %v2291, %v2472
    %v2820 = vmul.f32 %v2291, %v2476
    %v2821 = vmul.f32 %v2295, %v2464
    %v2822 = vmul.f32 %v2295, %v2468
    %v2823 = vmul.f32 %v2295, %v2472
    %v2824 = vmul.f32 %v2295, %v2476
    %v2825 = vmul.f32 %v2299, %v2464
    %v2826 = vmul.f32 %v2299, %v2468
    %v2827 = vmul.f32 %v2299, %v2472
    %v2828 = vmul.f32 %v2299, %v2476
    %v2829 = vmul.f32 %v2303, %v2464
    %v2830 = vmul.f32 %v2303, %v2468
    %v2831 = vmul.f32 %v2303, %v2472
    %v2832 = vmul.f32 %v2303, %v2476
    %v2833 = vmul.f32 %v2307, %v2464
    %v2834 = vmul.f32 %v2307, %v2468
    %v2835 = vmul.f32 %v2307, %v2472
    %v2836 = vmul.f32 %v2307, %v2476
    %v2837 = vmul.f32 %v2311, %v2464
    %v2838 = vmul.f32 %v2311, %v2468
    %v2839 = vmul.f32 %v2311, %v2472
    %v2840 = vmul.f32 %v2311, %v2476
    %v2841 = vmul.f32 %v2315, %v2464
    %v2842 = vmul.f32 %v2315, %v2468
    %v2843 = vmul.f32 %v2315, %v2472
    %v2844 = vmul.f32 %v2315, %v2476
    %v2845 = vmul.f32 %v2319, %v2464
    %v2846 = vmul.f32 %v2319, %v2468
    %v2847 = vmul.f32 %v2319, %v2472
    %v2848 = vmul.f32 %v2319, %v2476
    %v2849 = vmul.f32 %v2323, %v2464
    %v2850 = vmul.f32 %v2323, %v2468
    %v2851 = vmul.f32 %v2323, %v2472
    %v2852 = vmul.f32 %v2323, %v2476
    %v2853 = vmul.f32 %v2327, %v2464
    %v2854 = vmul.f32 %v2327, %v2468
    %v2855 = vmul.f32 %v2327, %v2472
    %v2856 = vmul.f32 %v2327, %v2476
    %v2857 = vmul.f32 %v2331, %v2464
    %v2858 = vmul.f32 %v2331, %v2468
    %v2859 = vmul.f32 %v2331, %v2472
    %v2860 = vmul.f32 %v2331, %v2476
    %v2861 = vmul.f32 %v2335, %v2464
    %v2862 = vmul.f32 %v2335, %v2468
    %v2863 = vmul.f32 %v2335, %v2472
    %v2864 = vmul.f32 %v2335, %v2476
    %v2865 = vmul.f32 %v2339, %v2464
    %v2866 = vmul.f32 %v2339, %v2468
    %v2867 = vmul.f32 %v2339, %v2472
    %v2868 = vmul.f32 %v2339, %v2476
    %v2869 = vmul.f32 %v2343, %v2464
    %v2870 = vmul.f32 %v2343, %v2468
    %v2871 = vmul.f32 %v2343, %v2472
    %v2872 = vmul.f32 %v2343, %v2476
    %v2873 = vmul.f32 %v2347, %v2464
    %v2874 = vmul.f32 %v2347, %v2468
    %v2875 = vmul.f32 %v2347, %v2472
    %v2876 = vmul.f32 %v2347, %v2476
    %v2877 = vmul.f32 %v2351, %v2464
    %v2878 = vmul.f32 %v2351, %v2468
    %v2879 = vmul.f32 %v2351, %v2472
    %v2880 = vmul.f32 %v2351, %v2476
    %v2881 = vmul.f32 %v2355, %v2464
    %v2882 = vmul.f32 %v2355, %v2468
    %v2883 = vmul.f32 %v2355, %v2472
    %v2884 = vmul.f32 %v2355, %v2476
    %v2885 = vmul.f32 %v2359, %v2464
    %v2886 = vmul.f32 %v2359, %v2468
    %v2887 = vmul.f32 %v2359, %v2472
    %v2888 = vmul.f32 %v2359, %v2476
    %v2889 = vmul.f32 %v2363, %v2464
    %v2890 = vmul.f32 %v2363, %v2468
    %v2891 = vmul.f32 %v2363, %v2472
    %v2892 = vmul.f32 %v2363, %v2476
    %v2893 = vmul.f32 %v2367, %v2464
    %v2894 = vmul.f32 %v2367, %v2468
    %v2895 = vmul.f32 %v2367, %v2472
    %v2896 = vmul.f32 %v2367, %v2476
    %v2897 = vmul.f32 %v2371, %v2464
    %v2898 = vmul.f32 %v2371, %v2468
    %v2899 = vmul.f32 %v2371, %v2472
    %v2900 = vmul.f32 %v2371, %v2476
    %v2901 = vmul.f32 %v2375, %v2464
    %v2902 = vmul.f32 %v2375, %v2468
    %v2903 = vmul.f32 %v2375, %v2472
    %v2904 = vmul.f32 %v2375, %v2476
    %v2905 = vmul.f32 %v2379, %v2464
    %v2906 = vmul.f32 %v2379, %v2468
    %v2907 = vmul.f32 %v2379, %v2472
    %v2908 = vmul.f32 %v2379, %v2476
    %v2909 = vmul.f32 %v2383, %v2464
    %v2910 = vmul.f32 %v2383, %v2468
    %v2911 = vmul.f32 %v2383, %v2472
    %v2912 = vmul.f32 %v2383, %v2476
    %v2913 = vmul.f32 %v2387, %v2464
    %v2914 = vmul.f32 %v2387, %v2468
    %v2915 = vmul.f32 %v2387, %v2472
    %v2916 = vmul.f32 %v2387, %v2476
    %v2917 = vmul.f32 %v2391, %v2464
    %v2918 = vmul.f32 %v2391, %v2468
    %v2919 = vmul.f32 %v2391, %v2472
    %v2920 = vmul.f32 %v2391, %v2476
    %v2921 = vmul.f32 %v2395, %v2464
    %v2922 = vmul.f32 %v2395, %v2468
    %v2923 = vmul.f32 %v2395, %v2472
    %v2924 = vmul.f32 %v2395, %v2476
    %v2925 = vmul.f32 %v2399, %v2464
    %v2926 = vmul.f32 %v2399, %v2468
    %v2927 = vmul.f32 %v2399, %v2472
    %v2928 = vmul.f32 %v2399, %v2476
    %v2929 = vmul.f32 %v2403, %v2464
    %v2930 = vmul.f32 %v2403, %v2468
    %v2931 = vmul.f32 %v2403, %v2472
    %v2932 = vmul.f32 %v2403, %v2476
    %v2933 = vmul.f32 %v2407, %v2464
    %v2934 = vmul.f32 %v2407, %v2468
    %v2935 = vmul.f32 %v2407, %v2472
    %v2936 = vmul.f32 %v2407, %v2476
    %v2937 = vmul.f32 %v2411, %v2464
    %v2938 = vmul.f32 %v2411, %v2468
    %v2939 = vmul.f32 %v2411, %v2472
    %v2940 = vmul.f32 %v2411, %v2476
    %v2941 = vmul.f32 %v2415, %v2464
    %v2942 = vmul.f32 %v2415, %v2468
    %v2943 = vmul.f32 %v2415, %v2472
    %v2944 = vmul.f32 %v2415, %v2476
    %v2945 = vmul.f32 %v2419, %v2464
    %v2946 = vmul.f32 %v2419, %v2468
    %v2947 = vmul.f32 %v2419, %v2472
    %v2948 = vmul.f32 %v2419, %v2476
    %v2949 = vmul.f32 %v2423, %v2464
    %v2950 = vmul.f32 %v2423, %v2468
    %v2951 = vmul.f32 %v2423, %v2472
    %v2952 = vmul.f32 %v2423, %v2476
    %v2953 = vmul.f32 %v2427, %v2464
    %v2954 = vmul.f32 %v2427, %v2468
    %v2955 = vmul.f32 %v2427, %v2472
    %v2956 = vmul.f32 %v2427, %v2476
    %v2957 = vmul.f32 %v2431, %v2464
    %v2958 = vmul.f32 %v2431, %v2468
    %v2959 = vmul.f32 %v2431, %v2472
    %v2960 = vmul.f32 %v2431, %v2476
    %v2961 = vmul.f32 %v2435, %v2464
    %v2962 = vmul.f32 %v2435, %v2468
    %v2963 = vmul.f32 %v2435, %v2472
    %v2964 = vmul.f32 %v2435, %v2476
    %v2965 = vmul.f32 %v2439, %v2464
    %v2966 = vmul.f32 %v2439, %v2468
    %v2967 = vmul.f32 %v2439, %v2472
    %v2968 = vmul.f32 %v2439, %v2476
    %v2969 = vmul.f32 %v2443, %v2464
    %v2970 = vmul.f32 %v2443, %v2468
    %v2971 = vmul.f32 %v2443, %v2472
    %v2972 = vmul.f32 %v2443, %v2476
    %v2973 = vmul.f32 %v2447, %v2464
    %v2974 = vmul.f32 %v2447, %v2468
    %v2975 = vmul.f32 %v2447, %v2472
    %v2976 = vmul.f32 %v2447, %v2476
    %v2977 = vmul.f32 %v2451, %v2464
    %v2978 = vmul.f32 %v2451, %v2468
    %v2979 = vmul.f32 %v2451, %v2472
    %v2980 = vmul.f32 %v2451, %v2476
    %v2981 = vmul.f32 %v2455, %v2464
    %v2982 = vmul.f32 %v2455, %v2468
    %v2983 = vmul.f32 %v2455, %v2472
    %v2984 = vmul.f32 %v2455, %v2476
    %v2985 = vmul.f32 %v2459, %v2464
    %v2986 = vmul.f32 %v2459, %v2468
    %v2987 = vmul.f32 %v2459, %v2472
    %v2988 = vmul.f32 %v2459, %v2476
    %v2989 = vadd.f32 %v1437, %v2477
    %v2990 = vadd.f32 %v1438, %v2478
    %v2991 = vadd.f32 %v1439, %v2479
    %v2992 = vadd.f32 %v1440, %v2480
    %v2993 = vadd.f32 %v1441, %v2481
    %v2994 = vadd.f32 %v1442, %v2482
    %v2995 = vadd.f32 %v1443, %v2483
    %v2996 = vadd.f32 %v1444, %v2484
    %v2997 = vadd.f32 %v1445, %v2485
    %v2998 = vadd.f32 %v1446, %v2486
    %v2999 = vadd.f32 %v1447, %v2487
    %v3000 = vadd.f32 %v1448, %v2488
    %v3001 = vadd.f32 %v1449, %v2489
    %v3002 = vadd.f32 %v1450, %v2490
    %v3003 = vadd.f32 %v1451, %v2491
    %v3004 = vadd.f32 %v1452, %v2492
    %v3005 = vadd.f32 %v1453, %v2493
    %v3006 = vadd.f32 %v1454, %v2494
    %v3007 = vadd.f32 %v1455, %v2495
    %v3008 = vadd.f32 %v1456, %v2496
    %v3009 = vadd.f32 %v1457, %v2497
    %v3010 = vadd.f32 %v1458, %v2498
    %v3011 = vadd.f32 %v1459, %v2499
    %v3012 = vadd.f32 %v1460, %v2500
    %v3013 = vadd.f32 %v1461, %v2501
    %v3014 = vadd.f32 %v1462, %v2502
    %v3015 = vadd.f32 %v1463, %v2503
    %v3016 = vadd.f32 %v1464, %v2504
    %v3017 = vadd.f32 %v1465, %v2505
    %v3018 = vadd.f32 %v1466, %v2506
    %v3019 = vadd.f32 %v1467, %v2507
    %v3020 = vadd.f32 %v1468, %v2508
    %v3021 = vadd.f32 %v1469, %v2509
    %v3022 = vadd.f32 %v1470, %v2510
    %v3023 = vadd.f32 %v1471, %v2511
    %v3024 = vadd.f32 %v1472, %v2512
    %v3025 = vadd.f32 %v1473, %v2513
    %v3026 = vadd.f32 %v1474, %v2514
    %v3027 = vadd.f32 %v1475, %v2515
    %v3028 = vadd.f32 %v1476, %v2516
    %v3029 = vadd.f32 %v1477, %v2517
    %v3030 = vadd.f32 %v1478, %v2518
    %v3031 = vadd.f32 %v1479, %v2519
    %v3032 = vadd.f32 %v1480, %v2520
    %v3033 = vadd.f32 %v1481, %v2521
    %v3034 = vadd.f32 %v1482, %v2522
    %v3035 = vadd.f32 %v1483, %v2523
    %v3036 = vadd.f32 %v1484, %v2524
    %v3037 = vadd.f32 %v1485, %v2525
    %v3038 = vadd.f32 %v1486, %v2526
    %v3039 = vadd.f32 %v1487, %v2527
    %v3040 = vadd.f32 %v1488, %v2528
    %v3041 = vadd.f32 %v1489, %v2529
    %v3042 = vadd.f32 %v1490, %v2530
    %v3043 = vadd.f32 %v1491, %v2531
    %v3044 = vadd.f32 %v1492, %v2532
    %v3045 = vadd.f32 %v1493, %v2533
    %v3046 = vadd.f32 %v1494, %v2534
    %v3047 = vadd.f32 %v1495, %v2535
    %v3048 = vadd.f32 %v1496, %v2536
    %v3049 = vadd.f32 %v1497, %v2537
    %v3050 = vadd.f32 %v1498, %v2538
    %v3051 = vadd.f32 %v1499, %v2539
    %v3052 = vadd.f32 %v1500, %v2540
    %v3053 = vadd.f32 %v1501, %v2541
    %v3054 = vadd.f32 %v1502, %v2542
    %v3055 = vadd.f32 %v1503, %v2543
    %v3056 = vadd.f32 %v1504, %v2544
    %v3057 = vadd.f32 %v1505, %v2545
    %v3058 = vadd.f32 %v1506, %v2546
    %v3059 = vadd.f32 %v1507, %v2547
    %v3060 = vadd.f32 %v1508, %v2548
    %v3061 = vadd.f32 %v1509, %v2549
    %v3062 = vadd.f32 %v1510, %v2550
    %v3063 = vadd.f32 %v1511, %v2551
    %v3064 = vadd.f32 %v1512, %v2552
    %v3065 = vadd.f32 %v1513, %v2553
    %v3066 = vadd.f32 %v1514, %v2554
    %v3067 = vadd.f32 %v1515, %v2555
    %v3068 = vadd.f32 %v1516, %v2556
    %v3069 = vadd.f32 %v1517, %v2557
    %v3070 = vadd.f32 %v1518, %v2558
    %v3071 = vadd.f32 %v1519, %v2559
    %v3072 = vadd.f32 %v1520, %v2560
    %v3073 = vadd.f32 %v1521, %v2561
    %v3074 = vadd.f32 %v1522, %v2562
    %v3075 = vadd.f32 %v1523, %v2563
    %v3076 = vadd.f32 %v1524, %v2564
    %v3077 = vadd.f32 %v1525, %v2565
    %v3078 = vadd.f32 %v1526, %v2566
    %v3079 = vadd.f32 %v1527, %v2567
    %v3080 = vadd.f32 %v1528, %v2568
    %v3081 = vadd.f32 %v1529, %v2569
    %v3082 = vadd.f32 %v1530, %v2570
    %v3083 = vadd.f32 %v1531, %v2571
    %v3084 = vadd.f32 %v1532, %v2572
    %v3085 = vadd.f32 %v1533, %v2573
    %v3086 = vadd.f32 %v1534, %v2574
    %v3087 = vadd.f32 %v1535, %v2575
    %v3088 = vadd.f32 %v1536, %v2576
    %v3089 = vadd.f32 %v1537, %v2577
    %v3090 = vadd.f32 %v1538, %v2578
    %v3091 = vadd.f32 %v1539, %v2579
    %v3092 = vadd.f32 %v1540, %v2580
    %v3093 = vadd.f32 %v1541, %v2581
    %v3094 = vadd.f32 %v1542, %v2582
    %v3095 = vadd.f32 %v1543, %v2583
    %v3096 = vadd.f32 %v1544, %v2584
    %v3097 = vadd.f32 %v1545, %v2585
    %v3098 = vadd.f32 %v1546, %v2586
    %v3099 = vadd.f32 %v1547, %v2587
    %v3100 = vadd.f32 %v1548, %v2588
    %v3101 = vadd.f32 %v1549, %v2589
    %v3102 = vadd.f32 %v1550, %v2590
    %v3103 = vadd.f32 %v1551, %v2591
    %v3104 = vadd.f32 %v1552, %v2592
    %v3105 = vadd.f32 %v1553, %v2593
    %v3106 = vadd.f32 %v1554, %v2594
    %v3107 = vadd.f32 %v1555, %v2595
    %v3108 = vadd.f32 %v1556, %v2596
    %v3109 = vadd.f32 %v1557, %v2597
    %v3110 = vadd.f32 %v1558, %v2598
    %v3111 = vadd.f32 %v1559, %v2599
    %v3112 = vadd.f32 %v1560, %v2600
    %v3113 = vadd.f32 %v1561, %v2601
    %v3114 = vadd.f32 %v1562, %v2602
    %v3115 = vadd.f32 %v1563, %v2603
    %v3116 = vadd.f32 %v1564, %v2604
    %v3117 = vadd.f32 %v1565, %v2605
    %v3118 = vadd.f32 %v1566, %v2606
    %v3119 = vadd.f32 %v1567, %v2607
    %v3120 = vadd.f32 %v1568, %v2608
    %v3121 = vadd.f32 %v1569, %v2609
    %v3122 = vadd.f32 %v1570, %v2610
    %v3123 = vadd.f32 %v1571, %v2611
    %v3124 = vadd.f32 %v1572, %v2612
    %v3125 = vadd.f32 %v1573, %v2613
    %v3126 = vadd.f32 %v1574, %v2614
    %v3127 = vadd.f32 %v1575, %v2615
    %v3128 = vadd.f32 %v1576, %v2616
    %v3129 = vadd.f32 %v1577, %v2617
    %v3130 = vadd.f32 %v1578, %v2618
    %v3131 = vadd.f32 %v1579, %v2619
    %v3132 = vadd.f32 %v1580, %v2620
    %v3133 = vadd.f32 %v1581, %v2621
    %v3134 = vadd.f32 %v1582, %v2622
    %v3135 = vadd.f32 %v1583, %v2623
    %v3136 = vadd.f32 %v1584, %v2624
    %v3137 = vadd.f32 %v1585, %v2625
    %v3138 = vadd.f32 %v1586, %v2626
    %v3139 = vadd.f32 %v1587, %v2627
    %v3140 = vadd.f32 %v1588, %v2628
    %v3141 = vadd.f32 %v1589, %v2629
    %v3142 = vadd.f32 %v1590, %v2630
    %v3143 = vadd.f32 %v1591, %v2631
    %v3144 = vadd.f32 %v1592, %v2632
    %v3145 = vadd.f32 %v1593, %v2633
    %v3146 = vadd.f32 %v1594, %v2634
    %v3147 = vadd.f32 %v1595, %v2635
    %v3148 = vadd.f32 %v1596, %v2636
    %v3149 = vadd.f32 %v1597, %v2637
    %v3150 = vadd.f32 %v1598, %v2638
    %v3151 = vadd.f32 %v1599, %v2639
    %v3152 = vadd.f32 %v1600, %v2640
    %v3153 = vadd.f32 %v1601, %v2641
    %v3154 = vadd.f32 %v1602, %v2642
    %v3155 = vadd.f32 %v1603, %v2643
    %v3156 = vadd.f32 %v1604, %v2644
    %v3157 = vadd.f32 %v1605, %v2645
    %v3158 = vadd.f32 %v1606, %v2646
    %v3159 = vadd.f32 %v1607, %v2647
    %v3160 = vadd.f32 %v1608, %v2648
    %v3161 = vadd.f32 %v1609, %v2649
    %v3162 = vadd.f32 %v1610, %v2650
    %v3163 = vadd.f32 %v1611, %v2651
    %v3164 = vadd.f32 %v1612, %v2652
    %v3165 = vadd.f32 %v1613, %v2653
    %v3166 = vadd.f32 %v1614, %v2654
    %v3167 = vadd.f32 %v1615, %v2655
    %v3168 = vadd.f32 %v1616, %v2656
    %v3169 = vadd.f32 %v1617, %v2657
    %v3170 = vadd.f32 %v1618, %v2658
    %v3171 = vadd.f32 %v1619, %v2659
    %v3172 = vadd.f32 %v1620, %v2660
    %v3173 = vadd.f32 %v1621, %v2661
    %v3174 = vadd.f32 %v1622, %v2662
    %v3175 = vadd.f32 %v1623, %v2663
    %v3176 = vadd.f32 %v1624, %v2664
    %v3177 = vadd.f32 %v1625, %v2665
    %v3178 = vadd.f32 %v1626, %v2666
    %v3179 = vadd.f32 %v1627, %v2667
    %v3180 = vadd.f32 %v1628, %v2668
    %v3181 = vadd.f32 %v1629, %v2669
    %v3182 = vadd.f32 %v1630, %v2670
    %v3183 = vadd.f32 %v1631, %v2671
    %v3184 = vadd.f32 %v1632, %v2672
    %v3185 = vadd.f32 %v1633, %v2673
    %v3186 = vadd.f32 %v1634, %v2674
    %v3187 = vadd.f32 %v1635, %v2675
    %v3188 = vadd.f32 %v1636, %v2676
    %v3189 = vadd.f32 %v1637, %v2677
    %v3190 = vadd.f32 %v1638, %v2678
    %v3191 = vadd.f32 %v1639, %v2679
    %v3192 = vadd.f32 %v1640, %v2680
    %v3193 = vadd.f32 %v1641, %v2681
    %v3194 = vadd.f32 %v1642, %v2682
    %v3195 = vadd.f32 %v1643, %v2683
    %v3196 = vadd.f32 %v1644, %v2684
    %v3197 = vadd.f32 %v1645, %v2685
    %v3198 = vadd.f32 %v1646, %v2686
    %v3199 = vadd.f32 %v1647, %v2687
    %v3200 = vadd.f32 %v1648, %v2688
    %v3201 = vadd.f32 %v1649, %v2689
    %v3202 = vadd.f32 %v1650, %v2690
    %v3203 = vadd.f32 %v1651, %v2691
    %v3204 = vadd.f32 %v1652, %v2692
    %v3205 = vadd.f32 %v1653, %v2693
    %v3206 = vadd.f32 %v1654, %v2694
    %v3207 = vadd.f32 %v1655, %v2695
    %v3208 = vadd.f32 %v1656, %v2696
    %v3209 = vadd.f32 %v1657, %v2697
    %v3210 = vadd.f32 %v1658, %v2698
    %v3211 = vadd.f32 %v1659, %v2699
    %v3212 = vadd.f32 %v1660, %v2700
    %v3213 = vadd.f32 %v1661, %v2701
    %v3214 = vadd.f32 %v1662, %v2702
    %v3215 = vadd.f32 %v1663, %v2703
    %v3216 = vadd.f32 %v1664, %v2704
    %v3217 = vadd.f32 %v1665, %v2705
    %v3218 = vadd.f32 %v1666, %v2706
    %v3219 = vadd.f32 %v1667, %v2707
    %v3220 = vadd.f32 %v1668, %v2708
    %v3221 = vadd.f32 %v1669, %v2709
    %v3222 = vadd.f32 %v1670, %v2710
    %v3223 = vadd.f32 %v1671, %v2711
    %v3224 = vadd.f32 %v1672, %v2712
    %v3225 = vadd.f32 %v1673, %v2713
    %v3226 = vadd.f32 %v1674, %v2714
    %v3227 = vadd.f32 %v1675, %v2715
    %v3228 = vadd.f32 %v1676, %v2716
    %v3229 = vadd.f32 %v1677, %v2717
    %v3230 = vadd.f32 %v1678, %v2718
    %v3231 = vadd.f32 %v1679, %v2719
    %v3232 = vadd.f32 %v1680, %v2720
    %v3233 = vadd.f32 %v1681, %v2721
    %v3234 = vadd.f32 %v1682, %v2722
    %v3235 = vadd.f32 %v1683, %v2723
    %v3236 = vadd.f32 %v1684, %v2724
    %v3237 = vadd.f32 %v1685, %v2725
    %v3238 = vadd.f32 %v1686, %v2726
    %v3239 = vadd.f32 %v1687, %v2727
    %v3240 = vadd.f32 %v1688, %v2728
    %v3241 = vadd.f32 %v1689, %v2729
    %v3242 = vadd.f32 %v1690, %v2730
    %v3243 = vadd.f32 %v1691, %v2731
    %v3244 = vadd.f32 %v1692, %v2732
    %v3245 = vadd.f32 %v1693, %v2733
    %v3246 = vadd.f32 %v1694, %v2734
    %v3247 = vadd.f32 %v1695, %v2735
    %v3248 = vadd.f32 %v1696, %v2736
    %v3249 = vadd.f32 %v1697, %v2737
    %v3250 = vadd.f32 %v1698, %v2738
    %v3251 = vadd.f32 %v1699, %v2739
    %v3252 = vadd.f32 %v1700, %v2740
    %v3253 = vadd.f32 %v1701, %v2741
    %v3254 = vadd.f32 %v1702, %v2742
    %v3255 = vadd.f32 %v1703, %v2743
    %v3256 = vadd.f32 %v1704, %v2744
    %v3257 = vadd.f32 %v1705, %v2745
    %v3258 = vadd.f32 %v1706, %v2746
    %v3259 = vadd.f32 %v1707, %v2747
    %v3260 = vadd.f32 %v1708, %v2748
    %v3261 = vadd.f32 %v1709, %v2749
    %v3262 = vadd.f32 %v1710, %v2750
    %v3263 = vadd.f32 %v1711, %v2751
    %v3264 = vadd.f32 %v1712, %v2752
    %v3265 = vadd.f32 %v1713, %v2753
    %v3266 = vadd.f32 %v1714, %v2754
    %v3267 = vadd.f32 %v1715, %v2755
    %v3268 = vadd.f32 %v1716, %v2756
    %v3269 = vadd.f32 %v1717, %v2757
    %v3270 = vadd.f32 %v1718, %v2758
    %v3271 = vadd.f32 %v1719, %v2759
    %v3272 = vadd.f32 %v1720, %v2760
    %v3273 = vadd.f32 %v1721, %v2761
    %v3274 = vadd.f32 %v1722, %v2762
    %v3275 = vadd.f32 %v1723, %v2763
    %v3276 = vadd.f32 %v1724, %v2764
    %v3277 = vadd.f32 %v1725, %v2765
    %v3278 = vadd.f32 %v1726, %v2766
    %v3279 = vadd.f32 %v1727, %v2767
    %v3280 = vadd.f32 %v1728, %v2768
    %v3281 = vadd.f32 %v1729, %v2769
    %v3282 = vadd.f32 %v1730, %v2770
    %v3283 = vadd.f32 %v1731, %v2771
    %v3284 = vadd.f32 %v1732, %v2772
    %v3285 = vadd.f32 %v1733, %v2773
    %v3286 = vadd.f32 %v1734, %v2774
    %v3287 = vadd.f32 %v1735, %v2775
    %v3288 = vadd.f32 %v1736, %v2776
    %v3289 = vadd.f32 %v1737, %v2777
    %v3290 = vadd.f32 %v1738, %v2778
    %v3291 = vadd.f32 %v1739, %v2779
    %v3292 = vadd.f32 %v1740, %v2780
    %v3293 = vadd.f32 %v1741, %v2781
    %v3294 = vadd.f32 %v1742, %v2782
    %v3295 = vadd.f32 %v1743, %v2783
    %v3296 = vadd.f32 %v1744, %v2784
    %v3297 = vadd.f32 %v1745, %v2785
    %v3298 = vadd.f32 %v1746, %v2786
    %v3299 = vadd.f32 %v1747, %v2787
    %v3300 = vadd.f32 %v1748, %v2788
    %v3301 = vadd.f32 %v1749, %v2789
    %v3302 = vadd.f32 %v1750, %v2790
    %v3303 = vadd.f32 %v1751, %v2791
    %v3304 = vadd.f32 %v1752, %v2792
    %v3305 = vadd.f32 %v1753, %v2793
    %v3306 = vadd.f32 %v1754, %v2794
    %v3307 = vadd.f32 %v1755, %v2795
    %v3308 = vadd.f32 %v1756, %v2796
    %v3309 = vadd.f32 %v1757, %v2797
    %v3310 = vadd.f32 %v1758, %v2798
    %v3311 = vadd.f32 %v1759, %v2799
    %v3312 = vadd.f32 %v1760, %v2800
    %v3313 = vadd.f32 %v1761, %v2801
    %v3314 = vadd.f32 %v1762, %v2802
    %v3315 = vadd.f32 %v1763, %v2803
    %v3316 = vadd.f32 %v1764, %v2804
    %v3317 = vadd.f32 %v1765, %v2805
    %v3318 = vadd.f32 %v1766, %v2806
    %v3319 = vadd.f32 %v1767, %v2807
    %v3320 = vadd.f32 %v1768, %v2808
    %v3321 = vadd.f32 %v1769, %v2809
    %v3322 = vadd.f32 %v1770, %v2810
    %v3323 = vadd.f32 %v1771, %v2811
    %v3324 = vadd.f32 %v1772, %v2812
    %v3325 = vadd.f32 %v1773, %v2813
    %v3326 = vadd.f32 %v1774, %v2814
    %v3327 = vadd.f32 %v1775, %v2815
    %v3328 = vadd.f32 %v1776, %v2816
    %v3329 = vadd.f32 %v1777, %v2817
    %v3330 = vadd.f32 %v1778, %v2818
    %v3331 = vadd.f32 %v1779, %v2819
    %v3332 = vadd.f32 %v1780, %v2820
    %v3333 = vadd.f32 %v1781, %v2821
    %v3334 = vadd.f32 %v1782, %v2822
    %v3335 = vadd.f32 %v1783, %v2823
    %v3336 = vadd.f32 %v1784, %v2824
    %v3337 = vadd.f32 %v1785, %v2825
    %v3338 = vadd.f32 %v1786, %v2826
    %v3339 = vadd.f32 %v1787, %v2827
    %v3340 = vadd.f32 %v1788, %v2828
    %v3341 = vadd.f32 %v1789, %v2829
    %v3342 = vadd.f32 %v1790, %v2830
    %v3343 = vadd.f32 %v1791, %v2831
    %v3344 = vadd.f32 %v1792, %v2832
    %v3345 = vadd.f32 %v1793, %v2833
    %v3346 = vadd.f32 %v1794, %v2834
    %v3347 = vadd.f32 %v1795, %v2835
    %v3348 = vadd.f32 %v1796, %v2836
    %v3349 = vadd.f32 %v1797, %v2837
    %v3350 = vadd.f32 %v1798, %v2838
    %v3351 = vadd.f32 %v1799, %v2839
    %v3352 = vadd.f32 %v1800, %v2840
    %v3353 = vadd.f32 %v1801, %v2841
    %v3354 = vadd.f32 %v1802, %v2842
    %v3355 = vadd.f32 %v1803, %v2843
    %v3356 = vadd.f32 %v1804, %v2844
    %v3357 = vadd.f32 %v1805, %v2845
    %v3358 = vadd.f32 %v1806, %v2846
    %v3359 = vadd.f32 %v1807, %v2847
    %v3360 = vadd.f32 %v1808, %v2848
    %v3361 = vadd.f32 %v1809, %v2849
    %v3362 = vadd.f32 %v1810, %v2850
    %v3363 = vadd.f32 %v1811, %v2851
    %v3364 = vadd.f32 %v1812, %v2852
    %v3365 = vadd.f32 %v1813, %v2853
    %v3366 = vadd.f32 %v1814, %v2854
    %v3367 = vadd.f32 %v1815, %v2855
    %v3368 = vadd.f32 %v1816, %v2856
    %v3369 = vadd.f32 %v1817, %v2857
    %v3370 = vadd.f32 %v1818, %v2858
    %v3371 = vadd.f32 %v1819, %v2859
    %v3372 = vadd.f32 %v1820, %v2860
    %v3373 = vadd.f32 %v1821, %v2861
    %v3374 = vadd.f32 %v1822, %v2862
    %v3375 = vadd.f32 %v1823, %v2863
    %v3376 = vadd.f32 %v1824, %v2864
    %v3377 = vadd.f32 %v1825, %v2865
    %v3378 = vadd.f32 %v1826, %v2866
    %v3379 = vadd.f32 %v1827, %v2867
    %v3380 = vadd.f32 %v1828, %v2868
    %v3381 = vadd.f32 %v1829, %v2869
    %v3382 = vadd.f32 %v1830, %v2870
    %v3383 = vadd.f32 %v1831, %v2871
    %v3384 = vadd.f32 %v1832, %v2872
    %v3385 = vadd.f32 %v1833, %v2873
    %v3386 = vadd.f32 %v1834, %v2874
    %v3387 = vadd.f32 %v1835, %v2875
    %v3388 = vadd.f32 %v1836, %v2876
    %v3389 = vadd.f32 %v1837, %v2877
    %v3390 = vadd.f32 %v1838, %v2878
    %v3391 = vadd.f32 %v1839, %v2879
    %v3392 = vadd.f32 %v1840, %v2880
    %v3393 = vadd.f32 %v1841, %v2881
    %v3394 = vadd.f32 %v1842, %v2882
    %v3395 = vadd.f32 %v1843, %v2883
    %v3396 = vadd.f32 %v1844, %v2884
    %v3397 = vadd.f32 %v1845, %v2885
    %v3398 = vadd.f32 %v1846, %v2886
    %v3399 = vadd.f32 %v1847, %v2887
    %v3400 = vadd.f32 %v1848, %v2888
    %v3401 = vadd.f32 %v1849, %v2889
    %v3402 = vadd.f32 %v1850, %v2890
    %v3403 = vadd.f32 %v1851, %v2891
    %v3404 = vadd.f32 %v1852, %v2892
    %v3405 = vadd.f32 %v1853, %v2893
    %v3406 = vadd.f32 %v1854, %v2894
    %v3407 = vadd.f32 %v1855, %v2895
    %v3408 = vadd.f32 %v1856, %v2896
    %v3409 = vadd.f32 %v1857, %v2897
    %v3410 = vadd.f32 %v1858, %v2898
    %v3411 = vadd.f32 %v1859, %v2899
    %v3412 = vadd.f32 %v1860, %v2900
    %v3413 = vadd.f32 %v1861, %v2901
    %v3414 = vadd.f32 %v1862, %v2902
    %v3415 = vadd.f32 %v1863, %v2903
    %v3416 = vadd.f32 %v1864, %v2904
    %v3417 = vadd.f32 %v1865, %v2905
    %v3418 = vadd.f32 %v1866, %v2906
    %v3419 = vadd.f32 %v1867, %v2907
    %v3420 = vadd.f32 %v1868, %v2908
    %v3421 = vadd.f32 %v1869, %v2909
    %v3422 = vadd.f32 %v1870, %v2910
    %v3423 = vadd.f32 %v1871, %v2911
    %v3424 = vadd.f32 %v1872, %v2912
    %v3425 = vadd.f32 %v1873, %v2913
    %v3426 = vadd.f32 %v1874, %v2914
    %v3427 = vadd.f32 %v1875, %v2915
    %v3428 = vadd.f32 %v1876, %v2916
    %v3429 = vadd.f32 %v1877, %v2917
    %v3430 = vadd.f32 %v1878, %v2918
    %v3431 = vadd.f32 %v1879, %v2919
    %v3432 = vadd.f32 %v1880, %v2920
    %v3433 = vadd.f32 %v1881, %v2921
    %v3434 = vadd.f32 %v1882, %v2922
    %v3435 = vadd.f32 %v1883, %v2923
    %v3436 = vadd.f32 %v1884, %v2924
    %v3437 = vadd.f32 %v1885, %v2925
    %v3438 = vadd.f32 %v1886, %v2926
    %v3439 = vadd.f32 %v1887, %v2927
    %v3440 = vadd.f32 %v1888, %v2928
    %v3441 = vadd.f32 %v1889, %v2929
    %v3442 = vadd.f32 %v1890, %v2930
    %v3443 = vadd.f32 %v1891, %v2931
    %v3444 = vadd.f32 %v1892, %v2932
    %v3445 = vadd.f32 %v1893, %v2933
    %v3446 = vadd.f32 %v1894, %v2934
    %v3447 = vadd.f32 %v1895, %v2935
    %v3448 = vadd.f32 %v1896, %v2936
    %v3449 = vadd.f32 %v1897, %v2937
    %v3450 = vadd.f32 %v1898, %v2938
    %v3451 = vadd.f32 %v1899, %v2939
    %v3452 = vadd.f32 %v1900, %v2940
    %v3453 = vadd.f32 %v1901, %v2941
    %v3454 = vadd.f32 %v1902, %v2942
    %v3455 = vadd.f32 %v1903, %v2943
    %v3456 = vadd.f32 %v1904, %v2944
    %v3457 = vadd.f32 %v1905, %v2945
    %v3458 = vadd.f32 %v1906, %v2946
    %v3459 = vadd.f32 %v1907, %v2947
    %v3460 = vadd.f32 %v1908, %v2948
    %v3461 = vadd.f32 %v1909, %v2949
    %v3462 = vadd.f32 %v1910, %v2950
    %v3463 = vadd.f32 %v1911, %v2951
    %v3464 = vadd.f32 %v1912, %v2952
    %v3465 = vadd.f32 %v1913, %v2953
    %v3466 = vadd.f32 %v1914, %v2954
    %v3467 = vadd.f32 %v1915, %v2955
    %v3468 = vadd.f32 %v1916, %v2956
    %v3469 = vadd.f32 %v1917, %v2957
    %v3470 = vadd.f32 %v1918, %v2958
    %v3471 = vadd.f32 %v1919, %v2959
    %v3472 = vadd.f32 %v1920, %v2960
    %v3473 = vadd.f32 %v1921, %v2961
    %v3474 = vadd.f32 %v1922, %v2962
    %v3475 = vadd.f32 %v1923, %v2963
    %v3476 = vadd.f32 %v1924, %v2964
    %v3477 = vadd.f32 %v1925, %v2965
    %v3478 = vadd.f32 %v1926, %v2966
    %v3479 = vadd.f32 %v1927, %v2967
    %v3480 = vadd.f32 %v1928, %v2968
    %v3481 = vadd.f32 %v1929, %v2969
    %v3482 = vadd.f32 %v1930, %v2970
    %v3483 = vadd.f32 %v1931, %v2971
    %v3484 = vadd.f32 %v1932, %v2972
    %v3485 = vadd.f32 %v1933, %v2973
    %v3486 = vadd.f32 %v1934, %v2974
    %v3487 = vadd.f32 %v1935, %v2975
    %v3488 = vadd.f32 %v1936, %v2976
    %v3489 = vadd.f32 %v1937, %v2977
    %v3490 = vadd.f32 %v1938, %v2978
    %v3491 = vadd.f32 %v1939, %v2979
    %v3492 = vadd.f32 %v1940, %v2980
    %v3493 = vadd.f32 %v1941, %v2981
    %v3494 = vadd.f32 %v1942, %v2982
    %v3495 = vadd.f32 %v1943, %v2983
    %v3496 = vadd.f32 %v1944, %v2984
    %v3497 = vadd.f32 %v1945, %v2985
    %v3498 = vadd.f32 %v1946, %v2986
    %v3499 = vadd.f32 %v1947, %v2987
    %v3500 = vadd.f32 %v1948, %v2988
    %3501 = vset.pattern.permute.xlu0 2
    %3502 = vperm.xlu0 %3501, %v115
    %v3503 = vpop.permute.xlu0 %3502
    %3505 = vset.pattern.permute.xlu0 2
    %3506 = vperm.xlu0 %3505, %v116
    %v3507 = vpop.permute.xlu0 %3506
    %3509 = vset.pattern.permute.xlu0 2
    %3510 = vperm.xlu0 %3509, %v117
    %v3511 = vpop.permute.xlu0 %3510
    %3513 = vset.pattern.permute.xlu0 2
    %3514 = vperm.xlu0 %3513, %v118
    %v3515 = vpop.permute.xlu0 %3514
    %3517 = vset.pattern.permute.xlu0 2
    %3518 = vperm.xlu0 %3517, %v119
    %v3519 = vpop.permute.xlu0 %3518
    %3521 = vset.pattern.permute.xlu0 2
    %3522 = vperm.xlu0 %3521, %v120
    %v3523 = vpop.permute.xlu0 %3522
    %3525 = vset.pattern.permute.xlu0 2
    %3526 = vperm.xlu0 %3525, %v121
    %v3527 = vpop.permute.xlu0 %3526
    %3529 = vset.pattern.permute.xlu0 2
    %3530 = vperm.xlu0 %3529, %v122
    %v3531 = vpop.permute.xlu0 %3530
    %3533 = vset.pattern.permute.xlu0 2
    %3534 = vperm.xlu0 %3533, %v123
    %v3535 = vpop.permute.xlu0 %3534
    %3537 = vset.pattern.permute.xlu0 2
    %3538 = vperm.xlu0 %3537, %v124
    %v3539 = vpop.permute.xlu0 %3538
    %3541 = vset.pattern.permute.xlu0 2
    %3542 = vperm.xlu0 %3541, %v125
    %v3543 = vpop.permute.xlu0 %3542
    %3545 = vset.pattern.permute.xlu0 2
    %3546 = vperm.xlu0 %3545, %v126
    %v3547 = vpop.permute.xlu0 %3546
    %3549 = vset.pattern.permute.xlu0 2
    %3550 = vperm.xlu0 %3549, %v127
    %v3551 = vpop.permute.xlu0 %3550
    %3553 = vset.pattern.permute.xlu0 2
    %3554 = vperm.xlu0 %3553, %v128
    %v3555 = vpop.permute.xlu0 %3554
    %3557 = vset.pattern.permute.xlu0 2
    %3558 = vperm.xlu0 %3557, %v129
    %v3559 = vpop.permute.xlu0 %3558
    %3561 = vset.pattern.permute.xlu0 2
    %3562 = vperm.xlu0 %3561, %v130
    %v3563 = vpop.permute.xlu0 %3562
    %3565 = vset.pattern.permute.xlu0 2
    %3566 = vperm.xlu0 %3565, %v131
    %v3567 = vpop.permute.xlu0 %3566
    %3569 = vset.pattern.permute.xlu0 2
    %3570 = vperm.xlu0 %3569, %v132
    %v3571 = vpop.permute.xlu0 %3570
    %3573 = vset.pattern.permute.xlu0 2
    %3574 = vperm.xlu0 %3573, %v133
    %v3575 = vpop.permute.xlu0 %3574
    %3577 = vset.pattern.permute.xlu0 2
    %3578 = vperm.xlu0 %3577, %v134
    %v3579 = vpop.permute.xlu0 %3578
    %3581 = vset.pattern.permute.xlu0 2
    %3582 = vperm.xlu0 %3581, %v135
    %v3583 = vpop.permute.xlu0 %3582
    %3585 = vset.pattern.permute.xlu0 2
    %3586 = vperm.xlu0 %3585, %v136
    %v3587 = vpop.permute.xlu0 %3586
    %3589 = vset.pattern.permute.xlu0 2
    %3590 = vperm.xlu0 %3589, %v137
    %v3591 = vpop.permute.xlu0 %3590
    %3593 = vset.pattern.permute.xlu0 2
    %3594 = vperm.xlu0 %3593, %v138
    %v3595 = vpop.permute.xlu0 %3594
    %3597 = vset.pattern.permute.xlu0 2
    %3598 = vperm.xlu0 %3597, %v139
    %v3599 = vpop.permute.xlu0 %3598
    %3601 = vset.pattern.permute.xlu0 2
    %3602 = vperm.xlu0 %3601, %v140
    %v3603 = vpop.permute.xlu0 %3602
    %3605 = vset.pattern.permute.xlu0 2
    %3606 = vperm.xlu0 %3605, %v141
    %v3607 = vpop.permute.xlu0 %3606
    %3609 = vset.pattern.permute.xlu0 2
    %3610 = vperm.xlu0 %3609, %v142
    %v3611 = vpop.permute.xlu0 %3610
    %3613 = vset.pattern.permute.xlu0 2
    %3614 = vperm.xlu0 %3613, %v143
    %v3615 = vpop.permute.xlu0 %3614
    %3617 = vset.pattern.permute.xlu0 2
    %3618 = vperm.xlu0 %3617, %v144
    %v3619 = vpop.permute.xlu0 %3618
    %3621 = vset.pattern.permute.xlu0 2
    %3622 = vperm.xlu0 %3621, %v145
    %v3623 = vpop.permute.xlu0 %3622
    %3625 = vset.pattern.permute.xlu0 2
    %3626 = vperm.xlu0 %3625, %v146
    %v3627 = vpop.permute.xlu0 %3626
    %3629 = vset.pattern.permute.xlu0 2
    %3630 = vperm.xlu0 %3629, %v147
    %v3631 = vpop.permute.xlu0 %3630
    %3633 = vset.pattern.permute.xlu0 2
    %3634 = vperm.xlu0 %3633, %v148
    %v3635 = vpop.permute.xlu0 %3634
    %3637 = vset.pattern.permute.xlu0 2
    %3638 = vperm.xlu0 %3637, %v149
    %v3639 = vpop.permute.xlu0 %3638
    %3641 = vset.pattern.permute.xlu0 2
    %3642 = vperm.xlu0 %3641, %v150
    %v3643 = vpop.permute.xlu0 %3642
    %3645 = vset.pattern.permute.xlu0 2
    %3646 = vperm.xlu0 %3645, %v151
    %v3647 = vpop.permute.xlu0 %3646
    %3649 = vset.pattern.permute.xlu0 2
    %3650 = vperm.xlu0 %3649, %v152
    %v3651 = vpop.permute.xlu0 %3650
    %3653 = vset.pattern.permute.xlu0 2
    %3654 = vperm.xlu0 %3653, %v153
    %v3655 = vpop.permute.xlu0 %3654
    %3657 = vset.pattern.permute.xlu0 2
    %3658 = vperm.xlu0 %3657, %v154
    %v3659 = vpop.permute.xlu0 %3658
    %3661 = vset.pattern.permute.xlu0 2
    %3662 = vperm.xlu0 %3661, %v155
    %v3663 = vpop.permute.xlu0 %3662
    %3665 = vset.pattern.permute.xlu0 2
    %3666 = vperm.xlu0 %3665, %v156
    %v3667 = vpop.permute.xlu0 %3666
    %3669 = vset.pattern.permute.xlu0 2
    %3670 = vperm.xlu0 %3669, %v157
    %v3671 = vpop.permute.xlu0 %3670
    %3673 = vset.pattern.permute.xlu0 2
    %3674 = vperm.xlu0 %3673, %v158
    %v3675 = vpop.permute.xlu0 %3674
    %3677 = vset.pattern.permute.xlu0 2
    %3678 = vperm.xlu0 %3677, %v159
    %v3679 = vpop.permute.xlu0 %3678
    %3681 = vset.pattern.permute.xlu0 2
    %3682 = vperm.xlu0 %3681, %v160
    %v3683 = vpop.permute.xlu0 %3682
    %3685 = vset.pattern.permute.xlu0 2
    %3686 = vperm.xlu0 %3685, %v161
    %v3687 = vpop.permute.xlu0 %3686
    %3689 = vset.pattern.permute.xlu0 2
    %3690 = vperm.xlu0 %3689, %v162
    %v3691 = vpop.permute.xlu0 %3690
    %3693 = vset.pattern.permute.xlu0 2
    %3694 = vperm.xlu0 %3693, %v163
    %v3695 = vpop.permute.xlu0 %3694
    %3697 = vset.pattern.permute.xlu0 2
    %3698 = vperm.xlu0 %3697, %v164
    %v3699 = vpop.permute.xlu0 %3698
    %3701 = vset.pattern.permute.xlu0 2
    %3702 = vperm.xlu0 %3701, %v165
    %v3703 = vpop.permute.xlu0 %3702
    %3705 = vset.pattern.permute.xlu0 2
    %3706 = vperm.xlu0 %3705, %v166
    %v3707 = vpop.permute.xlu0 %3706
    %3709 = vset.pattern.permute.xlu0 2
    %3710 = vperm.xlu0 %3709, %v167
    %v3711 = vpop.permute.xlu0 %3710
    %3713 = vset.pattern.permute.xlu0 2
    %3714 = vperm.xlu0 %3713, %v168
    %v3715 = vpop.permute.xlu0 %3714
    %3717 = vset.pattern.permute.xlu0 2
    %3718 = vperm.xlu0 %3717, %v169
    %v3719 = vpop.permute.xlu0 %3718
    %3721 = vset.pattern.permute.xlu0 2
    %3722 = vperm.xlu0 %3721, %v170
    %v3723 = vpop.permute.xlu0 %3722
    %3725 = vset.pattern.permute.xlu0 2
    %3726 = vperm.xlu0 %3725, %v171
    %v3727 = vpop.permute.xlu0 %3726
    %3729 = vset.pattern.permute.xlu0 2
    %3730 = vperm.xlu0 %3729, %v172
    %v3731 = vpop.permute.xlu0 %3730
    %3733 = vset.pattern.permute.xlu0 2
    %3734 = vperm.xlu0 %3733, %v173
    %v3735 = vpop.permute.xlu0 %3734
    %3737 = vset.pattern.permute.xlu0 2
    %3738 = vperm.xlu0 %3737, %v174
    %v3739 = vpop.permute.xlu0 %3738
    %3741 = vset.pattern.permute.xlu0 2
    %3742 = vperm.xlu0 %3741, %v175
    %v3743 = vpop.permute.xlu0 %3742
    %3745 = vset.pattern.permute.xlu0 2
    %3746 = vperm.xlu0 %3745, %v176
    %v3747 = vpop.permute.xlu0 %3746
    %3749 = vset.pattern.permute.xlu0 2
    %3750 = vperm.xlu0 %3749, %v177
    %v3751 = vpop.permute.xlu0 %3750
    %3753 = vset.pattern.permute.xlu0 2
    %3754 = vperm.xlu0 %3753, %v178
    %v3755 = vpop.permute.xlu0 %3754
    %3757 = vset.pattern.permute.xlu0 2
    %3758 = vperm.xlu0 %3757, %v179
    %v3759 = vpop.permute.xlu0 %3758
    %3761 = vset.pattern.permute.xlu0 2
    %3762 = vperm.xlu0 %3761, %v180
    %v3763 = vpop.permute.xlu0 %3762
    %3765 = vset.pattern.permute.xlu0 2
    %3766 = vperm.xlu0 %3765, %v181
    %v3767 = vpop.permute.xlu0 %3766
    %3769 = vset.pattern.permute.xlu0 2
    %3770 = vperm.xlu0 %3769, %v182
    %v3771 = vpop.permute.xlu0 %3770
    %3773 = vset.pattern.permute.xlu0 2
    %3774 = vperm.xlu0 %3773, %v183
    %v3775 = vpop.permute.xlu0 %3774
    %3777 = vset.pattern.permute.xlu0 2
    %3778 = vperm.xlu0 %3777, %v184
    %v3779 = vpop.permute.xlu0 %3778
    %3781 = vset.pattern.permute.xlu0 2
    %3782 = vperm.xlu0 %3781, %v185
    %v3783 = vpop.permute.xlu0 %3782
    %3785 = vset.pattern.permute.xlu0 2
    %3786 = vperm.xlu0 %3785, %v186
    %v3787 = vpop.permute.xlu0 %3786
    %3789 = vset.pattern.permute.xlu0 2
    %3790 = vperm.xlu0 %3789, %v187
    %v3791 = vpop.permute.xlu0 %3790
    %3793 = vset.pattern.permute.xlu0 2
    %3794 = vperm.xlu0 %3793, %v188
    %v3795 = vpop.permute.xlu0 %3794
    %3797 = vset.pattern.permute.xlu0 2
    %3798 = vperm.xlu0 %3797, %v189
    %v3799 = vpop.permute.xlu0 %3798
    %3801 = vset.pattern.permute.xlu0 2
    %3802 = vperm.xlu0 %3801, %v190
    %v3803 = vpop.permute.xlu0 %3802
    %3805 = vset.pattern.permute.xlu0 2
    %3806 = vperm.xlu0 %3805, %v191
    %v3807 = vpop.permute.xlu0 %3806
    %3809 = vset.pattern.permute.xlu0 2
    %3810 = vperm.xlu0 %3809, %v192
    %v3811 = vpop.permute.xlu0 %3810
    %3813 = vset.pattern.permute.xlu0 2
    %3814 = vperm.xlu0 %3813, %v193
    %v3815 = vpop.permute.xlu0 %3814
    %3817 = vset.pattern.permute.xlu0 2
    %3818 = vperm.xlu0 %3817, %v194
    %v3819 = vpop.permute.xlu0 %3818
    %3821 = vset.pattern.permute.xlu0 2
    %3822 = vperm.xlu0 %3821, %v195
    %v3823 = vpop.permute.xlu0 %3822
    %3825 = vset.pattern.permute.xlu0 2
    %3826 = vperm.xlu0 %3825, %v196
    %v3827 = vpop.permute.xlu0 %3826
    %3829 = vset.pattern.permute.xlu0 2
    %3830 = vperm.xlu0 %3829, %v197
    %v3831 = vpop.permute.xlu0 %3830
    %3833 = vset.pattern.permute.xlu0 2
    %3834 = vperm.xlu0 %3833, %v198
    %v3835 = vpop.permute.xlu0 %3834
    %3837 = vset.pattern.permute.xlu0 2
    %3838 = vperm.xlu0 %3837, %v199
    %v3839 = vpop.permute.xlu0 %3838
    %3841 = vset.pattern.permute.xlu0 2
    %3842 = vperm.xlu0 %3841, %v200
    %v3843 = vpop.permute.xlu0 %3842
    %3845 = vset.pattern.permute.xlu0 2
    %3846 = vperm.xlu0 %3845, %v201
    %v3847 = vpop.permute.xlu0 %3846
    %3849 = vset.pattern.permute.xlu0 2
    %3850 = vperm.xlu0 %3849, %v202
    %v3851 = vpop.permute.xlu0 %3850
    %3853 = vset.pattern.permute.xlu0 2
    %3854 = vperm.xlu0 %3853, %v203
    %v3855 = vpop.permute.xlu0 %3854
    %3857 = vset.pattern.permute.xlu0 2
    %3858 = vperm.xlu0 %3857, %v204
    %v3859 = vpop.permute.xlu0 %3858
    %3861 = vset.pattern.permute.xlu0 2
    %3862 = vperm.xlu0 %3861, %v205
    %v3863 = vpop.permute.xlu0 %3862
    %3865 = vset.pattern.permute.xlu0 2
    %3866 = vperm.xlu0 %3865, %v206
    %v3867 = vpop.permute.xlu0 %3866
    %3869 = vset.pattern.permute.xlu0 2
    %3870 = vperm.xlu0 %3869, %v207
    %v3871 = vpop.permute.xlu0 %3870
    %3873 = vset.pattern.permute.xlu0 2
    %3874 = vperm.xlu0 %3873, %v208
    %v3875 = vpop.permute.xlu0 %3874
    %3877 = vset.pattern.permute.xlu0 2
    %3878 = vperm.xlu0 %3877, %v209
    %v3879 = vpop.permute.xlu0 %3878
    %3881 = vset.pattern.permute.xlu0 2
    %3882 = vperm.xlu0 %3881, %v210
    %v3883 = vpop.permute.xlu0 %3882
    %3885 = vset.pattern.permute.xlu0 2
    %3886 = vperm.xlu0 %3885, %v211
    %v3887 = vpop.permute.xlu0 %3886
    %3889 = vset.pattern.permute.xlu0 2
    %3890 = vperm.xlu0 %3889, %v212
    %v3891 = vpop.permute.xlu0 %3890
    %3893 = vset.pattern.permute.xlu0 2
    %3894 = vperm.xlu0 %3893, %v213
    %v3895 = vpop.permute.xlu0 %3894
    %3897 = vset.pattern.permute.xlu0 2
    %3898 = vperm.xlu0 %3897, %v214
    %v3899 = vpop.permute.xlu0 %3898
    %3901 = vset.pattern.permute.xlu0 2
    %3902 = vperm.xlu0 %3901, %v215
    %v3903 = vpop.permute.xlu0 %3902
    %3905 = vset.pattern.permute.xlu0 2
    %3906 = vperm.xlu0 %3905, %v216
    %v3907 = vpop.permute.xlu0 %3906
    %3909 = vset.pattern.permute.xlu0 2
    %3910 = vperm.xlu0 %3909, %v217
    %v3911 = vpop.permute.xlu0 %3910
    %3913 = vset.pattern.permute.xlu0 2
    %3914 = vperm.xlu0 %3913, %v218
    %v3915 = vpop.permute.xlu0 %3914
    %3917 = vset.pattern.permute.xlu0 2
    %3918 = vperm.xlu0 %3917, %v219
    %v3919 = vpop.permute.xlu0 %3918
    %3921 = vset.pattern.permute.xlu0 2
    %3922 = vperm.xlu0 %3921, %v220
    %v3923 = vpop.permute.xlu0 %3922
    %3925 = vset.pattern.permute.xlu0 2
    %3926 = vperm.xlu0 %3925, %v221
    %v3927 = vpop.permute.xlu0 %3926
    %3929 = vset.pattern.permute.xlu0 2
    %3930 = vperm.xlu0 %3929, %v222
    %v3931 = vpop.permute.xlu0 %3930
    %3933 = vset.pattern.permute.xlu0 2
    %3934 = vperm.xlu0 %3933, %v223
    %v3935 = vpop.permute.xlu0 %3934
    %3937 = vset.pattern.permute.xlu0 2
    %3938 = vperm.xlu0 %3937, %v224
    %v3939 = vpop.permute.xlu0 %3938
    %3941 = vset.pattern.permute.xlu0 2
    %3942 = vperm.xlu0 %3941, %v225
    %v3943 = vpop.permute.xlu0 %3942
    %3945 = vset.pattern.permute.xlu0 2
    %3946 = vperm.xlu0 %3945, %v226
    %v3947 = vpop.permute.xlu0 %3946
    %3949 = vset.pattern.permute.xlu0 2
    %3950 = vperm.xlu0 %3949, %v227
    %v3951 = vpop.permute.xlu0 %3950
    %3953 = vset.pattern.permute.xlu0 2
    %3954 = vperm.xlu0 %3953, %v228
    %v3955 = vpop.permute.xlu0 %3954
    %3957 = vset.pattern.permute.xlu0 2
    %3958 = vperm.xlu0 %3957, %v229
    %v3959 = vpop.permute.xlu0 %3958
    %3961 = vset.pattern.permute.xlu0 2
    %3962 = vperm.xlu0 %3961, %v230
    %v3963 = vpop.permute.xlu0 %3962
    %3965 = vset.pattern.permute.xlu0 2
    %3966 = vperm.xlu0 %3965, %v231
    %v3967 = vpop.permute.xlu0 %3966
    %3969 = vset.pattern.permute.xlu0 2
    %3970 = vperm.xlu0 %3969, %v232
    %v3971 = vpop.permute.xlu0 %3970
    %3973 = vset.pattern.permute.xlu0 2
    %3974 = vperm.xlu0 %3973, %v233
    %v3975 = vpop.permute.xlu0 %3974
    %3977 = vset.pattern.permute.xlu0 2
    %3978 = vperm.xlu0 %3977, %v234
    %v3979 = vpop.permute.xlu0 %3978
    %3981 = vset.pattern.permute.xlu0 2
    %3982 = vperm.xlu0 %3981, %v235
    %v3983 = vpop.permute.xlu0 %3982
    %3985 = vset.pattern.permute.xlu0 2
    %3986 = vperm.xlu0 %3985, %v236
    %v3987 = vpop.permute.xlu0 %3986
    %3989 = vset.pattern.permute.xlu0 2
    %3990 = vperm.xlu0 %3989, %v237
    %v3991 = vpop.permute.xlu0 %3990
    %3993 = vset.pattern.permute.xlu0 2
    %3994 = vperm.xlu0 %3993, %v238
    %v3995 = vpop.permute.xlu0 %3994
    %3997 = vset.pattern.permute.xlu0 2
    %3998 = vperm.xlu0 %3997, %v239
    %v3999 = vpop.permute.xlu0 %3998
    %4001 = vset.pattern.permute.xlu0 2
    %4002 = vperm.xlu0 %4001, %v240
    %v4003 = vpop.permute.xlu0 %4002
    %4005 = vset.pattern.permute.xlu0 2
    %4006 = vperm.xlu0 %4005, %v241
    %v4007 = vpop.permute.xlu0 %4006
    %4009 = vset.pattern.permute.xlu0 2
    %4010 = vperm.xlu0 %4009, %v242
    %v4011 = vpop.permute.xlu0 %4010
    %v4013 = vlaneseq
    %v4014 = vshrl.u32 %v4013, 7
    %v4015 = vsub.s32 2, %v4014
    %v4016 = vrot.slane %v243, %v4015
    %v4017 = vlaneseq
    %v4018 = vshrl.u32 %v4017, 7
    %v4019 = vsub.s32 2, %v4018
    %v4020 = vrot.slane %v244, %v4019
    %v4021 = vlaneseq
    %v4022 = vshrl.u32 %v4021, 7
    %v4023 = vsub.s32 2, %v4022
    %v4024 = vrot.slane %v245, %v4023
    %v4025 = vlaneseq
    %v4026 = vshrl.u32 %v4025, 7
    %v4027 = vsub.s32 2, %v4026
    %v4028 = vrot.slane %v246, %v4027
    %v4029 = vmul.f32 %v3503, %v4016
    %v4030 = vmul.f32 %v3503, %v4020
    %v4031 = vmul.f32 %v3503, %v4024
    %v4032 = vmul.f32 %v3503, %v4028
    %v4033 = vmul.f32 %v3507, %v4016
    %v4034 = vmul.f32 %v3507, %v4020
    %v4035 = vmul.f32 %v3507, %v4024
    %v4036 = vmul.f32 %v3507, %v4028
    %v4037 = vmul.f32 %v3511, %v4016
    %v4038 = vmul.f32 %v3511, %v4020
    %v4039 = vmul.f32 %v3511, %v4024
    %v4040 = vmul.f32 %v3511, %v4028
    %v4041 = vmul.f32 %v3515, %v4016
    %v4042 = vmul.f32 %v3515, %v4020
    %v4043 = vmul.f32 %v3515, %v4024
    %v4044 = vmul.f32 %v3515, %v4028
    %v4045 = vmul.f32 %v3519, %v4016
    %v4046 = vmul.f32 %v3519, %v4020
    %v4047 = vmul.f32 %v3519, %v4024
    %v4048 = vmul.f32 %v3519, %v4028
    %v4049 = vmul.f32 %v3523, %v4016
    %v4050 = vmul.f32 %v3523, %v4020
    %v4051 = vmul.f32 %v3523, %v4024
    %v4052 = vmul.f32 %v3523, %v4028
    %v4053 = vmul.f32 %v3527, %v4016
    %v4054 = vmul.f32 %v3527, %v4020
    %v4055 = vmul.f32 %v3527, %v4024
    %v4056 = vmul.f32 %v3527, %v4028
    %v4057 = vmul.f32 %v3531, %v4016
    %v4058 = vmul.f32 %v3531, %v4020
    %v4059 = vmul.f32 %v3531, %v4024
    %v4060 = vmul.f32 %v3531, %v4028
    %v4061 = vmul.f32 %v3535, %v4016
    %v4062 = vmul.f32 %v3535, %v4020
    %v4063 = vmul.f32 %v3535, %v4024
    %v4064 = vmul.f32 %v3535, %v4028
    %v4065 = vmul.f32 %v3539, %v4016
    %v4066 = vmul.f32 %v3539, %v4020
    %v4067 = vmul.f32 %v3539, %v4024
    %v4068 = vmul.f32 %v3539, %v4028
    %v4069 = vmul.f32 %v3543, %v4016
    %v4070 = vmul.f32 %v3543, %v4020
    %v4071 = vmul.f32 %v3543, %v4024
    %v4072 = vmul.f32 %v3543, %v4028
    %v4073 = vmul.f32 %v3547, %v4016
    %v4074 = vmul.f32 %v3547, %v4020
    %v4075 = vmul.f32 %v3547, %v4024
    %v4076 = vmul.f32 %v3547, %v4028
    %v4077 = vmul.f32 %v3551, %v4016
    %v4078 = vmul.f32 %v3551, %v4020
    %v4079 = vmul.f32 %v3551, %v4024
    %v4080 = vmul.f32 %v3551, %v4028
    %v4081 = vmul.f32 %v3555, %v4016
    %v4082 = vmul.f32 %v3555, %v4020
    %v4083 = vmul.f32 %v3555, %v4024
    %v4084 = vmul.f32 %v3555, %v4028
    %v4085 = vmul.f32 %v3559, %v4016
    %v4086 = vmul.f32 %v3559, %v4020
    %v4087 = vmul.f32 %v3559, %v4024
    %v4088 = vmul.f32 %v3559, %v4028
    %v4089 = vmul.f32 %v3563, %v4016
    %v4090 = vmul.f32 %v3563, %v4020
    %v4091 = vmul.f32 %v3563, %v4024
    %v4092 = vmul.f32 %v3563, %v4028
    %v4093 = vmul.f32 %v3567, %v4016
    %v4094 = vmul.f32 %v3567, %v4020
    %v4095 = vmul.f32 %v3567, %v4024
    %v4096 = vmul.f32 %v3567, %v4028
    %v4097 = vmul.f32 %v3571, %v4016
    %v4098 = vmul.f32 %v3571, %v4020
    %v4099 = vmul.f32 %v3571, %v4024
    %v4100 = vmul.f32 %v3571, %v4028
    %v4101 = vmul.f32 %v3575, %v4016
    %v4102 = vmul.f32 %v3575, %v4020
    %v4103 = vmul.f32 %v3575, %v4024
    %v4104 = vmul.f32 %v3575, %v4028
    %v4105 = vmul.f32 %v3579, %v4016
    %v4106 = vmul.f32 %v3579, %v4020
    %v4107 = vmul.f32 %v3579, %v4024
    %v4108 = vmul.f32 %v3579, %v4028
    %v4109 = vmul.f32 %v3583, %v4016
    %v4110 = vmul.f32 %v3583, %v4020
    %v4111 = vmul.f32 %v3583, %v4024
    %v4112 = vmul.f32 %v3583, %v4028
    %v4113 = vmul.f32 %v3587, %v4016
    %v4114 = vmul.f32 %v3587, %v4020
    %v4115 = vmul.f32 %v3587, %v4024
    %v4116 = vmul.f32 %v3587, %v4028
    %v4117 = vmul.f32 %v3591, %v4016
    %v4118 = vmul.f32 %v3591, %v4020
    %v4119 = vmul.f32 %v3591, %v4024
    %v4120 = vmul.f32 %v3591, %v4028
    %v4121 = vmul.f32 %v3595, %v4016
    %v4122 = vmul.f32 %v3595, %v4020
    %v4123 = vmul.f32 %v3595, %v4024
    %v4124 = vmul.f32 %v3595, %v4028
    %v4125 = vmul.f32 %v3599, %v4016
    %v4126 = vmul.f32 %v3599, %v4020
    %v4127 = vmul.f32 %v3599, %v4024
    %v4128 = vmul.f32 %v3599, %v4028
    %v4129 = vmul.f32 %v3603, %v4016
    %v4130 = vmul.f32 %v3603, %v4020
    %v4131 = vmul.f32 %v3603, %v4024
    %v4132 = vmul.f32 %v3603, %v4028
    %v4133 = vmul.f32 %v3607, %v4016
    %v4134 = vmul.f32 %v3607, %v4020
    %v4135 = vmul.f32 %v3607, %v4024
    %v4136 = vmul.f32 %v3607, %v4028
    %v4137 = vmul.f32 %v3611, %v4016
    %v4138 = vmul.f32 %v3611, %v4020
    %v4139 = vmul.f32 %v3611, %v4024
    %v4140 = vmul.f32 %v3611, %v4028
    %v4141 = vmul.f32 %v3615, %v4016
    %v4142 = vmul.f32 %v3615, %v4020
    %v4143 = vmul.f32 %v3615, %v4024
    %v4144 = vmul.f32 %v3615, %v4028
    %v4145 = vmul.f32 %v3619, %v4016
    %v4146 = vmul.f32 %v3619, %v4020
    %v4147 = vmul.f32 %v3619, %v4024
    %v4148 = vmul.f32 %v3619, %v4028
    %v4149 = vmul.f32 %v3623, %v4016
    %v4150 = vmul.f32 %v3623, %v4020
    %v4151 = vmul.f32 %v3623, %v4024
    %v4152 = vmul.f32 %v3623, %v4028
    %v4153 = vmul.f32 %v3627, %v4016
    %v4154 = vmul.f32 %v3627, %v4020
    %v4155 = vmul.f32 %v3627, %v4024
    %v4156 = vmul.f32 %v3627, %v4028
    %v4157 = vmul.f32 %v3631, %v4016
    %v4158 = vmul.f32 %v3631, %v4020
    %v4159 = vmul.f32 %v3631, %v4024
    %v4160 = vmul.f32 %v3631, %v4028
    %v4161 = vmul.f32 %v3635, %v4016
    %v4162 = vmul.f32 %v3635, %v4020
    %v4163 = vmul.f32 %v3635, %v4024
    %v4164 = vmul.f32 %v3635, %v4028
    %v4165 = vmul.f32 %v3639, %v4016
    %v4166 = vmul.f32 %v3639, %v4020
    %v4167 = vmul.f32 %v3639, %v4024
    %v4168 = vmul.f32 %v3639, %v4028
    %v4169 = vmul.f32 %v3643, %v4016
    %v4170 = vmul.f32 %v3643, %v4020
    %v4171 = vmul.f32 %v3643, %v4024
    %v4172 = vmul.f32 %v3643, %v4028
    %v4173 = vmul.f32 %v3647, %v4016
    %v4174 = vmul.f32 %v3647, %v4020
    %v4175 = vmul.f32 %v3647, %v4024
    %v4176 = vmul.f32 %v3647, %v4028
    %v4177 = vmul.f32 %v3651, %v4016
    %v4178 = vmul.f32 %v3651, %v4020
    %v4179 = vmul.f32 %v3651, %v4024
    %v4180 = vmul.f32 %v3651, %v4028
    %v4181 = vmul.f32 %v3655, %v4016
    %v4182 = vmul.f32 %v3655, %v4020
    %v4183 = vmul.f32 %v3655, %v4024
    %v4184 = vmul.f32 %v3655, %v4028
    %v4185 = vmul.f32 %v3659, %v4016
    %v4186 = vmul.f32 %v3659, %v4020
    %v4187 = vmul.f32 %v3659, %v4024
    %v4188 = vmul.f32 %v3659, %v4028
    %v4189 = vmul.f32 %v3663, %v4016
    %v4190 = vmul.f32 %v3663, %v4020
    %v4191 = vmul.f32 %v3663, %v4024
    %v4192 = vmul.f32 %v3663, %v4028
    %v4193 = vmul.f32 %v3667, %v4016
    %v4194 = vmul.f32 %v3667, %v4020
    %v4195 = vmul.f32 %v3667, %v4024
    %v4196 = vmul.f32 %v3667, %v4028
    %v4197 = vmul.f32 %v3671, %v4016
    %v4198 = vmul.f32 %v3671, %v4020
    %v4199 = vmul.f32 %v3671, %v4024
    %v4200 = vmul.f32 %v3671, %v4028
    %v4201 = vmul.f32 %v3675, %v4016
    %v4202 = vmul.f32 %v3675, %v4020
    %v4203 = vmul.f32 %v3675, %v4024
    %v4204 = vmul.f32 %v3675, %v4028
    %v4205 = vmul.f32 %v3679, %v4016
    %v4206 = vmul.f32 %v3679, %v4020
    %v4207 = vmul.f32 %v3679, %v4024
    %v4208 = vmul.f32 %v3679, %v4028
    %v4209 = vmul.f32 %v3683, %v4016
    %v4210 = vmul.f32 %v3683, %v4020
    %v4211 = vmul.f32 %v3683, %v4024
    %v4212 = vmul.f32 %v3683, %v4028
    %v4213 = vmul.f32 %v3687, %v4016
    %v4214 = vmul.f32 %v3687, %v4020
    %v4215 = vmul.f32 %v3687, %v4024
    %v4216 = vmul.f32 %v3687, %v4028
    %v4217 = vmul.f32 %v3691, %v4016
    %v4218 = vmul.f32 %v3691, %v4020
    %v4219 = vmul.f32 %v3691, %v4024
    %v4220 = vmul.f32 %v3691, %v4028
    %v4221 = vmul.f32 %v3695, %v4016
    %v4222 = vmul.f32 %v3695, %v4020
    %v4223 = vmul.f32 %v3695, %v4024
    %v4224 = vmul.f32 %v3695, %v4028
    %v4225 = vmul.f32 %v3699, %v4016
    %v4226 = vmul.f32 %v3699, %v4020
    %v4227 = vmul.f32 %v3699, %v4024
    %v4228 = vmul.f32 %v3699, %v4028
    %v4229 = vmul.f32 %v3703, %v4016
    %v4230 = vmul.f32 %v3703, %v4020
    %v4231 = vmul.f32 %v3703, %v4024
    %v4232 = vmul.f32 %v3703, %v4028
    %v4233 = vmul.f32 %v3707, %v4016
    %v4234 = vmul.f32 %v3707, %v4020
    %v4235 = vmul.f32 %v3707, %v4024
    %v4236 = vmul.f32 %v3707, %v4028
    %v4237 = vmul.f32 %v3711, %v4016
    %v4238 = vmul.f32 %v3711, %v4020
    %v4239 = vmul.f32 %v3711, %v4024
    %v4240 = vmul.f32 %v3711, %v4028
    %v4241 = vmul.f32 %v3715, %v4016
    %v4242 = vmul.f32 %v3715, %v4020
    %v4243 = vmul.f32 %v3715, %v4024
    %v4244 = vmul.f32 %v3715, %v4028
    %v4245 = vmul.f32 %v3719, %v4016
    %v4246 = vmul.f32 %v3719, %v4020
    %v4247 = vmul.f32 %v3719, %v4024
    %v4248 = vmul.f32 %v3719, %v4028
    %v4249 = vmul.f32 %v3723, %v4016
    %v4250 = vmul.f32 %v3723, %v4020
    %v4251 = vmul.f32 %v3723, %v4024
    %v4252 = vmul.f32 %v3723, %v4028
    %v4253 = vmul.f32 %v3727, %v4016
    %v4254 = vmul.f32 %v3727, %v4020
    %v4255 = vmul.f32 %v3727, %v4024
    %v4256 = vmul.f32 %v3727, %v4028
    %v4257 = vmul.f32 %v3731, %v4016
    %v4258 = vmul.f32 %v3731, %v4020
    %v4259 = vmul.f32 %v3731, %v4024
    %v4260 = vmul.f32 %v3731, %v4028
    %v4261 = vmul.f32 %v3735, %v4016
    %v4262 = vmul.f32 %v3735, %v4020
    %v4263 = vmul.f32 %v3735, %v4024
    %v4264 = vmul.f32 %v3735, %v4028
    %v4265 = vmul.f32 %v3739, %v4016
    %v4266 = vmul.f32 %v3739, %v4020
    %v4267 = vmul.f32 %v3739, %v4024
    %v4268 = vmul.f32 %v3739, %v4028
    %v4269 = vmul.f32 %v3743, %v4016
    %v4270 = vmul.f32 %v3743, %v4020
    %v4271 = vmul.f32 %v3743, %v4024
    %v4272 = vmul.f32 %v3743, %v4028
    %v4273 = vmul.f32 %v3747, %v4016
    %v4274 = vmul.f32 %v3747, %v4020
    %v4275 = vmul.f32 %v3747, %v4024
    %v4276 = vmul.f32 %v3747, %v4028
    %v4277 = vmul.f32 %v3751, %v4016
    %v4278 = vmul.f32 %v3751, %v4020
    %v4279 = vmul.f32 %v3751, %v4024
    %v4280 = vmul.f32 %v3751, %v4028
    %v4281 = vmul.f32 %v3755, %v4016
    %v4282 = vmul.f32 %v3755, %v4020
    %v4283 = vmul.f32 %v3755, %v4024
    %v4284 = vmul.f32 %v3755, %v4028
    %v4285 = vmul.f32 %v3759, %v4016
    %v4286 = vmul.f32 %v3759, %v4020
    %v4287 = vmul.f32 %v3759, %v4024
    %v4288 = vmul.f32 %v3759, %v4028
    %v4289 = vmul.f32 %v3763, %v4016
    %v4290 = vmul.f32 %v3763, %v4020
    %v4291 = vmul.f32 %v3763, %v4024
    %v4292 = vmul.f32 %v3763, %v4028
    %v4293 = vmul.f32 %v3767, %v4016
    %v4294 = vmul.f32 %v3767, %v4020
    %v4295 = vmul.f32 %v3767, %v4024
    %v4296 = vmul.f32 %v3767, %v4028
    %v4297 = vmul.f32 %v3771, %v4016
    %v4298 = vmul.f32 %v3771, %v4020
    %v4299 = vmul.f32 %v3771, %v4024
    %v4300 = vmul.f32 %v3771, %v4028
    %v4301 = vmul.f32 %v3775, %v4016
    %v4302 = vmul.f32 %v3775, %v4020
    %v4303 = vmul.f32 %v3775, %v4024
    %v4304 = vmul.f32 %v3775, %v4028
    %v4305 = vmul.f32 %v3779, %v4016
    %v4306 = vmul.f32 %v3779, %v4020
    %v4307 = vmul.f32 %v3779, %v4024
    %v4308 = vmul.f32 %v3779, %v4028
    %v4309 = vmul.f32 %v3783, %v4016
    %v4310 = vmul.f32 %v3783, %v4020
    %v4311 = vmul.f32 %v3783, %v4024
    %v4312 = vmul.f32 %v3783, %v4028
    %v4313 = vmul.f32 %v3787, %v4016
    %v4314 = vmul.f32 %v3787, %v4020
    %v4315 = vmul.f32 %v3787, %v4024
    %v4316 = vmul.f32 %v3787, %v4028
    %v4317 = vmul.f32 %v3791, %v4016
    %v4318 = vmul.f32 %v3791, %v4020
    %v4319 = vmul.f32 %v3791, %v4024
    %v4320 = vmul.f32 %v3791, %v4028
    %v4321 = vmul.f32 %v3795, %v4016
    %v4322 = vmul.f32 %v3795, %v4020
    %v4323 = vmul.f32 %v3795, %v4024
    %v4324 = vmul.f32 %v3795, %v4028
    %v4325 = vmul.f32 %v3799, %v4016
    %v4326 = vmul.f32 %v3799, %v4020
    %v4327 = vmul.f32 %v3799, %v4024
    %v4328 = vmul.f32 %v3799, %v4028
    %v4329 = vmul.f32 %v3803, %v4016
    %v4330 = vmul.f32 %v3803, %v4020
    %v4331 = vmul.f32 %v3803, %v4024
    %v4332 = vmul.f32 %v3803, %v4028
    %v4333 = vmul.f32 %v3807, %v4016
    %v4334 = vmul.f32 %v3807, %v4020
    %v4335 = vmul.f32 %v3807, %v4024
    %v4336 = vmul.f32 %v3807, %v4028
    %v4337 = vmul.f32 %v3811, %v4016
    %v4338 = vmul.f32 %v3811, %v4020
    %v4339 = vmul.f32 %v3811, %v4024
    %v4340 = vmul.f32 %v3811, %v4028
    %v4341 = vmul.f32 %v3815, %v4016
    %v4342 = vmul.f32 %v3815, %v4020
    %v4343 = vmul.f32 %v3815, %v4024
    %v4344 = vmul.f32 %v3815, %v4028
    %v4345 = vmul.f32 %v3819, %v4016
    %v4346 = vmul.f32 %v3819, %v4020
    %v4347 = vmul.f32 %v3819, %v4024
    %v4348 = vmul.f32 %v3819, %v4028
    %v4349 = vmul.f32 %v3823, %v4016
    %v4350 = vmul.f32 %v3823, %v4020
    %v4351 = vmul.f32 %v3823, %v4024
    %v4352 = vmul.f32 %v3823, %v4028
    %v4353 = vmul.f32 %v3827, %v4016
    %v4354 = vmul.f32 %v3827, %v4020
    %v4355 = vmul.f32 %v3827, %v4024
    %v4356 = vmul.f32 %v3827, %v4028
    %v4357 = vmul.f32 %v3831, %v4016
    %v4358 = vmul.f32 %v3831, %v4020
    %v4359 = vmul.f32 %v3831, %v4024
    %v4360 = vmul.f32 %v3831, %v4028
    %v4361 = vmul.f32 %v3835, %v4016
    %v4362 = vmul.f32 %v3835, %v4020
    %v4363 = vmul.f32 %v3835, %v4024
    %v4364 = vmul.f32 %v3835, %v4028
    %v4365 = vmul.f32 %v3839, %v4016
    %v4366 = vmul.f32 %v3839, %v4020
    %v4367 = vmul.f32 %v3839, %v4024
    %v4368 = vmul.f32 %v3839, %v4028
    %v4369 = vmul.f32 %v3843, %v4016
    %v4370 = vmul.f32 %v3843, %v4020
    %v4371 = vmul.f32 %v3843, %v4024
    %v4372 = vmul.f32 %v3843, %v4028
    %v4373 = vmul.f32 %v3847, %v4016
    %v4374 = vmul.f32 %v3847, %v4020
    %v4375 = vmul.f32 %v3847, %v4024
    %v4376 = vmul.f32 %v3847, %v4028
    %v4377 = vmul.f32 %v3851, %v4016
    %v4378 = vmul.f32 %v3851, %v4020
    %v4379 = vmul.f32 %v3851, %v4024
    %v4380 = vmul.f32 %v3851, %v4028
    %v4381 = vmul.f32 %v3855, %v4016
    %v4382 = vmul.f32 %v3855, %v4020
    %v4383 = vmul.f32 %v3855, %v4024
    %v4384 = vmul.f32 %v3855, %v4028
    %v4385 = vmul.f32 %v3859, %v4016
    %v4386 = vmul.f32 %v3859, %v4020
    %v4387 = vmul.f32 %v3859, %v4024
    %v4388 = vmul.f32 %v3859, %v4028
    %v4389 = vmul.f32 %v3863, %v4016
    %v4390 = vmul.f32 %v3863, %v4020
    %v4391 = vmul.f32 %v3863, %v4024
    %v4392 = vmul.f32 %v3863, %v4028
    %v4393 = vmul.f32 %v3867, %v4016
    %v4394 = vmul.f32 %v3867, %v4020
    %v4395 = vmul.f32 %v3867, %v4024
    %v4396 = vmul.f32 %v3867, %v4028
    %v4397 = vmul.f32 %v3871, %v4016
    %v4398 = vmul.f32 %v3871, %v4020
    %v4399 = vmul.f32 %v3871, %v4024
    %v4400 = vmul.f32 %v3871, %v4028
    %v4401 = vmul.f32 %v3875, %v4016
    %v4402 = vmul.f32 %v3875, %v4020
    %v4403 = vmul.f32 %v3875, %v4024
    %v4404 = vmul.f32 %v3875, %v4028
    %v4405 = vmul.f32 %v3879, %v4016
    %v4406 = vmul.f32 %v3879, %v4020
    %v4407 = vmul.f32 %v3879, %v4024
    %v4408 = vmul.f32 %v3879, %v4028
    %v4409 = vmul.f32 %v3883, %v4016
    %v4410 = vmul.f32 %v3883, %v4020
    %v4411 = vmul.f32 %v3883, %v4024
    %v4412 = vmul.f32 %v3883, %v4028
    %v4413 = vmul.f32 %v3887, %v4016
    %v4414 = vmul.f32 %v3887, %v4020
    %v4415 = vmul.f32 %v3887, %v4024
    %v4416 = vmul.f32 %v3887, %v4028
    %v4417 = vmul.f32 %v3891, %v4016
    %v4418 = vmul.f32 %v3891, %v4020
    %v4419 = vmul.f32 %v3891, %v4024
    %v4420 = vmul.f32 %v3891, %v4028
    %v4421 = vmul.f32 %v3895, %v4016
    %v4422 = vmul.f32 %v3895, %v4020
    %v4423 = vmul.f32 %v3895, %v4024
    %v4424 = vmul.f32 %v3895, %v4028
    %v4425 = vmul.f32 %v3899, %v4016
    %v4426 = vmul.f32 %v3899, %v4020
    %v4427 = vmul.f32 %v3899, %v4024
    %v4428 = vmul.f32 %v3899, %v4028
    %v4429 = vmul.f32 %v3903, %v4016
    %v4430 = vmul.f32 %v3903, %v4020
    %v4431 = vmul.f32 %v3903, %v4024
    %v4432 = vmul.f32 %v3903, %v4028
    %v4433 = vmul.f32 %v3907, %v4016
    %v4434 = vmul.f32 %v3907, %v4020
    %v4435 = vmul.f32 %v3907, %v4024
    %v4436 = vmul.f32 %v3907, %v4028
    %v4437 = vmul.f32 %v3911, %v4016
    %v4438 = vmul.f32 %v3911, %v4020
    %v4439 = vmul.f32 %v3911, %v4024
    %v4440 = vmul.f32 %v3911, %v4028
    %v4441 = vmul.f32 %v3915, %v4016
    %v4442 = vmul.f32 %v3915, %v4020
    %v4443 = vmul.f32 %v3915, %v4024
    %v4444 = vmul.f32 %v3915, %v4028
    %v4445 = vmul.f32 %v3919, %v4016
    %v4446 = vmul.f32 %v3919, %v4020
    %v4447 = vmul.f32 %v3919, %v4024
    %v4448 = vmul.f32 %v3919, %v4028
    %v4449 = vmul.f32 %v3923, %v4016
    %v4450 = vmul.f32 %v3923, %v4020
    %v4451 = vmul.f32 %v3923, %v4024
    %v4452 = vmul.f32 %v3923, %v4028
    %v4453 = vmul.f32 %v3927, %v4016
    %v4454 = vmul.f32 %v3927, %v4020
    %v4455 = vmul.f32 %v3927, %v4024
    %v4456 = vmul.f32 %v3927, %v4028
    %v4457 = vmul.f32 %v3931, %v4016
    %v4458 = vmul.f32 %v3931, %v4020
    %v4459 = vmul.f32 %v3931, %v4024
    %v4460 = vmul.f32 %v3931, %v4028
    %v4461 = vmul.f32 %v3935, %v4016
    %v4462 = vmul.f32 %v3935, %v4020
    %v4463 = vmul.f32 %v3935, %v4024
    %v4464 = vmul.f32 %v3935, %v4028
    %v4465 = vmul.f32 %v3939, %v4016
    %v4466 = vmul.f32 %v3939, %v4020
    %v4467 = vmul.f32 %v3939, %v4024
    %v4468 = vmul.f32 %v3939, %v4028
    %v4469 = vmul.f32 %v3943, %v4016
    %v4470 = vmul.f32 %v3943, %v4020
    %v4471 = vmul.f32 %v3943, %v4024
    %v4472 = vmul.f32 %v3943, %v4028
    %v4473 = vmul.f32 %v3947, %v4016
    %v4474 = vmul.f32 %v3947, %v4020
    %v4475 = vmul.f32 %v3947, %v4024
    %v4476 = vmul.f32 %v3947, %v4028
    %v4477 = vmul.f32 %v3951, %v4016
    %v4478 = vmul.f32 %v3951, %v4020
    %v4479 = vmul.f32 %v3951, %v4024
    %v4480 = vmul.f32 %v3951, %v4028
    %v4481 = vmul.f32 %v3955, %v4016
    %v4482 = vmul.f32 %v3955, %v4020
    %v4483 = vmul.f32 %v3955, %v4024
    %v4484 = vmul.f32 %v3955, %v4028
    %v4485 = vmul.f32 %v3959, %v4016
    %v4486 = vmul.f32 %v3959, %v4020
    %v4487 = vmul.f32 %v3959, %v4024
    %v4488 = vmul.f32 %v3959, %v4028
    %v4489 = vmul.f32 %v3963, %v4016
    %v4490 = vmul.f32 %v3963, %v4020
    %v4491 = vmul.f32 %v3963, %v4024
    %v4492 = vmul.f32 %v3963, %v4028
    %v4493 = vmul.f32 %v3967, %v4016
    %v4494 = vmul.f32 %v3967, %v4020
    %v4495 = vmul.f32 %v3967, %v4024
    %v4496 = vmul.f32 %v3967, %v4028
    %v4497 = vmul.f32 %v3971, %v4016
    %v4498 = vmul.f32 %v3971, %v4020
    %v4499 = vmul.f32 %v3971, %v4024
    %v4500 = vmul.f32 %v3971, %v4028
    %v4501 = vmul.f32 %v3975, %v4016
    %v4502 = vmul.f32 %v3975, %v4020
    %v4503 = vmul.f32 %v3975, %v4024
    %v4504 = vmul.f32 %v3975, %v4028
    %v4505 = vmul.f32 %v3979, %v4016
    %v4506 = vmul.f32 %v3979, %v4020
    %v4507 = vmul.f32 %v3979, %v4024
    %v4508 = vmul.f32 %v3979, %v4028
    %v4509 = vmul.f32 %v3983, %v4016
    %v4510 = vmul.f32 %v3983, %v4020
    %v4511 = vmul.f32 %v3983, %v4024
    %v4512 = vmul.f32 %v3983, %v4028
    %v4513 = vmul.f32 %v3987, %v4016
    %v4514 = vmul.f32 %v3987, %v4020
    %v4515 = vmul.f32 %v3987, %v4024
    %v4516 = vmul.f32 %v3987, %v4028
    %v4517 = vmul.f32 %v3991, %v4016
    %v4518 = vmul.f32 %v3991, %v4020
    %v4519 = vmul.f32 %v3991, %v4024
    %v4520 = vmul.f32 %v3991, %v4028
    %v4521 = vmul.f32 %v3995, %v4016
    %v4522 = vmul.f32 %v3995, %v4020
    %v4523 = vmul.f32 %v3995, %v4024
    %v4524 = vmul.f32 %v3995, %v4028
    %v4525 = vmul.f32 %v3999, %v4016
    %v4526 = vmul.f32 %v3999, %v4020
    %v4527 = vmul.f32 %v3999, %v4024
    %v4528 = vmul.f32 %v3999, %v4028
    %v4529 = vmul.f32 %v4003, %v4016
    %v4530 = vmul.f32 %v4003, %v4020
    %v4531 = vmul.f32 %v4003, %v4024
    %v4532 = vmul.f32 %v4003, %v4028
    %v4533 = vmul.f32 %v4007, %v4016
    %v4534 = vmul.f32 %v4007, %v4020
    %v4535 = vmul.f32 %v4007, %v4024
    %v4536 = vmul.f32 %v4007, %v4028
    %v4537 = vmul.f32 %v4011, %v4016
    %v4538 = vmul.f32 %v4011, %v4020
    %v4539 = vmul.f32 %v4011, %v4024
    %v4540 = vmul.f32 %v4011, %v4028
    %v4541 = vadd.f32 %v2989, %v4029
    %v4542 = vadd.f32 %v2990, %v4030
    %v4543 = vadd.f32 %v2991, %v4031
    %v4544 = vadd.f32 %v2992, %v4032
    %v4545 = vadd.f32 %v2993, %v4033
    %v4546 = vadd.f32 %v2994, %v4034
    %v4547 = vadd.f32 %v2995, %v4035
    %v4548 = vadd.f32 %v2996, %v4036
    %v4549 = vadd.f32 %v2997, %v4037
    %v4550 = vadd.f32 %v2998, %v4038
    %v4551 = vadd.f32 %v2999, %v4039
    %v4552 = vadd.f32 %v3000, %v4040
    %v4553 = vadd.f32 %v3001, %v4041
    %v4554 = vadd.f32 %v3002, %v4042
    %v4555 = vadd.f32 %v3003, %v4043
    %v4556 = vadd.f32 %v3004, %v4044
    %v4557 = vadd.f32 %v3005, %v4045
    %v4558 = vadd.f32 %v3006, %v4046
    %v4559 = vadd.f32 %v3007, %v4047
    %v4560 = vadd.f32 %v3008, %v4048
    %v4561 = vadd.f32 %v3009, %v4049
    %v4562 = vadd.f32 %v3010, %v4050
    %v4563 = vadd.f32 %v3011, %v4051
    %v4564 = vadd.f32 %v3012, %v4052
    %v4565 = vadd.f32 %v3013, %v4053
    %v4566 = vadd.f32 %v3014, %v4054
    %v4567 = vadd.f32 %v3015, %v4055
    %v4568 = vadd.f32 %v3016, %v4056
    %v4569 = vadd.f32 %v3017, %v4057
    %v4570 = vadd.f32 %v3018, %v4058
    %v4571 = vadd.f32 %v3019, %v4059
    %v4572 = vadd.f32 %v3020, %v4060
    %v4573 = vadd.f32 %v3021, %v4061
    %v4574 = vadd.f32 %v3022, %v4062
    %v4575 = vadd.f32 %v3023, %v4063
    %v4576 = vadd.f32 %v3024, %v4064
    %v4577 = vadd.f32 %v3025, %v4065
    %v4578 = vadd.f32 %v3026, %v4066
    %v4579 = vadd.f32 %v3027, %v4067
    %v4580 = vadd.f32 %v3028, %v4068
    %v4581 = vadd.f32 %v3029, %v4069
    %v4582 = vadd.f32 %v3030, %v4070
    %v4583 = vadd.f32 %v3031, %v4071
    %v4584 = vadd.f32 %v3032, %v4072
    %v4585 = vadd.f32 %v3033, %v4073
    %v4586 = vadd.f32 %v3034, %v4074
    %v4587 = vadd.f32 %v3035, %v4075
    %v4588 = vadd.f32 %v3036, %v4076
    %v4589 = vadd.f32 %v3037, %v4077
    %v4590 = vadd.f32 %v3038, %v4078
    %v4591 = vadd.f32 %v3039, %v4079
    %v4592 = vadd.f32 %v3040, %v4080
    %v4593 = vadd.f32 %v3041, %v4081
    %v4594 = vadd.f32 %v3042, %v4082
    %v4595 = vadd.f32 %v3043, %v4083
    %v4596 = vadd.f32 %v3044, %v4084
    %v4597 = vadd.f32 %v3045, %v4085
    %v4598 = vadd.f32 %v3046, %v4086
    %v4599 = vadd.f32 %v3047, %v4087
    %v4600 = vadd.f32 %v3048, %v4088
    %v4601 = vadd.f32 %v3049, %v4089
    %v4602 = vadd.f32 %v3050, %v4090
    %v4603 = vadd.f32 %v3051, %v4091
    %v4604 = vadd.f32 %v3052, %v4092
    %v4605 = vadd.f32 %v3053, %v4093
    %v4606 = vadd.f32 %v3054, %v4094
    %v4607 = vadd.f32 %v3055, %v4095
    %v4608 = vadd.f32 %v3056, %v4096
    %v4609 = vadd.f32 %v3057, %v4097
    %v4610 = vadd.f32 %v3058, %v4098
    %v4611 = vadd.f32 %v3059, %v4099
    %v4612 = vadd.f32 %v3060, %v4100
    %v4613 = vadd.f32 %v3061, %v4101
    %v4614 = vadd.f32 %v3062, %v4102
    %v4615 = vadd.f32 %v3063, %v4103
    %v4616 = vadd.f32 %v3064, %v4104
    %v4617 = vadd.f32 %v3065, %v4105
    %v4618 = vadd.f32 %v3066, %v4106
    %v4619 = vadd.f32 %v3067, %v4107
    %v4620 = vadd.f32 %v3068, %v4108
    %v4621 = vadd.f32 %v3069, %v4109
    %v4622 = vadd.f32 %v3070, %v4110
    %v4623 = vadd.f32 %v3071, %v4111
    %v4624 = vadd.f32 %v3072, %v4112
    %v4625 = vadd.f32 %v3073, %v4113
    %v4626 = vadd.f32 %v3074, %v4114
    %v4627 = vadd.f32 %v3075, %v4115
    %v4628 = vadd.f32 %v3076, %v4116
    %v4629 = vadd.f32 %v3077, %v4117
    %v4630 = vadd.f32 %v3078, %v4118
    %v4631 = vadd.f32 %v3079, %v4119
    %v4632 = vadd.f32 %v3080, %v4120
    %v4633 = vadd.f32 %v3081, %v4121
    %v4634 = vadd.f32 %v3082, %v4122
    %v4635 = vadd.f32 %v3083, %v4123
    %v4636 = vadd.f32 %v3084, %v4124
    %v4637 = vadd.f32 %v3085, %v4125
    %v4638 = vadd.f32 %v3086, %v4126
    %v4639 = vadd.f32 %v3087, %v4127
    %v4640 = vadd.f32 %v3088, %v4128
    %v4641 = vadd.f32 %v3089, %v4129
    %v4642 = vadd.f32 %v3090, %v4130
    %v4643 = vadd.f32 %v3091, %v4131
    %v4644 = vadd.f32 %v3092, %v4132
    %v4645 = vadd.f32 %v3093, %v4133
    %v4646 = vadd.f32 %v3094, %v4134
    %v4647 = vadd.f32 %v3095, %v4135
    %v4648 = vadd.f32 %v3096, %v4136
    %v4649 = vadd.f32 %v3097, %v4137
    %v4650 = vadd.f32 %v3098, %v4138
    %v4651 = vadd.f32 %v3099, %v4139
    %v4652 = vadd.f32 %v3100, %v4140
    %v4653 = vadd.f32 %v3101, %v4141
    %v4654 = vadd.f32 %v3102, %v4142
    %v4655 = vadd.f32 %v3103, %v4143
    %v4656 = vadd.f32 %v3104, %v4144
    %v4657 = vadd.f32 %v3105, %v4145
    %v4658 = vadd.f32 %v3106, %v4146
    %v4659 = vadd.f32 %v3107, %v4147
    %v4660 = vadd.f32 %v3108, %v4148
    %v4661 = vadd.f32 %v3109, %v4149
    %v4662 = vadd.f32 %v3110, %v4150
    %v4663 = vadd.f32 %v3111, %v4151
    %v4664 = vadd.f32 %v3112, %v4152
    %v4665 = vadd.f32 %v3113, %v4153
    %v4666 = vadd.f32 %v3114, %v4154
    %v4667 = vadd.f32 %v3115, %v4155
    %v4668 = vadd.f32 %v3116, %v4156
    %v4669 = vadd.f32 %v3117, %v4157
    %v4670 = vadd.f32 %v3118, %v4158
    %v4671 = vadd.f32 %v3119, %v4159
    %v4672 = vadd.f32 %v3120, %v4160
    %v4673 = vadd.f32 %v3121, %v4161
    %v4674 = vadd.f32 %v3122, %v4162
    %v4675 = vadd.f32 %v3123, %v4163
    %v4676 = vadd.f32 %v3124, %v4164
    %v4677 = vadd.f32 %v3125, %v4165
    %v4678 = vadd.f32 %v3126, %v4166
    %v4679 = vadd.f32 %v3127, %v4167
    %v4680 = vadd.f32 %v3128, %v4168
    %v4681 = vadd.f32 %v3129, %v4169
    %v4682 = vadd.f32 %v3130, %v4170
    %v4683 = vadd.f32 %v3131, %v4171
    %v4684 = vadd.f32 %v3132, %v4172
    %v4685 = vadd.f32 %v3133, %v4173
    %v4686 = vadd.f32 %v3134, %v4174
    %v4687 = vadd.f32 %v3135, %v4175
    %v4688 = vadd.f32 %v3136, %v4176
    %v4689 = vadd.f32 %v3137, %v4177
    %v4690 = vadd.f32 %v3138, %v4178
    %v4691 = vadd.f32 %v3139, %v4179
    %v4692 = vadd.f32 %v3140, %v4180
    %v4693 = vadd.f32 %v3141, %v4181
    %v4694 = vadd.f32 %v3142, %v4182
    %v4695 = vadd.f32 %v3143, %v4183
    %v4696 = vadd.f32 %v3144, %v4184
    %v4697 = vadd.f32 %v3145, %v4185
    %v4698 = vadd.f32 %v3146, %v4186
    %v4699 = vadd.f32 %v3147, %v4187
    %v4700 = vadd.f32 %v3148, %v4188
    %v4701 = vadd.f32 %v3149, %v4189
    %v4702 = vadd.f32 %v3150, %v4190
    %v4703 = vadd.f32 %v3151, %v4191
    %v4704 = vadd.f32 %v3152, %v4192
    %v4705 = vadd.f32 %v3153, %v4193
    %v4706 = vadd.f32 %v3154, %v4194
    %v4707 = vadd.f32 %v3155, %v4195
    %v4708 = vadd.f32 %v3156, %v4196
    %v4709 = vadd.f32 %v3157, %v4197
    %v4710 = vadd.f32 %v3158, %v4198
    %v4711 = vadd.f32 %v3159, %v4199
    %v4712 = vadd.f32 %v3160, %v4200
    %v4713 = vadd.f32 %v3161, %v4201
    %v4714 = vadd.f32 %v3162, %v4202
    %v4715 = vadd.f32 %v3163, %v4203
    %v4716 = vadd.f32 %v3164, %v4204
    %v4717 = vadd.f32 %v3165, %v4205
    %v4718 = vadd.f32 %v3166, %v4206
    %v4719 = vadd.f32 %v3167, %v4207
    %v4720 = vadd.f32 %v3168, %v4208
    %v4721 = vadd.f32 %v3169, %v4209
    %v4722 = vadd.f32 %v3170, %v4210
    %v4723 = vadd.f32 %v3171, %v4211
    %v4724 = vadd.f32 %v3172, %v4212
    %v4725 = vadd.f32 %v3173, %v4213
    %v4726 = vadd.f32 %v3174, %v4214
    %v4727 = vadd.f32 %v3175, %v4215
    %v4728 = vadd.f32 %v3176, %v4216
    %v4729 = vadd.f32 %v3177, %v4217
    %v4730 = vadd.f32 %v3178, %v4218
    %v4731 = vadd.f32 %v3179, %v4219
    %v4732 = vadd.f32 %v3180, %v4220
    %v4733 = vadd.f32 %v3181, %v4221
    %v4734 = vadd.f32 %v3182, %v4222
    %v4735 = vadd.f32 %v3183, %v4223
    %v4736 = vadd.f32 %v3184, %v4224
    %v4737 = vadd.f32 %v3185, %v4225
    %v4738 = vadd.f32 %v3186, %v4226
    %v4739 = vadd.f32 %v3187, %v4227
    %v4740 = vadd.f32 %v3188, %v4228
    %v4741 = vadd.f32 %v3189, %v4229
    %v4742 = vadd.f32 %v3190, %v4230
    %v4743 = vadd.f32 %v3191, %v4231
    %v4744 = vadd.f32 %v3192, %v4232
    %v4745 = vadd.f32 %v3193, %v4233
    %v4746 = vadd.f32 %v3194, %v4234
    %v4747 = vadd.f32 %v3195, %v4235
    %v4748 = vadd.f32 %v3196, %v4236
    %v4749 = vadd.f32 %v3197, %v4237
    %v4750 = vadd.f32 %v3198, %v4238
    %v4751 = vadd.f32 %v3199, %v4239
    %v4752 = vadd.f32 %v3200, %v4240
    %v4753 = vadd.f32 %v3201, %v4241
    %v4754 = vadd.f32 %v3202, %v4242
    %v4755 = vadd.f32 %v3203, %v4243
    %v4756 = vadd.f32 %v3204, %v4244
    %v4757 = vadd.f32 %v3205, %v4245
    %v4758 = vadd.f32 %v3206, %v4246
    %v4759 = vadd.f32 %v3207, %v4247
    %v4760 = vadd.f32 %v3208, %v4248
    %v4761 = vadd.f32 %v3209, %v4249
    %v4762 = vadd.f32 %v3210, %v4250
    %v4763 = vadd.f32 %v3211, %v4251
    %v4764 = vadd.f32 %v3212, %v4252
    %v4765 = vadd.f32 %v3213, %v4253
    %v4766 = vadd.f32 %v3214, %v4254
    %v4767 = vadd.f32 %v3215, %v4255
    %v4768 = vadd.f32 %v3216, %v4256
    %v4769 = vadd.f32 %v3217, %v4257
    %v4770 = vadd.f32 %v3218, %v4258
    %v4771 = vadd.f32 %v3219, %v4259
    %v4772 = vadd.f32 %v3220, %v4260
    %v4773 = vadd.f32 %v3221, %v4261
    %v4774 = vadd.f32 %v3222, %v4262
    %v4775 = vadd.f32 %v3223, %v4263
    %v4776 = vadd.f32 %v3224, %v4264
    %v4777 = vadd.f32 %v3225, %v4265
    %v4778 = vadd.f32 %v3226, %v4266
    %v4779 = vadd.f32 %v3227, %v4267
    %v4780 = vadd.f32 %v3228, %v4268
    %v4781 = vadd.f32 %v3229, %v4269
    %v4782 = vadd.f32 %v3230, %v4270
    %v4783 = vadd.f32 %v3231, %v4271
    %v4784 = vadd.f32 %v3232, %v4272
    %v4785 = vadd.f32 %v3233, %v4273
    %v4786 = vadd.f32 %v3234, %v4274
    %v4787 = vadd.f32 %v3235, %v4275
    %v4788 = vadd.f32 %v3236, %v4276
    %v4789 = vadd.f32 %v3237, %v4277
    %v4790 = vadd.f32 %v3238, %v4278
    %v4791 = vadd.f32 %v3239, %v4279
    %v4792 = vadd.f32 %v3240, %v4280
    %v4793 = vadd.f32 %v3241, %v4281
    %v4794 = vadd.f32 %v3242, %v4282
    %v4795 = vadd.f32 %v3243, %v4283
    %v4796 = vadd.f32 %v3244, %v4284
    %v4797 = vadd.f32 %v3245, %v4285
    %v4798 = vadd.f32 %v3246, %v4286
    %v4799 = vadd.f32 %v3247, %v4287
    %v4800 = vadd.f32 %v3248, %v4288
    %v4801 = vadd.f32 %v3249, %v4289
    %v4802 = vadd.f32 %v3250, %v4290
    %v4803 = vadd.f32 %v3251, %v4291
    %v4804 = vadd.f32 %v3252, %v4292
    %v4805 = vadd.f32 %v3253, %v4293
    %v4806 = vadd.f32 %v3254, %v4294
    %v4807 = vadd.f32 %v3255, %v4295
    %v4808 = vadd.f32 %v3256, %v4296
    %v4809 = vadd.f32 %v3257, %v4297
    %v4810 = vadd.f32 %v3258, %v4298
    %v4811 = vadd.f32 %v3259, %v4299
    %v4812 = vadd.f32 %v3260, %v4300
    %v4813 = vadd.f32 %v3261, %v4301
    %v4814 = vadd.f32 %v3262, %v4302
    %v4815 = vadd.f32 %v3263, %v4303
    %v4816 = vadd.f32 %v3264, %v4304
    %v4817 = vadd.f32 %v3265, %v4305
    %v4818 = vadd.f32 %v3266, %v4306
    %v4819 = vadd.f32 %v3267, %v4307
    %v4820 = vadd.f32 %v3268, %v4308
    %v4821 = vadd.f32 %v3269, %v4309
    %v4822 = vadd.f32 %v3270, %v4310
    %v4823 = vadd.f32 %v3271, %v4311
    %v4824 = vadd.f32 %v3272, %v4312
    %v4825 = vadd.f32 %v3273, %v4313
    %v4826 = vadd.f32 %v3274, %v4314
    %v4827 = vadd.f32 %v3275, %v4315
    %v4828 = vadd.f32 %v3276, %v4316
    %v4829 = vadd.f32 %v3277, %v4317
    %v4830 = vadd.f32 %v3278, %v4318
    %v4831 = vadd.f32 %v3279, %v4319
    %v4832 = vadd.f32 %v3280, %v4320
    %v4833 = vadd.f32 %v3281, %v4321
    %v4834 = vadd.f32 %v3282, %v4322
    %v4835 = vadd.f32 %v3283, %v4323
    %v4836 = vadd.f32 %v3284, %v4324
    %v4837 = vadd.f32 %v3285, %v4325
    %v4838 = vadd.f32 %v3286, %v4326
    %v4839 = vadd.f32 %v3287, %v4327
    %v4840 = vadd.f32 %v3288, %v4328
    %v4841 = vadd.f32 %v3289, %v4329
    %v4842 = vadd.f32 %v3290, %v4330
    %v4843 = vadd.f32 %v3291, %v4331
    %v4844 = vadd.f32 %v3292, %v4332
    %v4845 = vadd.f32 %v3293, %v4333
    %v4846 = vadd.f32 %v3294, %v4334
    %v4847 = vadd.f32 %v3295, %v4335
    %v4848 = vadd.f32 %v3296, %v4336
    %v4849 = vadd.f32 %v3297, %v4337
    %v4850 = vadd.f32 %v3298, %v4338
    %v4851 = vadd.f32 %v3299, %v4339
    %v4852 = vadd.f32 %v3300, %v4340
    %v4853 = vadd.f32 %v3301, %v4341
    %v4854 = vadd.f32 %v3302, %v4342
    %v4855 = vadd.f32 %v3303, %v4343
    %v4856 = vadd.f32 %v3304, %v4344
    %v4857 = vadd.f32 %v3305, %v4345
    %v4858 = vadd.f32 %v3306, %v4346
    %v4859 = vadd.f32 %v3307, %v4347
    %v4860 = vadd.f32 %v3308, %v4348
    %v4861 = vadd.f32 %v3309, %v4349
    %v4862 = vadd.f32 %v3310, %v4350
    %v4863 = vadd.f32 %v3311, %v4351
    %v4864 = vadd.f32 %v3312, %v4352
    %v4865 = vadd.f32 %v3313, %v4353
    %v4866 = vadd.f32 %v3314, %v4354
    %v4867 = vadd.f32 %v3315, %v4355
    %v4868 = vadd.f32 %v3316, %v4356
    %v4869 = vadd.f32 %v3317, %v4357
    %v4870 = vadd.f32 %v3318, %v4358
    %v4871 = vadd.f32 %v3319, %v4359
    %v4872 = vadd.f32 %v3320, %v4360
    %v4873 = vadd.f32 %v3321, %v4361
    %v4874 = vadd.f32 %v3322, %v4362
    %v4875 = vadd.f32 %v3323, %v4363
    %v4876 = vadd.f32 %v3324, %v4364
    %v4877 = vadd.f32 %v3325, %v4365
    %v4878 = vadd.f32 %v3326, %v4366
    %v4879 = vadd.f32 %v3327, %v4367
    %v4880 = vadd.f32 %v3328, %v4368
    %v4881 = vadd.f32 %v3329, %v4369
    %v4882 = vadd.f32 %v3330, %v4370
    %v4883 = vadd.f32 %v3331, %v4371
    %v4884 = vadd.f32 %v3332, %v4372
    %v4885 = vadd.f32 %v3333, %v4373
    %v4886 = vadd.f32 %v3334, %v4374
    %v4887 = vadd.f32 %v3335, %v4375
    %v4888 = vadd.f32 %v3336, %v4376
    %v4889 = vadd.f32 %v3337, %v4377
    %v4890 = vadd.f32 %v3338, %v4378
    %v4891 = vadd.f32 %v3339, %v4379
    %v4892 = vadd.f32 %v3340, %v4380
    %v4893 = vadd.f32 %v3341, %v4381
    %v4894 = vadd.f32 %v3342, %v4382
    %v4895 = vadd.f32 %v3343, %v4383
    %v4896 = vadd.f32 %v3344, %v4384
    %v4897 = vadd.f32 %v3345, %v4385
    %v4898 = vadd.f32 %v3346, %v4386
    %v4899 = vadd.f32 %v3347, %v4387
    %v4900 = vadd.f32 %v3348, %v4388
    %v4901 = vadd.f32 %v3349, %v4389
    %v4902 = vadd.f32 %v3350, %v4390
    %v4903 = vadd.f32 %v3351, %v4391
    %v4904 = vadd.f32 %v3352, %v4392
    %v4905 = vadd.f32 %v3353, %v4393
    %v4906 = vadd.f32 %v3354, %v4394
    %v4907 = vadd.f32 %v3355, %v4395
    %v4908 = vadd.f32 %v3356, %v4396
    %v4909 = vadd.f32 %v3357, %v4397
    %v4910 = vadd.f32 %v3358, %v4398
    %v4911 = vadd.f32 %v3359, %v4399
    %v4912 = vadd.f32 %v3360, %v4400
    %v4913 = vadd.f32 %v3361, %v4401
    %v4914 = vadd.f32 %v3362, %v4402
    %v4915 = vadd.f32 %v3363, %v4403
    %v4916 = vadd.f32 %v3364, %v4404
    %v4917 = vadd.f32 %v3365, %v4405
    %v4918 = vadd.f32 %v3366, %v4406
    %v4919 = vadd.f32 %v3367, %v4407
    %v4920 = vadd.f32 %v3368, %v4408
    %v4921 = vadd.f32 %v3369, %v4409
    %v4922 = vadd.f32 %v3370, %v4410
    %v4923 = vadd.f32 %v3371, %v4411
    %v4924 = vadd.f32 %v3372, %v4412
    %v4925 = vadd.f32 %v3373, %v4413
    %v4926 = vadd.f32 %v3374, %v4414
    %v4927 = vadd.f32 %v3375, %v4415
    %v4928 = vadd.f32 %v3376, %v4416
    %v4929 = vadd.f32 %v3377, %v4417
    %v4930 = vadd.f32 %v3378, %v4418
    %v4931 = vadd.f32 %v3379, %v4419
    %v4932 = vadd.f32 %v3380, %v4420
    %v4933 = vadd.f32 %v3381, %v4421
    %v4934 = vadd.f32 %v3382, %v4422
    %v4935 = vadd.f32 %v3383, %v4423
    %v4936 = vadd.f32 %v3384, %v4424
    %v4937 = vadd.f32 %v3385, %v4425
    %v4938 = vadd.f32 %v3386, %v4426
    %v4939 = vadd.f32 %v3387, %v4427
    %v4940 = vadd.f32 %v3388, %v4428
    %v4941 = vadd.f32 %v3389, %v4429
    %v4942 = vadd.f32 %v3390, %v4430
    %v4943 = vadd.f32 %v3391, %v4431
    %v4944 = vadd.f32 %v3392, %v4432
    %v4945 = vadd.f32 %v3393, %v4433
    %v4946 = vadd.f32 %v3394, %v4434
    %v4947 = vadd.f32 %v3395, %v4435
    %v4948 = vadd.f32 %v3396, %v4436
    %v4949 = vadd.f32 %v3397, %v4437
    %v4950 = vadd.f32 %v3398, %v4438
    %v4951 = vadd.f32 %v3399, %v4439
    %v4952 = vadd.f32 %v3400, %v4440
    %v4953 = vadd.f32 %v3401, %v4441
    %v4954 = vadd.f32 %v3402, %v4442
    %v4955 = vadd.f32 %v3403, %v4443
    %v4956 = vadd.f32 %v3404, %v4444
    %v4957 = vadd.f32 %v3405, %v4445
    %v4958 = vadd.f32 %v3406, %v4446
    %v4959 = vadd.f32 %v3407, %v4447
    %v4960 = vadd.f32 %v3408, %v4448
    %v4961 = vadd.f32 %v3409, %v4449
    %v4962 = vadd.f32 %v3410, %v4450
    %v4963 = vadd.f32 %v3411, %v4451
    %v4964 = vadd.f32 %v3412, %v4452
    %v4965 = vadd.f32 %v3413, %v4453
    %v4966 = vadd.f32 %v3414, %v4454
    %v4967 = vadd.f32 %v3415, %v4455
    %v4968 = vadd.f32 %v3416, %v4456
    %v4969 = vadd.f32 %v3417, %v4457
    %v4970 = vadd.f32 %v3418, %v4458
    %v4971 = vadd.f32 %v3419, %v4459
    %v4972 = vadd.f32 %v3420, %v4460
    %v4973 = vadd.f32 %v3421, %v4461
    %v4974 = vadd.f32 %v3422, %v4462
    %v4975 = vadd.f32 %v3423, %v4463
    %v4976 = vadd.f32 %v3424, %v4464
    %v4977 = vadd.f32 %v3425, %v4465
    %v4978 = vadd.f32 %v3426, %v4466
    %v4979 = vadd.f32 %v3427, %v4467
    %v4980 = vadd.f32 %v3428, %v4468
    %v4981 = vadd.f32 %v3429, %v4469
    %v4982 = vadd.f32 %v3430, %v4470
    %v4983 = vadd.f32 %v3431, %v4471
    %v4984 = vadd.f32 %v3432, %v4472
    %v4985 = vadd.f32 %v3433, %v4473
    %v4986 = vadd.f32 %v3434, %v4474
    %v4987 = vadd.f32 %v3435, %v4475
    %v4988 = vadd.f32 %v3436, %v4476
    %v4989 = vadd.f32 %v3437, %v4477
    %v4990 = vadd.f32 %v3438, %v4478
    %v4991 = vadd.f32 %v3439, %v4479
    %v4992 = vadd.f32 %v3440, %v4480
    %v4993 = vadd.f32 %v3441, %v4481
    %v4994 = vadd.f32 %v3442, %v4482
    %v4995 = vadd.f32 %v3443, %v4483
    %v4996 = vadd.f32 %v3444, %v4484
    %v4997 = vadd.f32 %v3445, %v4485
    %v4998 = vadd.f32 %v3446, %v4486
    %v4999 = vadd.f32 %v3447, %v4487
    %v5000 = vadd.f32 %v3448, %v4488
    %v5001 = vadd.f32 %v3449, %v4489
    %v5002 = vadd.f32 %v3450, %v4490
    %v5003 = vadd.f32 %v3451, %v4491
    %v5004 = vadd.f32 %v3452, %v4492
    %v5005 = vadd.f32 %v3453, %v4493
    %v5006 = vadd.f32 %v3454, %v4494
    %v5007 = vadd.f32 %v3455, %v4495
    %v5008 = vadd.f32 %v3456, %v4496
    %v5009 = vadd.f32 %v3457, %v4497
    %v5010 = vadd.f32 %v3458, %v4498
    %v5011 = vadd.f32 %v3459, %v4499
    %v5012 = vadd.f32 %v3460, %v4500
    %v5013 = vadd.f32 %v3461, %v4501
    %v5014 = vadd.f32 %v3462, %v4502
    %v5015 = vadd.f32 %v3463, %v4503
    %v5016 = vadd.f32 %v3464, %v4504
    %v5017 = vadd.f32 %v3465, %v4505
    %v5018 = vadd.f32 %v3466, %v4506
    %v5019 = vadd.f32 %v3467, %v4507
    %v5020 = vadd.f32 %v3468, %v4508
    %v5021 = vadd.f32 %v3469, %v4509
    %v5022 = vadd.f32 %v3470, %v4510
    %v5023 = vadd.f32 %v3471, %v4511
    %v5024 = vadd.f32 %v3472, %v4512
    %v5025 = vadd.f32 %v3473, %v4513
    %v5026 = vadd.f32 %v3474, %v4514
    %v5027 = vadd.f32 %v3475, %v4515
    %v5028 = vadd.f32 %v3476, %v4516
    %v5029 = vadd.f32 %v3477, %v4517
    %v5030 = vadd.f32 %v3478, %v4518
    %v5031 = vadd.f32 %v3479, %v4519
    %v5032 = vadd.f32 %v3480, %v4520
    %v5033 = vadd.f32 %v3481, %v4521
    %v5034 = vadd.f32 %v3482, %v4522
    %v5035 = vadd.f32 %v3483, %v4523
    %v5036 = vadd.f32 %v3484, %v4524
    %v5037 = vadd.f32 %v3485, %v4525
    %v5038 = vadd.f32 %v3486, %v4526
    %v5039 = vadd.f32 %v3487, %v4527
    %v5040 = vadd.f32 %v3488, %v4528
    %v5041 = vadd.f32 %v3489, %v4529
    %v5042 = vadd.f32 %v3490, %v4530
    %v5043 = vadd.f32 %v3491, %v4531
    %v5044 = vadd.f32 %v3492, %v4532
    %v5045 = vadd.f32 %v3493, %v4533
    %v5046 = vadd.f32 %v3494, %v4534
    %v5047 = vadd.f32 %v3495, %v4535
    %v5048 = vadd.f32 %v3496, %v4536
    %v5049 = vadd.f32 %v3497, %v4537
    %v5050 = vadd.f32 %v3498, %v4538
    %v5051 = vadd.f32 %v3499, %v4539
    %v5052 = vadd.f32 %v3500, %v4540
    %v5053 = vmax.f32 %v4541, 0.0
    %v5054 = vmax.f32 %v4542, 0.0
    %v5055 = vmax.f32 %v4543, 0.0
    %v5056 = vmax.f32 %v4544, 0.0
    %v5057 = vmax.f32 %v4545, 0.0
    %v5058 = vmax.f32 %v4546, 0.0
    %v5059 = vmax.f32 %v4547, 0.0
    %v5060 = vmax.f32 %v4548, 0.0
    %v5061 = vmax.f32 %v4549, 0.0
    %v5062 = vmax.f32 %v4550, 0.0
    %v5063 = vmax.f32 %v4551, 0.0
    %v5064 = vmax.f32 %v4552, 0.0
    %v5065 = vmax.f32 %v4553, 0.0
    %v5066 = vmax.f32 %v4554, 0.0
    %v5067 = vmax.f32 %v4555, 0.0
    %v5068 = vmax.f32 %v4556, 0.0
    %v5069 = vmax.f32 %v4557, 0.0
    %v5070 = vmax.f32 %v4558, 0.0
    %v5071 = vmax.f32 %v4559, 0.0
    %v5072 = vmax.f32 %v4560, 0.0
    %v5073 = vmax.f32 %v4561, 0.0
    %v5074 = vmax.f32 %v4562, 0.0
    %v5075 = vmax.f32 %v4563, 0.0
    %v5076 = vmax.f32 %v4564, 0.0
    %v5077 = vmax.f32 %v4565, 0.0
    %v5078 = vmax.f32 %v4566, 0.0
    %v5079 = vmax.f32 %v4567, 0.0
    %v5080 = vmax.f32 %v4568, 0.0
    %v5081 = vmax.f32 %v4569, 0.0
    %v5082 = vmax.f32 %v4570, 0.0
    %v5083 = vmax.f32 %v4571, 0.0
    %v5084 = vmax.f32 %v4572, 0.0
    %v5085 = vmax.f32 %v4573, 0.0
    %v5086 = vmax.f32 %v4574, 0.0
    %v5087 = vmax.f32 %v4575, 0.0
    %v5088 = vmax.f32 %v4576, 0.0
    %v5089 = vmax.f32 %v4577, 0.0
    %v5090 = vmax.f32 %v4578, 0.0
    %v5091 = vmax.f32 %v4579, 0.0
    %v5092 = vmax.f32 %v4580, 0.0
    %v5093 = vmax.f32 %v4581, 0.0
    %v5094 = vmax.f32 %v4582, 0.0
    %v5095 = vmax.f32 %v4583, 0.0
    %v5096 = vmax.f32 %v4584, 0.0
    %v5097 = vmax.f32 %v4585, 0.0
    %v5098 = vmax.f32 %v4586, 0.0
    %v5099 = vmax.f32 %v4587, 0.0
    %v5100 = vmax.f32 %v4588, 0.0
    %v5101 = vmax.f32 %v4589, 0.0
    %v5102 = vmax.f32 %v4590, 0.0
    %v5103 = vmax.f32 %v4591, 0.0
    %v5104 = vmax.f32 %v4592, 0.0
    %v5105 = vmax.f32 %v4593, 0.0
    %v5106 = vmax.f32 %v4594, 0.0
    %v5107 = vmax.f32 %v4595, 0.0
    %v5108 = vmax.f32 %v4596, 0.0
    %v5109 = vmax.f32 %v4597, 0.0
    %v5110 = vmax.f32 %v4598, 0.0
    %v5111 = vmax.f32 %v4599, 0.0
    %v5112 = vmax.f32 %v4600, 0.0
    %v5113 = vmax.f32 %v4601, 0.0
    %v5114 = vmax.f32 %v4602, 0.0
    %v5115 = vmax.f32 %v4603, 0.0
    %v5116 = vmax.f32 %v4604, 0.0
    %v5117 = vmax.f32 %v4605, 0.0
    %v5118 = vmax.f32 %v4606, 0.0
    %v5119 = vmax.f32 %v4607, 0.0
    %v5120 = vmax.f32 %v4608, 0.0
    %v5121 = vmax.f32 %v4609, 0.0
    %v5122 = vmax.f32 %v4610, 0.0
    %v5123 = vmax.f32 %v4611, 0.0
    %v5124 = vmax.f32 %v4612, 0.0
    %v5125 = vmax.f32 %v4613, 0.0
    %v5126 = vmax.f32 %v4614, 0.0
    %v5127 = vmax.f32 %v4615, 0.0
    %v5128 = vmax.f32 %v4616, 0.0
    %v5129 = vmax.f32 %v4617, 0.0
    %v5130 = vmax.f32 %v4618, 0.0
    %v5131 = vmax.f32 %v4619, 0.0
    %v5132 = vmax.f32 %v4620, 0.0
    %v5133 = vmax.f32 %v4621, 0.0
    %v5134 = vmax.f32 %v4622, 0.0
    %v5135 = vmax.f32 %v4623, 0.0
    %v5136 = vmax.f32 %v4624, 0.0
    %v5137 = vmax.f32 %v4625, 0.0
    %v5138 = vmax.f32 %v4626, 0.0
    %v5139 = vmax.f32 %v4627, 0.0
    %v5140 = vmax.f32 %v4628, 0.0
    %v5141 = vmax.f32 %v4629, 0.0
    %v5142 = vmax.f32 %v4630, 0.0
    %v5143 = vmax.f32 %v4631, 0.0
    %v5144 = vmax.f32 %v4632, 0.0
    %v5145 = vmax.f32 %v4633, 0.0
    %v5146 = vmax.f32 %v4634, 0.0
    %v5147 = vmax.f32 %v4635, 0.0
    %v5148 = vmax.f32 %v4636, 0.0
    %v5149 = vmax.f32 %v4637, 0.0
    %v5150 = vmax.f32 %v4638, 0.0
    %v5151 = vmax.f32 %v4639, 0.0
    %v5152 = vmax.f32 %v4640, 0.0
    %v5153 = vmax.f32 %v4641, 0.0
    %v5154 = vmax.f32 %v4642, 0.0
    %v5155 = vmax.f32 %v4643, 0.0
    %v5156 = vmax.f32 %v4644, 0.0
    %v5157 = vmax.f32 %v4645, 0.0
    %v5158 = vmax.f32 %v4646, 0.0
    %v5159 = vmax.f32 %v4647, 0.0
    %v5160 = vmax.f32 %v4648, 0.0
    %v5161 = vmax.f32 %v4649, 0.0
    %v5162 = vmax.f32 %v4650, 0.0
    %v5163 = vmax.f32 %v4651, 0.0
    %v5164 = vmax.f32 %v4652, 0.0
    %v5165 = vmax.f32 %v4653, 0.0
    %v5166 = vmax.f32 %v4654, 0.0
    %v5167 = vmax.f32 %v4655, 0.0
    %v5168 = vmax.f32 %v4656, 0.0
    %v5169 = vmax.f32 %v4657, 0.0
    %v5170 = vmax.f32 %v4658, 0.0
    %v5171 = vmax.f32 %v4659, 0.0
    %v5172 = vmax.f32 %v4660, 0.0
    %v5173 = vmax.f32 %v4661, 0.0
    %v5174 = vmax.f32 %v4662, 0.0
    %v5175 = vmax.f32 %v4663, 0.0
    %v5176 = vmax.f32 %v4664, 0.0
    %v5177 = vmax.f32 %v4665, 0.0
    %v5178 = vmax.f32 %v4666, 0.0
    %v5179 = vmax.f32 %v4667, 0.0
    %v5180 = vmax.f32 %v4668, 0.0
    %v5181 = vmax.f32 %v4669, 0.0
    %v5182 = vmax.f32 %v4670, 0.0
    %v5183 = vmax.f32 %v4671, 0.0
    %v5184 = vmax.f32 %v4672, 0.0
    %v5185 = vmax.f32 %v4673, 0.0
    %v5186 = vmax.f32 %v4674, 0.0
    %v5187 = vmax.f32 %v4675, 0.0
    %v5188 = vmax.f32 %v4676, 0.0
    %v5189 = vmax.f32 %v4677, 0.0
    %v5190 = vmax.f32 %v4678, 0.0
    %v5191 = vmax.f32 %v4679, 0.0
    %v5192 = vmax.f32 %v4680, 0.0
    %v5193 = vmax.f32 %v4681, 0.0
    %v5194 = vmax.f32 %v4682, 0.0
    %v5195 = vmax.f32 %v4683, 0.0
    %v5196 = vmax.f32 %v4684, 0.0
    %v5197 = vmax.f32 %v4685, 0.0
    %v5198 = vmax.f32 %v4686, 0.0
    %v5199 = vmax.f32 %v4687, 0.0
    %v5200 = vmax.f32 %v4688, 0.0
    %v5201 = vmax.f32 %v4689, 0.0
    %v5202 = vmax.f32 %v4690, 0.0
    %v5203 = vmax.f32 %v4691, 0.0
    %v5204 = vmax.f32 %v4692, 0.0
    %v5205 = vmax.f32 %v4693, 0.0
    %v5206 = vmax.f32 %v4694, 0.0
    %v5207 = vmax.f32 %v4695, 0.0
    %v5208 = vmax.f32 %v4696, 0.0
    %v5209 = vmax.f32 %v4697, 0.0
    %v5210 = vmax.f32 %v4698, 0.0
    %v5211 = vmax.f32 %v4699, 0.0
    %v5212 = vmax.f32 %v4700, 0.0
    %v5213 = vmax.f32 %v4701, 0.0
    %v5214 = vmax.f32 %v4702, 0.0
    %v5215 = vmax.f32 %v4703, 0.0
    %v5216 = vmax.f32 %v4704, 0.0
    %v5217 = vmax.f32 %v4705, 0.0
    %v5218 = vmax.f32 %v4706, 0.0
    %v5219 = vmax.f32 %v4707, 0.0
    %v5220 = vmax.f32 %v4708, 0.0
    %v5221 = vmax.f32 %v4709, 0.0
    %v5222 = vmax.f32 %v4710, 0.0
    %v5223 = vmax.f32 %v4711, 0.0
    %v5224 = vmax.f32 %v4712, 0.0
    %v5225 = vmax.f32 %v4713, 0.0
    %v5226 = vmax.f32 %v4714, 0.0
    %v5227 = vmax.f32 %v4715, 0.0
    %v5228 = vmax.f32 %v4716, 0.0
    %v5229 = vmax.f32 %v4717, 0.0
    %v5230 = vmax.f32 %v4718, 0.0
    %v5231 = vmax.f32 %v4719, 0.0
    %v5232 = vmax.f32 %v4720, 0.0
    %v5233 = vmax.f32 %v4721, 0.0
    %v5234 = vmax.f32 %v4722, 0.0
    %v5235 = vmax.f32 %v4723, 0.0
    %v5236 = vmax.f32 %v4724, 0.0
    %v5237 = vmax.f32 %v4725, 0.0
    %v5238 = vmax.f32 %v4726, 0.0
    %v5239 = vmax.f32 %v4727, 0.0
    %v5240 = vmax.f32 %v4728, 0.0
    %v5241 = vmax.f32 %v4729, 0.0
    %v5242 = vmax.f32 %v4730, 0.0
    %v5243 = vmax.f32 %v4731, 0.0
    %v5244 = vmax.f32 %v4732, 0.0
    %v5245 = vmax.f32 %v4733, 0.0
    %v5246 = vmax.f32 %v4734, 0.0
    %v5247 = vmax.f32 %v4735, 0.0
    %v5248 = vmax.f32 %v4736, 0.0
    %v5249 = vmax.f32 %v4737, 0.0
    %v5250 = vmax.f32 %v4738, 0.0
    %v5251 = vmax.f32 %v4739, 0.0
    %v5252 = vmax.f32 %v4740, 0.0
    %v5253 = vmax.f32 %v4741, 0.0
    %v5254 = vmax.f32 %v4742, 0.0
    %v5255 = vmax.f32 %v4743, 0.0
    %v5256 = vmax.f32 %v4744, 0.0
    %v5257 = vmax.f32 %v4745, 0.0
    %v5258 = vmax.f32 %v4746, 0.0
    %v5259 = vmax.f32 %v4747, 0.0
    %v5260 = vmax.f32 %v4748, 0.0
    %v5261 = vmax.f32 %v4749, 0.0
    %v5262 = vmax.f32 %v4750, 0.0
    %v5263 = vmax.f32 %v4751, 0.0
    %v5264 = vmax.f32 %v4752, 0.0
    %v5265 = vmax.f32 %v4753, 0.0
    %v5266 = vmax.f32 %v4754, 0.0
    %v5267 = vmax.f32 %v4755, 0.0
    %v5268 = vmax.f32 %v4756, 0.0
    %v5269 = vmax.f32 %v4757, 0.0
    %v5270 = vmax.f32 %v4758, 0.0
    %v5271 = vmax.f32 %v4759, 0.0
    %v5272 = vmax.f32 %v4760, 0.0
    %v5273 = vmax.f32 %v4761, 0.0
    %v5274 = vmax.f32 %v4762, 0.0
    %v5275 = vmax.f32 %v4763, 0.0
    %v5276 = vmax.f32 %v4764, 0.0
    %v5277 = vmax.f32 %v4765, 0.0
    %v5278 = vmax.f32 %v4766, 0.0
    %v5279 = vmax.f32 %v4767, 0.0
    %v5280 = vmax.f32 %v4768, 0.0
    %v5281 = vmax.f32 %v4769, 0.0
    %v5282 = vmax.f32 %v4770, 0.0
    %v5283 = vmax.f32 %v4771, 0.0
    %v5284 = vmax.f32 %v4772, 0.0
    %v5285 = vmax.f32 %v4773, 0.0
    %v5286 = vmax.f32 %v4774, 0.0
    %v5287 = vmax.f32 %v4775, 0.0
    %v5288 = vmax.f32 %v4776, 0.0
    %v5289 = vmax.f32 %v4777, 0.0
    %v5290 = vmax.f32 %v4778, 0.0
    %v5291 = vmax.f32 %v4779, 0.0
    %v5292 = vmax.f32 %v4780, 0.0
    %v5293 = vmax.f32 %v4781, 0.0
    %v5294 = vmax.f32 %v4782, 0.0
    %v5295 = vmax.f32 %v4783, 0.0
    %v5296 = vmax.f32 %v4784, 0.0
    %v5297 = vmax.f32 %v4785, 0.0
    %v5298 = vmax.f32 %v4786, 0.0
    %v5299 = vmax.f32 %v4787, 0.0
    %v5300 = vmax.f32 %v4788, 0.0
    %v5301 = vmax.f32 %v4789, 0.0
    %v5302 = vmax.f32 %v4790, 0.0
    %v5303 = vmax.f32 %v4791, 0.0
    %v5304 = vmax.f32 %v4792, 0.0
    %v5305 = vmax.f32 %v4793, 0.0
    %v5306 = vmax.f32 %v4794, 0.0
    %v5307 = vmax.f32 %v4795, 0.0
    %v5308 = vmax.f32 %v4796, 0.0
    %v5309 = vmax.f32 %v4797, 0.0
    %v5310 = vmax.f32 %v4798, 0.0
    %v5311 = vmax.f32 %v4799, 0.0
    %v5312 = vmax.f32 %v4800, 0.0
    %v5313 = vmax.f32 %v4801, 0.0
    %v5314 = vmax.f32 %v4802, 0.0
    %v5315 = vmax.f32 %v4803, 0.0
    %v5316 = vmax.f32 %v4804, 0.0
    %v5317 = vmax.f32 %v4805, 0.0
    %v5318 = vmax.f32 %v4806, 0.0
    %v5319 = vmax.f32 %v4807, 0.0
    %v5320 = vmax.f32 %v4808, 0.0
    %v5321 = vmax.f32 %v4809, 0.0
    %v5322 = vmax.f32 %v4810, 0.0
    %v5323 = vmax.f32 %v4811, 0.0
    %v5324 = vmax.f32 %v4812, 0.0
    %v5325 = vmax.f32 %v4813, 0.0
    %v5326 = vmax.f32 %v4814, 0.0
    %v5327 = vmax.f32 %v4815, 0.0
    %v5328 = vmax.f32 %v4816, 0.0
    %v5329 = vmax.f32 %v4817, 0.0
    %v5330 = vmax.f32 %v4818, 0.0
    %v5331 = vmax.f32 %v4819, 0.0
    %v5332 = vmax.f32 %v4820, 0.0
    %v5333 = vmax.f32 %v4821, 0.0
    %v5334 = vmax.f32 %v4822, 0.0
    %v5335 = vmax.f32 %v4823, 0.0
    %v5336 = vmax.f32 %v4824, 0.0
    %v5337 = vmax.f32 %v4825, 0.0
    %v5338 = vmax.f32 %v4826, 0.0
    %v5339 = vmax.f32 %v4827, 0.0
    %v5340 = vmax.f32 %v4828, 0.0
    %v5341 = vmax.f32 %v4829, 0.0
    %v5342 = vmax.f32 %v4830, 0.0
    %v5343 = vmax.f32 %v4831, 0.0
    %v5344 = vmax.f32 %v4832, 0.0
    %v5345 = vmax.f32 %v4833, 0.0
    %v5346 = vmax.f32 %v4834, 0.0
    %v5347 = vmax.f32 %v4835, 0.0
    %v5348 = vmax.f32 %v4836, 0.0
    %v5349 = vmax.f32 %v4837, 0.0
    %v5350 = vmax.f32 %v4838, 0.0
    %v5351 = vmax.f32 %v4839, 0.0
    %v5352 = vmax.f32 %v4840, 0.0
    %v5353 = vmax.f32 %v4841, 0.0
    %v5354 = vmax.f32 %v4842, 0.0
    %v5355 = vmax.f32 %v4843, 0.0
    %v5356 = vmax.f32 %v4844, 0.0
    %v5357 = vmax.f32 %v4845, 0.0
    %v5358 = vmax.f32 %v4846, 0.0
    %v5359 = vmax.f32 %v4847, 0.0
    %v5360 = vmax.f32 %v4848, 0.0
    %v5361 = vmax.f32 %v4849, 0.0
    %v5362 = vmax.f32 %v4850, 0.0
    %v5363 = vmax.f32 %v4851, 0.0
    %v5364 = vmax.f32 %v4852, 0.0
    %v5365 = vmax.f32 %v4853, 0.0
    %v5366 = vmax.f32 %v4854, 0.0
    %v5367 = vmax.f32 %v4855, 0.0
    %v5368 = vmax.f32 %v4856, 0.0
    %v5369 = vmax.f32 %v4857, 0.0
    %v5370 = vmax.f32 %v4858, 0.0
    %v5371 = vmax.f32 %v4859, 0.0
    %v5372 = vmax.f32 %v4860, 0.0
    %v5373 = vmax.f32 %v4861, 0.0
    %v5374 = vmax.f32 %v4862, 0.0
    %v5375 = vmax.f32 %v4863, 0.0
    %v5376 = vmax.f32 %v4864, 0.0
    %v5377 = vmax.f32 %v4865, 0.0
    %v5378 = vmax.f32 %v4866, 0.0
    %v5379 = vmax.f32 %v4867, 0.0
    %v5380 = vmax.f32 %v4868, 0.0
    %v5381 = vmax.f32 %v4869, 0.0
    %v5382 = vmax.f32 %v4870, 0.0
    %v5383 = vmax.f32 %v4871, 0.0
    %v5384 = vmax.f32 %v4872, 0.0
    %v5385 = vmax.f32 %v4873, 0.0
    %v5386 = vmax.f32 %v4874, 0.0
    %v5387 = vmax.f32 %v4875, 0.0
    %v5388 = vmax.f32 %v4876, 0.0
    %v5389 = vmax.f32 %v4877, 0.0
    %v5390 = vmax.f32 %v4878, 0.0
    %v5391 = vmax.f32 %v4879, 0.0
    %v5392 = vmax.f32 %v4880, 0.0
    %v5393 = vmax.f32 %v4881, 0.0
    %v5394 = vmax.f32 %v4882, 0.0
    %v5395 = vmax.f32 %v4883, 0.0
    %v5396 = vmax.f32 %v4884, 0.0
    %v5397 = vmax.f32 %v4885, 0.0
    %v5398 = vmax.f32 %v4886, 0.0
    %v5399 = vmax.f32 %v4887, 0.0
    %v5400 = vmax.f32 %v4888, 0.0
    %v5401 = vmax.f32 %v4889, 0.0
    %v5402 = vmax.f32 %v4890, 0.0
    %v5403 = vmax.f32 %v4891, 0.0
    %v5404 = vmax.f32 %v4892, 0.0
    %v5405 = vmax.f32 %v4893, 0.0
    %v5406 = vmax.f32 %v4894, 0.0
    %v5407 = vmax.f32 %v4895, 0.0
    %v5408 = vmax.f32 %v4896, 0.0
    %v5409 = vmax.f32 %v4897, 0.0
    %v5410 = vmax.f32 %v4898, 0.0
    %v5411 = vmax.f32 %v4899, 0.0
    %v5412 = vmax.f32 %v4900, 0.0
    %v5413 = vmax.f32 %v4901, 0.0
    %v5414 = vmax.f32 %v4902, 0.0
    %v5415 = vmax.f32 %v4903, 0.0
    %v5416 = vmax.f32 %v4904, 0.0
    %v5417 = vmax.f32 %v4905, 0.0
    %v5418 = vmax.f32 %v4906, 0.0
    %v5419 = vmax.f32 %v4907, 0.0
    %v5420 = vmax.f32 %v4908, 0.0
    %v5421 = vmax.f32 %v4909, 0.0
    %v5422 = vmax.f32 %v4910, 0.0
    %v5423 = vmax.f32 %v4911, 0.0
    %v5424 = vmax.f32 %v4912, 0.0
    %v5425 = vmax.f32 %v4913, 0.0
    %v5426 = vmax.f32 %v4914, 0.0
    %v5427 = vmax.f32 %v4915, 0.0
    %v5428 = vmax.f32 %v4916, 0.0
    %v5429 = vmax.f32 %v4917, 0.0
    %v5430 = vmax.f32 %v4918, 0.0
    %v5431 = vmax.f32 %v4919, 0.0
    %v5432 = vmax.f32 %v4920, 0.0
    %v5433 = vmax.f32 %v4921, 0.0
    %v5434 = vmax.f32 %v4922, 0.0
    %v5435 = vmax.f32 %v4923, 0.0
    %v5436 = vmax.f32 %v4924, 0.0
    %v5437 = vmax.f32 %v4925, 0.0
    %v5438 = vmax.f32 %v4926, 0.0
    %v5439 = vmax.f32 %v4927, 0.0
    %v5440 = vmax.f32 %v4928, 0.0
    %v5441 = vmax.f32 %v4929, 0.0
    %v5442 = vmax.f32 %v4930, 0.0
    %v5443 = vmax.f32 %v4931, 0.0
    %v5444 = vmax.f32 %v4932, 0.0
    %v5445 = vmax.f32 %v4933, 0.0
    %v5446 = vmax.f32 %v4934, 0.0
    %v5447 = vmax.f32 %v4935, 0.0
    %v5448 = vmax.f32 %v4936, 0.0
    %v5449 = vmax.f32 %v4937, 0.0
    %v5450 = vmax.f32 %v4938, 0.0
    %v5451 = vmax.f32 %v4939, 0.0
    %v5452 = vmax.f32 %v4940, 0.0
    %v5453 = vmax.f32 %v4941, 0.0
    %v5454 = vmax.f32 %v4942, 0.0
    %v5455 = vmax.f32 %v4943, 0.0
    %v5456 = vmax.f32 %v4944, 0.0
    %v5457 = vmax.f32 %v4945, 0.0
    %v5458 = vmax.f32 %v4946, 0.0
    %v5459 = vmax.f32 %v4947, 0.0
    %v5460 = vmax.f32 %v4948, 0.0
    %v5461 = vmax.f32 %v4949, 0.0
    %v5462 = vmax.f32 %v4950, 0.0
    %v5463 = vmax.f32 %v4951, 0.0
    %v5464 = vmax.f32 %v4952, 0.0
    %v5465 = vmax.f32 %v4953, 0.0
    %v5466 = vmax.f32 %v4954, 0.0
    %v5467 = vmax.f32 %v4955, 0.0
    %v5468 = vmax.f32 %v4956, 0.0
    %v5469 = vmax.f32 %v4957, 0.0
    %v5470 = vmax.f32 %v4958, 0.0
    %v5471 = vmax.f32 %v4959, 0.0
    %v5472 = vmax.f32 %v4960, 0.0
    %v5473 = vmax.f32 %v4961, 0.0
    %v5474 = vmax.f32 %v4962, 0.0
    %v5475 = vmax.f32 %v4963, 0.0
    %v5476 = vmax.f32 %v4964, 0.0
    %v5477 = vmax.f32 %v4965, 0.0
    %v5478 = vmax.f32 %v4966, 0.0
    %v5479 = vmax.f32 %v4967, 0.0
    %v5480 = vmax.f32 %v4968, 0.0
    %v5481 = vmax.f32 %v4969, 0.0
    %v5482 = vmax.f32 %v4970, 0.0
    %v5483 = vmax.f32 %v4971, 0.0
    %v5484 = vmax.f32 %v4972, 0.0
    %v5485 = vmax.f32 %v4973, 0.0
    %v5486 = vmax.f32 %v4974, 0.0
    %v5487 = vmax.f32 %v4975, 0.0
    %v5488 = vmax.f32 %v4976, 0.0
    %v5489 = vmax.f32 %v4977, 0.0
    %v5490 = vmax.f32 %v4978, 0.0
    %v5491 = vmax.f32 %v4979, 0.0
    %v5492 = vmax.f32 %v4980, 0.0
    %v5493 = vmax.f32 %v4981, 0.0
    %v5494 = vmax.f32 %v4982, 0.0
    %v5495 = vmax.f32 %v4983, 0.0
    %v5496 = vmax.f32 %v4984, 0.0
    %v5497 = vmax.f32 %v4985, 0.0
    %v5498 = vmax.f32 %v4986, 0.0
    %v5499 = vmax.f32 %v4987, 0.0
    %v5500 = vmax.f32 %v4988, 0.0
    %v5501 = vmax.f32 %v4989, 0.0
    %v5502 = vmax.f32 %v4990, 0.0
    %v5503 = vmax.f32 %v4991, 0.0
    %v5504 = vmax.f32 %v4992, 0.0
    %v5505 = vmax.f32 %v4993, 0.0
    %v5506 = vmax.f32 %v4994, 0.0
    %v5507 = vmax.f32 %v4995, 0.0
    %v5508 = vmax.f32 %v4996, 0.0
    %v5509 = vmax.f32 %v4997, 0.0
    %v5510 = vmax.f32 %v4998, 0.0
    %v5511 = vmax.f32 %v4999, 0.0
    %v5512 = vmax.f32 %v5000, 0.0
    %v5513 = vmax.f32 %v5001, 0.0
    %v5514 = vmax.f32 %v5002, 0.0
    %v5515 = vmax.f32 %v5003, 0.0
    %v5516 = vmax.f32 %v5004, 0.0
    %v5517 = vmax.f32 %v5005, 0.0
    %v5518 = vmax.f32 %v5006, 0.0
    %v5519 = vmax.f32 %v5007, 0.0
    %v5520 = vmax.f32 %v5008, 0.0
    %v5521 = vmax.f32 %v5009, 0.0
    %v5522 = vmax.f32 %v5010, 0.0
    %v5523 = vmax.f32 %v5011, 0.0
    %v5524 = vmax.f32 %v5012, 0.0
    %v5525 = vmax.f32 %v5013, 0.0
    %v5526 = vmax.f32 %v5014, 0.0
    %v5527 = vmax.f32 %v5015, 0.0
    %v5528 = vmax.f32 %v5016, 0.0
    %v5529 = vmax.f32 %v5017, 0.0
    %v5530 = vmax.f32 %v5018, 0.0
    %v5531 = vmax.f32 %v5019, 0.0
    %v5532 = vmax.f32 %v5020, 0.0
    %v5533 = vmax.f32 %v5021, 0.0
    %v5534 = vmax.f32 %v5022, 0.0
    %v5535 = vmax.f32 %v5023, 0.0
    %v5536 = vmax.f32 %v5024, 0.0
    %v5537 = vmax.f32 %v5025, 0.0
    %v5538 = vmax.f32 %v5026, 0.0
    %v5539 = vmax.f32 %v5027, 0.0
    %v5540 = vmax.f32 %v5028, 0.0
    %v5541 = vmax.f32 %v5029, 0.0
    %v5542 = vmax.f32 %v5030, 0.0
    %v5543 = vmax.f32 %v5031, 0.0
    %v5544 = vmax.f32 %v5032, 0.0
    %v5545 = vmax.f32 %v5033, 0.0
    %v5546 = vmax.f32 %v5034, 0.0
    %v5547 = vmax.f32 %v5035, 0.0
    %v5548 = vmax.f32 %v5036, 0.0
    %v5549 = vmax.f32 %v5037, 0.0
    %v5550 = vmax.f32 %v5038, 0.0
    %v5551 = vmax.f32 %v5039, 0.0
    %v5552 = vmax.f32 %v5040, 0.0
    %v5553 = vmax.f32 %v5041, 0.0
    %v5554 = vmax.f32 %v5042, 0.0
    %v5555 = vmax.f32 %v5043, 0.0
    %v5556 = vmax.f32 %v5044, 0.0
    %v5557 = vmax.f32 %v5045, 0.0
    %v5558 = vmax.f32 %v5046, 0.0
    %v5559 = vmax.f32 %v5047, 0.0
    %v5560 = vmax.f32 %v5048, 0.0
    %v5561 = vmax.f32 %v5049, 0.0
    %v5562 = vmax.f32 %v5050, 0.0
    %v5563 = vmax.f32 %v5051, 0.0
    %v5564 = vmax.f32 %v5052, 0.0
    %v5565 = vpack.c.bf16 %v5057, %v5053
    %v5566 = vpack.c.bf16 %v5058, %v5054
    %v5567 = vpack.c.bf16 %v5059, %v5055
    %v5568 = vpack.c.bf16 %v5060, %v5056
    %v5569 = vpack.c.bf16 %v5065, %v5061
    %v5570 = vpack.c.bf16 %v5066, %v5062
    %v5571 = vpack.c.bf16 %v5067, %v5063
    %v5572 = vpack.c.bf16 %v5068, %v5064
    %v5573 = vpack.c.bf16 %v5073, %v5069
    %v5574 = vpack.c.bf16 %v5074, %v5070
    %v5575 = vpack.c.bf16 %v5075, %v5071
    %v5576 = vpack.c.bf16 %v5076, %v5072
    %v5577 = vpack.c.bf16 %v5081, %v5077
    %v5578 = vpack.c.bf16 %v5082, %v5078
    %v5579 = vpack.c.bf16 %v5083, %v5079
    %v5580 = vpack.c.bf16 %v5084, %v5080
    %v5581 = vpack.c.bf16 %v5089, %v5085
    %v5582 = vpack.c.bf16 %v5090, %v5086
    %v5583 = vpack.c.bf16 %v5091, %v5087
    %v5584 = vpack.c.bf16 %v5092, %v5088
    %v5585 = vpack.c.bf16 %v5097, %v5093
    %v5586 = vpack.c.bf16 %v5098, %v5094
    %v5587 = vpack.c.bf16 %v5099, %v5095
    %v5588 = vpack.c.bf16 %v5100, %v5096
    %v5589 = vpack.c.bf16 %v5105, %v5101
    %v5590 = vpack.c.bf16 %v5106, %v5102
    %v5591 = vpack.c.bf16 %v5107, %v5103
    %v5592 = vpack.c.bf16 %v5108, %v5104
    %v5593 = vpack.c.bf16 %v5113, %v5109
    %v5594 = vpack.c.bf16 %v5114, %v5110
    %v5595 = vpack.c.bf16 %v5115, %v5111
    %v5596 = vpack.c.bf16 %v5116, %v5112
    %v5597 = vpack.c.bf16 %v5121, %v5117
    %v5598 = vpack.c.bf16 %v5122, %v5118
    %v5599 = vpack.c.bf16 %v5123, %v5119
    %v5600 = vpack.c.bf16 %v5124, %v5120
    %v5601 = vpack.c.bf16 %v5129, %v5125
    %v5602 = vpack.c.bf16 %v5130, %v5126
    %v5603 = vpack.c.bf16 %v5131, %v5127
    %v5604 = vpack.c.bf16 %v5132, %v5128
    %v5605 = vpack.c.bf16 %v5137, %v5133
    %v5606 = vpack.c.bf16 %v5138, %v5134
    %v5607 = vpack.c.bf16 %v5139, %v5135
    %v5608 = vpack.c.bf16 %v5140, %v5136
    %v5609 = vpack.c.bf16 %v5145, %v5141
    %v5610 = vpack.c.bf16 %v5146, %v5142
    %v5611 = vpack.c.bf16 %v5147, %v5143
    %v5612 = vpack.c.bf16 %v5148, %v5144
    %v5613 = vpack.c.bf16 %v5153, %v5149
    %v5614 = vpack.c.bf16 %v5154, %v5150
    %v5615 = vpack.c.bf16 %v5155, %v5151
    %v5616 = vpack.c.bf16 %v5156, %v5152
    %v5617 = vpack.c.bf16 %v5161, %v5157
    %v5618 = vpack.c.bf16 %v5162, %v5158
    %v5619 = vpack.c.bf16 %v5163, %v5159
    %v5620 = vpack.c.bf16 %v5164, %v5160
    %v5621 = vpack.c.bf16 %v5169, %v5165
    %v5622 = vpack.c.bf16 %v5170, %v5166
    %v5623 = vpack.c.bf16 %v5171, %v5167
    %v5624 = vpack.c.bf16 %v5172, %v5168
    %v5625 = vpack.c.bf16 %v5177, %v5173
    %v5626 = vpack.c.bf16 %v5178, %v5174
    %v5627 = vpack.c.bf16 %v5179, %v5175
    %v5628 = vpack.c.bf16 %v5180, %v5176
    %v5629 = vpack.c.bf16 %v5185, %v5181
    %v5630 = vpack.c.bf16 %v5186, %v5182
    %v5631 = vpack.c.bf16 %v5187, %v5183
    %v5632 = vpack.c.bf16 %v5188, %v5184
    %v5633 = vpack.c.bf16 %v5193, %v5189
    %v5634 = vpack.c.bf16 %v5194, %v5190
    %v5635 = vpack.c.bf16 %v5195, %v5191
    %v5636 = vpack.c.bf16 %v5196, %v5192
    %v5637 = vpack.c.bf16 %v5201, %v5197
    %v5638 = vpack.c.bf16 %v5202, %v5198
    %v5639 = vpack.c.bf16 %v5203, %v5199
    %v5640 = vpack.c.bf16 %v5204, %v5200
    %v5641 = vpack.c.bf16 %v5209, %v5205
    %v5642 = vpack.c.bf16 %v5210, %v5206
    %v5643 = vpack.c.bf16 %v5211, %v5207
    %v5644 = vpack.c.bf16 %v5212, %v5208
    %v5645 = vpack.c.bf16 %v5217, %v5213
    %v5646 = vpack.c.bf16 %v5218, %v5214
    %v5647 = vpack.c.bf16 %v5219, %v5215
    %v5648 = vpack.c.bf16 %v5220, %v5216
    %v5649 = vpack.c.bf16 %v5225, %v5221
    %v5650 = vpack.c.bf16 %v5226, %v5222
    %v5651 = vpack.c.bf16 %v5227, %v5223
    %v5652 = vpack.c.bf16 %v5228, %v5224
    %v5653 = vpack.c.bf16 %v5233, %v5229
    %v5654 = vpack.c.bf16 %v5234, %v5230
    %v5655 = vpack.c.bf16 %v5235, %v5231
    %v5656 = vpack.c.bf16 %v5236, %v5232
    %v5657 = vpack.c.bf16 %v5241, %v5237
    %v5658 = vpack.c.bf16 %v5242, %v5238
    %v5659 = vpack.c.bf16 %v5243, %v5239
    %v5660 = vpack.c.bf16 %v5244, %v5240
    %v5661 = vpack.c.bf16 %v5249, %v5245
    %v5662 = vpack.c.bf16 %v5250, %v5246
    %v5663 = vpack.c.bf16 %v5251, %v5247
    %v5664 = vpack.c.bf16 %v5252, %v5248
    %v5665 = vpack.c.bf16 %v5257, %v5253
    %v5666 = vpack.c.bf16 %v5258, %v5254
    %v5667 = vpack.c.bf16 %v5259, %v5255
    %v5668 = vpack.c.bf16 %v5260, %v5256
    %v5669 = vpack.c.bf16 %v5265, %v5261
    %v5670 = vpack.c.bf16 %v5266, %v5262
    %v5671 = vpack.c.bf16 %v5267, %v5263
    %v5672 = vpack.c.bf16 %v5268, %v5264
    %v5673 = vpack.c.bf16 %v5273, %v5269
    %v5674 = vpack.c.bf16 %v5274, %v5270
    %v5675 = vpack.c.bf16 %v5275, %v5271
    %v5676 = vpack.c.bf16 %v5276, %v5272
    %v5677 = vpack.c.bf16 %v5281, %v5277
    %v5678 = vpack.c.bf16 %v5282, %v5278
    %v5679 = vpack.c.bf16 %v5283, %v5279
    %v5680 = vpack.c.bf16 %v5284, %v5280
    %v5681 = vpack.c.bf16 %v5289, %v5285
    %v5682 = vpack.c.bf16 %v5290, %v5286
    %v5683 = vpack.c.bf16 %v5291, %v5287
    %v5684 = vpack.c.bf16 %v5292, %v5288
    %v5685 = vpack.c.bf16 %v5297, %v5293
    %v5686 = vpack.c.bf16 %v5298, %v5294
    %v5687 = vpack.c.bf16 %v5299, %v5295
    %v5688 = vpack.c.bf16 %v5300, %v5296
    %v5689 = vpack.c.bf16 %v5305, %v5301
    %v5690 = vpack.c.bf16 %v5306, %v5302
    %v5691 = vpack.c.bf16 %v5307, %v5303
    %v5692 = vpack.c.bf16 %v5308, %v5304
    %v5693 = vpack.c.bf16 %v5313, %v5309
    %v5694 = vpack.c.bf16 %v5314, %v5310
    %v5695 = vpack.c.bf16 %v5315, %v5311
    %v5696 = vpack.c.bf16 %v5316, %v5312
    %v5697 = vpack.c.bf16 %v5321, %v5317
    %v5698 = vpack.c.bf16 %v5322, %v5318
    %v5699 = vpack.c.bf16 %v5323, %v5319
    %v5700 = vpack.c.bf16 %v5324, %v5320
    %v5701 = vpack.c.bf16 %v5329, %v5325
    %v5702 = vpack.c.bf16 %v5330, %v5326
    %v5703 = vpack.c.bf16 %v5331, %v5327
    %v5704 = vpack.c.bf16 %v5332, %v5328
    %v5705 = vpack.c.bf16 %v5337, %v5333
    %v5706 = vpack.c.bf16 %v5338, %v5334
    %v5707 = vpack.c.bf16 %v5339, %v5335
    %v5708 = vpack.c.bf16 %v5340, %v5336
    %v5709 = vpack.c.bf16 %v5345, %v5341
    %v5710 = vpack.c.bf16 %v5346, %v5342
    %v5711 = vpack.c.bf16 %v5347, %v5343
    %v5712 = vpack.c.bf16 %v5348, %v5344
    %v5713 = vpack.c.bf16 %v5353, %v5349
    %v5714 = vpack.c.bf16 %v5354, %v5350
    %v5715 = vpack.c.bf16 %v5355, %v5351
    %v5716 = vpack.c.bf16 %v5356, %v5352
    %v5717 = vpack.c.bf16 %v5361, %v5357
    %v5718 = vpack.c.bf16 %v5362, %v5358
    %v5719 = vpack.c.bf16 %v5363, %v5359
    %v5720 = vpack.c.bf16 %v5364, %v5360
    %v5721 = vpack.c.bf16 %v5369, %v5365
    %v5722 = vpack.c.bf16 %v5370, %v5366
    %v5723 = vpack.c.bf16 %v5371, %v5367
    %v5724 = vpack.c.bf16 %v5372, %v5368
    %v5725 = vpack.c.bf16 %v5377, %v5373
    %v5726 = vpack.c.bf16 %v5378, %v5374
    %v5727 = vpack.c.bf16 %v5379, %v5375
    %v5728 = vpack.c.bf16 %v5380, %v5376
    %v5729 = vpack.c.bf16 %v5385, %v5381
    %v5730 = vpack.c.bf16 %v5386, %v5382
    %v5731 = vpack.c.bf16 %v5387, %v5383
    %v5732 = vpack.c.bf16 %v5388, %v5384
    %v5733 = vpack.c.bf16 %v5393, %v5389
    %v5734 = vpack.c.bf16 %v5394, %v5390
    %v5735 = vpack.c.bf16 %v5395, %v5391
    %v5736 = vpack.c.bf16 %v5396, %v5392
    %v5737 = vpack.c.bf16 %v5401, %v5397
    %v5738 = vpack.c.bf16 %v5402, %v5398
    %v5739 = vpack.c.bf16 %v5403, %v5399
    %v5740 = vpack.c.bf16 %v5404, %v5400
    %v5741 = vpack.c.bf16 %v5409, %v5405
    %v5742 = vpack.c.bf16 %v5410, %v5406
    %v5743 = vpack.c.bf16 %v5411, %v5407
    %v5744 = vpack.c.bf16 %v5412, %v5408
    %v5745 = vpack.c.bf16 %v5417, %v5413
    %v5746 = vpack.c.bf16 %v5418, %v5414
    %v5747 = vpack.c.bf16 %v5419, %v5415
    %v5748 = vpack.c.bf16 %v5420, %v5416
    %v5749 = vpack.c.bf16 %v5425, %v5421
    %v5750 = vpack.c.bf16 %v5426, %v5422
    %v5751 = vpack.c.bf16 %v5427, %v5423
    %v5752 = vpack.c.bf16 %v5428, %v5424
    %v5753 = vpack.c.bf16 %v5433, %v5429
    %v5754 = vpack.c.bf16 %v5434, %v5430
    %v5755 = vpack.c.bf16 %v5435, %v5431
    %v5756 = vpack.c.bf16 %v5436, %v5432
    %v5757 = vpack.c.bf16 %v5441, %v5437
    %v5758 = vpack.c.bf16 %v5442, %v5438
    %v5759 = vpack.c.bf16 %v5443, %v5439
    %v5760 = vpack.c.bf16 %v5444, %v5440
    %v5761 = vpack.c.bf16 %v5449, %v5445
    %v5762 = vpack.c.bf16 %v5450, %v5446
    %v5763 = vpack.c.bf16 %v5451, %v5447
    %v5764 = vpack.c.bf16 %v5452, %v5448
    %v5765 = vpack.c.bf16 %v5457, %v5453
    %v5766 = vpack.c.bf16 %v5458, %v5454
    %v5767 = vpack.c.bf16 %v5459, %v5455
    %v5768 = vpack.c.bf16 %v5460, %v5456
    %v5769 = vpack.c.bf16 %v5465, %v5461
    %v5770 = vpack.c.bf16 %v5466, %v5462
    %v5771 = vpack.c.bf16 %v5467, %v5463
    %v5772 = vpack.c.bf16 %v5468, %v5464
    %v5773 = vpack.c.bf16 %v5473, %v5469
    %v5774 = vpack.c.bf16 %v5474, %v5470
    %v5775 = vpack.c.bf16 %v5475, %v5471
    %v5776 = vpack.c.bf16 %v5476, %v5472
    %v5777 = vpack.c.bf16 %v5481, %v5477
    %v5778 = vpack.c.bf16 %v5482, %v5478
    %v5779 = vpack.c.bf16 %v5483, %v5479
    %v5780 = vpack.c.bf16 %v5484, %v5480
    %v5781 = vpack.c.bf16 %v5489, %v5485
    %v5782 = vpack.c.bf16 %v5490, %v5486
    %v5783 = vpack.c.bf16 %v5491, %v5487
    %v5784 = vpack.c.bf16 %v5492, %v5488
    %v5785 = vpack.c.bf16 %v5497, %v5493
    %v5786 = vpack.c.bf16 %v5498, %v5494
    %v5787 = vpack.c.bf16 %v5499, %v5495
    %v5788 = vpack.c.bf16 %v5500, %v5496
    %v5789 = vpack.c.bf16 %v5505, %v5501
    %v5790 = vpack.c.bf16 %v5506, %v5502
    %v5791 = vpack.c.bf16 %v5507, %v5503
    %v5792 = vpack.c.bf16 %v5508, %v5504
    %v5793 = vpack.c.bf16 %v5513, %v5509
    %v5794 = vpack.c.bf16 %v5514, %v5510
    %v5795 = vpack.c.bf16 %v5515, %v5511
    %v5796 = vpack.c.bf16 %v5516, %v5512
    %v5797 = vpack.c.bf16 %v5521, %v5517
    %v5798 = vpack.c.bf16 %v5522, %v5518
    %v5799 = vpack.c.bf16 %v5523, %v5519
    %v5800 = vpack.c.bf16 %v5524, %v5520
    %v5801 = vpack.c.bf16 %v5529, %v5525
    %v5802 = vpack.c.bf16 %v5530, %v5526
    %v5803 = vpack.c.bf16 %v5531, %v5527
    %v5804 = vpack.c.bf16 %v5532, %v5528
    %v5805 = vpack.c.bf16 %v5537, %v5533
    %v5806 = vpack.c.bf16 %v5538, %v5534
    %v5807 = vpack.c.bf16 %v5539, %v5535
    %v5808 = vpack.c.bf16 %v5540, %v5536
    %v5809 = vpack.c.bf16 %v5545, %v5541
    %v5810 = vpack.c.bf16 %v5546, %v5542
    %v5811 = vpack.c.bf16 %v5547, %v5543
    %v5812 = vpack.c.bf16 %v5548, %v5544
    %v5813 = vpack.c.bf16 %v5553, %v5549
    %v5814 = vpack.c.bf16 %v5554, %v5550
    %v5815 = vpack.c.bf16 %v5555, %v5551
    %v5816 = vpack.c.bf16 %v5556, %v5552
    %v5817 = vpack.c.bf16 %v5561, %v5557
    %v5818 = vpack.c.bf16 %v5562, %v5558
    %v5819 = vpack.c.bf16 %v5563, %v5559
    %v5820 = vpack.c.bf16 %v5564, %v5560
    %v5821 = vld [vmem:[#allocation8] sm:$0xff]
    %v5822 = vld [vmem:[#allocation8 + $0x8] sm:$0xff]
    %v5823 = vld [vmem:[#allocation8 + $0x10] sm:$0xff]
    %v5824 = vld [vmem:[#allocation8 + $0x18] sm:$0xff]
    %v5825 = vld [vmem:[#allocation8 + $0x20] sm:$0xff]
    %v5826 = vld [vmem:[#allocation8 + $0x28] sm:$0xff]
    %v5827 = vld [vmem:[#allocation8 + $0x30] sm:$0xff]
    %v5828 = vld [vmem:[#allocation8 + $0x38] sm:$0xff]
    %v5829 = vld [vmem:[#allocation8 + $0x40] sm:$0xff]
    %v5830 = vld [vmem:[#allocation8 + $0x48] sm:$0xff]
    %v5831 = vld [vmem:[#allocation8 + $0x50] sm:$0xff]
    %v5832 = vld [vmem:[#allocation8 + $0x58] sm:$0xff]
    %v5833 = vld [vmem:[#allocation8 + $0x60] sm:$0xff]
    %v5834 = vld [vmem:[#allocation8 + $0x68] sm:$0xff]
    %v5835 = vld [vmem:[#allocation8 + $0x70] sm:$0xff]
    %v5836 = vld [vmem:[#allocation8 + $0x78] sm:$0xff]
    %v5837 = vld [vmem:[#allocation8 + $0x80] sm:$0xff]
    %v5838 = vld [vmem:[#allocation8 + $0x88] sm:$0xff]
    %v5839 = vld [vmem:[#allocation8 + $0x90] sm:$0xff]
    %v5840 = vld [vmem:[#allocation8 + $0x98] sm:$0xff]
    %v5841 = vld [vmem:[#allocation8 + $0xa0] sm:$0xff]
    %v5842 = vld [vmem:[#allocation8 + $0xa8] sm:$0xff]
    %v5843 = vld [vmem:[#allocation8 + $0xb0] sm:$0xff]
    %v5844 = vld [vmem:[#allocation8 + $0xb8] sm:$0xff]
    %v5845 = vld [vmem:[#allocation8 + $0xc0] sm:$0xff]
    %v5846 = vld [vmem:[#allocation8 + $0xc8] sm:$0xff]
    %v5847 = vld [vmem:[#allocation8 + $0xd0] sm:$0xff]
    %v5848 = vld [vmem:[#allocation8 + $0xd8] sm:$0xff]
    %v5849 = vld [vmem:[#allocation8 + $0xe0] sm:$0xff]
    %v5850 = vld [vmem:[#allocation8 + $0xe8] sm:$0xff]
    %v5851 = vld [vmem:[#allocation8 + $0xf0] sm:$0xff]
    %v5852 = vld [vmem:[#allocation8 + $0xf8] sm:$0xff]
    %v5853 = vld [vmem:[#allocation8 + $0x100] sm:$0xff]
    %v5854 = vld [vmem:[#allocation8 + $0x108] sm:$0xff]
    %v5855 = vld [vmem:[#allocation8 + $0x110] sm:$0xff]
    %v5856 = vld [vmem:[#allocation8 + $0x118] sm:$0xff]
    %v5857 = vld [vmem:[#allocation8 + $0x120] sm:$0xff]
    %v5858 = vld [vmem:[#allocation8 + $0x128] sm:$0xff]
    %v5859 = vld [vmem:[#allocation8 + $0x130] sm:$0xff]
    %v5860 = vld [vmem:[#allocation8 + $0x138] sm:$0xff]
    %v5861 = vld [vmem:[#allocation8 + $0x140] sm:$0xff]
    %v5862 = vld [vmem:[#allocation8 + $0x148] sm:$0xff]
    %v5863 = vld [vmem:[#allocation8 + $0x150] sm:$0xff]
    %v5864 = vld [vmem:[#allocation8 + $0x158] sm:$0xff]
    %v5865 = vld [vmem:[#allocation8 + $0x160] sm:$0xff]
    %v5866 = vld [vmem:[#allocation8 + $0x168] sm:$0xff]
    %v5867 = vld [vmem:[#allocation8 + $0x170] sm:$0xff]
    %v5868 = vld [vmem:[#allocation8 + $0x178] sm:$0xff]
    %v5869 = vld [vmem:[#allocation8 + $0x180] sm:$0xff]
    %v5870 = vld [vmem:[#allocation8 + $0x188] sm:$0xff]
    %v5871 = vld [vmem:[#allocation8 + $0x190] sm:$0xff]
    %v5872 = vld [vmem:[#allocation8 + $0x198] sm:$0xff]
    %v5873 = vld [vmem:[#allocation8 + $0x1a0] sm:$0xff]
    %v5874 = vld [vmem:[#allocation8 + $0x1a8] sm:$0xff]
    %v5875 = vld [vmem:[#allocation8 + $0x1b0] sm:$0xff]
    %v5876 = vld [vmem:[#allocation8 + $0x1b8] sm:$0xff]
    %v5877 = vld [vmem:[#allocation8 + $0x1c0] sm:$0xff]
    %v5878 = vld [vmem:[#allocation8 + $0x1c8] sm:$0xff]
    %v5879 = vld [vmem:[#allocation8 + $0x1d0] sm:$0xff]
    %v5880 = vld [vmem:[#allocation8 + $0x1d8] sm:$0xff]
    %v5881 = vld [vmem:[#allocation8 + $0x1e0] sm:$0xff]
    %v5882 = vld [vmem:[#allocation8 + $0x1e8] sm:$0xff]
    %v5883 = vld [vmem:[#allocation8 + $0x1f0] sm:$0xff]
    %v5884 = vld [vmem:[#allocation8 + $0x1f8] sm:$0xff]
    %v5885 = vld [vmem:[#allocation8 + $0x200] sm:$0xff]
    %v5886 = vld [vmem:[#allocation8 + $0x208] sm:$0xff]
    %v5887 = vld [vmem:[#allocation8 + $0x210] sm:$0xff]
    %v5888 = vld [vmem:[#allocation8 + $0x218] sm:$0xff]
    %v5889 = vld [vmem:[#allocation8 + $0x220] sm:$0xff]
    %v5890 = vld [vmem:[#allocation8 + $0x228] sm:$0xff]
    %v5891 = vld [vmem:[#allocation8 + $0x230] sm:$0xff]
    %v5892 = vld [vmem:[#allocation8 + $0x238] sm:$0xff]
    %v5893 = vld [vmem:[#allocation8 + $0x240] sm:$0xff]
    %v5894 = vld [vmem:[#allocation8 + $0x248] sm:$0xff]
    %v5895 = vld [vmem:[#allocation8 + $0x250] sm:$0xff]
    %v5896 = vld [vmem:[#allocation8 + $0x258] sm:$0xff]
    %v5897 = vld [vmem:[#allocation8 + $0x260] sm:$0xff]
    %v5898 = vld [vmem:[#allocation8 + $0x268] sm:$0xff]
    %v5899 = vld [vmem:[#allocation8 + $0x270] sm:$0xff]
    %v5900 = vld [vmem:[#allocation8 + $0x278] sm:$0xff]
    %v5901 = vld [vmem:[#allocation8 + $0x280] sm:$0xff]
    %v5902 = vld [vmem:[#allocation8 + $0x288] sm:$0xff]
    %v5903 = vld [vmem:[#allocation8 + $0x290] sm:$0xff]
    %v5904 = vld [vmem:[#allocation8 + $0x298] sm:$0xff]
    %v5905 = vld [vmem:[#allocation8 + $0x2a0] sm:$0xff]
    %v5906 = vld [vmem:[#allocation8 + $0x2a8] sm:$0xff]
    %v5907 = vld [vmem:[#allocation8 + $0x2b0] sm:$0xff]
    %v5908 = vld [vmem:[#allocation8 + $0x2b8] sm:$0xff]
    %v5909 = vld [vmem:[#allocation8 + $0x2c0] sm:$0xff]
    %v5910 = vld [vmem:[#allocation8 + $0x2c8] sm:$0xff]
    %v5911 = vld [vmem:[#allocation8 + $0x2d0] sm:$0xff]
    %v5912 = vld [vmem:[#allocation8 + $0x2d8] sm:$0xff]
    %v5913 = vld [vmem:[#allocation8 + $0x2e0] sm:$0xff]
    %v5914 = vld [vmem:[#allocation8 + $0x2e8] sm:$0xff]
    %v5915 = vld [vmem:[#allocation8 + $0x2f0] sm:$0xff]
    %v5916 = vld [vmem:[#allocation8 + $0x2f8] sm:$0xff]
    %v5917 = vld [vmem:[#allocation8 + $0x300] sm:$0xff]
    %v5918 = vld [vmem:[#allocation8 + $0x308] sm:$0xff]
    %v5919 = vld [vmem:[#allocation8 + $0x310] sm:$0xff]
    %v5920 = vld [vmem:[#allocation8 + $0x318] sm:$0xff]
    %v5921 = vld [vmem:[#allocation8 + $0x320] sm:$0xff]
    %v5922 = vld [vmem:[#allocation8 + $0x328] sm:$0xff]
    %v5923 = vld [vmem:[#allocation8 + $0x330] sm:$0xff]
    %v5924 = vld [vmem:[#allocation8 + $0x338] sm:$0xff]
    %v5925 = vld [vmem:[#allocation8 + $0x340] sm:$0xff]
    %v5926 = vld [vmem:[#allocation8 + $0x348] sm:$0xff]
    %v5927 = vld [vmem:[#allocation8 + $0x350] sm:$0xff]
    %v5928 = vld [vmem:[#allocation8 + $0x358] sm:$0xff]
    %v5929 = vld [vmem:[#allocation8 + $0x360] sm:$0xff]
    %v5930 = vld [vmem:[#allocation8 + $0x368] sm:$0xff]
    %v5931 = vld [vmem:[#allocation8 + $0x370] sm:$0xff]
    %v5932 = vld [vmem:[#allocation8 + $0x378] sm:$0xff]
    %v5933 = vld [vmem:[#allocation8 + $0x380] sm:$0xff]
    %v5934 = vld [vmem:[#allocation8 + $0x388] sm:$0xff]
    %v5935 = vld [vmem:[#allocation8 + $0x390] sm:$0xff]
    %v5936 = vld [vmem:[#allocation8 + $0x398] sm:$0xff]
    %v5937 = vld [vmem:[#allocation8 + $0x3a0] sm:$0xff]
    %v5938 = vld [vmem:[#allocation8 + $0x3a8] sm:$0xff]
    %v5939 = vld [vmem:[#allocation8 + $0x3b0] sm:$0xff]
    %v5940 = vld [vmem:[#allocation8 + $0x3b8] sm:$0xff]
    %v5941 = vld [vmem:[#allocation8 + $0x3c0] sm:$0xff]
    %v5942 = vld [vmem:[#allocation8 + $0x3c8] sm:$0xff]
    %v5943 = vld [vmem:[#allocation8 + $0x3d0] sm:$0xff]
    %v5944 = vld [vmem:[#allocation8 + $0x3d8] sm:$0xff]
    %v5945 = vld [vmem:[#allocation8 + $0x3e0] sm:$0xff]
    %v5946 = vld [vmem:[#allocation8 + $0x3e8] sm:$0xff]
    %v5947 = vld [vmem:[#allocation8 + $0x3f0] sm:$0xff]
    %v5948 = vld [vmem:[#allocation8 + $0x3f8] sm:$0xff]
    %v5949 = vld [vmem:[#allocation10] sm:$0xf]
    %v5951 = vlaneseq
    %v5952 = vshrl.u32 %v5951, 7
    %v5953 = vsub.s32 0, %v5952
    %v5954 = vrot.slane %v5949, %v5953
    %v5955 = vlaneseq
    %v5956 = vshrl.u32 %v5955, 7
    %v5957 = vsub.s32 1, %v5956
    %v5958 = vrot.slane %v5949, %v5957
    %v5959 = vlaneseq
    %v5960 = vshrl.u32 %v5959, 7
    %v5961 = vsub.s32 2, %v5960
    %v5962 = vrot.slane %v5949, %v5961
    %v5963 = vlaneseq
    %v5964 = vshrl.u32 %v5963, 7
    %v5965 = vsub.s32 3, %v5964
    %v5966 = vrot.slane %v5949, %v5965
    %v6099 = vunpack.c.l.b16 %v5821
    %v6100 = vunpack.c.h.b16 %v5821
    %v6101 = vunpack.c.l.b16 %v5822
    %v6102 = vunpack.c.h.b16 %v5822
    %v6103 = vunpack.c.l.b16 %v5823
    %v6104 = vunpack.c.h.b16 %v5823
    %v6105 = vunpack.c.l.b16 %v5824
    %v6106 = vunpack.c.h.b16 %v5824
    %v6107 = vunpack.c.l.b16 %v5825
    %v6108 = vunpack.c.h.b16 %v5825
    %v6109 = vunpack.c.l.b16 %v5826
    %v6110 = vunpack.c.h.b16 %v5826
    %v6111 = vunpack.c.l.b16 %v5827
    %v6112 = vunpack.c.h.b16 %v5827
    %v6113 = vunpack.c.l.b16 %v5828
    %v6114 = vunpack.c.h.b16 %v5828
    %v6115 = vunpack.c.l.b16 %v5829
    %v6116 = vunpack.c.h.b16 %v5829
    %v6117 = vunpack.c.l.b16 %v5830
    %v6118 = vunpack.c.h.b16 %v5830
    %v6119 = vunpack.c.l.b16 %v5831
    %v6120 = vunpack.c.h.b16 %v5831
    %v6121 = vunpack.c.l.b16 %v5832
    %v6122 = vunpack.c.h.b16 %v5832
    %v6123 = vunpack.c.l.b16 %v5833
    %v6124 = vunpack.c.h.b16 %v5833
    %v6125 = vunpack.c.l.b16 %v5834
    %v6126 = vunpack.c.h.b16 %v5834
    %v6127 = vunpack.c.l.b16 %v5835
    %v6128 = vunpack.c.h.b16 %v5835
    %v6129 = vunpack.c.l.b16 %v5836
    %v6130 = vunpack.c.h.b16 %v5836
    %v6131 = vunpack.c.l.b16 %v5837
    %v6132 = vunpack.c.h.b16 %v5837
    %v6133 = vunpack.c.l.b16 %v5838
    %v6134 = vunpack.c.h.b16 %v5838
    %v6135 = vunpack.c.l.b16 %v5839
    %v6136 = vunpack.c.h.b16 %v5839
    %v6137 = vunpack.c.l.b16 %v5840
    %v6138 = vunpack.c.h.b16 %v5840
    %v6139 = vunpack.c.l.b16 %v5841
    %v6140 = vunpack.c.h.b16 %v5841
    %v6141 = vunpack.c.l.b16 %v5842
    %v6142 = vunpack.c.h.b16 %v5842
    %v6143 = vunpack.c.l.b16 %v5843
    %v6144 = vunpack.c.h.b16 %v5843
    %v6145 = vunpack.c.l.b16 %v5844
    %v6146 = vunpack.c.h.b16 %v5844
    %v6147 = vunpack.c.l.b16 %v5845
    %v6148 = vunpack.c.h.b16 %v5845
    %v6149 = vunpack.c.l.b16 %v5846
    %v6150 = vunpack.c.h.b16 %v5846
    %v6151 = vunpack.c.l.b16 %v5847
    %v6152 = vunpack.c.h.b16 %v5847
    %v6153 = vunpack.c.l.b16 %v5848
    %v6154 = vunpack.c.h.b16 %v5848
    %v6155 = vunpack.c.l.b16 %v5849
    %v6156 = vunpack.c.h.b16 %v5849
    %v6157 = vunpack.c.l.b16 %v5850
    %v6158 = vunpack.c.h.b16 %v5850
    %v6159 = vunpack.c.l.b16 %v5851
    %v6160 = vunpack.c.h.b16 %v5851
    %v6161 = vunpack.c.l.b16 %v5852
    %v6162 = vunpack.c.h.b16 %v5852
    %v6163 = vunpack.c.l.b16 %v5853
    %v6164 = vunpack.c.h.b16 %v5853
    %v6165 = vunpack.c.l.b16 %v5854
    %v6166 = vunpack.c.h.b16 %v5854
    %v6167 = vunpack.c.l.b16 %v5855
    %v6168 = vunpack.c.h.b16 %v5855
    %v6169 = vunpack.c.l.b16 %v5856
    %v6170 = vunpack.c.h.b16 %v5856
    %v6171 = vunpack.c.l.b16 %v5857
    %v6172 = vunpack.c.h.b16 %v5857
    %v6173 = vunpack.c.l.b16 %v5858
    %v6174 = vunpack.c.h.b16 %v5858
    %v6175 = vunpack.c.l.b16 %v5859
    %v6176 = vunpack.c.h.b16 %v5859
    %v6177 = vunpack.c.l.b16 %v5860
    %v6178 = vunpack.c.h.b16 %v5860
    %v6179 = vunpack.c.l.b16 %v5861
    %v6180 = vunpack.c.h.b16 %v5861
    %v6181 = vunpack.c.l.b16 %v5862
    %v6182 = vunpack.c.h.b16 %v5862
    %v6183 = vunpack.c.l.b16 %v5863
    %v6184 = vunpack.c.h.b16 %v5863
    %v6185 = vunpack.c.l.b16 %v5864
    %v6186 = vunpack.c.h.b16 %v5864
    %v6187 = vunpack.c.l.b16 %v5865
    %v6188 = vunpack.c.h.b16 %v5865
    %v6189 = vunpack.c.l.b16 %v5866
    %v6190 = vunpack.c.h.b16 %v5866
    %v6191 = vunpack.c.l.b16 %v5867
    %v6192 = vunpack.c.h.b16 %v5867
    %v6193 = vunpack.c.l.b16 %v5868
    %v6194 = vunpack.c.h.b16 %v5868
    %v6195 = vunpack.c.l.b16 %v5869
    %v6196 = vunpack.c.h.b16 %v5869
    %v6197 = vunpack.c.l.b16 %v5870
    %v6198 = vunpack.c.h.b16 %v5870
    %v6199 = vunpack.c.l.b16 %v5871
    %v6200 = vunpack.c.h.b16 %v5871
    %v6201 = vunpack.c.l.b16 %v5872
    %v6202 = vunpack.c.h.b16 %v5872
    %v6203 = vunpack.c.l.b16 %v5873
    %v6204 = vunpack.c.h.b16 %v5873
    %v6205 = vunpack.c.l.b16 %v5874
    %v6206 = vunpack.c.h.b16 %v5874
    %v6207 = vunpack.c.l.b16 %v5875
    %v6208 = vunpack.c.h.b16 %v5875
    %v6209 = vunpack.c.l.b16 %v5876
    %v6210 = vunpack.c.h.b16 %v5876
    %v6211 = vunpack.c.l.b16 %v5877
    %v6212 = vunpack.c.h.b16 %v5877
    %v6213 = vunpack.c.l.b16 %v5878
    %v6214 = vunpack.c.h.b16 %v5878
    %v6215 = vunpack.c.l.b16 %v5879
    %v6216 = vunpack.c.h.b16 %v5879
    %v6217 = vunpack.c.l.b16 %v5880
    %v6218 = vunpack.c.h.b16 %v5880
    %v6219 = vunpack.c.l.b16 %v5881
    %v6220 = vunpack.c.h.b16 %v5881
    %v6221 = vunpack.c.l.b16 %v5882
    %v6222 = vunpack.c.h.b16 %v5882
    %v6223 = vunpack.c.l.b16 %v5883
    %v6224 = vunpack.c.h.b16 %v5883
    %v6225 = vunpack.c.l.b16 %v5884
    %v6226 = vunpack.c.h.b16 %v5884
    %v6227 = vunpack.c.l.b16 %v5885
    %v6228 = vunpack.c.h.b16 %v5885
    %v6229 = vunpack.c.l.b16 %v5886
    %v6230 = vunpack.c.h.b16 %v5886
    %v6231 = vunpack.c.l.b16 %v5887
    %v6232 = vunpack.c.h.b16 %v5887
    %v6233 = vunpack.c.l.b16 %v5888
    %v6234 = vunpack.c.h.b16 %v5888
    %v6235 = vunpack.c.l.b16 %v5889
    %v6236 = vunpack.c.h.b16 %v5889
    %v6237 = vunpack.c.l.b16 %v5890
    %v6238 = vunpack.c.h.b16 %v5890
    %v6239 = vunpack.c.l.b16 %v5891
    %v6240 = vunpack.c.h.b16 %v5891
    %v6241 = vunpack.c.l.b16 %v5892
    %v6242 = vunpack.c.h.b16 %v5892
    %v6243 = vunpack.c.l.b16 %v5893
    %v6244 = vunpack.c.h.b16 %v5893
    %v6245 = vunpack.c.l.b16 %v5894
    %v6246 = vunpack.c.h.b16 %v5894
    %v6247 = vunpack.c.l.b16 %v5895
    %v6248 = vunpack.c.h.b16 %v5895
    %v6249 = vunpack.c.l.b16 %v5896
    %v6250 = vunpack.c.h.b16 %v5896
    %v6251 = vunpack.c.l.b16 %v5897
    %v6252 = vunpack.c.h.b16 %v5897
    %v6253 = vunpack.c.l.b16 %v5898
    %v6254 = vunpack.c.h.b16 %v5898
    %v6255 = vunpack.c.l.b16 %v5899
    %v6256 = vunpack.c.h.b16 %v5899
    %v6257 = vunpack.c.l.b16 %v5900
    %v6258 = vunpack.c.h.b16 %v5900
    %v6259 = vunpack.c.l.b16 %v5901
    %v6260 = vunpack.c.h.b16 %v5901
    %v6261 = vunpack.c.l.b16 %v5902
    %v6262 = vunpack.c.h.b16 %v5902
    %v6263 = vunpack.c.l.b16 %v5903
    %v6264 = vunpack.c.h.b16 %v5903
    %v6265 = vunpack.c.l.b16 %v5904
    %v6266 = vunpack.c.h.b16 %v5904
    %v6267 = vunpack.c.l.b16 %v5905
    %v6268 = vunpack.c.h.b16 %v5905
    %v6269 = vunpack.c.l.b16 %v5906
    %v6270 = vunpack.c.h.b16 %v5906
    %v6271 = vunpack.c.l.b16 %v5907
    %v6272 = vunpack.c.h.b16 %v5907
    %v6273 = vunpack.c.l.b16 %v5908
    %v6274 = vunpack.c.h.b16 %v5908
    %v6275 = vunpack.c.l.b16 %v5909
    %v6276 = vunpack.c.h.b16 %v5909
    %v6277 = vunpack.c.l.b16 %v5910
    %v6278 = vunpack.c.h.b16 %v5910
    %v6279 = vunpack.c.l.b16 %v5911
    %v6280 = vunpack.c.h.b16 %v5911
    %v6281 = vunpack.c.l.b16 %v5912
    %v6282 = vunpack.c.h.b16 %v5912
    %v6283 = vunpack.c.l.b16 %v5913
    %v6284 = vunpack.c.h.b16 %v5913
    %v6285 = vunpack.c.l.b16 %v5914
    %v6286 = vunpack.c.h.b16 %v5914
    %v6287 = vunpack.c.l.b16 %v5915
    %v6288 = vunpack.c.h.b16 %v5915
    %v6289 = vunpack.c.l.b16 %v5916
    %v6290 = vunpack.c.h.b16 %v5916
    %v6291 = vunpack.c.l.b16 %v5917
    %v6292 = vunpack.c.h.b16 %v5917
    %v6293 = vunpack.c.l.b16 %v5918
    %v6294 = vunpack.c.h.b16 %v5918
    %v6295 = vunpack.c.l.b16 %v5919
    %v6296 = vunpack.c.h.b16 %v5919
    %v6297 = vunpack.c.l.b16 %v5920
    %v6298 = vunpack.c.h.b16 %v5920
    %v6299 = vunpack.c.l.b16 %v5921
    %v6300 = vunpack.c.h.b16 %v5921
    %v6301 = vunpack.c.l.b16 %v5922
    %v6302 = vunpack.c.h.b16 %v5922
    %v6303 = vunpack.c.l.b16 %v5923
    %v6304 = vunpack.c.h.b16 %v5923
    %v6305 = vunpack.c.l.b16 %v5924
    %v6306 = vunpack.c.h.b16 %v5924
    %v6307 = vunpack.c.l.b16 %v5925
    %v6308 = vunpack.c.h.b16 %v5925
    %v6309 = vunpack.c.l.b16 %v5926
    %v6310 = vunpack.c.h.b16 %v5926
    %v6311 = vunpack.c.l.b16 %v5927
    %v6312 = vunpack.c.h.b16 %v5927
    %v6313 = vunpack.c.l.b16 %v5928
    %v6314 = vunpack.c.h.b16 %v5928
    %v6315 = vunpack.c.l.b16 %v5929
    %v6316 = vunpack.c.h.b16 %v5929
    %v6317 = vunpack.c.l.b16 %v5930
    %v6318 = vunpack.c.h.b16 %v5930
    %v6319 = vunpack.c.l.b16 %v5931
    %v6320 = vunpack.c.h.b16 %v5931
    %v6321 = vunpack.c.l.b16 %v5932
    %v6322 = vunpack.c.h.b16 %v5932
    %v6323 = vunpack.c.l.b16 %v5933
    %v6324 = vunpack.c.h.b16 %v5933
    %v6325 = vunpack.c.l.b16 %v5934
    %v6326 = vunpack.c.h.b16 %v5934
    %v6327 = vunpack.c.l.b16 %v5935
    %v6328 = vunpack.c.h.b16 %v5935
    %v6329 = vunpack.c.l.b16 %v5936
    %v6330 = vunpack.c.h.b16 %v5936
    %v6331 = vunpack.c.l.b16 %v5937
    %v6332 = vunpack.c.h.b16 %v5937
    %v6333 = vunpack.c.l.b16 %v5938
    %v6334 = vunpack.c.h.b16 %v5938
    %v6335 = vunpack.c.l.b16 %v5939
    %v6336 = vunpack.c.h.b16 %v5939
    %v6337 = vunpack.c.l.b16 %v5940
    %v6338 = vunpack.c.h.b16 %v5940
    %v6339 = vunpack.c.l.b16 %v5941
    %v6340 = vunpack.c.h.b16 %v5941
    %v6341 = vunpack.c.l.b16 %v5942
    %v6342 = vunpack.c.h.b16 %v5942
    %v6343 = vunpack.c.l.b16 %v5943
    %v6344 = vunpack.c.h.b16 %v5943
    %v6345 = vunpack.c.l.b16 %v5944
    %v6346 = vunpack.c.h.b16 %v5944
    %v6347 = vunpack.c.l.b16 %v5945
    %v6348 = vunpack.c.h.b16 %v5945
    %v6349 = vunpack.c.l.b16 %v5946
    %v6350 = vunpack.c.h.b16 %v5946
    %v6351 = vunpack.c.l.b16 %v5947
    %v6352 = vunpack.c.h.b16 %v5947
    %v6353 = vunpack.c.l.b16 %v5948
    %v6354 = vunpack.c.h.b16 %v5948
    %v6355 = vpack.c.b16 %v6103, %v6099
    %v6356 = vpack.c.b16 %v6104, %v6100
    %v6357 = vpack.c.b16 %v6105, %v6101
    %v6358 = vpack.c.b16 %v6106, %v6102
    %v6359 = vpack.c.b16 %v6111, %v6107
    %v6360 = vpack.c.b16 %v6112, %v6108
    %v6361 = vpack.c.b16 %v6113, %v6109
    %v6362 = vpack.c.b16 %v6114, %v6110
    %v6363 = vpack.c.b16 %v6119, %v6115
    %v6364 = vpack.c.b16 %v6120, %v6116
    %v6365 = vpack.c.b16 %v6121, %v6117
    %v6366 = vpack.c.b16 %v6122, %v6118
    %v6367 = vpack.c.b16 %v6127, %v6123
    %v6368 = vpack.c.b16 %v6128, %v6124
    %v6369 = vpack.c.b16 %v6129, %v6125
    %v6370 = vpack.c.b16 %v6130, %v6126
    %v6371 = vpack.c.b16 %v6135, %v6131
    %v6372 = vpack.c.b16 %v6136, %v6132
    %v6373 = vpack.c.b16 %v6137, %v6133
    %v6374 = vpack.c.b16 %v6138, %v6134
    %v6375 = vpack.c.b16 %v6143, %v6139
    %v6376 = vpack.c.b16 %v6144, %v6140
    %v6377 = vpack.c.b16 %v6145, %v6141
    %v6378 = vpack.c.b16 %v6146, %v6142
    %v6379 = vpack.c.b16 %v6151, %v6147
    %v6380 = vpack.c.b16 %v6152, %v6148
    %v6381 = vpack.c.b16 %v6153, %v6149
    %v6382 = vpack.c.b16 %v6154, %v6150
    %v6383 = vpack.c.b16 %v6159, %v6155
    %v6384 = vpack.c.b16 %v6160, %v6156
    %v6385 = vpack.c.b16 %v6161, %v6157
    %v6386 = vpack.c.b16 %v6162, %v6158
    %v6387 = vpack.c.b16 %v6167, %v6163
    %v6388 = vpack.c.b16 %v6168, %v6164
    %v6389 = vpack.c.b16 %v6169, %v6165
    %v6390 = vpack.c.b16 %v6170, %v6166
    %v6391 = vpack.c.b16 %v6175, %v6171
    %v6392 = vpack.c.b16 %v6176, %v6172
    %v6393 = vpack.c.b16 %v6177, %v6173
    %v6394 = vpack.c.b16 %v6178, %v6174
    %v6395 = vpack.c.b16 %v6183, %v6179
    %v6396 = vpack.c.b16 %v6184, %v6180
    %v6397 = vpack.c.b16 %v6185, %v6181
    %v6398 = vpack.c.b16 %v6186, %v6182
    %v6399 = vpack.c.b16 %v6191, %v6187
    %v6400 = vpack.c.b16 %v6192, %v6188
    %v6401 = vpack.c.b16 %v6193, %v6189
    %v6402 = vpack.c.b16 %v6194, %v6190
    %v6403 = vpack.c.b16 %v6199, %v6195
    %v6404 = vpack.c.b16 %v6200, %v6196
    %v6405 = vpack.c.b16 %v6201, %v6197
    %v6406 = vpack.c.b16 %v6202, %v6198
    %v6407 = vpack.c.b16 %v6207, %v6203
    %v6408 = vpack.c.b16 %v6208, %v6204
    %v6409 = vpack.c.b16 %v6209, %v6205
    %v6410 = vpack.c.b16 %v6210, %v6206
    %v6411 = vpack.c.b16 %v6215, %v6211
    %v6412 = vpack.c.b16 %v6216, %v6212
    %v6413 = vpack.c.b16 %v6217, %v6213
    %v6414 = vpack.c.b16 %v6218, %v6214
    %v6415 = vpack.c.b16 %v6223, %v6219
    %v6416 = vpack.c.b16 %v6224, %v6220
    %v6417 = vpack.c.b16 %v6225, %v6221
    %v6418 = vpack.c.b16 %v6226, %v6222
    %v6419 = vpack.c.b16 %v6231, %v6227
    %v6420 = vpack.c.b16 %v6232, %v6228
    %v6421 = vpack.c.b16 %v6233, %v6229
    %v6422 = vpack.c.b16 %v6234, %v6230
    %v6423 = vpack.c.b16 %v6239, %v6235
    %v6424 = vpack.c.b16 %v6240, %v6236
    %v6425 = vpack.c.b16 %v6241, %v6237
    %v6426 = vpack.c.b16 %v6242, %v6238
    %v6427 = vpack.c.b16 %v6247, %v6243
    %v6428 = vpack.c.b16 %v6248, %v6244
    %v6429 = vpack.c.b16 %v6249, %v6245
    %v6430 = vpack.c.b16 %v6250, %v6246
    %v6431 = vpack.c.b16 %v6255, %v6251
    %v6432 = vpack.c.b16 %v6256, %v6252
    %v6433 = vpack.c.b16 %v6257, %v6253
    %v6434 = vpack.c.b16 %v6258, %v6254
    %v6435 = vpack.c.b16 %v6263, %v6259
    %v6436 = vpack.c.b16 %v6264, %v6260
    %v6437 = vpack.c.b16 %v6265, %v6261
    %v6438 = vpack.c.b16 %v6266, %v6262
    %v6439 = vpack.c.b16 %v6271, %v6267
    %v6440 = vpack.c.b16 %v6272, %v6268
    %v6441 = vpack.c.b16 %v6273, %v6269
    %v6442 = vpack.c.b16 %v6274, %v6270
    %v6443 = vpack.c.b16 %v6279, %v6275
    %v6444 = vpack.c.b16 %v6280, %v6276
    %v6445 = vpack.c.b16 %v6281, %v6277
    %v6446 = vpack.c.b16 %v6282, %v6278
    %v6447 = vpack.c.b16 %v6287, %v6283
    %v6448 = vpack.c.b16 %v6288, %v6284
    %v6449 = vpack.c.b16 %v6289, %v6285
    %v6450 = vpack.c.b16 %v6290, %v6286
    %v6451 = vpack.c.b16 %v6295, %v6291
    %v6452 = vpack.c.b16 %v6296, %v6292
    %v6453 = vpack.c.b16 %v6297, %v6293
    %v6454 = vpack.c.b16 %v6298, %v6294
    %v6455 = vpack.c.b16 %v6303, %v6299
    %v6456 = vpack.c.b16 %v6304, %v6300
    %v6457 = vpack.c.b16 %v6305, %v6301
    %v6458 = vpack.c.b16 %v6306, %v6302
    %v6459 = vpack.c.b16 %v6311, %v6307
    %v6460 = vpack.c.b16 %v6312, %v6308
    %v6461 = vpack.c.b16 %v6313, %v6309
    %v6462 = vpack.c.b16 %v6314, %v6310
    %v6463 = vpack.c.b16 %v6319, %v6315
    %v6464 = vpack.c.b16 %v6320, %v6316
    %v6465 = vpack.c.b16 %v6321, %v6317
    %v6466 = vpack.c.b16 %v6322, %v6318
    %v6467 = vpack.c.b16 %v6327, %v6323
    %v6468 = vpack.c.b16 %v6328, %v6324
    %v6469 = vpack.c.b16 %v6329, %v6325
    %v6470 = vpack.c.b16 %v6330, %v6326
    %v6471 = vpack.c.b16 %v6335, %v6331
    %v6472 = vpack.c.b16 %v6336, %v6332
    %v6473 = vpack.c.b16 %v6337, %v6333
    %v6474 = vpack.c.b16 %v6338, %v6334
    %v6475 = vpack.c.b16 %v6343, %v6339
    %v6476 = vpack.c.b16 %v6344, %v6340
    %v6477 = vpack.c.b16 %v6345, %v6341
    %v6478 = vpack.c.b16 %v6346, %v6342
    %v6479 = vpack.c.b16 %v6351, %v6347
    %v6480 = vpack.c.b16 %v6352, %v6348
    %v6481 = vpack.c.b16 %v6353, %v6349
    %v6482 = vpack.c.b16 %v6354, %v6350
    %6611 = vmatprep.subr.bf16.mxu0 %v6356
    %6612 = vmatpush1.bf16.msra.mxu0 %v6355
    %6613 = vmatprep.subr.bf16.mxu0 %v6360
    %6614 = vmatpush1.bf16.msra.mxu0 %v6359
    %6615 = vmatprep.subr.bf16.mxu0 %v6364
    %6616 = vmatpush1.bf16.msra.mxu0 %v6363
    %6617 = vmatprep.subr.bf16.mxu0 %v6368
    %6618 = vmatpush1.bf16.msra.mxu0 %v6367
    %6619 = vmatprep.subr.bf16.mxu0 %v6372
    %6620 = vmatpush1.bf16.msra.mxu0 %v6371
    %6621 = vmatprep.subr.bf16.mxu0 %v6376
    %6622 = vmatpush1.bf16.msra.mxu0 %v6375
    %6623 = vmatprep.subr.bf16.mxu0 %v6380
    %6624 = vmatpush1.bf16.msra.mxu0 %v6379
    %6625 = vmatprep.subr.bf16.mxu0 %v6384
    %6626 = vmatpush1.bf16.msra.mxu0 %v6383
    %6627 = vmatprep.subr.bf16.mxu0 %v6388
    %6628 = vmatpush1.bf16.msra.mxu0 %v6387
    %6629 = vmatprep.subr.bf16.mxu0 %v6392
    %6630 = vmatpush1.bf16.msra.mxu0 %v6391
    %6631 = vmatprep.subr.bf16.mxu0 %v6396
    %6632 = vmatpush1.bf16.msra.mxu0 %v6395
    %6633 = vmatprep.subr.bf16.mxu0 %v6400
    %6634 = vmatpush1.bf16.msra.mxu0 %v6399
    %6635 = vmatprep.subr.bf16.mxu0 %v6404
    %6636 = vmatpush1.bf16.msra.mxu0 %v6403
    %6637 = vmatprep.subr.bf16.mxu0 %v6408
    %6638 = vmatpush1.bf16.msra.mxu0 %v6407
    %6639 = vmatprep.subr.bf16.mxu0 %v6412
    %6640 = vmatpush1.bf16.msra.mxu0 %v6411
    %6641 = vmatprep.subr.bf16.mxu0 %v6416
    %6642 = vmatpush1.bf16.msra.mxu0 %v6415
    %6643 = vmatprep.mubr.bf16.mxu0 %v5566
    %6644 = vmatmul.mubr.bf16.gmra.mrb[0].mxu0 %v5565
    %v6645 = vpop.f32.mrb[0].mxu0
    %v6646 = vadd.f32 %v5954, %v6645
    %v6647 = vpop.f32.mrb[0].mxu0
    %v6648 = vadd.f32 %v5958, %v6647
    %v6649 = vpop.f32.mrb[0].mxu0
    %v6650 = vadd.f32 %v5954, %v6649
    %v6651 = vpop.f32.mrb[0].mxu0
    %v6652 = vadd.f32 %v5958, %v6651
    %6653 = vmatprep.mubr.bf16.mxu0 %v5570
    %6654 = vmatmul.mubr.bf16.gmra.mrb[0].mxu0 %v5569
    %v6655 = vpop.f32.mrb[0].mxu0
    %v6656 = vadd.f32 %v5954, %v6655
    %v6657 = vpop.f32.mrb[0].mxu0
    %v6658 = vadd.f32 %v5958, %v6657
    %v6659 = vpop.f32.mrb[0].mxu0
    %v6660 = vadd.f32 %v5954, %v6659
    %v6661 = vpop.f32.mrb[0].mxu0
    %v6662 = vadd.f32 %v5958, %v6661
    %6663 = vmatprep.mubr.bf16.mxu0 %v5574
    %6664 = vmatmul.mubr.bf16.gmra.mrb[0].mxu0 %v5573
    %v6665 = vpop.f32.mrb[0].mxu0
    %v6666 = vadd.f32 %v5954, %v6665
    %v6667 = vpop.f32.mrb[0].mxu0
    %v6668 = vadd.f32 %v5958, %v6667
    %v6669 = vpop.f32.mrb[0].mxu0
    %v6670 = vadd.f32 %v5954, %v6669
    %v6671 = vpop.f32.mrb[0].mxu0
    %v6672 = vadd.f32 %v5958, %v6671
    %6673 = vmatprep.mubr.bf16.mxu0 %v5578
    %6674 = vmatmul.mubr.bf16.gmra.mrb[0].mxu0 %v5577
    %v6675 = vpop.f32.mrb[0].mxu0
    %v6676 = vadd.f32 %v5954, %v6675
    %v6677 = vpop.f32.mrb[0].mxu0
    %v6678 = vadd.f32 %v5958, %v6677
    %v6679 = vpop.f32.mrb[0].mxu0
    %v6680 = vadd.f32 %v5954, %v6679
    %v6681 = vpop.f32.mrb[0].mxu0
    %v6682 = vadd.f32 %v5958, %v6681
    %6683 = vmatprep.mubr.bf16.mxu0 %v5582
    %6684 = vmatmul.mubr.bf16.gmra.mrb[0].mxu0 %v5581
    %v6685 = vpop.f32.mrb[0].mxu0
    %v6686 = vadd.f32 %v5954, %v6685
    %v6687 = vpop.f32.mrb[0].mxu0
    %v6688 = vadd.f32 %v5958, %v6687
    %v6689 = vpop.f32.mrb[0].mxu0
    %v6690 = vadd.f32 %v5954, %v6689
    %v6691 = vpop.f32.mrb[0].mxu0
    %v6692 = vadd.f32 %v5958, %v6691
    %6693 = vmatprep.mubr.bf16.mxu0 %v5586
    %6694 = vmatmul.mubr.bf16.gmra.mrb[0].mxu0 %v5585
    %v6695 = vpop.f32.mrb[0].mxu0
    %v6696 = vadd.f32 %v5954, %v6695
    %v6697 = vpop.f32.mrb[0].mxu0
    %v6698 = vadd.f32 %v5958, %v6697
    %v6699 = vpop.f32.mrb[0].mxu0
    %v6700 = vadd.f32 %v5954, %v6699
    %v6701 = vpop.f32.mrb[0].mxu0
    %v6702 = vadd.f32 %v5958, %v6701
    %6703 = vmatprep.mubr.bf16.mxu0 %v5590
    %6704 = vmatmul.mubr.bf16.gmra.mrb[0].mxu0 %v5589
    %v6705 = vpop.f32.mrb[0].mxu0
    %v6706 = vadd.f32 %v5954, %v6705
    %v6707 = vpop.f32.mrb[0].mxu0
    %v6708 = vadd.f32 %v5958, %v6707
    %v6709 = vpop.f32.mrb[0].mxu0
    %v6710 = vadd.f32 %v5954, %v6709
    %v6711 = vpop.f32.mrb[0].mxu0
    %v6712 = vadd.f32 %v5958, %v6711
    %6713 = vmatprep.mubr.bf16.mxu0 %v5594
    %6714 = vmatmul.mubr.bf16.gmra.mrb[0].mxu0 %v5593
    %v6715 = vpop.f32.mrb[0].mxu0
    %v6716 = vadd.f32 %v5954, %v6715
    %v6717 = vpop.f32.mrb[0].mxu0
    %v6718 = vadd.f32 %v5958, %v6717
    %v6719 = vpop.f32.mrb[0].mxu0
    %v6720 = vadd.f32 %v5954, %v6719
    %v6721 = vpop.f32.mrb[0].mxu0
    %v6722 = vadd.f32 %v5958, %v6721
    %6723 = vmatprep.mubr.bf16.mxu0 %v5598
    %6724 = vmatmul.mubr.bf16.gmra.mrb[0].mxu0 %v5597
    %v6725 = vpop.f32.mrb[0].mxu0
    %v6726 = vadd.f32 %v5954, %v6725
    %v6727 = vpop.f32.mrb[0].mxu0
    %v6728 = vadd.f32 %v5958, %v6727
    %v6729 = vpop.f32.mrb[0].mxu0
    %v6730 = vadd.f32 %v5954, %v6729
    %v6731 = vpop.f32.mrb[0].mxu0
    %v6732 = vadd.f32 %v5958, %v6731
    %6733 = vmatprep.mubr.bf16.mxu0 %v5602
    %6734 = vmatmul.mubr.bf16.gmra.mrb[0].mxu0 %v5601
    %v6735 = vpop.f32.mrb[0].mxu0
    %v6736 = vadd.f32 %v5954, %v6735
    %v6737 = vpop.f32.mrb[0].mxu0
    %v6738 = vadd.f32 %v5958, %v6737
    %v6739 = vpop.f32.mrb[0].mxu0
    %v6740 = vadd.f32 %v5954, %v6739
    %v6741 = vpop.f32.mrb[0].mxu0
    %v6742 = vadd.f32 %v5958, %v6741
    %6743 = vmatprep.mubr.bf16.mxu0 %v5606
    %6744 = vmatmul.mubr.bf16.gmra.mrb[0].mxu0 %v5605
    %v6745 = vpop.f32.mrb[0].mxu0
    %v6746 = vadd.f32 %v5954, %v6745
    %v6747 = vpop.f32.mrb[0].mxu0
    %v6748 = vadd.f32 %v5958, %v6747
    %v6749 = vpop.f32.mrb[0].mxu0
    %v6750 = vadd.f32 %v5954, %v6749
    %v6751 = vpop.f32.mrb[0].mxu0
    %v6752 = vadd.f32 %v5958, %v6751
    %6753 = vmatprep.mubr.bf16.mxu0 %v5610
    %6754 = vmatmul.mubr.bf16.gmra.mrb[0].mxu0 %v5609
    %v6755 = vpop.f32.mrb[0].mxu0
    %v6756 = vadd.f32 %v5954, %v6755
    %v6757 = vpop.f32.mrb[0].mxu0
    %v6758 = vadd.f32 %v5958, %v6757
    %v6759 = vpop.f32.mrb[0].mxu0
    %v6760 = vadd.f32 %v5954, %v6759
    %v6761 = vpop.f32.mrb[0].mxu0
    %v6762 = vadd.f32 %v5958, %v6761
    %6763 = vmatprep.mubr.bf16.mxu0 %v5614
    %6764 = vmatmul.mubr.bf16.gmra.mrb[0].mxu0 %v5613
    %v6765 = vpop.f32.mrb[0].mxu0
    %v6766 = vadd.f32 %v5954, %v6765
    %v6767 = vpop.f32.mrb[0].mxu0
    %v6768 = vadd.f32 %v5958, %v6767
    %v6769 = vpop.f32.mrb[0].mxu0
    %v6770 = vadd.f32 %v5954, %v6769
    %v6771 = vpop.f32.mrb[0].mxu0
    %v6772 = vadd.f32 %v5958, %v6771
    %6773 = vmatprep.mubr.bf16.mxu0 %v5618
    %6774 = vmatmul.mubr.bf16.gmra.mrb[0].mxu0 %v5617
    %v6775 = vpop.f32.mrb[0].mxu0
    %v6776 = vadd.f32 %v5954, %v6775
    %v6777 = vpop.f32.mrb[0].mxu0
    %v6778 = vadd.f32 %v5958, %v6777
    %v6779 = vpop.f32.mrb[0].mxu0
    %v6780 = vadd.f32 %v5954, %v6779
    %v6781 = vpop.f32.mrb[0].mxu0
    %v6782 = vadd.f32 %v5958, %v6781
    %6783 = vmatprep.mubr.bf16.mxu0 %v5622
    %6784 = vmatmul.mubr.bf16.gmra.mrb[0].mxu0 %v5621
    %v6785 = vpop.f32.mrb[0].mxu0
    %v6786 = vadd.f32 %v5954, %v6785
    %v6787 = vpop.f32.mrb[0].mxu0
    %v6788 = vadd.f32 %v5958, %v6787
    %v6789 = vpop.f32.mrb[0].mxu0
    %v6790 = vadd.f32 %v5954, %v6789
    %v6791 = vpop.f32.mrb[0].mxu0
    %v6792 = vadd.f32 %v5958, %v6791
    %6793 = vmatprep.mubr.bf16.mxu0 %v5626
    %6794 = vmatmul.mubr.bf16.gmra.mrb[0].mxu0 %v5625
    %v6795 = vpop.f32.mrb[0].mxu0
    %v6796 = vadd.f32 %v5954, %v6795
    %v6797 = vpop.f32.mrb[0].mxu0
    %v6798 = vadd.f32 %v5958, %v6797
    %v6799 = vpop.f32.mrb[0].mxu0
    %v6800 = vadd.f32 %v5954, %v6799
    %v6801 = vpop.f32.mrb[0].mxu0
    %v6802 = vadd.f32 %v5958, %v6801
    %6803 = vmatprep.mubr.bf16.mxu0 %v5630
    %6804 = vmatmul.mubr.bf16.gmra.mrb[0].mxu0 %v5629
    %v6805 = vpop.f32.mrb[0].mxu0
    %v6806 = vadd.f32 %v5954, %v6805
    %v6807 = vpop.f32.mrb[0].mxu0
    %v6808 = vadd.f32 %v5958, %v6807
    %v6809 = vpop.f32.mrb[0].mxu0
    %v6810 = vadd.f32 %v5954, %v6809
    %v6811 = vpop.f32.mrb[0].mxu0
    %v6812 = vadd.f32 %v5958, %v6811
    %6813 = vmatprep.mubr.bf16.mxu0 %v5634
    %6814 = vmatmul.mubr.bf16.gmra.mrb[0].mxu0 %v5633
    %v6815 = vpop.f32.mrb[0].mxu0
    %v6816 = vadd.f32 %v5954, %v6815
    %v6817 = vpop.f32.mrb[0].mxu0
    %v6818 = vadd.f32 %v5958, %v6817
    %v6819 = vpop.f32.mrb[0].mxu0
    %v6820 = vadd.f32 %v5954, %v6819
    %v6821 = vpop.f32.mrb[0].mxu0
    %v6822 = vadd.f32 %v5958, %v6821
    %6823 = vmatprep.mubr.bf16.mxu0 %v5638
    %6824 = vmatmul.mubr.bf16.gmra.mrb[0].mxu0 %v5637
    %v6825 = vpop.f32.mrb[0].mxu0
    %v6826 = vadd.f32 %v5954, %v6825
    %v6827 = vpop.f32.mrb[0].mxu0
    %v6828 = vadd.f32 %v5958, %v6827
    %v6829 = vpop.f32.mrb[0].mxu0
    %v6830 = vadd.f32 %v5954, %v6829
    %v6831 = vpop.f32.mrb[0].mxu0
    %v6832 = vadd.f32 %v5958, %v6831
    %6833 = vmatprep.mubr.bf16.mxu0 %v5642
    %6834 = vmatmul.mubr.bf16.gmra.mrb[0].mxu0 %v5641
    %v6835 = vpop.f32.mrb[0].mxu0
    %v6836 = vadd.f32 %v5954, %v6835
    %v6837 = vpop.f32.mrb[0].mxu0
    %v6838 = vadd.f32 %v5958, %v6837
    %v6839 = vpop.f32.mrb[0].mxu0
    %v6840 = vadd.f32 %v5954, %v6839
    %v6841 = vpop.f32.mrb[0].mxu0
    %v6842 = vadd.f32 %v5958, %v6841
    %6843 = vmatprep.mubr.bf16.mxu0 %v5646
    %6844 = vmatmul.mubr.bf16.gmra.mrb[0].mxu0 %v5645
    %v6845 = vpop.f32.mrb[0].mxu0
    %v6846 = vadd.f32 %v5954, %v6845
    %v6847 = vpop.f32.mrb[0].mxu0
    %v6848 = vadd.f32 %v5958, %v6847
    %v6849 = vpop.f32.mrb[0].mxu0
    %v6850 = vadd.f32 %v5954, %v6849
    %v6851 = vpop.f32.mrb[0].mxu0
    %v6852 = vadd.f32 %v5958, %v6851
    %6853 = vmatprep.mubr.bf16.mxu0 %v5650
    %6854 = vmatmul.mubr.bf16.gmra.mrb[0].mxu0 %v5649
    %v6855 = vpop.f32.mrb[0].mxu0
    %v6856 = vadd.f32 %v5954, %v6855
    %v6857 = vpop.f32.mrb[0].mxu0
    %v6858 = vadd.f32 %v5958, %v6857
    %v6859 = vpop.f32.mrb[0].mxu0
    %v6860 = vadd.f32 %v5954, %v6859
    %v6861 = vpop.f32.mrb[0].mxu0
    %v6862 = vadd.f32 %v5958, %v6861
    %6863 = vmatprep.mubr.bf16.mxu0 %v5654
    %6864 = vmatmul.mubr.bf16.gmra.mrb[0].mxu0 %v5653
    %v6865 = vpop.f32.mrb[0].mxu0
    %v6866 = vadd.f32 %v5954, %v6865
    %v6867 = vpop.f32.mrb[0].mxu0
    %v6868 = vadd.f32 %v5958, %v6867
    %v6869 = vpop.f32.mrb[0].mxu0
    %v6870 = vadd.f32 %v5954, %v6869
    %v6871 = vpop.f32.mrb[0].mxu0
    %v6872 = vadd.f32 %v5958, %v6871
    %6873 = vmatprep.mubr.bf16.mxu0 %v5658
    %6874 = vmatmul.mubr.bf16.gmra.mrb[0].mxu0 %v5657
    %v6875 = vpop.f32.mrb[0].mxu0
    %v6876 = vadd.f32 %v5954, %v6875
    %v6877 = vpop.f32.mrb[0].mxu0
    %v6878 = vadd.f32 %v5958, %v6877
    %v6879 = vpop.f32.mrb[0].mxu0
    %v6880 = vadd.f32 %v5954, %v6879
    %v6881 = vpop.f32.mrb[0].mxu0
    %v6882 = vadd.f32 %v5958, %v6881
    %6883 = vmatprep.mubr.bf16.mxu0 %v5662
    %6884 = vmatmul.mubr.bf16.gmra.mrb[0].mxu0 %v5661
    %v6885 = vpop.f32.mrb[0].mxu0
    %v6886 = vadd.f32 %v5954, %v6885
    %v6887 = vpop.f32.mrb[0].mxu0
    %v6888 = vadd.f32 %v5958, %v6887
    %v6889 = vpop.f32.mrb[0].mxu0
    %v6890 = vadd.f32 %v5954, %v6889
    %v6891 = vpop.f32.mrb[0].mxu0
    %v6892 = vadd.f32 %v5958, %v6891
    %6893 = vmatprep.mubr.bf16.mxu0 %v5666
    %6894 = vmatmul.mubr.bf16.gmra.mrb[0].mxu0 %v5665
    %v6895 = vpop.f32.mrb[0].mxu0
    %v6896 = vadd.f32 %v5954, %v6895
    %v6897 = vpop.f32.mrb[0].mxu0
    %v6898 = vadd.f32 %v5958, %v6897
    %v6899 = vpop.f32.mrb[0].mxu0
    %v6900 = vadd.f32 %v5954, %v6899
    %v6901 = vpop.f32.mrb[0].mxu0
    %v6902 = vadd.f32 %v5958, %v6901
    %6903 = vmatprep.mubr.bf16.mxu0 %v5670
    %6904 = vmatmul.mubr.bf16.gmra.mrb[0].mxu0 %v5669
    %v6905 = vpop.f32.mrb[0].mxu0
    %v6906 = vadd.f32 %v5954, %v6905
    %v6907 = vpop.f32.mrb[0].mxu0
    %v6908 = vadd.f32 %v5958, %v6907
    %v6909 = vpop.f32.mrb[0].mxu0
    %v6910 = vadd.f32 %v5954, %v6909
    %v6911 = vpop.f32.mrb[0].mxu0
    %v6912 = vadd.f32 %v5958, %v6911
    %6913 = vmatprep.mubr.bf16.mxu0 %v5674
    %6914 = vmatmul.mubr.bf16.gmra.mrb[0].mxu0 %v5673
    %v6915 = vpop.f32.mrb[0].mxu0
    %v6916 = vadd.f32 %v5954, %v6915
    %v6917 = vpop.f32.mrb[0].mxu0
    %v6918 = vadd.f32 %v5958, %v6917
    %v6919 = vpop.f32.mrb[0].mxu0
    %v6920 = vadd.f32 %v5954, %v6919
    %v6921 = vpop.f32.mrb[0].mxu0
    %v6922 = vadd.f32 %v5958, %v6921
    %6923 = vmatprep.mubr.bf16.mxu0 %v5678
    %6924 = vmatmul.mubr.bf16.gmra.mrb[0].mxu0 %v5677
    %v6925 = vpop.f32.mrb[0].mxu0
    %v6926 = vadd.f32 %v5954, %v6925
    %v6927 = vpop.f32.mrb[0].mxu0
    %v6928 = vadd.f32 %v5958, %v6927
    %v6929 = vpop.f32.mrb[0].mxu0
    %v6930 = vadd.f32 %v5954, %v6929
    %v6931 = vpop.f32.mrb[0].mxu0
    %v6932 = vadd.f32 %v5958, %v6931
    %6933 = vmatprep.mubr.bf16.mxu0 %v5682
    %6934 = vmatmul.mubr.bf16.gmra.mrb[0].mxu0 %v5681
    %v6935 = vpop.f32.mrb[0].mxu0
    %v6936 = vadd.f32 %v5954, %v6935
    %v6937 = vpop.f32.mrb[0].mxu0
    %v6938 = vadd.f32 %v5958, %v6937
    %v6939 = vpop.f32.mrb[0].mxu0
    %v6940 = vadd.f32 %v5954, %v6939
    %v6941 = vpop.f32.mrb[0].mxu0
    %v6942 = vadd.f32 %v5958, %v6941
    %6943 = vmatprep.mubr.bf16.mxu0 %v5686
    %6944 = vmatmul.mubr.bf16.gmra.mrb[0].mxu0 %v5685
    %v6945 = vpop.f32.mrb[0].mxu0
    %v6946 = vadd.f32 %v5954, %v6945
    %v6947 = vpop.f32.mrb[0].mxu0
    %v6948 = vadd.f32 %v5958, %v6947
    %v6949 = vpop.f32.mrb[0].mxu0
    %v6950 = vadd.f32 %v5954, %v6949
    %v6951 = vpop.f32.mrb[0].mxu0
    %v6952 = vadd.f32 %v5958, %v6951
    %6953 = vmatprep.mubr.bf16.mxu0 %v5690
    %6954 = vmatmul.mubr.bf16.gmra.mrb[0].mxu0 %v5689
    %v6955 = vpop.f32.mrb[0].mxu0
    %v6956 = vadd.f32 %v5954, %v6955
    %v6957 = vpop.f32.mrb[0].mxu0
    %v6958 = vadd.f32 %v5958, %v6957
    %v6959 = vpop.f32.mrb[0].mxu0
    %v6960 = vadd.f32 %v5954, %v6959
    %v6961 = vpop.f32.mrb[0].mxu0
    %v6962 = vadd.f32 %v5958, %v6961
    %6963 = vmatprep.mubr.bf16.mxu0 %v5694
    %6964 = vmatmul.mubr.bf16.gmra.mrb[0].mxu0 %v5693
    %v6965 = vpop.f32.mrb[0].mxu0
    %v6966 = vadd.f32 %v5954, %v6965
    %v6967 = vpop.f32.mrb[0].mxu0
    %v6968 = vadd.f32 %v5958, %v6967
    %v6969 = vpop.f32.mrb[0].mxu0
    %v6970 = vadd.f32 %v5954, %v6969
    %v6971 = vpop.f32.mrb[0].mxu0
    %v6972 = vadd.f32 %v5958, %v6971
    %6973 = vmatprep.mubr.bf16.mxu0 %v5698
    %6974 = vmatmul.mubr.bf16.gmra.mrb[0].mxu0 %v5697
    %v6975 = vpop.f32.mrb[0].mxu0
    %v6976 = vadd.f32 %v5954, %v6975
    %v6977 = vpop.f32.mrb[0].mxu0
    %v6978 = vadd.f32 %v5958, %v6977
    %v6979 = vpop.f32.mrb[0].mxu0
    %v6980 = vadd.f32 %v5954, %v6979
    %v6981 = vpop.f32.mrb[0].mxu0
    %v6982 = vadd.f32 %v5958, %v6981
    %6983 = vmatprep.mubr.bf16.mxu0 %v5702
    %6984 = vmatmul.mubr.bf16.gmra.mrb[0].mxu0 %v5701
    %v6985 = vpop.f32.mrb[0].mxu0
    %v6986 = vadd.f32 %v5954, %v6985
    %v6987 = vpop.f32.mrb[0].mxu0
    %v6988 = vadd.f32 %v5958, %v6987
    %v6989 = vpop.f32.mrb[0].mxu0
    %v6990 = vadd.f32 %v5954, %v6989
    %v6991 = vpop.f32.mrb[0].mxu0
    %v6992 = vadd.f32 %v5958, %v6991
    %6993 = vmatprep.mubr.bf16.mxu0 %v5706
    %6994 = vmatmul.mubr.bf16.gmra.mrb[0].mxu0 %v5705
    %v6995 = vpop.f32.mrb[0].mxu0
    %v6996 = vadd.f32 %v5954, %v6995
    %v6997 = vpop.f32.mrb[0].mxu0
    %v6998 = vadd.f32 %v5958, %v6997
    %v6999 = vpop.f32.mrb[0].mxu0
    %v7000 = vadd.f32 %v5954, %v6999
    %v7001 = vpop.f32.mrb[0].mxu0
    %v7002 = vadd.f32 %v5958, %v7001
    %7003 = vmatprep.mubr.bf16.mxu0 %v5710
    %7004 = vmatmul.mubr.bf16.gmra.mrb[0].mxu0 %v5709
    %v7005 = vpop.f32.mrb[0].mxu0
    %v7006 = vadd.f32 %v5954, %v7005
    %v7007 = vpop.f32.mrb[0].mxu0
    %v7008 = vadd.f32 %v5958, %v7007
    %v7009 = vpop.f32.mrb[0].mxu0
    %v7010 = vadd.f32 %v5954, %v7009
    %v7011 = vpop.f32.mrb[0].mxu0
    %v7012 = vadd.f32 %v5958, %v7011
    %7013 = vmatprep.mubr.bf16.mxu0 %v5714
    %7014 = vmatmul.mubr.bf16.gmra.mrb[0].mxu0 %v5713
    %v7015 = vpop.f32.mrb[0].mxu0
    %v7016 = vadd.f32 %v5954, %v7015
    %v7017 = vpop.f32.mrb[0].mxu0
    %v7018 = vadd.f32 %v5958, %v7017
    %v7019 = vpop.f32.mrb[0].mxu0
    %v7020 = vadd.f32 %v5954, %v7019
    %v7021 = vpop.f32.mrb[0].mxu0
    %v7022 = vadd.f32 %v5958, %v7021
    %7023 = vmatprep.mubr.bf16.mxu0 %v5718
    %7024 = vmatmul.mubr.bf16.gmra.mrb[0].mxu0 %v5717
    %v7025 = vpop.f32.mrb[0].mxu0
    %v7026 = vadd.f32 %v5954, %v7025
    %v7027 = vpop.f32.mrb[0].mxu0
    %v7028 = vadd.f32 %v5958, %v7027
    %v7029 = vpop.f32.mrb[0].mxu0
    %v7030 = vadd.f32 %v5954, %v7029
    %v7031 = vpop.f32.mrb[0].mxu0
    %v7032 = vadd.f32 %v5958, %v7031
    %7033 = vmatprep.mubr.bf16.mxu0 %v5722
    %7034 = vmatmul.mubr.bf16.gmra.mrb[0].mxu0 %v5721
    %v7035 = vpop.f32.mrb[0].mxu0
    %v7036 = vadd.f32 %v5954, %v7035
    %v7037 = vpop.f32.mrb[0].mxu0
    %v7038 = vadd.f32 %v5958, %v7037
    %v7039 = vpop.f32.mrb[0].mxu0
    %v7040 = vadd.f32 %v5954, %v7039
    %v7041 = vpop.f32.mrb[0].mxu0
    %v7042 = vadd.f32 %v5958, %v7041
    %7043 = vmatprep.mubr.bf16.mxu0 %v5726
    %7044 = vmatmul.mubr.bf16.gmra.mrb[0].mxu0 %v5725
    %v7045 = vpop.f32.mrb[0].mxu0
    %v7046 = vadd.f32 %v5954, %v7045
    %v7047 = vpop.f32.mrb[0].mxu0
    %v7048 = vadd.f32 %v5958, %v7047
    %v7049 = vpop.f32.mrb[0].mxu0
    %v7050 = vadd.f32 %v5954, %v7049
    %v7051 = vpop.f32.mrb[0].mxu0
    %v7052 = vadd.f32 %v5958, %v7051
    %7053 = vmatprep.mubr.bf16.mxu0 %v5730
    %7054 = vmatmul.mubr.bf16.gmra.mrb[0].mxu0 %v5729
    %v7055 = vpop.f32.mrb[0].mxu0
    %v7056 = vadd.f32 %v5954, %v7055
    %v7057 = vpop.f32.mrb[0].mxu0
    %v7058 = vadd.f32 %v5958, %v7057
    %v7059 = vpop.f32.mrb[0].mxu0
    %v7060 = vadd.f32 %v5954, %v7059
    %v7061 = vpop.f32.mrb[0].mxu0
    %v7062 = vadd.f32 %v5958, %v7061
    %7063 = vmatprep.mubr.bf16.mxu0 %v5734
    %7064 = vmatmul.mubr.bf16.gmra.mrb[0].mxu0 %v5733
    %v7065 = vpop.f32.mrb[0].mxu0
    %v7066 = vadd.f32 %v5954, %v7065
    %v7067 = vpop.f32.mrb[0].mxu0
    %v7068 = vadd.f32 %v5958, %v7067
    %v7069 = vpop.f32.mrb[0].mxu0
    %v7070 = vadd.f32 %v5954, %v7069
    %v7071 = vpop.f32.mrb[0].mxu0
    %v7072 = vadd.f32 %v5958, %v7071
    %7073 = vmatprep.mubr.bf16.mxu0 %v5738
    %7074 = vmatmul.mubr.bf16.gmra.mrb[0].mxu0 %v5737
    %v7075 = vpop.f32.mrb[0].mxu0
    %v7076 = vadd.f32 %v5954, %v7075
    %v7077 = vpop.f32.mrb[0].mxu0
    %v7078 = vadd.f32 %v5958, %v7077
    %v7079 = vpop.f32.mrb[0].mxu0
    %v7080 = vadd.f32 %v5954, %v7079
    %v7081 = vpop.f32.mrb[0].mxu0
    %v7082 = vadd.f32 %v5958, %v7081
    %7083 = vmatprep.mubr.bf16.mxu0 %v5742
    %7084 = vmatmul.mubr.bf16.gmra.mrb[0].mxu0 %v5741
    %v7085 = vpop.f32.mrb[0].mxu0
    %v7086 = vadd.f32 %v5954, %v7085
    %v7087 = vpop.f32.mrb[0].mxu0
    %v7088 = vadd.f32 %v5958, %v7087
    %v7089 = vpop.f32.mrb[0].mxu0
    %v7090 = vadd.f32 %v5954, %v7089
    %v7091 = vpop.f32.mrb[0].mxu0
    %v7092 = vadd.f32 %v5958, %v7091
    %7093 = vmatprep.mubr.bf16.mxu0 %v5746
    %7094 = vmatmul.mubr.bf16.gmra.mrb[0].mxu0 %v5745
    %v7095 = vpop.f32.mrb[0].mxu0
    %v7096 = vadd.f32 %v5954, %v7095
    %v7097 = vpop.f32.mrb[0].mxu0
    %v7098 = vadd.f32 %v5958, %v7097
    %v7099 = vpop.f32.mrb[0].mxu0
    %v7100 = vadd.f32 %v5954, %v7099
    %v7101 = vpop.f32.mrb[0].mxu0
    %v7102 = vadd.f32 %v5958, %v7101
    %7103 = vmatprep.mubr.bf16.mxu0 %v5750
    %7104 = vmatmul.mubr.bf16.gmra.mrb[0].mxu0 %v5749
    %v7105 = vpop.f32.mrb[0].mxu0
    %v7106 = vadd.f32 %v5954, %v7105
    %v7107 = vpop.f32.mrb[0].mxu0
    %v7108 = vadd.f32 %v5958, %v7107
    %v7109 = vpop.f32.mrb[0].mxu0
    %v7110 = vadd.f32 %v5954, %v7109
    %v7111 = vpop.f32.mrb[0].mxu0
    %v7112 = vadd.f32 %v5958, %v7111
    %7113 = vmatprep.mubr.bf16.mxu0 %v5754
    %7114 = vmatmul.mubr.bf16.gmra.mrb[0].mxu0 %v5753
    %v7115 = vpop.f32.mrb[0].mxu0
    %v7116 = vadd.f32 %v5954, %v7115
    %v7117 = vpop.f32.mrb[0].mxu0
    %v7118 = vadd.f32 %v5958, %v7117
    %v7119 = vpop.f32.mrb[0].mxu0
    %v7120 = vadd.f32 %v5954, %v7119
    %v7121 = vpop.f32.mrb[0].mxu0
    %v7122 = vadd.f32 %v5958, %v7121
    %7123 = vmatprep.mubr.bf16.mxu0 %v5758
    %7124 = vmatmul.mubr.bf16.gmra.mrb[0].mxu0 %v5757
    %v7125 = vpop.f32.mrb[0].mxu0
    %v7126 = vadd.f32 %v5954, %v7125
    %v7127 = vpop.f32.mrb[0].mxu0
    %v7128 = vadd.f32 %v5958, %v7127
    %v7129 = vpop.f32.mrb[0].mxu0
    %v7130 = vadd.f32 %v5954, %v7129
    %v7131 = vpop.f32.mrb[0].mxu0
    %v7132 = vadd.f32 %v5958, %v7131
    %7133 = vmatprep.mubr.bf16.mxu0 %v5762
    %7134 = vmatmul.mubr.bf16.gmra.mrb[0].mxu0 %v5761
    %v7135 = vpop.f32.mrb[0].mxu0
    %v7136 = vadd.f32 %v5954, %v7135
    %v7137 = vpop.f32.mrb[0].mxu0
    %v7138 = vadd.f32 %v5958, %v7137
    %v7139 = vpop.f32.mrb[0].mxu0
    %v7140 = vadd.f32 %v5954, %v7139
    %v7141 = vpop.f32.mrb[0].mxu0
    %v7142 = vadd.f32 %v5958, %v7141
    %7143 = vmatprep.mubr.bf16.mxu0 %v5766
    %7144 = vmatmul.mubr.bf16.gmra.mrb[0].mxu0 %v5765
    %v7145 = vpop.f32.mrb[0].mxu0
    %v7146 = vadd.f32 %v5954, %v7145
    %v7147 = vpop.f32.mrb[0].mxu0
    %v7148 = vadd.f32 %v5958, %v7147
    %v7149 = vpop.f32.mrb[0].mxu0
    %v7150 = vadd.f32 %v5954, %v7149
    %v7151 = vpop.f32.mrb[0].mxu0
    %v7152 = vadd.f32 %v5958, %v7151
    %7153 = vmatprep.mubr.bf16.mxu0 %v5770
    %7154 = vmatmul.mubr.bf16.gmra.mrb[0].mxu0 %v5769
    %v7155 = vpop.f32.mrb[0].mxu0
    %v7156 = vadd.f32 %v5954, %v7155
    %v7157 = vpop.f32.mrb[0].mxu0
    %v7158 = vadd.f32 %v5958, %v7157
    %v7159 = vpop.f32.mrb[0].mxu0
    %v7160 = vadd.f32 %v5954, %v7159
    %v7161 = vpop.f32.mrb[0].mxu0
    %v7162 = vadd.f32 %v5958, %v7161
    %7163 = vmatprep.mubr.bf16.mxu0 %v5774
    %7164 = vmatmul.mubr.bf16.gmra.mrb[0].mxu0 %v5773
    %v7165 = vpop.f32.mrb[0].mxu0
    %v7166 = vadd.f32 %v5954, %v7165
    %v7167 = vpop.f32.mrb[0].mxu0
    %v7168 = vadd.f32 %v5958, %v7167
    %v7169 = vpop.f32.mrb[0].mxu0
    %v7170 = vadd.f32 %v5954, %v7169
    %v7171 = vpop.f32.mrb[0].mxu0
    %v7172 = vadd.f32 %v5958, %v7171
    %7173 = vmatprep.mubr.bf16.mxu0 %v5778
    %7174 = vmatmul.mubr.bf16.gmra.mrb[0].mxu0 %v5777
    %v7175 = vpop.f32.mrb[0].mxu0
    %v7176 = vadd.f32 %v5954, %v7175
    %v7177 = vpop.f32.mrb[0].mxu0
    %v7178 = vadd.f32 %v5958, %v7177
    %v7179 = vpop.f32.mrb[0].mxu0
    %v7180 = vadd.f32 %v5954, %v7179
    %v7181 = vpop.f32.mrb[0].mxu0
    %v7182 = vadd.f32 %v5958, %v7181
    %7183 = vmatprep.mubr.bf16.mxu0 %v5782
    %7184 = vmatmul.mubr.bf16.gmra.mrb[0].mxu0 %v5781
    %v7185 = vpop.f32.mrb[0].mxu0
    %v7186 = vadd.f32 %v5954, %v7185
    %v7187 = vpop.f32.mrb[0].mxu0
    %v7188 = vadd.f32 %v5958, %v7187
    %v7189 = vpop.f32.mrb[0].mxu0
    %v7190 = vadd.f32 %v5954, %v7189
    %v7191 = vpop.f32.mrb[0].mxu0
    %v7192 = vadd.f32 %v5958, %v7191
    %7193 = vmatprep.mubr.bf16.mxu0 %v5786
    %7194 = vmatmul.mubr.bf16.gmra.mrb[0].mxu0 %v5785
    %v7195 = vpop.f32.mrb[0].mxu0
    %v7196 = vadd.f32 %v5954, %v7195
    %v7197 = vpop.f32.mrb[0].mxu0
    %v7198 = vadd.f32 %v5958, %v7197
    %v7199 = vpop.f32.mrb[0].mxu0
    %v7200 = vadd.f32 %v5954, %v7199
    %v7201 = vpop.f32.mrb[0].mxu0
    %v7202 = vadd.f32 %v5958, %v7201
    %7203 = vmatprep.mubr.bf16.mxu0 %v5790
    %7204 = vmatmul.mubr.bf16.gmra.mrb[0].mxu0 %v5789
    %v7205 = vpop.f32.mrb[0].mxu0
    %v7206 = vadd.f32 %v5954, %v7205
    %v7207 = vpop.f32.mrb[0].mxu0
    %v7208 = vadd.f32 %v5958, %v7207
    %v7209 = vpop.f32.mrb[0].mxu0
    %v7210 = vadd.f32 %v5954, %v7209
    %v7211 = vpop.f32.mrb[0].mxu0
    %v7212 = vadd.f32 %v5958, %v7211
    %7213 = vmatprep.mubr.bf16.mxu0 %v5794
    %7214 = vmatmul.mubr.bf16.gmra.mrb[0].mxu0 %v5793
    %v7215 = vpop.f32.mrb[0].mxu0
    %v7216 = vadd.f32 %v5954, %v7215
    %v7217 = vpop.f32.mrb[0].mxu0
    %v7218 = vadd.f32 %v5958, %v7217
    %v7219 = vpop.f32.mrb[0].mxu0
    %v7220 = vadd.f32 %v5954, %v7219
    %v7221 = vpop.f32.mrb[0].mxu0
    %v7222 = vadd.f32 %v5958, %v7221
    %7223 = vmatprep.mubr.bf16.mxu0 %v5798
    %7224 = vmatmul.mubr.bf16.gmra.mrb[0].mxu0 %v5797
    %v7225 = vpop.f32.mrb[0].mxu0
    %v7226 = vadd.f32 %v5954, %v7225
    %v7227 = vpop.f32.mrb[0].mxu0
    %v7228 = vadd.f32 %v5958, %v7227
    %v7229 = vpop.f32.mrb[0].mxu0
    %v7230 = vadd.f32 %v5954, %v7229
    %v7231 = vpop.f32.mrb[0].mxu0
    %v7232 = vadd.f32 %v5958, %v7231
    %7233 = vmatprep.mubr.bf16.mxu0 %v5802
    %7234 = vmatmul.mubr.bf16.gmra.mrb[0].mxu0 %v5801
    %v7235 = vpop.f32.mrb[0].mxu0
    %v7236 = vadd.f32 %v5954, %v7235
    %v7237 = vpop.f32.mrb[0].mxu0
    %v7238 = vadd.f32 %v5958, %v7237
    %v7239 = vpop.f32.mrb[0].mxu0
    %v7240 = vadd.f32 %v5954, %v7239
    %v7241 = vpop.f32.mrb[0].mxu0
    %v7242 = vadd.f32 %v5958, %v7241
    %7243 = vmatprep.mubr.bf16.mxu0 %v5806
    %7244 = vmatmul.mubr.bf16.gmra.mrb[0].mxu0 %v5805
    %v7245 = vpop.f32.mrb[0].mxu0
    %v7246 = vadd.f32 %v5954, %v7245
    %v7247 = vpop.f32.mrb[0].mxu0
    %v7248 = vadd.f32 %v5958, %v7247
    %v7249 = vpop.f32.mrb[0].mxu0
    %v7250 = vadd.f32 %v5954, %v7249
    %v7251 = vpop.f32.mrb[0].mxu0
    %v7252 = vadd.f32 %v5958, %v7251
    %7253 = vmatprep.mubr.bf16.mxu0 %v5810
    %7254 = vmatmul.mubr.bf16.gmra.mrb[0].mxu0 %v5809
    %v7255 = vpop.f32.mrb[0].mxu0
    %v7256 = vadd.f32 %v5954, %v7255
    %v7257 = vpop.f32.mrb[0].mxu0
    %v7258 = vadd.f32 %v5958, %v7257
    %v7259 = vpop.f32.mrb[0].mxu0
    %v7260 = vadd.f32 %v5954, %v7259
    %v7261 = vpop.f32.mrb[0].mxu0
    %v7262 = vadd.f32 %v5958, %v7261
    %7263 = vmatprep.mubr.bf16.mxu0 %v5814
    %7264 = vmatmul.mubr.bf16.gmra.mrb[0].mxu0 %v5813
    %v7265 = vpop.f32.mrb[0].mxu0
    %v7266 = vadd.f32 %v5954, %v7265
    %v7267 = vpop.f32.mrb[0].mxu0
    %v7268 = vadd.f32 %v5958, %v7267
    %v7269 = vpop.f32.mrb[0].mxu0
    %v7270 = vadd.f32 %v5954, %v7269
    %v7271 = vpop.f32.mrb[0].mxu0
    %v7272 = vadd.f32 %v5958, %v7271
    %7273 = vmatprep.mubr.bf16.mxu0 %v5818
    %7274 = vmatmul.mubr.bf16.gmra.mrb[0].mxu0 %v5817
    %v7275 = vpop.f32.mrb[0].mxu0
    %v7276 = vadd.f32 %v5954, %v7275
    %v7277 = vpop.f32.mrb[0].mxu0
    %v7278 = vadd.f32 %v5958, %v7277
    %v7279 = vpop.f32.mrb[0].mxu0
    %v7280 = vadd.f32 %v5954, %v7279
    %v7281 = vpop.f32.mrb[0].mxu0
    %v7282 = vadd.f32 %v5958, %v7281
    %7283 = vdwg.mxu0
    %7284 = vmatprep.subr.bf16.mxu0 %v6420
    %7285 = vmatpush1.bf16.msra.mxu0 %v6419
    %7286 = vmatprep.subr.bf16.mxu0 %v6424
    %7287 = vmatpush1.bf16.msra.mxu0 %v6423
    %7288 = vmatprep.subr.bf16.mxu0 %v6428
    %7289 = vmatpush1.bf16.msra.mxu0 %v6427
    %7290 = vmatprep.subr.bf16.mxu0 %v6432
    %7291 = vmatpush1.bf16.msra.mxu0 %v6431
    %7292 = vmatprep.subr.bf16.mxu0 %v6436
    %7293 = vmatpush1.bf16.msra.mxu0 %v6435
    %7294 = vmatprep.subr.bf16.mxu0 %v6440
    %7295 = vmatpush1.bf16.msra.mxu0 %v6439
    %7296 = vmatprep.subr.bf16.mxu0 %v6444
    %7297 = vmatpush1.bf16.msra.mxu0 %v6443
    %7298 = vmatprep.subr.bf16.mxu0 %v6448
    %7299 = vmatpush1.bf16.msra.mxu0 %v6447
    %7300 = vmatprep.subr.bf16.mxu0 %v6452
    %7301 = vmatpush1.bf16.msra.mxu0 %v6451
    %7302 = vmatprep.subr.bf16.mxu0 %v6456
    %7303 = vmatpush1.bf16.msra.mxu0 %v6455
    %7304 = vmatprep.subr.bf16.mxu0 %v6460
    %7305 = vmatpush1.bf16.msra.mxu0 %v6459
    %7306 = vmatprep.subr.bf16.mxu0 %v6464
    %7307 = vmatpush1.bf16.msra.mxu0 %v6463
    %7308 = vmatprep.subr.bf16.mxu0 %v6468
    %7309 = vmatpush1.bf16.msra.mxu0 %v6467
    %7310 = vmatprep.subr.bf16.mxu0 %v6472
    %7311 = vmatpush1.bf16.msra.mxu0 %v6471
    %7312 = vmatprep.subr.bf16.mxu0 %v6476
    %7313 = vmatpush1.bf16.msra.mxu0 %v6475
    %7314 = vmatprep.subr.bf16.mxu0 %v6480
    %7315 = vmatpush1.bf16.msra.mxu0 %v6479
    %7316 = vmatprep.mubr.bf16.mxu0 %v5568
    %7317 = vmatmul.mubr.bf16.gmra.mrb[0].mxu0 %v5567
    %v7318 = vpop.f32.mrb[0].mxu0
    %v7319 = vadd.f32 %v6646, %v7318
    %v7320 = vpop.f32.mrb[0].mxu0
    %v7321 = vadd.f32 %v6648, %v7320
    %v7322 = vpop.f32.mrb[0].mxu0
    %v7323 = vadd.f32 %v6650, %v7322
    %v7324 = vpop.f32.mrb[0].mxu0
    %v7325 = vadd.f32 %v6652, %v7324
    %7326 = vmatprep.mubr.bf16.mxu0 %v5572
    %7327 = vmatmul.mubr.bf16.gmra.mrb[0].mxu0 %v5571
    %v7328 = vpop.f32.mrb[0].mxu0
    %v7329 = vadd.f32 %v6656, %v7328
    %v7330 = vpop.f32.mrb[0].mxu0
    %v7331 = vadd.f32 %v6658, %v7330
    %v7332 = vpop.f32.mrb[0].mxu0
    %v7333 = vadd.f32 %v6660, %v7332
    %v7334 = vpop.f32.mrb[0].mxu0
    %v7335 = vadd.f32 %v6662, %v7334
    %7336 = vmatprep.mubr.bf16.mxu0 %v5576
    %7337 = vmatmul.mubr.bf16.gmra.mrb[0].mxu0 %v5575
    %v7338 = vpop.f32.mrb[0].mxu0
    %v7339 = vadd.f32 %v6666, %v7338
    %v7340 = vpop.f32.mrb[0].mxu0
    %v7341 = vadd.f32 %v6668, %v7340
    %v7342 = vpop.f32.mrb[0].mxu0
    %v7343 = vadd.f32 %v6670, %v7342
    %v7344 = vpop.f32.mrb[0].mxu0
    %v7345 = vadd.f32 %v6672, %v7344
    %7346 = vmatprep.mubr.bf16.mxu0 %v5580
    %7347 = vmatmul.mubr.bf16.gmra.mrb[0].mxu0 %v5579
    %v7348 = vpop.f32.mrb[0].mxu0
    %v7349 = vadd.f32 %v6676, %v7348
    %v7350 = vpop.f32.mrb[0].mxu0
    %v7351 = vadd.f32 %v6678, %v7350
    %v7352 = vpop.f32.mrb[0].mxu0
    %v7353 = vadd.f32 %v6680, %v7352
    %v7354 = vpop.f32.mrb[0].mxu0
    %v7355 = vadd.f32 %v6682, %v7354
    %7356 = vmatprep.mubr.bf16.mxu0 %v5584
    %7357 = vmatmul.mubr.bf16.gmra.mrb[0].mxu0 %v5583
    %v7358 = vpop.f32.mrb[0].mxu0
    %v7359 = vadd.f32 %v6686, %v7358
    %v7360 = vpop.f32.mrb[0].mxu0
    %v7361 = vadd.f32 %v6688, %v7360
    %v7362 = vpop.f32.mrb[0].mxu0
    %v7363 = vadd.f32 %v6690, %v7362
    %v7364 = vpop.f32.mrb[0].mxu0
    %v7365 = vadd.f32 %v6692, %v7364
    %7366 = vmatprep.mubr.bf16.mxu0 %v5588
    %7367 = vmatmul.mubr.bf16.gmra.mrb[0].mxu0 %v5587
    %v7368 = vpop.f32.mrb[0].mxu0
    %v7369 = vadd.f32 %v6696, %v7368
    %v7370 = vpop.f32.mrb[0].mxu0
    %v7371 = vadd.f32 %v6698, %v7370
    %v7372 = vpop.f32.mrb[0].mxu0
    %v7373 = vadd.f32 %v6700, %v7372
    %v7374 = vpop.f32.mrb[0].mxu0
    %v7375 = vadd.f32 %v6702, %v7374
    %7376 = vmatprep.mubr.bf16.mxu0 %v5592
    %7377 = vmatmul.mubr.bf16.gmra.mrb[0].mxu0 %v5591
    %v7378 = vpop.f32.mrb[0].mxu0
    %v7379 = vadd.f32 %v6706, %v7378
    %v7380 = vpop.f32.mrb[0].mxu0
    %v7381 = vadd.f32 %v6708, %v7380
    %v7382 = vpop.f32.mrb[0].mxu0
    %v7383 = vadd.f32 %v6710, %v7382
    %v7384 = vpop.f32.mrb[0].mxu0
    %v7385 = vadd.f32 %v6712, %v7384
    %7386 = vmatprep.mubr.bf16.mxu0 %v5596
    %7387 = vmatmul.mubr.bf16.gmra.mrb[0].mxu0 %v5595
    %v7388 = vpop.f32.mrb[0].mxu0
    %v7389 = vadd.f32 %v6716, %v7388
    %v7390 = vpop.f32.mrb[0].mxu0
    %v7391 = vadd.f32 %v6718, %v7390
    %v7392 = vpop.f32.mrb[0].mxu0
    %v7393 = vadd.f32 %v6720, %v7392
    %v7394 = vpop.f32.mrb[0].mxu0
    %v7395 = vadd.f32 %v6722, %v7394
    %7396 = vmatprep.mubr.bf16.mxu0 %v5600
    %7397 = vmatmul.mubr.bf16.gmra.mrb[0].mxu0 %v5599
    %v7398 = vpop.f32.mrb[0].mxu0
    %v7399 = vadd.f32 %v6726, %v7398
    %v7400 = vpop.f32.mrb[0].mxu0
    %v7401 = vadd.f32 %v6728, %v7400
    %v7402 = vpop.f32.mrb[0].mxu0
    %v7403 = vadd.f32 %v6730, %v7402
    %v7404 = vpop.f32.mrb[0].mxu0
    %v7405 = vadd.f32 %v6732, %v7404
    %7406 = vmatprep.mubr.bf16.mxu0 %v5604
    %7407 = vmatmul.mubr.bf16.gmra.mrb[0].mxu0 %v5603
    %v7408 = vpop.f32.mrb[0].mxu0
    %v7409 = vadd.f32 %v6736, %v7408
    %v7410 = vpop.f32.mrb[0].mxu0
    %v7411 = vadd.f32 %v6738, %v7410
    %v7412 = vpop.f32.mrb[0].mxu0
    %v7413 = vadd.f32 %v6740, %v7412
    %v7414 = vpop.f32.mrb[0].mxu0
    %v7415 = vadd.f32 %v6742, %v7414
    %7416 = vmatprep.mubr.bf16.mxu0 %v5608
    %7417 = vmatmul.mubr.bf16.gmra.mrb[0].mxu0 %v5607
    %v7418 = vpop.f32.mrb[0].mxu0
    %v7419 = vadd.f32 %v6746, %v7418
    %v7420 = vpop.f32.mrb[0].mxu0
    %v7421 = vadd.f32 %v6748, %v7420
    %v7422 = vpop.f32.mrb[0].mxu0
    %v7423 = vadd.f32 %v6750, %v7422
    %v7424 = vpop.f32.mrb[0].mxu0
    %v7425 = vadd.f32 %v6752, %v7424
    %7426 = vmatprep.mubr.bf16.mxu0 %v5612
    %7427 = vmatmul.mubr.bf16.gmra.mrb[0].mxu0 %v5611
    %v7428 = vpop.f32.mrb[0].mxu0
    %v7429 = vadd.f32 %v6756, %v7428
    %v7430 = vpop.f32.mrb[0].mxu0
    %v7431 = vadd.f32 %v6758, %v7430
    %v7432 = vpop.f32.mrb[0].mxu0
    %v7433 = vadd.f32 %v6760, %v7432
    %v7434 = vpop.f32.mrb[0].mxu0
    %v7435 = vadd.f32 %v6762, %v7434
    %7436 = vmatprep.mubr.bf16.mxu0 %v5616
    %7437 = vmatmul.mubr.bf16.gmra.mrb[0].mxu0 %v5615
    %v7438 = vpop.f32.mrb[0].mxu0
    %v7439 = vadd.f32 %v6766, %v7438
    %v7440 = vpop.f32.mrb[0].mxu0
    %v7441 = vadd.f32 %v6768, %v7440
    %v7442 = vpop.f32.mrb[0].mxu0
    %v7443 = vadd.f32 %v6770, %v7442
    %v7444 = vpop.f32.mrb[0].mxu0
    %v7445 = vadd.f32 %v6772, %v7444
    %7446 = vmatprep.mubr.bf16.mxu0 %v5620
    %7447 = vmatmul.mubr.bf16.gmra.mrb[0].mxu0 %v5619
    %v7448 = vpop.f32.mrb[0].mxu0
    %v7449 = vadd.f32 %v6776, %v7448
    %v7450 = vpop.f32.mrb[0].mxu0
    %v7451 = vadd.f32 %v6778, %v7450
    %v7452 = vpop.f32.mrb[0].mxu0
    %v7453 = vadd.f32 %v6780, %v7452
    %v7454 = vpop.f32.mrb[0].mxu0
    %v7455 = vadd.f32 %v6782, %v7454
    %7456 = vmatprep.mubr.bf16.mxu0 %v5624
    %7457 = vmatmul.mubr.bf16.gmra.mrb[0].mxu0 %v5623
    %v7458 = vpop.f32.mrb[0].mxu0
    %v7459 = vadd.f32 %v6786, %v7458
    %v7460 = vpop.f32.mrb[0].mxu0
    %v7461 = vadd.f32 %v6788, %v7460
    %v7462 = vpop.f32.mrb[0].mxu0
    %v7463 = vadd.f32 %v6790, %v7462
    %v7464 = vpop.f32.mrb[0].mxu0
    %v7465 = vadd.f32 %v6792, %v7464
    %7466 = vmatprep.mubr.bf16.mxu0 %v5628
    %7467 = vmatmul.mubr.bf16.gmra.mrb[0].mxu0 %v5627
    %v7468 = vpop.f32.mrb[0].mxu0
    %v7469 = vadd.f32 %v6796, %v7468
    %v7470 = vpop.f32.mrb[0].mxu0
    %v7471 = vadd.f32 %v6798, %v7470
    %v7472 = vpop.f32.mrb[0].mxu0
    %v7473 = vadd.f32 %v6800, %v7472
    %v7474 = vpop.f32.mrb[0].mxu0
    %v7475 = vadd.f32 %v6802, %v7474
    %7476 = vmatprep.mubr.bf16.mxu0 %v5632
    %7477 = vmatmul.mubr.bf16.gmra.mrb[0].mxu0 %v5631
    %v7478 = vpop.f32.mrb[0].mxu0
    %v7479 = vadd.f32 %v6806, %v7478
    %v7480 = vpop.f32.mrb[0].mxu0
    %v7481 = vadd.f32 %v6808, %v7480
    %v7482 = vpop.f32.mrb[0].mxu0
    %v7483 = vadd.f32 %v6810, %v7482
    %v7484 = vpop.f32.mrb[0].mxu0
    %v7485 = vadd.f32 %v6812, %v7484
    %7486 = vmatprep.mubr.bf16.mxu0 %v5636
    %7487 = vmatmul.mubr.bf16.gmra.mrb[0].mxu0 %v5635
    %v7488 = vpop.f32.mrb[0].mxu0
    %v7489 = vadd.f32 %v6816, %v7488
    %v7490 = vpop.f32.mrb[0].mxu0
    %v7491 = vadd.f32 %v6818, %v7490
    %v7492 = vpop.f32.mrb[0].mxu0
    %v7493 = vadd.f32 %v6820, %v7492
    %v7494 = vpop.f32.mrb[0].mxu0
    %v7495 = vadd.f32 %v6822, %v7494
    %7496 = vmatprep.mubr.bf16.mxu0 %v5640
    %7497 = vmatmul.mubr.bf16.gmra.mrb[0].mxu0 %v5639
    %v7498 = vpop.f32.mrb[0].mxu0
    %v7499 = vadd.f32 %v6826, %v7498
    %v7500 = vpop.f32.mrb[0].mxu0
    %v7501 = vadd.f32 %v6828, %v7500
    %v7502 = vpop.f32.mrb[0].mxu0
    %v7503 = vadd.f32 %v6830, %v7502
    %v7504 = vpop.f32.mrb[0].mxu0
    %v7505 = vadd.f32 %v6832, %v7504
    %7506 = vmatprep.mubr.bf16.mxu0 %v5644
    %7507 = vmatmul.mubr.bf16.gmra.mrb[0].mxu0 %v5643
    %v7508 = vpop.f32.mrb[0].mxu0
    %v7509 = vadd.f32 %v6836, %v7508
    %v7510 = vpop.f32.mrb[0].mxu0
    %v7511 = vadd.f32 %v6838, %v7510
    %v7512 = vpop.f32.mrb[0].mxu0
    %v7513 = vadd.f32 %v6840, %v7512
    %v7514 = vpop.f32.mrb[0].mxu0
    %v7515 = vadd.f32 %v6842, %v7514
    %7516 = vmatprep.mubr.bf16.mxu0 %v5648
    %7517 = vmatmul.mubr.bf16.gmra.mrb[0].mxu0 %v5647
    %v7518 = vpop.f32.mrb[0].mxu0
    %v7519 = vadd.f32 %v6846, %v7518
    %v7520 = vpop.f32.mrb[0].mxu0
    %v7521 = vadd.f32 %v6848, %v7520
    %v7522 = vpop.f32.mrb[0].mxu0
    %v7523 = vadd.f32 %v6850, %v7522
    %v7524 = vpop.f32.mrb[0].mxu0
    %v7525 = vadd.f32 %v6852, %v7524
    %7526 = vmatprep.mubr.bf16.mxu0 %v5652
    %7527 = vmatmul.mubr.bf16.gmra.mrb[0].mxu0 %v5651
    %v7528 = vpop.f32.mrb[0].mxu0
    %v7529 = vadd.f32 %v6856, %v7528
    %v7530 = vpop.f32.mrb[0].mxu0
    %v7531 = vadd.f32 %v6858, %v7530
    %v7532 = vpop.f32.mrb[0].mxu0
    %v7533 = vadd.f32 %v6860, %v7532
    %v7534 = vpop.f32.mrb[0].mxu0
    %v7535 = vadd.f32 %v6862, %v7534
    %7536 = vmatprep.mubr.bf16.mxu0 %v5656
    %7537 = vmatmul.mubr.bf16.gmra.mrb[0].mxu0 %v5655
    %v7538 = vpop.f32.mrb[0].mxu0
    %v7539 = vadd.f32 %v6866, %v7538
    %v7540 = vpop.f32.mrb[0].mxu0
    %v7541 = vadd.f32 %v6868, %v7540
    %v7542 = vpop.f32.mrb[0].mxu0
    %v7543 = vadd.f32 %v6870, %v7542
    %v7544 = vpop.f32.mrb[0].mxu0
    %v7545 = vadd.f32 %v6872, %v7544
    %7546 = vmatprep.mubr.bf16.mxu0 %v5660
    %7547 = vmatmul.mubr.bf16.gmra.mrb[0].mxu0 %v5659
    %v7548 = vpop.f32.mrb[0].mxu0
    %v7549 = vadd.f32 %v6876, %v7548
    %v7550 = vpop.f32.mrb[0].mxu0
    %v7551 = vadd.f32 %v6878, %v7550
    %v7552 = vpop.f32.mrb[0].mxu0
    %v7553 = vadd.f32 %v6880, %v7552
    %v7554 = vpop.f32.mrb[0].mxu0
    %v7555 = vadd.f32 %v6882, %v7554
    %7556 = vmatprep.mubr.bf16.mxu0 %v5664
    %7557 = vmatmul.mubr.bf16.gmra.mrb[0].mxu0 %v5663
    %v7558 = vpop.f32.mrb[0].mxu0
    %v7559 = vadd.f32 %v6886, %v7558
    %v7560 = vpop.f32.mrb[0].mxu0
    %v7561 = vadd.f32 %v6888, %v7560
    %v7562 = vpop.f32.mrb[0].mxu0
    %v7563 = vadd.f32 %v6890, %v7562
    %v7564 = vpop.f32.mrb[0].mxu0
    %v7565 = vadd.f32 %v6892, %v7564
    %7566 = vmatprep.mubr.bf16.mxu0 %v5668
    %7567 = vmatmul.mubr.bf16.gmra.mrb[0].mxu0 %v5667
    %v7568 = vpop.f32.mrb[0].mxu0
    %v7569 = vadd.f32 %v6896, %v7568
    %v7570 = vpop.f32.mrb[0].mxu0
    %v7571 = vadd.f32 %v6898, %v7570
    %v7572 = vpop.f32.mrb[0].mxu0
    %v7573 = vadd.f32 %v6900, %v7572
    %v7574 = vpop.f32.mrb[0].mxu0
    %v7575 = vadd.f32 %v6902, %v7574
    %7576 = vmatprep.mubr.bf16.mxu0 %v5672
    %7577 = vmatmul.mubr.bf16.gmra.mrb[0].mxu0 %v5671
    %v7578 = vpop.f32.mrb[0].mxu0
    %v7579 = vadd.f32 %v6906, %v7578
    %v7580 = vpop.f32.mrb[0].mxu0
    %v7581 = vadd.f32 %v6908, %v7580
    %v7582 = vpop.f32.mrb[0].mxu0
    %v7583 = vadd.f32 %v6910, %v7582
    %v7584 = vpop.f32.mrb[0].mxu0
    %v7585 = vadd.f32 %v6912, %v7584
    %7586 = vmatprep.mubr.bf16.mxu0 %v5676
    %7587 = vmatmul.mubr.bf16.gmra.mrb[0].mxu0 %v5675
    %v7588 = vpop.f32.mrb[0].mxu0
    %v7589 = vadd.f32 %v6916, %v7588
    %v7590 = vpop.f32.mrb[0].mxu0
    %v7591 = vadd.f32 %v6918, %v7590
    %v7592 = vpop.f32.mrb[0].mxu0
    %v7593 = vadd.f32 %v6920, %v7592
    %v7594 = vpop.f32.mrb[0].mxu0
    %v7595 = vadd.f32 %v6922, %v7594
    %7596 = vmatprep.mubr.bf16.mxu0 %v5680
    %7597 = vmatmul.mubr.bf16.gmra.mrb[0].mxu0 %v5679
    %v7598 = vpop.f32.mrb[0].mxu0
    %v7599 = vadd.f32 %v6926, %v7598
    %v7600 = vpop.f32.mrb[0].mxu0
    %v7601 = vadd.f32 %v6928, %v7600
    %v7602 = vpop.f32.mrb[0].mxu0
    %v7603 = vadd.f32 %v6930, %v7602
    %v7604 = vpop.f32.mrb[0].mxu0
    %v7605 = vadd.f32 %v6932, %v7604
    %7606 = vmatprep.mubr.bf16.mxu0 %v5684
    %7607 = vmatmul.mubr.bf16.gmra.mrb[0].mxu0 %v5683
    %v7608 = vpop.f32.mrb[0].mxu0
    %v7609 = vadd.f32 %v6936, %v7608
    %v7610 = vpop.f32.mrb[0].mxu0
    %v7611 = vadd.f32 %v6938, %v7610
    %v7612 = vpop.f32.mrb[0].mxu0
    %v7613 = vadd.f32 %v6940, %v7612
    %v7614 = vpop.f32.mrb[0].mxu0
    %v7615 = vadd.f32 %v6942, %v7614
    %7616 = vmatprep.mubr.bf16.mxu0 %v5688
    %7617 = vmatmul.mubr.bf16.gmra.mrb[0].mxu0 %v5687
    %v7618 = vpop.f32.mrb[0].mxu0
    %v7619 = vadd.f32 %v6946, %v7618
    %v7620 = vpop.f32.mrb[0].mxu0
    %v7621 = vadd.f32 %v6948, %v7620
    %v7622 = vpop.f32.mrb[0].mxu0
    %v7623 = vadd.f32 %v6950, %v7622
    %v7624 = vpop.f32.mrb[0].mxu0
    %v7625 = vadd.f32 %v6952, %v7624
    %7626 = vmatprep.mubr.bf16.mxu0 %v5692
    %7627 = vmatmul.mubr.bf16.gmra.mrb[0].mxu0 %v5691
    %v7628 = vpop.f32.mrb[0].mxu0
    %v7629 = vadd.f32 %v6956, %v7628
    %v7630 = vpop.f32.mrb[0].mxu0
    %v7631 = vadd.f32 %v6958, %v7630
    %v7632 = vpop.f32.mrb[0].mxu0
    %v7633 = vadd.f32 %v6960, %v7632
    %v7634 = vpop.f32.mrb[0].mxu0
    %v7635 = vadd.f32 %v6962, %v7634
    %7636 = vmatprep.mubr.bf16.mxu0 %v5696
    %7637 = vmatmul.mubr.bf16.gmra.mrb[0].mxu0 %v5695
    %v7638 = vpop.f32.mrb[0].mxu0
    %v7639 = vadd.f32 %v6966, %v7638
    %v7640 = vpop.f32.mrb[0].mxu0
    %v7641 = vadd.f32 %v6968, %v7640
    %v7642 = vpop.f32.mrb[0].mxu0
    %v7643 = vadd.f32 %v6970, %v7642
    %v7644 = vpop.f32.mrb[0].mxu0
    %v7645 = vadd.f32 %v6972, %v7644
    %7646 = vmatprep.mubr.bf16.mxu0 %v5700
    %7647 = vmatmul.mubr.bf16.gmra.mrb[0].mxu0 %v5699
    %v7648 = vpop.f32.mrb[0].mxu0
    %v7649 = vadd.f32 %v6976, %v7648
    %v7650 = vpop.f32.mrb[0].mxu0
    %v7651 = vadd.f32 %v6978, %v7650
    %v7652 = vpop.f32.mrb[0].mxu0
    %v7653 = vadd.f32 %v6980, %v7652
    %v7654 = vpop.f32.mrb[0].mxu0
    %v7655 = vadd.f32 %v6982, %v7654
    %7656 = vmatprep.mubr.bf16.mxu0 %v5704
    %7657 = vmatmul.mubr.bf16.gmra.mrb[0].mxu0 %v5703
    %v7658 = vpop.f32.mrb[0].mxu0
    %v7659 = vadd.f32 %v6986, %v7658
    %v7660 = vpop.f32.mrb[0].mxu0
    %v7661 = vadd.f32 %v6988, %v7660
    %v7662 = vpop.f32.mrb[0].mxu0
    %v7663 = vadd.f32 %v6990, %v7662
    %v7664 = vpop.f32.mrb[0].mxu0
    %v7665 = vadd.f32 %v6992, %v7664
    %7666 = vmatprep.mubr.bf16.mxu0 %v5708
    %7667 = vmatmul.mubr.bf16.gmra.mrb[0].mxu0 %v5707
    %v7668 = vpop.f32.mrb[0].mxu0
    %v7669 = vadd.f32 %v6996, %v7668
    %v7670 = vpop.f32.mrb[0].mxu0
    %v7671 = vadd.f32 %v6998, %v7670
    %v7672 = vpop.f32.mrb[0].mxu0
    %v7673 = vadd.f32 %v7000, %v7672
    %v7674 = vpop.f32.mrb[0].mxu0
    %v7675 = vadd.f32 %v7002, %v7674
    %7676 = vmatprep.mubr.bf16.mxu0 %v5712
    %7677 = vmatmul.mubr.bf16.gmra.mrb[0].mxu0 %v5711
    %v7678 = vpop.f32.mrb[0].mxu0
    %v7679 = vadd.f32 %v7006, %v7678
    %v7680 = vpop.f32.mrb[0].mxu0
    %v7681 = vadd.f32 %v7008, %v7680
    %v7682 = vpop.f32.mrb[0].mxu0
    %v7683 = vadd.f32 %v7010, %v7682
    %v7684 = vpop.f32.mrb[0].mxu0
    %v7685 = vadd.f32 %v7012, %v7684
    %7686 = vmatprep.mubr.bf16.mxu0 %v5716
    %7687 = vmatmul.mubr.bf16.gmra.mrb[0].mxu0 %v5715
    %v7688 = vpop.f32.mrb[0].mxu0
    %v7689 = vadd.f32 %v7016, %v7688
    %v7690 = vpop.f32.mrb[0].mxu0
    %v7691 = vadd.f32 %v7018, %v7690
    %v7692 = vpop.f32.mrb[0].mxu0
    %v7693 = vadd.f32 %v7020, %v7692
    %v7694 = vpop.f32.mrb[0].mxu0
    %v7695 = vadd.f32 %v7022, %v7694
    %7696 = vmatprep.mubr.bf16.mxu0 %v5720
    %7697 = vmatmul.mubr.bf16.gmra.mrb[0].mxu0 %v5719
    %v7698 = vpop.f32.mrb[0].mxu0
    %v7699 = vadd.f32 %v7026, %v7698
    %v7700 = vpop.f32.mrb[0].mxu0
    %v7701 = vadd.f32 %v7028, %v7700
    %v7702 = vpop.f32.mrb[0].mxu0
    %v7703 = vadd.f32 %v7030, %v7702
    %v7704 = vpop.f32.mrb[0].mxu0
    %v7705 = vadd.f32 %v7032, %v7704
    %7706 = vmatprep.mubr.bf16.mxu0 %v5724
    %7707 = vmatmul.mubr.bf16.gmra.mrb[0].mxu0 %v5723
    %v7708 = vpop.f32.mrb[0].mxu0
    %v7709 = vadd.f32 %v7036, %v7708
    %v7710 = vpop.f32.mrb[0].mxu0
    %v7711 = vadd.f32 %v7038, %v7710
    %v7712 = vpop.f32.mrb[0].mxu0
    %v7713 = vadd.f32 %v7040, %v7712
    %v7714 = vpop.f32.mrb[0].mxu0
    %v7715 = vadd.f32 %v7042, %v7714
    %7716 = vmatprep.mubr.bf16.mxu0 %v5728
    %7717 = vmatmul.mubr.bf16.gmra.mrb[0].mxu0 %v5727
    %v7718 = vpop.f32.mrb[0].mxu0
    %v7719 = vadd.f32 %v7046, %v7718
    %v7720 = vpop.f32.mrb[0].mxu0
    %v7721 = vadd.f32 %v7048, %v7720
    %v7722 = vpop.f32.mrb[0].mxu0
    %v7723 = vadd.f32 %v7050, %v7722
    %v7724 = vpop.f32.mrb[0].mxu0
    %v7725 = vadd.f32 %v7052, %v7724
    %7726 = vmatprep.mubr.bf16.mxu0 %v5732
    %7727 = vmatmul.mubr.bf16.gmra.mrb[0].mxu0 %v5731
    %v7728 = vpop.f32.mrb[0].mxu0
    %v7729 = vadd.f32 %v7056, %v7728
    %v7730 = vpop.f32.mrb[0].mxu0
    %v7731 = vadd.f32 %v7058, %v7730
    %v7732 = vpop.f32.mrb[0].mxu0
    %v7733 = vadd.f32 %v7060, %v7732
    %v7734 = vpop.f32.mrb[0].mxu0
    %v7735 = vadd.f32 %v7062, %v7734
    %7736 = vmatprep.mubr.bf16.mxu0 %v5736
    %7737 = vmatmul.mubr.bf16.gmra.mrb[0].mxu0 %v5735
    %v7738 = vpop.f32.mrb[0].mxu0
    %v7739 = vadd.f32 %v7066, %v7738
    %v7740 = vpop.f32.mrb[0].mxu0
    %v7741 = vadd.f32 %v7068, %v7740
    %v7742 = vpop.f32.mrb[0].mxu0
    %v7743 = vadd.f32 %v7070, %v7742
    %v7744 = vpop.f32.mrb[0].mxu0
    %v7745 = vadd.f32 %v7072, %v7744
    %7746 = vmatprep.mubr.bf16.mxu0 %v5740
    %7747 = vmatmul.mubr.bf16.gmra.mrb[0].mxu0 %v5739
    %v7748 = vpop.f32.mrb[0].mxu0
    %v7749 = vadd.f32 %v7076, %v7748
    %v7750 = vpop.f32.mrb[0].mxu0
    %v7751 = vadd.f32 %v7078, %v7750
    %v7752 = vpop.f32.mrb[0].mxu0
    %v7753 = vadd.f32 %v7080, %v7752
    %v7754 = vpop.f32.mrb[0].mxu0
    %v7755 = vadd.f32 %v7082, %v7754
    %7756 = vmatprep.mubr.bf16.mxu0 %v5744
    %7757 = vmatmul.mubr.bf16.gmra.mrb[0].mxu0 %v5743
    %v7758 = vpop.f32.mrb[0].mxu0
    %v7759 = vadd.f32 %v7086, %v7758
    %v7760 = vpop.f32.mrb[0].mxu0
    %v7761 = vadd.f32 %v7088, %v7760
    %v7762 = vpop.f32.mrb[0].mxu0
    %v7763 = vadd.f32 %v7090, %v7762
    %v7764 = vpop.f32.mrb[0].mxu0
    %v7765 = vadd.f32 %v7092, %v7764
    %7766 = vmatprep.mubr.bf16.mxu0 %v5748
    %7767 = vmatmul.mubr.bf16.gmra.mrb[0].mxu0 %v5747
    %v7768 = vpop.f32.mrb[0].mxu0
    %v7769 = vadd.f32 %v7096, %v7768
    %v7770 = vpop.f32.mrb[0].mxu0
    %v7771 = vadd.f32 %v7098, %v7770
    %v7772 = vpop.f32.mrb[0].mxu0
    %v7773 = vadd.f32 %v7100, %v7772
    %v7774 = vpop.f32.mrb[0].mxu0
    %v7775 = vadd.f32 %v7102, %v7774
    %7776 = vmatprep.mubr.bf16.mxu0 %v5752
    %7777 = vmatmul.mubr.bf16.gmra.mrb[0].mxu0 %v5751
    %v7778 = vpop.f32.mrb[0].mxu0
    %v7779 = vadd.f32 %v7106, %v7778
    %v7780 = vpop.f32.mrb[0].mxu0
    %v7781 = vadd.f32 %v7108, %v7780
    %v7782 = vpop.f32.mrb[0].mxu0
    %v7783 = vadd.f32 %v7110, %v7782
    %v7784 = vpop.f32.mrb[0].mxu0
    %v7785 = vadd.f32 %v7112, %v7784
    %7786 = vmatprep.mubr.bf16.mxu0 %v5756
    %7787 = vmatmul.mubr.bf16.gmra.mrb[0].mxu0 %v5755
    %v7788 = vpop.f32.mrb[0].mxu0
    %v7789 = vadd.f32 %v7116, %v7788
    %v7790 = vpop.f32.mrb[0].mxu0
    %v7791 = vadd.f32 %v7118, %v7790
    %v7792 = vpop.f32.mrb[0].mxu0
    %v7793 = vadd.f32 %v7120, %v7792
    %v7794 = vpop.f32.mrb[0].mxu0
    %v7795 = vadd.f32 %v7122, %v7794
    %7796 = vmatprep.mubr.bf16.mxu0 %v5760
    %7797 = vmatmul.mubr.bf16.gmra.mrb[0].mxu0 %v5759
    %v7798 = vpop.f32.mrb[0].mxu0
    %v7799 = vadd.f32 %v7126, %v7798
    %v7800 = vpop.f32.mrb[0].mxu0
    %v7801 = vadd.f32 %v7128, %v7800
    %v7802 = vpop.f32.mrb[0].mxu0
    %v7803 = vadd.f32 %v7130, %v7802
    %v7804 = vpop.f32.mrb[0].mxu0
    %v7805 = vadd.f32 %v7132, %v7804
    %7806 = vmatprep.mubr.bf16.mxu0 %v5764
    %7807 = vmatmul.mubr.bf16.gmra.mrb[0].mxu0 %v5763
    %v7808 = vpop.f32.mrb[0].mxu0
    %v7809 = vadd.f32 %v7136, %v7808
    %v7810 = vpop.f32.mrb[0].mxu0
    %v7811 = vadd.f32 %v7138, %v7810
    %v7812 = vpop.f32.mrb[0].mxu0
    %v7813 = vadd.f32 %v7140, %v7812
    %v7814 = vpop.f32.mrb[0].mxu0
    %v7815 = vadd.f32 %v7142, %v7814
    %7816 = vmatprep.mubr.bf16.mxu0 %v5768
    %7817 = vmatmul.mubr.bf16.gmra.mrb[0].mxu0 %v5767
    %v7818 = vpop.f32.mrb[0].mxu0
    %v7819 = vadd.f32 %v7146, %v7818
    %v7820 = vpop.f32.mrb[0].mxu0
    %v7821 = vadd.f32 %v7148, %v7820
    %v7822 = vpop.f32.mrb[0].mxu0
    %v7823 = vadd.f32 %v7150, %v7822
    %v7824 = vpop.f32.mrb[0].mxu0
    %v7825 = vadd.f32 %v7152, %v7824
    %7826 = vmatprep.mubr.bf16.mxu0 %v5772
    %7827 = vmatmul.mubr.bf16.gmra.mrb[0].mxu0 %v5771
    %v7828 = vpop.f32.mrb[0].mxu0
    %v7829 = vadd.f32 %v7156, %v7828
    %v7830 = vpop.f32.mrb[0].mxu0
    %v7831 = vadd.f32 %v7158, %v7830
    %v7832 = vpop.f32.mrb[0].mxu0
    %v7833 = vadd.f32 %v7160, %v7832
    %v7834 = vpop.f32.mrb[0].mxu0
    %v7835 = vadd.f32 %v7162, %v7834
    %7836 = vmatprep.mubr.bf16.mxu0 %v5776
    %7837 = vmatmul.mubr.bf16.gmra.mrb[0].mxu0 %v5775
    %v7838 = vpop.f32.mrb[0].mxu0
    %v7839 = vadd.f32 %v7166, %v7838
    %v7840 = vpop.f32.mrb[0].mxu0
    %v7841 = vadd.f32 %v7168, %v7840
    %v7842 = vpop.f32.mrb[0].mxu0
    %v7843 = vadd.f32 %v7170, %v7842
    %v7844 = vpop.f32.mrb[0].mxu0
    %v7845 = vadd.f32 %v7172, %v7844
    %7846 = vmatprep.mubr.bf16.mxu0 %v5780
    %7847 = vmatmul.mubr.bf16.gmra.mrb[0].mxu0 %v5779
    %v7848 = vpop.f32.mrb[0].mxu0
    %v7849 = vadd.f32 %v7176, %v7848
    %v7850 = vpop.f32.mrb[0].mxu0
    %v7851 = vadd.f32 %v7178, %v7850
    %v7852 = vpop.f32.mrb[0].mxu0
    %v7853 = vadd.f32 %v7180, %v7852
    %v7854 = vpop.f32.mrb[0].mxu0
    %v7855 = vadd.f32 %v7182, %v7854
    %7856 = vmatprep.mubr.bf16.mxu0 %v5784
    %7857 = vmatmul.mubr.bf16.gmra.mrb[0].mxu0 %v5783
    %v7858 = vpop.f32.mrb[0].mxu0
    %v7859 = vadd.f32 %v7186, %v7858
    %v7860 = vpop.f32.mrb[0].mxu0
    %v7861 = vadd.f32 %v7188, %v7860
    %v7862 = vpop.f32.mrb[0].mxu0
    %v7863 = vadd.f32 %v7190, %v7862
    %v7864 = vpop.f32.mrb[0].mxu0
    %v7865 = vadd.f32 %v7192, %v7864
    %7866 = vmatprep.mubr.bf16.mxu0 %v5788
    %7867 = vmatmul.mubr.bf16.gmra.mrb[0].mxu0 %v5787
    %v7868 = vpop.f32.mrb[0].mxu0
    %v7869 = vadd.f32 %v7196, %v7868
    %v7870 = vpop.f32.mrb[0].mxu0
    %v7871 = vadd.f32 %v7198, %v7870
    %v7872 = vpop.f32.mrb[0].mxu0
    %v7873 = vadd.f32 %v7200, %v7872
    %v7874 = vpop.f32.mrb[0].mxu0
    %v7875 = vadd.f32 %v7202, %v7874
    %7876 = vmatprep.mubr.bf16.mxu0 %v5792
    %7877 = vmatmul.mubr.bf16.gmra.mrb[0].mxu0 %v5791
    %v7878 = vpop.f32.mrb[0].mxu0
    %v7879 = vadd.f32 %v7206, %v7878
    %v7880 = vpop.f32.mrb[0].mxu0
    %v7881 = vadd.f32 %v7208, %v7880
    %v7882 = vpop.f32.mrb[0].mxu0
    %v7883 = vadd.f32 %v7210, %v7882
    %v7884 = vpop.f32.mrb[0].mxu0
    %v7885 = vadd.f32 %v7212, %v7884
    %7886 = vmatprep.mubr.bf16.mxu0 %v5796
    %7887 = vmatmul.mubr.bf16.gmra.mrb[0].mxu0 %v5795
    %v7888 = vpop.f32.mrb[0].mxu0
    %v7889 = vadd.f32 %v7216, %v7888
    %v7890 = vpop.f32.mrb[0].mxu0
    %v7891 = vadd.f32 %v7218, %v7890
    %v7892 = vpop.f32.mrb[0].mxu0
    %v7893 = vadd.f32 %v7220, %v7892
    %v7894 = vpop.f32.mrb[0].mxu0
    %v7895 = vadd.f32 %v7222, %v7894
    %7896 = vmatprep.mubr.bf16.mxu0 %v5800
    %7897 = vmatmul.mubr.bf16.gmra.mrb[0].mxu0 %v5799
    %v7898 = vpop.f32.mrb[0].mxu0
    %v7899 = vadd.f32 %v7226, %v7898
    %v7900 = vpop.f32.mrb[0].mxu0
    %v7901 = vadd.f32 %v7228, %v7900
    %v7902 = vpop.f32.mrb[0].mxu0
    %v7903 = vadd.f32 %v7230, %v7902
    %v7904 = vpop.f32.mrb[0].mxu0
    %v7905 = vadd.f32 %v7232, %v7904
    %7906 = vmatprep.mubr.bf16.mxu0 %v5804
    %7907 = vmatmul.mubr.bf16.gmra.mrb[0].mxu0 %v5803
    %v7908 = vpop.f32.mrb[0].mxu0
    %v7909 = vadd.f32 %v7236, %v7908
    %v7910 = vpop.f32.mrb[0].mxu0
    %v7911 = vadd.f32 %v7238, %v7910
    %v7912 = vpop.f32.mrb[0].mxu0
    %v7913 = vadd.f32 %v7240, %v7912
    %v7914 = vpop.f32.mrb[0].mxu0
    %v7915 = vadd.f32 %v7242, %v7914
    %7916 = vmatprep.mubr.bf16.mxu0 %v5808
    %7917 = vmatmul.mubr.bf16.gmra.mrb[0].mxu0 %v5807
    %v7918 = vpop.f32.mrb[0].mxu0
    %v7919 = vadd.f32 %v7246, %v7918
    %v7920 = vpop.f32.mrb[0].mxu0
    %v7921 = vadd.f32 %v7248, %v7920
    %v7922 = vpop.f32.mrb[0].mxu0
    %v7923 = vadd.f32 %v7250, %v7922
    %v7924 = vpop.f32.mrb[0].mxu0
    %v7925 = vadd.f32 %v7252, %v7924
    %7926 = vmatprep.mubr.bf16.mxu0 %v5812
    %7927 = vmatmul.mubr.bf16.gmra.mrb[0].mxu0 %v5811
    %v7928 = vpop.f32.mrb[0].mxu0
    %v7929 = vadd.f32 %v7256, %v7928
    %v7930 = vpop.f32.mrb[0].mxu0
    %v7931 = vadd.f32 %v7258, %v7930
    %v7932 = vpop.f32.mrb[0].mxu0
    %v7933 = vadd.f32 %v7260, %v7932
    %v7934 = vpop.f32.mrb[0].mxu0
    %v7935 = vadd.f32 %v7262, %v7934
    %7936 = vmatprep.mubr.bf16.mxu0 %v5816
    %7937 = vmatmul.mubr.bf16.gmra.mrb[0].mxu0 %v5815
    %v7938 = vpop.f32.mrb[0].mxu0
    %v7939 = vadd.f32 %v7266, %v7938
    %v7940 = vpop.f32.mrb[0].mxu0
    %v7941 = vadd.f32 %v7268, %v7940
    %v7942 = vpop.f32.mrb[0].mxu0
    %v7943 = vadd.f32 %v7270, %v7942
    %v7944 = vpop.f32.mrb[0].mxu0
    %v7945 = vadd.f32 %v7272, %v7944
    %7946 = vmatprep.mubr.bf16.mxu0 %v5820
    %7947 = vmatmul.mubr.bf16.gmra.mrb[0].mxu0 %v5819
    %v7948 = vpop.f32.mrb[0].mxu0
    %v7949 = vadd.f32 %v7276, %v7948
    %v7950 = vpop.f32.mrb[0].mxu0
    %v7951 = vadd.f32 %v7278, %v7950
    %v7952 = vpop.f32.mrb[0].mxu0
    %v7953 = vadd.f32 %v7280, %v7952
    %v7954 = vpop.f32.mrb[0].mxu0
    %v7955 = vadd.f32 %v7282, %v7954
    %7956 = vdwg.mxu0
    %7957 = vmatprep.subr.bf16.mxu0 %v6358
    %7958 = vmatpush1.bf16.msra.mxu0 %v6357
    %7959 = vmatprep.subr.bf16.mxu0 %v6362
    %7960 = vmatpush1.bf16.msra.mxu0 %v6361
    %7961 = vmatprep.subr.bf16.mxu0 %v6366
    %7962 = vmatpush1.bf16.msra.mxu0 %v6365
    %7963 = vmatprep.subr.bf16.mxu0 %v6370
    %7964 = vmatpush1.bf16.msra.mxu0 %v6369
    %7965 = vmatprep.subr.bf16.mxu0 %v6374
    %7966 = vmatpush1.bf16.msra.mxu0 %v6373
    %7967 = vmatprep.subr.bf16.mxu0 %v6378
    %7968 = vmatpush1.bf16.msra.mxu0 %v6377
    %7969 = vmatprep.subr.bf16.mxu0 %v6382
    %7970 = vmatpush1.bf16.msra.mxu0 %v6381
    %7971 = vmatprep.subr.bf16.mxu0 %v6386
    %7972 = vmatpush1.bf16.msra.mxu0 %v6385
    %7973 = vmatprep.subr.bf16.mxu0 %v6390
    %7974 = vmatpush1.bf16.msra.mxu0 %v6389
    %7975 = vmatprep.subr.bf16.mxu0 %v6394
    %7976 = vmatpush1.bf16.msra.mxu0 %v6393
    %7977 = vmatprep.subr.bf16.mxu0 %v6398
    %7978 = vmatpush1.bf16.msra.mxu0 %v6397
    %7979 = vmatprep.subr.bf16.mxu0 %v6402
    %7980 = vmatpush1.bf16.msra.mxu0 %v6401
    %7981 = vmatprep.subr.bf16.mxu0 %v6406
    %7982 = vmatpush1.bf16.msra.mxu0 %v6405
    %7983 = vmatprep.subr.bf16.mxu0 %v6410
    %7984 = vmatpush1.bf16.msra.mxu0 %v6409
    %7985 = vmatprep.subr.bf16.mxu0 %v6414
    %7986 = vmatpush1.bf16.msra.mxu0 %v6413
    %7987 = vmatprep.subr.bf16.mxu0 %v6418
    %7988 = vmatpush1.bf16.msra.mxu0 %v6417
    %7989 = vmatprep.mubr.bf16.mxu0 %v5566
    %7990 = vmatmul.mubr.bf16.gmra.mrb[0].mxu0 %v5565
    %v7991 = vpop.f32.mrb[0].mxu0
    %v7992 = vadd.f32 %v5962, %v7991
    %v7993 = vpop.f32.mrb[0].mxu0
    %v7994 = vadd.f32 %v5966, %v7993
    %v7995 = vpop.f32.mrb[0].mxu0
    %v7996 = vadd.f32 %v5962, %v7995
    %v7997 = vpop.f32.mrb[0].mxu0
    %v7998 = vadd.f32 %v5966, %v7997
    %7999 = vmatprep.mubr.bf16.mxu0 %v5570
    %8000 = vmatmul.mubr.bf16.gmra.mrb[0].mxu0 %v5569
    %v8001 = vpop.f32.mrb[0].mxu0
    %v8002 = vadd.f32 %v5962, %v8001
    %v8003 = vpop.f32.mrb[0].mxu0
    %v8004 = vadd.f32 %v5966, %v8003
    %v8005 = vpop.f32.mrb[0].mxu0
    %v8006 = vadd.f32 %v5962, %v8005
    %v8007 = vpop.f32.mrb[0].mxu0
    %v8008 = vadd.f32 %v5966, %v8007
    %8009 = vmatprep.mubr.bf16.mxu0 %v5574
    %8010 = vmatmul.mubr.bf16.gmra.mrb[0].mxu0 %v5573
    %v8011 = vpop.f32.mrb[0].mxu0
    %v8012 = vadd.f32 %v5962, %v8011
    %v8013 = vpop.f32.mrb[0].mxu0
    %v8014 = vadd.f32 %v5966, %v8013
    %v8015 = vpop.f32.mrb[0].mxu0
    %v8016 = vadd.f32 %v5962, %v8015
    %v8017 = vpop.f32.mrb[0].mxu0
    %v8018 = vadd.f32 %v5966, %v8017
    %8019 = vmatprep.mubr.bf16.mxu0 %v5578
    %8020 = vmatmul.mubr.bf16.gmra.mrb[0].mxu0 %v5577
    %v8021 = vpop.f32.mrb[0].mxu0
    %v8022 = vadd.f32 %v5962, %v8021
    %v8023 = vpop.f32.mrb[0].mxu0
    %v8024 = vadd.f32 %v5966, %v8023
    %v8025 = vpop.f32.mrb[0].mxu0
    %v8026 = vadd.f32 %v5962, %v8025
    %v8027 = vpop.f32.mrb[0].mxu0
    %v8028 = vadd.f32 %v5966, %v8027
    %8029 = vmatprep.mubr.bf16.mxu0 %v5582
    %8030 = vmatmul.mubr.bf16.gmra.mrb[0].mxu0 %v5581
    %v8031 = vpop.f32.mrb[0].mxu0
    %v8032 = vadd.f32 %v5962, %v8031
    %v8033 = vpop.f32.mrb[0].mxu0
    %v8034 = vadd.f32 %v5966, %v8033
    %v8035 = vpop.f32.mrb[0].mxu0
    %v8036 = vadd.f32 %v5962, %v8035
    %v8037 = vpop.f32.mrb[0].mxu0
    %v8038 = vadd.f32 %v5966, %v8037
    %8039 = vmatprep.mubr.bf16.mxu0 %v5586
    %8040 = vmatmul.mubr.bf16.gmra.mrb[0].mxu0 %v5585
    %v8041 = vpop.f32.mrb[0].mxu0
    %v8042 = vadd.f32 %v5962, %v8041
    %v8043 = vpop.f32.mrb[0].mxu0
    %v8044 = vadd.f32 %v5966, %v8043
    %v8045 = vpop.f32.mrb[0].mxu0
    %v8046 = vadd.f32 %v5962, %v8045
    %v8047 = vpop.f32.mrb[0].mxu0
    %v8048 = vadd.f32 %v5966, %v8047
    %8049 = vmatprep.mubr.bf16.mxu0 %v5590
    %8050 = vmatmul.mubr.bf16.gmra.mrb[0].mxu0 %v5589
    %v8051 = vpop.f32.mrb[0].mxu0
    %v8052 = vadd.f32 %v5962, %v8051
    %v8053 = vpop.f32.mrb[0].mxu0
    %v8054 = vadd.f32 %v5966, %v8053
    %v8055 = vpop.f32.mrb[0].mxu0
    %v8056 = vadd.f32 %v5962, %v8055
    %v8057 = vpop.f32.mrb[0].mxu0
    %v8058 = vadd.f32 %v5966, %v8057
    %8059 = vmatprep.mubr.bf16.mxu0 %v5594
    %8060 = vmatmul.mubr.bf16.gmra.mrb[0].mxu0 %v5593
    %v8061 = vpop.f32.mrb[0].mxu0
    %v8062 = vadd.f32 %v5962, %v8061
    %v8063 = vpop.f32.mrb[0].mxu0
    %v8064 = vadd.f32 %v5966, %v8063
    %v8065 = vpop.f32.mrb[0].mxu0
    %v8066 = vadd.f32 %v5962, %v8065
    %v8067 = vpop.f32.mrb[0].mxu0
    %v8068 = vadd.f32 %v5966, %v8067
    %8069 = vmatprep.mubr.bf16.mxu0 %v5598
    %8070 = vmatmul.mubr.bf16.gmra.mrb[0].mxu0 %v5597
    %v8071 = vpop.f32.mrb[0].mxu0
    %v8072 = vadd.f32 %v5962, %v8071
    %v8073 = vpop.f32.mrb[0].mxu0
    %v8074 = vadd.f32 %v5966, %v8073
    %v8075 = vpop.f32.mrb[0].mxu0
    %v8076 = vadd.f32 %v5962, %v8075
    %v8077 = vpop.f32.mrb[0].mxu0
    %v8078 = vadd.f32 %v5966, %v8077
    %8079 = vmatprep.mubr.bf16.mxu0 %v5602
    %8080 = vmatmul.mubr.bf16.gmra.mrb[0].mxu0 %v5601
    %v8081 = vpop.f32.mrb[0].mxu0
    %v8082 = vadd.f32 %v5962, %v8081
    %v8083 = vpop.f32.mrb[0].mxu0
    %v8084 = vadd.f32 %v5966, %v8083
    %v8085 = vpop.f32.mrb[0].mxu0
    %v8086 = vadd.f32 %v5962, %v8085
    %v8087 = vpop.f32.mrb[0].mxu0
    %v8088 = vadd.f32 %v5966, %v8087
    %8089 = vmatprep.mubr.bf16.mxu0 %v5606
    %8090 = vmatmul.mubr.bf16.gmra.mrb[0].mxu0 %v5605
    %v8091 = vpop.f32.mrb[0].mxu0
    %v8092 = vadd.f32 %v5962, %v8091
    %v8093 = vpop.f32.mrb[0].mxu0
    %v8094 = vadd.f32 %v5966, %v8093
    %v8095 = vpop.f32.mrb[0].mxu0
    %v8096 = vadd.f32 %v5962, %v8095
    %v8097 = vpop.f32.mrb[0].mxu0
    %v8098 = vadd.f32 %v5966, %v8097
    %8099 = vmatprep.mubr.bf16.mxu0 %v5610
    %8100 = vmatmul.mubr.bf16.gmra.mrb[0].mxu0 %v5609
    %v8101 = vpop.f32.mrb[0].mxu0
    %v8102 = vadd.f32 %v5962, %v8101
    %v8103 = vpop.f32.mrb[0].mxu0
    %v8104 = vadd.f32 %v5966, %v8103
    %v8105 = vpop.f32.mrb[0].mxu0
    %v8106 = vadd.f32 %v5962, %v8105
    %v8107 = vpop.f32.mrb[0].mxu0
    %v8108 = vadd.f32 %v5966, %v8107
    %8109 = vmatprep.mubr.bf16.mxu0 %v5614
    %8110 = vmatmul.mubr.bf16.gmra.mrb[0].mxu0 %v5613
    %v8111 = vpop.f32.mrb[0].mxu0
    %v8112 = vadd.f32 %v5962, %v8111
    %v8113 = vpop.f32.mrb[0].mxu0
    %v8114 = vadd.f32 %v5966, %v8113
    %v8115 = vpop.f32.mrb[0].mxu0
    %v8116 = vadd.f32 %v5962, %v8115
    %v8117 = vpop.f32.mrb[0].mxu0
    %v8118 = vadd.f32 %v5966, %v8117
    %8119 = vmatprep.mubr.bf16.mxu0 %v5618
    %8120 = vmatmul.mubr.bf16.gmra.mrb[0].mxu0 %v5617
    %v8121 = vpop.f32.mrb[0].mxu0
    %v8122 = vadd.f32 %v5962, %v8121
    %v8123 = vpop.f32.mrb[0].mxu0
    %v8124 = vadd.f32 %v5966, %v8123
    %v8125 = vpop.f32.mrb[0].mxu0
    %v8126 = vadd.f32 %v5962, %v8125
    %v8127 = vpop.f32.mrb[0].mxu0
    %v8128 = vadd.f32 %v5966, %v8127
    %8129 = vmatprep.mubr.bf16.mxu0 %v5622
    %8130 = vmatmul.mubr.bf16.gmra.mrb[0].mxu0 %v5621
    %v8131 = vpop.f32.mrb[0].mxu0
    %v8132 = vadd.f32 %v5962, %v8131
    %v8133 = vpop.f32.mrb[0].mxu0
    %v8134 = vadd.f32 %v5966, %v8133
    %v8135 = vpop.f32.mrb[0].mxu0
    %v8136 = vadd.f32 %v5962, %v8135
    %v8137 = vpop.f32.mrb[0].mxu0
    %v8138 = vadd.f32 %v5966, %v8137
    %8139 = vmatprep.mubr.bf16.mxu0 %v5626
    %8140 = vmatmul.mubr.bf16.gmra.mrb[0].mxu0 %v5625
    %v8141 = vpop.f32.mrb[0].mxu0
    %v8142 = vadd.f32 %v5962, %v8141
    %v8143 = vpop.f32.mrb[0].mxu0
    %v8144 = vadd.f32 %v5966, %v8143
    %v8145 = vpop.f32.mrb[0].mxu0
    %v8146 = vadd.f32 %v5962, %v8145
    %v8147 = vpop.f32.mrb[0].mxu0
    %v8148 = vadd.f32 %v5966, %v8147
    %8149 = vmatprep.mubr.bf16.mxu0 %v5630
    %8150 = vmatmul.mubr.bf16.gmra.mrb[0].mxu0 %v5629
    %v8151 = vpop.f32.mrb[0].mxu0
    %v8152 = vadd.f32 %v5962, %v8151
    %v8153 = vpop.f32.mrb[0].mxu0
    %v8154 = vadd.f32 %v5966, %v8153
    %v8155 = vpop.f32.mrb[0].mxu0
    %v8156 = vadd.f32 %v5962, %v8155
    %v8157 = vpop.f32.mrb[0].mxu0
    %v8158 = vadd.f32 %v5966, %v8157
    %8159 = vmatprep.mubr.bf16.mxu0 %v5634
    %8160 = vmatmul.mubr.bf16.gmra.mrb[0].mxu0 %v5633
    %v8161 = vpop.f32.mrb[0].mxu0
    %v8162 = vadd.f32 %v5962, %v8161
    %v8163 = vpop.f32.mrb[0].mxu0
    %v8164 = vadd.f32 %v5966, %v8163
    %v8165 = vpop.f32.mrb[0].mxu0
    %v8166 = vadd.f32 %v5962, %v8165
    %v8167 = vpop.f32.mrb[0].mxu0
    %v8168 = vadd.f32 %v5966, %v8167
    %8169 = vmatprep.mubr.bf16.mxu0 %v5638
    %8170 = vmatmul.mubr.bf16.gmra.mrb[0].mxu0 %v5637
    %v8171 = vpop.f32.mrb[0].mxu0
    %v8172 = vadd.f32 %v5962, %v8171
    %v8173 = vpop.f32.mrb[0].mxu0
    %v8174 = vadd.f32 %v5966, %v8173
    %v8175 = vpop.f32.mrb[0].mxu0
    %v8176 = vadd.f32 %v5962, %v8175
    %v8177 = vpop.f32.mrb[0].mxu0
    %v8178 = vadd.f32 %v5966, %v8177
    %8179 = vmatprep.mubr.bf16.mxu0 %v5642
    %8180 = vmatmul.mubr.bf16.gmra.mrb[0].mxu0 %v5641
    %v8181 = vpop.f32.mrb[0].mxu0
    %v8182 = vadd.f32 %v5962, %v8181
    %v8183 = vpop.f32.mrb[0].mxu0
    %v8184 = vadd.f32 %v5966, %v8183
    %v8185 = vpop.f32.mrb[0].mxu0
    %v8186 = vadd.f32 %v5962, %v8185
    %v8187 = vpop.f32.mrb[0].mxu0
    %v8188 = vadd.f32 %v5966, %v8187
    %8189 = vmatprep.mubr.bf16.mxu0 %v5646
    %8190 = vmatmul.mubr.bf16.gmra.mrb[0].mxu0 %v5645
    %v8191 = vpop.f32.mrb[0].mxu0
    %v8192 = vadd.f32 %v5962, %v8191
    %v8193 = vpop.f32.mrb[0].mxu0
    %v8194 = vadd.f32 %v5966, %v8193
    %v8195 = vpop.f32.mrb[0].mxu0
    %v8196 = vadd.f32 %v5962, %v8195
    %v8197 = vpop.f32.mrb[0].mxu0
    %v8198 = vadd.f32 %v5966, %v8197
    %8199 = vmatprep.mubr.bf16.mxu0 %v5650
    %8200 = vmatmul.mubr.bf16.gmra.mrb[0].mxu0 %v5649
    %v8201 = vpop.f32.mrb[0].mxu0
    %v8202 = vadd.f32 %v5962, %v8201
    %v8203 = vpop.f32.mrb[0].mxu0
    %v8204 = vadd.f32 %v5966, %v8203
    %v8205 = vpop.f32.mrb[0].mxu0
    %v8206 = vadd.f32 %v5962, %v8205
    %v8207 = vpop.f32.mrb[0].mxu0
    %v8208 = vadd.f32 %v5966, %v8207
    %8209 = vmatprep.mubr.bf16.mxu0 %v5654
    %8210 = vmatmul.mubr.bf16.gmra.mrb[0].mxu0 %v5653
    %v8211 = vpop.f32.mrb[0].mxu0
    %v8212 = vadd.f32 %v5962, %v8211
    %v8213 = vpop.f32.mrb[0].mxu0
    %v8214 = vadd.f32 %v5966, %v8213
    %v8215 = vpop.f32.mrb[0].mxu0
    %v8216 = vadd.f32 %v5962, %v8215
    %v8217 = vpop.f32.mrb[0].mxu0
    %v8218 = vadd.f32 %v5966, %v8217
    %8219 = vmatprep.mubr.bf16.mxu0 %v5658
    %8220 = vmatmul.mubr.bf16.gmra.mrb[0].mxu0 %v5657
    %v8221 = vpop.f32.mrb[0].mxu0
    %v8222 = vadd.f32 %v5962, %v8221
    %v8223 = vpop.f32.mrb[0].mxu0
    %v8224 = vadd.f32 %v5966, %v8223
    %v8225 = vpop.f32.mrb[0].mxu0
    %v8226 = vadd.f32 %v5962, %v8225
    %v8227 = vpop.f32.mrb[0].mxu0
    %v8228 = vadd.f32 %v5966, %v8227
    %8229 = vmatprep.mubr.bf16.mxu0 %v5662
    %8230 = vmatmul.mubr.bf16.gmra.mrb[0].mxu0 %v5661
    %v8231 = vpop.f32.mrb[0].mxu0
    %v8232 = vadd.f32 %v5962, %v8231
    %v8233 = vpop.f32.mrb[0].mxu0
    %v8234 = vadd.f32 %v5966, %v8233
    %v8235 = vpop.f32.mrb[0].mxu0
    %v8236 = vadd.f32 %v5962, %v8235
    %v8237 = vpop.f32.mrb[0].mxu0
    %v8238 = vadd.f32 %v5966, %v8237
    %8239 = vmatprep.mubr.bf16.mxu0 %v5666
    %8240 = vmatmul.mubr.bf16.gmra.mrb[0].mxu0 %v5665
    %v8241 = vpop.f32.mrb[0].mxu0
    %v8242 = vadd.f32 %v5962, %v8241
    %v8243 = vpop.f32.mrb[0].mxu0
    %v8244 = vadd.f32 %v5966, %v8243
    %v8245 = vpop.f32.mrb[0].mxu0
    %v8246 = vadd.f32 %v5962, %v8245
    %v8247 = vpop.f32.mrb[0].mxu0
    %v8248 = vadd.f32 %v5966, %v8247
    %8249 = vmatprep.mubr.bf16.mxu0 %v5670
    %8250 = vmatmul.mubr.bf16.gmra.mrb[0].mxu0 %v5669
    %v8251 = vpop.f32.mrb[0].mxu0
    %v8252 = vadd.f32 %v5962, %v8251
    %v8253 = vpop.f32.mrb[0].mxu0
    %v8254 = vadd.f32 %v5966, %v8253
    %v8255 = vpop.f32.mrb[0].mxu0
    %v8256 = vadd.f32 %v5962, %v8255
    %v8257 = vpop.f32.mrb[0].mxu0
    %v8258 = vadd.f32 %v5966, %v8257
    %8259 = vmatprep.mubr.bf16.mxu0 %v5674
    %8260 = vmatmul.mubr.bf16.gmra.mrb[0].mxu0 %v5673
    %v8261 = vpop.f32.mrb[0].mxu0
    %v8262 = vadd.f32 %v5962, %v8261
    %v8263 = vpop.f32.mrb[0].mxu0
    %v8264 = vadd.f32 %v5966, %v8263
    %v8265 = vpop.f32.mrb[0].mxu0
    %v8266 = vadd.f32 %v5962, %v8265
    %v8267 = vpop.f32.mrb[0].mxu0
    %v8268 = vadd.f32 %v5966, %v8267
    %8269 = vmatprep.mubr.bf16.mxu0 %v5678
    %8270 = vmatmul.mubr.bf16.gmra.mrb[0].mxu0 %v5677
    %v8271 = vpop.f32.mrb[0].mxu0
    %v8272 = vadd.f32 %v5962, %v8271
    %v8273 = vpop.f32.mrb[0].mxu0
    %v8274 = vadd.f32 %v5966, %v8273
    %v8275 = vpop.f32.mrb[0].mxu0
    %v8276 = vadd.f32 %v5962, %v8275
    %v8277 = vpop.f32.mrb[0].mxu0
    %v8278 = vadd.f32 %v5966, %v8277
    %8279 = vmatprep.mubr.bf16.mxu0 %v5682
    %8280 = vmatmul.mubr.bf16.gmra.mrb[0].mxu0 %v5681
    %v8281 = vpop.f32.mrb[0].mxu0
    %v8282 = vadd.f32 %v5962, %v8281
    %v8283 = vpop.f32.mrb[0].mxu0
    %v8284 = vadd.f32 %v5966, %v8283
    %v8285 = vpop.f32.mrb[0].mxu0
    %v8286 = vadd.f32 %v5962, %v8285
    %v8287 = vpop.f32.mrb[0].mxu0
    %v8288 = vadd.f32 %v5966, %v8287
    %8289 = vmatprep.mubr.bf16.mxu0 %v5686
    %8290 = vmatmul.mubr.bf16.gmra.mrb[0].mxu0 %v5685
    %v8291 = vpop.f32.mrb[0].mxu0
    %v8292 = vadd.f32 %v5962, %v8291
    %v8293 = vpop.f32.mrb[0].mxu0
    %v8294 = vadd.f32 %v5966, %v8293
    %v8295 = vpop.f32.mrb[0].mxu0
    %v8296 = vadd.f32 %v5962, %v8295
    %v8297 = vpop.f32.mrb[0].mxu0
    %v8298 = vadd.f32 %v5966, %v8297
    %8299 = vmatprep.mubr.bf16.mxu0 %v5690
    %8300 = vmatmul.mubr.bf16.gmra.mrb[0].mxu0 %v5689
    %v8301 = vpop.f32.mrb[0].mxu0
    %v8302 = vadd.f32 %v5962, %v8301
    %v8303 = vpop.f32.mrb[0].mxu0
    %v8304 = vadd.f32 %v5966, %v8303
    %v8305 = vpop.f32.mrb[0].mxu0
    %v8306 = vadd.f32 %v5962, %v8305
    %v8307 = vpop.f32.mrb[0].mxu0
    %v8308 = vadd.f32 %v5966, %v8307
    %8309 = vmatprep.mubr.bf16.mxu0 %v5694
    %8310 = vmatmul.mubr.bf16.gmra.mrb[0].mxu0 %v5693
    %v8311 = vpop.f32.mrb[0].mxu0
    %v8312 = vadd.f32 %v5962, %v8311
    %v8313 = vpop.f32.mrb[0].mxu0
    %v8314 = vadd.f32 %v5966, %v8313
    %v8315 = vpop.f32.mrb[0].mxu0
    %v8316 = vadd.f32 %v5962, %v8315
    %v8317 = vpop.f32.mrb[0].mxu0
    %v8318 = vadd.f32 %v5966, %v8317
    %8319 = vmatprep.mubr.bf16.mxu0 %v5698
    %8320 = vmatmul.mubr.bf16.gmra.mrb[0].mxu0 %v5697
    %v8321 = vpop.f32.mrb[0].mxu0
    %v8322 = vadd.f32 %v5962, %v8321
    %v8323 = vpop.f32.mrb[0].mxu0
    %v8324 = vadd.f32 %v5966, %v8323
    %v8325 = vpop.f32.mrb[0].mxu0
    %v8326 = vadd.f32 %v5962, %v8325
    %v8327 = vpop.f32.mrb[0].mxu0
    %v8328 = vadd.f32 %v5966, %v8327
    %8329 = vmatprep.mubr.bf16.mxu0 %v5702
    %8330 = vmatmul.mubr.bf16.gmra.mrb[0].mxu0 %v5701
    %v8331 = vpop.f32.mrb[0].mxu0
    %v8332 = vadd.f32 %v5962, %v8331
    %v8333 = vpop.f32.mrb[0].mxu0
    %v8334 = vadd.f32 %v5966, %v8333
    %v8335 = vpop.f32.mrb[0].mxu0
    %v8336 = vadd.f32 %v5962, %v8335
    %v8337 = vpop.f32.mrb[0].mxu0
    %v8338 = vadd.f32 %v5966, %v8337
    %8339 = vmatprep.mubr.bf16.mxu0 %v5706
    %8340 = vmatmul.mubr.bf16.gmra.mrb[0].mxu0 %v5705
    %v8341 = vpop.f32.mrb[0].mxu0
    %v8342 = vadd.f32 %v5962, %v8341
    %v8343 = vpop.f32.mrb[0].mxu0
    %v8344 = vadd.f32 %v5966, %v8343
    %v8345 = vpop.f32.mrb[0].mxu0
    %v8346 = vadd.f32 %v5962, %v8345
    %v8347 = vpop.f32.mrb[0].mxu0
    %v8348 = vadd.f32 %v5966, %v8347
    %8349 = vmatprep.mubr.bf16.mxu0 %v5710
    %8350 = vmatmul.mubr.bf16.gmra.mrb[0].mxu0 %v5709
    %v8351 = vpop.f32.mrb[0].mxu0
    %v8352 = vadd.f32 %v5962, %v8351
    %v8353 = vpop.f32.mrb[0].mxu0
    %v8354 = vadd.f32 %v5966, %v8353
    %v8355 = vpop.f32.mrb[0].mxu0
    %v8356 = vadd.f32 %v5962, %v8355
    %v8357 = vpop.f32.mrb[0].mxu0
    %v8358 = vadd.f32 %v5966, %v8357
    %8359 = vmatprep.mubr.bf16.mxu0 %v5714
    %8360 = vmatmul.mubr.bf16.gmra.mrb[0].mxu0 %v5713
    %v8361 = vpop.f32.mrb[0].mxu0
    %v8362 = vadd.f32 %v5962, %v8361
    %v8363 = vpop.f32.mrb[0].mxu0
    %v8364 = vadd.f32 %v5966, %v8363
    %v8365 = vpop.f32.mrb[0].mxu0
    %v8366 = vadd.f32 %v5962, %v8365
    %v8367 = vpop.f32.mrb[0].mxu0
    %v8368 = vadd.f32 %v5966, %v8367
    %8369 = vmatprep.mubr.bf16.mxu0 %v5718
    %8370 = vmatmul.mubr.bf16.gmra.mrb[0].mxu0 %v5717
    %v8371 = vpop.f32.mrb[0].mxu0
    %v8372 = vadd.f32 %v5962, %v8371
    %v8373 = vpop.f32.mrb[0].mxu0
    %v8374 = vadd.f32 %v5966, %v8373
    %v8375 = vpop.f32.mrb[0].mxu0
    %v8376 = vadd.f32 %v5962, %v8375
    %v8377 = vpop.f32.mrb[0].mxu0
    %v8378 = vadd.f32 %v5966, %v8377
    %8379 = vmatprep.mubr.bf16.mxu0 %v5722
    %8380 = vmatmul.mubr.bf16.gmra.mrb[0].mxu0 %v5721
    %v8381 = vpop.f32.mrb[0].mxu0
    %v8382 = vadd.f32 %v5962, %v8381
    %v8383 = vpop.f32.mrb[0].mxu0
    %v8384 = vadd.f32 %v5966, %v8383
    %v8385 = vpop.f32.mrb[0].mxu0
    %v8386 = vadd.f32 %v5962, %v8385
    %v8387 = vpop.f32.mrb[0].mxu0
    %v8388 = vadd.f32 %v5966, %v8387
    %8389 = vmatprep.mubr.bf16.mxu0 %v5726
    %8390 = vmatmul.mubr.bf16.gmra.mrb[0].mxu0 %v5725
    %v8391 = vpop.f32.mrb[0].mxu0
    %v8392 = vadd.f32 %v5962, %v8391
    %v8393 = vpop.f32.mrb[0].mxu0
    %v8394 = vadd.f32 %v5966, %v8393
    %v8395 = vpop.f32.mrb[0].mxu0
    %v8396 = vadd.f32 %v5962, %v8395
    %v8397 = vpop.f32.mrb[0].mxu0
    %v8398 = vadd.f32 %v5966, %v8397
    %8399 = vmatprep.mubr.bf16.mxu0 %v5730
    %8400 = vmatmul.mubr.bf16.gmra.mrb[0].mxu0 %v5729
    %v8401 = vpop.f32.mrb[0].mxu0
    %v8402 = vadd.f32 %v5962, %v8401
    %v8403 = vpop.f32.mrb[0].mxu0
    %v8404 = vadd.f32 %v5966, %v8403
    %v8405 = vpop.f32.mrb[0].mxu0
    %v8406 = vadd.f32 %v5962, %v8405
    %v8407 = vpop.f32.mrb[0].mxu0
    %v8408 = vadd.f32 %v5966, %v8407
    %8409 = vmatprep.mubr.bf16.mxu0 %v5734
    %8410 = vmatmul.mubr.bf16.gmra.mrb[0].mxu0 %v5733
    %v8411 = vpop.f32.mrb[0].mxu0
    %v8412 = vadd.f32 %v5962, %v8411
    %v8413 = vpop.f32.mrb[0].mxu0
    %v8414 = vadd.f32 %v5966, %v8413
    %v8415 = vpop.f32.mrb[0].mxu0
    %v8416 = vadd.f32 %v5962, %v8415
    %v8417 = vpop.f32.mrb[0].mxu0
    %v8418 = vadd.f32 %v5966, %v8417
    %8419 = vmatprep.mubr.bf16.mxu0 %v5738
    %8420 = vmatmul.mubr.bf16.gmra.mrb[0].mxu0 %v5737
    %v8421 = vpop.f32.mrb[0].mxu0
    %v8422 = vadd.f32 %v5962, %v8421
    %v8423 = vpop.f32.mrb[0].mxu0
    %v8424 = vadd.f32 %v5966, %v8423
    %v8425 = vpop.f32.mrb[0].mxu0
    %v8426 = vadd.f32 %v5962, %v8425
    %v8427 = vpop.f32.mrb[0].mxu0
    %v8428 = vadd.f32 %v5966, %v8427
    %8429 = vmatprep.mubr.bf16.mxu0 %v5742
    %8430 = vmatmul.mubr.bf16.gmra.mrb[0].mxu0 %v5741
    %v8431 = vpop.f32.mrb[0].mxu0
    %v8432 = vadd.f32 %v5962, %v8431
    %v8433 = vpop.f32.mrb[0].mxu0
    %v8434 = vadd.f32 %v5966, %v8433
    %v8435 = vpop.f32.mrb[0].mxu0
    %v8436 = vadd.f32 %v5962, %v8435
    %v8437 = vpop.f32.mrb[0].mxu0
    %v8438 = vadd.f32 %v5966, %v8437
    %8439 = vmatprep.mubr.bf16.mxu0 %v5746
    %8440 = vmatmul.mubr.bf16.gmra.mrb[0].mxu0 %v5745
    %v8441 = vpop.f32.mrb[0].mxu0
    %v8442 = vadd.f32 %v5962, %v8441
    %v8443 = vpop.f32.mrb[0].mxu0
    %v8444 = vadd.f32 %v5966, %v8443
    %v8445 = vpop.f32.mrb[0].mxu0
    %v8446 = vadd.f32 %v5962, %v8445
    %v8447 = vpop.f32.mrb[0].mxu0
    %v8448 = vadd.f32 %v5966, %v8447
    %8449 = vmatprep.mubr.bf16.mxu0 %v5750
    %8450 = vmatmul.mubr.bf16.gmra.mrb[0].mxu0 %v5749
    %v8451 = vpop.f32.mrb[0].mxu0
    %v8452 = vadd.f32 %v5962, %v8451
    %v8453 = vpop.f32.mrb[0].mxu0
    %v8454 = vadd.f32 %v5966, %v8453
    %v8455 = vpop.f32.mrb[0].mxu0
    %v8456 = vadd.f32 %v5962, %v8455
    %v8457 = vpop.f32.mrb[0].mxu0
    %v8458 = vadd.f32 %v5966, %v8457
    %8459 = vmatprep.mubr.bf16.mxu0 %v5754
    %8460 = vmatmul.mubr.bf16.gmra.mrb[0].mxu0 %v5753
    %v8461 = vpop.f32.mrb[0].mxu0
    %v8462 = vadd.f32 %v5962, %v8461
    %v8463 = vpop.f32.mrb[0].mxu0
    %v8464 = vadd.f32 %v5966, %v8463
    %v8465 = vpop.f32.mrb[0].mxu0
    %v8466 = vadd.f32 %v5962, %v8465
    %v8467 = vpop.f32.mrb[0].mxu0
    %v8468 = vadd.f32 %v5966, %v8467
    %8469 = vmatprep.mubr.bf16.mxu0 %v5758
    %8470 = vmatmul.mubr.bf16.gmra.mrb[0].mxu0 %v5757
    %v8471 = vpop.f32.mrb[0].mxu0
    %v8472 = vadd.f32 %v5962, %v8471
    %v8473 = vpop.f32.mrb[0].mxu0
    %v8474 = vadd.f32 %v5966, %v8473
    %v8475 = vpop.f32.mrb[0].mxu0
    %v8476 = vadd.f32 %v5962, %v8475
    %v8477 = vpop.f32.mrb[0].mxu0
    %v8478 = vadd.f32 %v5966, %v8477
    %8479 = vmatprep.mubr.bf16.mxu0 %v5762
    %8480 = vmatmul.mubr.bf16.gmra.mrb[0].mxu0 %v5761
    %v8481 = vpop.f32.mrb[0].mxu0
    %v8482 = vadd.f32 %v5962, %v8481
    %v8483 = vpop.f32.mrb[0].mxu0
    %v8484 = vadd.f32 %v5966, %v8483
    %v8485 = vpop.f32.mrb[0].mxu0
    %v8486 = vadd.f32 %v5962, %v8485
    %v8487 = vpop.f32.mrb[0].mxu0
    %v8488 = vadd.f32 %v5966, %v8487
    %8489 = vmatprep.mubr.bf16.mxu0 %v5766
    %8490 = vmatmul.mubr.bf16.gmra.mrb[0].mxu0 %v5765
    %v8491 = vpop.f32.mrb[0].mxu0
    %v8492 = vadd.f32 %v5962, %v8491
    %v8493 = vpop.f32.mrb[0].mxu0
    %v8494 = vadd.f32 %v5966, %v8493
    %v8495 = vpop.f32.mrb[0].mxu0
    %v8496 = vadd.f32 %v5962, %v8495
    %v8497 = vpop.f32.mrb[0].mxu0
    %v8498 = vadd.f32 %v5966, %v8497
    %8499 = vmatprep.mubr.bf16.mxu0 %v5770
    %8500 = vmatmul.mubr.bf16.gmra.mrb[0].mxu0 %v5769
    %v8501 = vpop.f32.mrb[0].mxu0
    %v8502 = vadd.f32 %v5962, %v8501
    %v8503 = vpop.f32.mrb[0].mxu0
    %v8504 = vadd.f32 %v5966, %v8503
    %v8505 = vpop.f32.mrb[0].mxu0
    %v8506 = vadd.f32 %v5962, %v8505
    %v8507 = vpop.f32.mrb[0].mxu0
    %v8508 = vadd.f32 %v5966, %v8507
    %8509 = vmatprep.mubr.bf16.mxu0 %v5774
    %8510 = vmatmul.mubr.bf16.gmra.mrb[0].mxu0 %v5773
    %v8511 = vpop.f32.mrb[0].mxu0
    %v8512 = vadd.f32 %v5962, %v8511
    %v8513 = vpop.f32.mrb[0].mxu0
    %v8514 = vadd.f32 %v5966, %v8513
    %v8515 = vpop.f32.mrb[0].mxu0
    %v8516 = vadd.f32 %v5962, %v8515
    %v8517 = vpop.f32.mrb[0].mxu0
    %v8518 = vadd.f32 %v5966, %v8517
    %8519 = vmatprep.mubr.bf16.mxu0 %v5778
    %8520 = vmatmul.mubr.bf16.gmra.mrb[0].mxu0 %v5777
    %v8521 = vpop.f32.mrb[0].mxu0
    %v8522 = vadd.f32 %v5962, %v8521
    %v8523 = vpop.f32.mrb[0].mxu0
    %v8524 = vadd.f32 %v5966, %v8523
    %v8525 = vpop.f32.mrb[0].mxu0
    %v8526 = vadd.f32 %v5962, %v8525
    %v8527 = vpop.f32.mrb[0].mxu0
    %v8528 = vadd.f32 %v5966, %v8527
    %8529 = vmatprep.mubr.bf16.mxu0 %v5782
    %8530 = vmatmul.mubr.bf16.gmra.mrb[0].mxu0 %v5781
    %v8531 = vpop.f32.mrb[0].mxu0
    %v8532 = vadd.f32 %v5962, %v8531
    %v8533 = vpop.f32.mrb[0].mxu0
    %v8534 = vadd.f32 %v5966, %v8533
    %v8535 = vpop.f32.mrb[0].mxu0
    %v8536 = vadd.f32 %v5962, %v8535
    %v8537 = vpop.f32.mrb[0].mxu0
    %v8538 = vadd.f32 %v5966, %v8537
    %8539 = vmatprep.mubr.bf16.mxu0 %v5786
    %8540 = vmatmul.mubr.bf16.gmra.mrb[0].mxu0 %v5785
    %v8541 = vpop.f32.mrb[0].mxu0
    %v8542 = vadd.f32 %v5962, %v8541
    %v8543 = vpop.f32.mrb[0].mxu0
    %v8544 = vadd.f32 %v5966, %v8543
    %v8545 = vpop.f32.mrb[0].mxu0
    %v8546 = vadd.f32 %v5962, %v8545
    %v8547 = vpop.f32.mrb[0].mxu0
    %v8548 = vadd.f32 %v5966, %v8547
    %8549 = vmatprep.mubr.bf16.mxu0 %v5790
    %8550 = vmatmul.mubr.bf16.gmra.mrb[0].mxu0 %v5789
    %v8551 = vpop.f32.mrb[0].mxu0
    %v8552 = vadd.f32 %v5962, %v8551
    %v8553 = vpop.f32.mrb[0].mxu0
    %v8554 = vadd.f32 %v5966, %v8553
    %v8555 = vpop.f32.mrb[0].mxu0
    %v8556 = vadd.f32 %v5962, %v8555
    %v8557 = vpop.f32.mrb[0].mxu0
    %v8558 = vadd.f32 %v5966, %v8557
    %8559 = vmatprep.mubr.bf16.mxu0 %v5794
    %8560 = vmatmul.mubr.bf16.gmra.mrb[0].mxu0 %v5793
    %v8561 = vpop.f32.mrb[0].mxu0
    %v8562 = vadd.f32 %v5962, %v8561
    %v8563 = vpop.f32.mrb[0].mxu0
    %v8564 = vadd.f32 %v5966, %v8563
    %v8565 = vpop.f32.mrb[0].mxu0
    %v8566 = vadd.f32 %v5962, %v8565
    %v8567 = vpop.f32.mrb[0].mxu0
    %v8568 = vadd.f32 %v5966, %v8567
    %8569 = vmatprep.mubr.bf16.mxu0 %v5798
    %8570 = vmatmul.mubr.bf16.gmra.mrb[0].mxu0 %v5797
    %v8571 = vpop.f32.mrb[0].mxu0
    %v8572 = vadd.f32 %v5962, %v8571
    %v8573 = vpop.f32.mrb[0].mxu0
    %v8574 = vadd.f32 %v5966, %v8573
    %v8575 = vpop.f32.mrb[0].mxu0
    %v8576 = vadd.f32 %v5962, %v8575
    %v8577 = vpop.f32.mrb[0].mxu0
    %v8578 = vadd.f32 %v5966, %v8577
    %8579 = vmatprep.mubr.bf16.mxu0 %v5802
    %8580 = vmatmul.mubr.bf16.gmra.mrb[0].mxu0 %v5801
    %v8581 = vpop.f32.mrb[0].mxu0
    %v8582 = vadd.f32 %v5962, %v8581
    %v8583 = vpop.f32.mrb[0].mxu0
    %v8584 = vadd.f32 %v5966, %v8583
    %v8585 = vpop.f32.mrb[0].mxu0
    %v8586 = vadd.f32 %v5962, %v8585
    %v8587 = vpop.f32.mrb[0].mxu0
    %v8588 = vadd.f32 %v5966, %v8587
    %8589 = vmatprep.mubr.bf16.mxu0 %v5806
    %8590 = vmatmul.mubr.bf16.gmra.mrb[0].mxu0 %v5805
    %v8591 = vpop.f32.mrb[0].mxu0
    %v8592 = vadd.f32 %v5962, %v8591
    %v8593 = vpop.f32.mrb[0].mxu0
    %v8594 = vadd.f32 %v5966, %v8593
    %v8595 = vpop.f32.mrb[0].mxu0
    %v8596 = vadd.f32 %v5962, %v8595
    %v8597 = vpop.f32.mrb[0].mxu0
    %v8598 = vadd.f32 %v5966, %v8597
    %8599 = vmatprep.mubr.bf16.mxu0 %v5810
    %8600 = vmatmul.mubr.bf16.gmra.mrb[0].mxu0 %v5809
    %v8601 = vpop.f32.mrb[0].mxu0
    %v8602 = vadd.f32 %v5962, %v8601
    %v8603 = vpop.f32.mrb[0].mxu0
    %v8604 = vadd.f32 %v5966, %v8603
    %v8605 = vpop.f32.mrb[0].mxu0
    %v8606 = vadd.f32 %v5962, %v8605
    %v8607 = vpop.f32.mrb[0].mxu0
    %v8608 = vadd.f32 %v5966, %v8607
    %8609 = vmatprep.mubr.bf16.mxu0 %v5814
    %8610 = vmatmul.mubr.bf16.gmra.mrb[0].mxu0 %v5813
    %v8611 = vpop.f32.mrb[0].mxu0
    %v8612 = vadd.f32 %v5962, %v8611
    %v8613 = vpop.f32.mrb[0].mxu0
    %v8614 = vadd.f32 %v5966, %v8613
    %v8615 = vpop.f32.mrb[0].mxu0
    %v8616 = vadd.f32 %v5962, %v8615
    %v8617 = vpop.f32.mrb[0].mxu0
    %v8618 = vadd.f32 %v5966, %v8617
    %8619 = vmatprep.mubr.bf16.mxu0 %v5818
    %8620 = vmatmul.mubr.bf16.gmra.mrb[0].mxu0 %v5817
    %v8621 = vpop.f32.mrb[0].mxu0
    %v8622 = vadd.f32 %v5962, %v8621
    %v8623 = vpop.f32.mrb[0].mxu0
    %v8624 = vadd.f32 %v5966, %v8623
    %v8625 = vpop.f32.mrb[0].mxu0
    %v8626 = vadd.f32 %v5962, %v8625
    %v8627 = vpop.f32.mrb[0].mxu0
    %v8628 = vadd.f32 %v5966, %v8627
    %8629 = vdwg.mxu0
    %8630 = vmatprep.subr.bf16.mxu0 %v6422
    %8631 = vmatpush1.bf16.msra.mxu0 %v6421
    %8632 = vmatprep.subr.bf16.mxu0 %v6426
    %8633 = vmatpush1.bf16.msra.mxu0 %v6425
    %8634 = vmatprep.subr.bf16.mxu0 %v6430
    %8635 = vmatpush1.bf16.msra.mxu0 %v6429
    %8636 = vmatprep.subr.bf16.mxu0 %v6434
    %8637 = vmatpush1.bf16.msra.mxu0 %v6433
    %8638 = vmatprep.subr.bf16.mxu0 %v6438
    %8639 = vmatpush1.bf16.msra.mxu0 %v6437
    %8640 = vmatprep.subr.bf16.mxu0 %v6442
    %8641 = vmatpush1.bf16.msra.mxu0 %v6441
    %8642 = vmatprep.subr.bf16.mxu0 %v6446
    %8643 = vmatpush1.bf16.msra.mxu0 %v6445
    %8644 = vmatprep.subr.bf16.mxu0 %v6450
    %8645 = vmatpush1.bf16.msra.mxu0 %v6449
    %8646 = vmatprep.subr.bf16.mxu0 %v6454
    %8647 = vmatpush1.bf16.msra.mxu0 %v6453
    %8648 = vmatprep.subr.bf16.mxu0 %v6458
    %8649 = vmatpush1.bf16.msra.mxu0 %v6457
    %8650 = vmatprep.subr.bf16.mxu0 %v6462
    %8651 = vmatpush1.bf16.msra.mxu0 %v6461
    %8652 = vmatprep.subr.bf16.mxu0 %v6466
    %8653 = vmatpush1.bf16.msra.mxu0 %v6465
    %8654 = vmatprep.subr.bf16.mxu0 %v6470
    %8655 = vmatpush1.bf16.msra.mxu0 %v6469
    %8656 = vmatprep.subr.bf16.mxu0 %v6474
    %8657 = vmatpush1.bf16.msra.mxu0 %v6473
    %8658 = vmatprep.subr.bf16.mxu0 %v6478
    %8659 = vmatpush1.bf16.msra.mxu0 %v6477
    %8660 = vmatprep.subr.bf16.mxu0 %v6482
    %8661 = vmatpush1.bf16.msra.mxu0 %v6481
    %8662 = vmatprep.mubr.bf16.mxu0 %v5568
    %8663 = vmatmul.mubr.bf16.gmra.mrb[0].mxu0 %v5567
    %v8664 = vpop.f32.mrb[0].mxu0
    %v8665 = vadd.f32 %v7992, %v8664
    %v8666 = vpop.f32.mrb[0].mxu0
    %v8667 = vadd.f32 %v7994, %v8666
    %v8668 = vpop.f32.mrb[0].mxu0
    %v8669 = vadd.f32 %v7996, %v8668
    %v8670 = vpop.f32.mrb[0].mxu0
    %v8671 = vadd.f32 %v7998, %v8670
    %8672 = vmatprep.mubr.bf16.mxu0 %v5572
    %8673 = vmatmul.mubr.bf16.gmra.mrb[0].mxu0 %v5571
    %v8674 = vpop.f32.mrb[0].mxu0
    %v8675 = vadd.f32 %v8002, %v8674
    %v8676 = vpop.f32.mrb[0].mxu0
    %v8677 = vadd.f32 %v8004, %v8676
    %v8678 = vpop.f32.mrb[0].mxu0
    %v8679 = vadd.f32 %v8006, %v8678
    %v8680 = vpop.f32.mrb[0].mxu0
    %v8681 = vadd.f32 %v8008, %v8680
    %8682 = vmatprep.mubr.bf16.mxu0 %v5576
    %8683 = vmatmul.mubr.bf16.gmra.mrb[0].mxu0 %v5575
    %v8684 = vpop.f32.mrb[0].mxu0
    %v8685 = vadd.f32 %v8012, %v8684
    %v8686 = vpop.f32.mrb[0].mxu0
    %v8687 = vadd.f32 %v8014, %v8686
    %v8688 = vpop.f32.mrb[0].mxu0
    %v8689 = vadd.f32 %v8016, %v8688
    %v8690 = vpop.f32.mrb[0].mxu0
    %v8691 = vadd.f32 %v8018, %v8690
    %8692 = vmatprep.mubr.bf16.mxu0 %v5580
    %8693 = vmatmul.mubr.bf16.gmra.mrb[0].mxu0 %v5579
    %v8694 = vpop.f32.mrb[0].mxu0
    %v8695 = vadd.f32 %v8022, %v8694
    %v8696 = vpop.f32.mrb[0].mxu0
    %v8697 = vadd.f32 %v8024, %v8696
    %v8698 = vpop.f32.mrb[0].mxu0
    %v8699 = vadd.f32 %v8026, %v8698
    %v8700 = vpop.f32.mrb[0].mxu0
    %v8701 = vadd.f32 %v8028, %v8700
    %8702 = vmatprep.mubr.bf16.mxu0 %v5584
    %8703 = vmatmul.mubr.bf16.gmra.mrb[0].mxu0 %v5583
    %v8704 = vpop.f32.mrb[0].mxu0
    %v8705 = vadd.f32 %v8032, %v8704
    %v8706 = vpop.f32.mrb[0].mxu0
    %v8707 = vadd.f32 %v8034, %v8706
    %v8708 = vpop.f32.mrb[0].mxu0
    %v8709 = vadd.f32 %v8036, %v8708
    %v8710 = vpop.f32.mrb[0].mxu0
    %v8711 = vadd.f32 %v8038, %v8710
    %8712 = vmatprep.mubr.bf16.mxu0 %v5588
    %8713 = vmatmul.mubr.bf16.gmra.mrb[0].mxu0 %v5587
    %v8714 = vpop.f32.mrb[0].mxu0
    %v8715 = vadd.f32 %v8042, %v8714
    %v8716 = vpop.f32.mrb[0].mxu0
    %v8717 = vadd.f32 %v8044, %v8716
    %v8718 = vpop.f32.mrb[0].mxu0
    %v8719 = vadd.f32 %v8046, %v8718
    %v8720 = vpop.f32.mrb[0].mxu0
    %v8721 = vadd.f32 %v8048, %v8720
    %8722 = vmatprep.mubr.bf16.mxu0 %v5592
    %8723 = vmatmul.mubr.bf16.gmra.mrb[0].mxu0 %v5591
    %v8724 = vpop.f32.mrb[0].mxu0
    %v8725 = vadd.f32 %v8052, %v8724
    %v8726 = vpop.f32.mrb[0].mxu0
    %v8727 = vadd.f32 %v8054, %v8726
    %v8728 = vpop.f32.mrb[0].mxu0
    %v8729 = vadd.f32 %v8056, %v8728
    %v8730 = vpop.f32.mrb[0].mxu0
    %v8731 = vadd.f32 %v8058, %v8730
    %8732 = vmatprep.mubr.bf16.mxu0 %v5596
    %8733 = vmatmul.mubr.bf16.gmra.mrb[0].mxu0 %v5595
    %v8734 = vpop.f32.mrb[0].mxu0
    %v8735 = vadd.f32 %v8062, %v8734
    %v8736 = vpop.f32.mrb[0].mxu0
    %v8737 = vadd.f32 %v8064, %v8736
    %v8738 = vpop.f32.mrb[0].mxu0
    %v8739 = vadd.f32 %v8066, %v8738
    %v8740 = vpop.f32.mrb[0].mxu0
    %v8741 = vadd.f32 %v8068, %v8740
    %8742 = vmatprep.mubr.bf16.mxu0 %v5600
    %8743 = vmatmul.mubr.bf16.gmra.mrb[0].mxu0 %v5599
    %v8744 = vpop.f32.mrb[0].mxu0
    %v8745 = vadd.f32 %v8072, %v8744
    %v8746 = vpop.f32.mrb[0].mxu0
    %v8747 = vadd.f32 %v8074, %v8746
    %v8748 = vpop.f32.mrb[0].mxu0
    %v8749 = vadd.f32 %v8076, %v8748
    %v8750 = vpop.f32.mrb[0].mxu0
    %v8751 = vadd.f32 %v8078, %v8750
    %8752 = vmatprep.mubr.bf16.mxu0 %v5604
    %8753 = vmatmul.mubr.bf16.gmra.mrb[0].mxu0 %v5603
    %v8754 = vpop.f32.mrb[0].mxu0
    %v8755 = vadd.f32 %v8082, %v8754
    %v8756 = vpop.f32.mrb[0].mxu0
    %v8757 = vadd.f32 %v8084, %v8756
    %v8758 = vpop.f32.mrb[0].mxu0
    %v8759 = vadd.f32 %v8086, %v8758
    %v8760 = vpop.f32.mrb[0].mxu0
    %v8761 = vadd.f32 %v8088, %v8760
    %8762 = vmatprep.mubr.bf16.mxu0 %v5608
    %8763 = vmatmul.mubr.bf16.gmra.mrb[0].mxu0 %v5607
    %v8764 = vpop.f32.mrb[0].mxu0
    %v8765 = vadd.f32 %v8092, %v8764
    %v8766 = vpop.f32.mrb[0].mxu0
    %v8767 = vadd.f32 %v8094, %v8766
    %v8768 = vpop.f32.mrb[0].mxu0
    %v8769 = vadd.f32 %v8096, %v8768
    %v8770 = vpop.f32.mrb[0].mxu0
    %v8771 = vadd.f32 %v8098, %v8770
    %8772 = vmatprep.mubr.bf16.mxu0 %v5612
    %8773 = vmatmul.mubr.bf16.gmra.mrb[0].mxu0 %v5611
    %v8774 = vpop.f32.mrb[0].mxu0
    %v8775 = vadd.f32 %v8102, %v8774
    %v8776 = vpop.f32.mrb[0].mxu0
    %v8777 = vadd.f32 %v8104, %v8776
    %v8778 = vpop.f32.mrb[0].mxu0
    %v8779 = vadd.f32 %v8106, %v8778
    %v8780 = vpop.f32.mrb[0].mxu0
    %v8781 = vadd.f32 %v8108, %v8780
    %8782 = vmatprep.mubr.bf16.mxu0 %v5616
    %8783 = vmatmul.mubr.bf16.gmra.mrb[0].mxu0 %v5615
    %v8784 = vpop.f32.mrb[0].mxu0
    %v8785 = vadd.f32 %v8112, %v8784
    %v8786 = vpop.f32.mrb[0].mxu0
    %v8787 = vadd.f32 %v8114, %v8786
    %v8788 = vpop.f32.mrb[0].mxu0
    %v8789 = vadd.f32 %v8116, %v8788
    %v8790 = vpop.f32.mrb[0].mxu0
    %v8791 = vadd.f32 %v8118, %v8790
    %8792 = vmatprep.mubr.bf16.mxu0 %v5620
    %8793 = vmatmul.mubr.bf16.gmra.mrb[0].mxu0 %v5619
    %v8794 = vpop.f32.mrb[0].mxu0
    %v8795 = vadd.f32 %v8122, %v8794
    %v8796 = vpop.f32.mrb[0].mxu0
    %v8797 = vadd.f32 %v8124, %v8796
    %v8798 = vpop.f32.mrb[0].mxu0
    %v8799 = vadd.f32 %v8126, %v8798
    %v8800 = vpop.f32.mrb[0].mxu0
    %v8801 = vadd.f32 %v8128, %v8800
    %8802 = vmatprep.mubr.bf16.mxu0 %v5624
    %8803 = vmatmul.mubr.bf16.gmra.mrb[0].mxu0 %v5623
    %v8804 = vpop.f32.mrb[0].mxu0
    %v8805 = vadd.f32 %v8132, %v8804
    %v8806 = vpop.f32.mrb[0].mxu0
    %v8807 = vadd.f32 %v8134, %v8806
    %v8808 = vpop.f32.mrb[0].mxu0
    %v8809 = vadd.f32 %v8136, %v8808
    %v8810 = vpop.f32.mrb[0].mxu0
    %v8811 = vadd.f32 %v8138, %v8810
    %8812 = vmatprep.mubr.bf16.mxu0 %v5628
    %8813 = vmatmul.mubr.bf16.gmra.mrb[0].mxu0 %v5627
    %v8814 = vpop.f32.mrb[0].mxu0
    %v8815 = vadd.f32 %v8142, %v8814
    %v8816 = vpop.f32.mrb[0].mxu0
    %v8817 = vadd.f32 %v8144, %v8816
    %v8818 = vpop.f32.mrb[0].mxu0
    %v8819 = vadd.f32 %v8146, %v8818
    %v8820 = vpop.f32.mrb[0].mxu0
    %v8821 = vadd.f32 %v8148, %v8820
    %8822 = vmatprep.mubr.bf16.mxu0 %v5632
    %8823 = vmatmul.mubr.bf16.gmra.mrb[0].mxu0 %v5631
    %v8824 = vpop.f32.mrb[0].mxu0
    %v8825 = vadd.f32 %v8152, %v8824
    %v8826 = vpop.f32.mrb[0].mxu0
    %v8827 = vadd.f32 %v8154, %v8826
    %v8828 = vpop.f32.mrb[0].mxu0
    %v8829 = vadd.f32 %v8156, %v8828
    %v8830 = vpop.f32.mrb[0].mxu0
    %v8831 = vadd.f32 %v8158, %v8830
    %8832 = vmatprep.mubr.bf16.mxu0 %v5636
    %8833 = vmatmul.mubr.bf16.gmra.mrb[0].mxu0 %v5635
    %v8834 = vpop.f32.mrb[0].mxu0
    %v8835 = vadd.f32 %v8162, %v8834
    %v8836 = vpop.f32.mrb[0].mxu0
    %v8837 = vadd.f32 %v8164, %v8836
    %v8838 = vpop.f32.mrb[0].mxu0
    %v8839 = vadd.f32 %v8166, %v8838
    %v8840 = vpop.f32.mrb[0].mxu0
    %v8841 = vadd.f32 %v8168, %v8840
    %8842 = vmatprep.mubr.bf16.mxu0 %v5640
    %8843 = vmatmul.mubr.bf16.gmra.mrb[0].mxu0 %v5639
    %v8844 = vpop.f32.mrb[0].mxu0
    %v8845 = vadd.f32 %v8172, %v8844
    %v8846 = vpop.f32.mrb[0].mxu0
    %v8847 = vadd.f32 %v8174, %v8846
    %v8848 = vpop.f32.mrb[0].mxu0
    %v8849 = vadd.f32 %v8176, %v8848
    %v8850 = vpop.f32.mrb[0].mxu0
    %v8851 = vadd.f32 %v8178, %v8850
    %8852 = vmatprep.mubr.bf16.mxu0 %v5644
    %8853 = vmatmul.mubr.bf16.gmra.mrb[0].mxu0 %v5643
    %v8854 = vpop.f32.mrb[0].mxu0
    %v8855 = vadd.f32 %v8182, %v8854
    %v8856 = vpop.f32.mrb[0].mxu0
    %v8857 = vadd.f32 %v8184, %v8856
    %v8858 = vpop.f32.mrb[0].mxu0
    %v8859 = vadd.f32 %v8186, %v8858
    %v8860 = vpop.f32.mrb[0].mxu0
    %v8861 = vadd.f32 %v8188, %v8860
    %8862 = vmatprep.mubr.bf16.mxu0 %v5648
    %8863 = vmatmul.mubr.bf16.gmra.mrb[0].mxu0 %v5647
    %v8864 = vpop.f32.mrb[0].mxu0
    %v8865 = vadd.f32 %v8192, %v8864
    %v8866 = vpop.f32.mrb[0].mxu0
    %v8867 = vadd.f32 %v8194, %v8866
    %v8868 = vpop.f32.mrb[0].mxu0
    %v8869 = vadd.f32 %v8196, %v8868
    %v8870 = vpop.f32.mrb[0].mxu0
    %v8871 = vadd.f32 %v8198, %v8870
    %8872 = vmatprep.mubr.bf16.mxu0 %v5652
    %8873 = vmatmul.mubr.bf16.gmra.mrb[0].mxu0 %v5651
    %v8874 = vpop.f32.mrb[0].mxu0
    %v8875 = vadd.f32 %v8202, %v8874
    %v8876 = vpop.f32.mrb[0].mxu0
    %v8877 = vadd.f32 %v8204, %v8876
    %v8878 = vpop.f32.mrb[0].mxu0
    %v8879 = vadd.f32 %v8206, %v8878
    %v8880 = vpop.f32.mrb[0].mxu0
    %v8881 = vadd.f32 %v8208, %v8880
    %8882 = vmatprep.mubr.bf16.mxu0 %v5656
    %8883 = vmatmul.mubr.bf16.gmra.mrb[0].mxu0 %v5655
    %v8884 = vpop.f32.mrb[0].mxu0
    %v8885 = vadd.f32 %v8212, %v8884
    %v8886 = vpop.f32.mrb[0].mxu0
    %v8887 = vadd.f32 %v8214, %v8886
    %v8888 = vpop.f32.mrb[0].mxu0
    %v8889 = vadd.f32 %v8216, %v8888
    %v8890 = vpop.f32.mrb[0].mxu0
    %v8891 = vadd.f32 %v8218, %v8890
    %8892 = vmatprep.mubr.bf16.mxu0 %v5660
    %8893 = vmatmul.mubr.bf16.gmra.mrb[0].mxu0 %v5659
    %v8894 = vpop.f32.mrb[0].mxu0
    %v8895 = vadd.f32 %v8222, %v8894
    %v8896 = vpop.f32.mrb[0].mxu0
    %v8897 = vadd.f32 %v8224, %v8896
    %v8898 = vpop.f32.mrb[0].mxu0
    %v8899 = vadd.f32 %v8226, %v8898
    %v8900 = vpop.f32.mrb[0].mxu0
    %v8901 = vadd.f32 %v8228, %v8900
    %8902 = vmatprep.mubr.bf16.mxu0 %v5664
    %8903 = vmatmul.mubr.bf16.gmra.mrb[0].mxu0 %v5663
    %v8904 = vpop.f32.mrb[0].mxu0
    %v8905 = vadd.f32 %v8232, %v8904
    %v8906 = vpop.f32.mrb[0].mxu0
    %v8907 = vadd.f32 %v8234, %v8906
    %v8908 = vpop.f32.mrb[0].mxu0
    %v8909 = vadd.f32 %v8236, %v8908
    %v8910 = vpop.f32.mrb[0].mxu0
    %v8911 = vadd.f32 %v8238, %v8910
    %8912 = vmatprep.mubr.bf16.mxu0 %v5668
    %8913 = vmatmul.mubr.bf16.gmra.mrb[0].mxu0 %v5667
    %v8914 = vpop.f32.mrb[0].mxu0
    %v8915 = vadd.f32 %v8242, %v8914
    %v8916 = vpop.f32.mrb[0].mxu0
    %v8917 = vadd.f32 %v8244, %v8916
    %v8918 = vpop.f32.mrb[0].mxu0
    %v8919 = vadd.f32 %v8246, %v8918
    %v8920 = vpop.f32.mrb[0].mxu0
    %v8921 = vadd.f32 %v8248, %v8920
    %8922 = vmatprep.mubr.bf16.mxu0 %v5672
    %8923 = vmatmul.mubr.bf16.gmra.mrb[0].mxu0 %v5671
    %v8924 = vpop.f32.mrb[0].mxu0
    %v8925 = vadd.f32 %v8252, %v8924
    %v8926 = vpop.f32.mrb[0].mxu0
    %v8927 = vadd.f32 %v8254, %v8926
    %v8928 = vpop.f32.mrb[0].mxu0
    %v8929 = vadd.f32 %v8256, %v8928
    %v8930 = vpop.f32.mrb[0].mxu0
    %v8931 = vadd.f32 %v8258, %v8930
    %8932 = vmatprep.mubr.bf16.mxu0 %v5676
    %8933 = vmatmul.mubr.bf16.gmra.mrb[0].mxu0 %v5675
    %v8934 = vpop.f32.mrb[0].mxu0
    %v8935 = vadd.f32 %v8262, %v8934
    %v8936 = vpop.f32.mrb[0].mxu0
    %v8937 = vadd.f32 %v8264, %v8936
    %v8938 = vpop.f32.mrb[0].mxu0
    %v8939 = vadd.f32 %v8266, %v8938
    %v8940 = vpop.f32.mrb[0].mxu0
    %v8941 = vadd.f32 %v8268, %v8940
    %8942 = vmatprep.mubr.bf16.mxu0 %v5680
    %8943 = vmatmul.mubr.bf16.gmra.mrb[0].mxu0 %v5679
    %v8944 = vpop.f32.mrb[0].mxu0
    %v8945 = vadd.f32 %v8272, %v8944
    %v8946 = vpop.f32.mrb[0].mxu0
    %v8947 = vadd.f32 %v8274, %v8946
    %v8948 = vpop.f32.mrb[0].mxu0
    %v8949 = vadd.f32 %v8276, %v8948
    %v8950 = vpop.f32.mrb[0].mxu0
    %v8951 = vadd.f32 %v8278, %v8950
    %8952 = vmatprep.mubr.bf16.mxu0 %v5684
    %8953 = vmatmul.mubr.bf16.gmra.mrb[0].mxu0 %v5683
    %v8954 = vpop.f32.mrb[0].mxu0
    %v8955 = vadd.f32 %v8282, %v8954
    %v8956 = vpop.f32.mrb[0].mxu0
    %v8957 = vadd.f32 %v8284, %v8956
    %v8958 = vpop.f32.mrb[0].mxu0
    %v8959 = vadd.f32 %v8286, %v8958
    %v8960 = vpop.f32.mrb[0].mxu0
    %v8961 = vadd.f32 %v8288, %v8960
    %8962 = vmatprep.mubr.bf16.mxu0 %v5688
    %8963 = vmatmul.mubr.bf16.gmra.mrb[0].mxu0 %v5687
    %v8964 = vpop.f32.mrb[0].mxu0
    %v8965 = vadd.f32 %v8292, %v8964
    %v8966 = vpop.f32.mrb[0].mxu0
    %v8967 = vadd.f32 %v8294, %v8966
    %v8968 = vpop.f32.mrb[0].mxu0
    %v8969 = vadd.f32 %v8296, %v8968
    %v8970 = vpop.f32.mrb[0].mxu0
    %v8971 = vadd.f32 %v8298, %v8970
    %8972 = vmatprep.mubr.bf16.mxu0 %v5692
    %8973 = vmatmul.mubr.bf16.gmra.mrb[0].mxu0 %v5691
    %v8974 = vpop.f32.mrb[0].mxu0
    %v8975 = vadd.f32 %v8302, %v8974
    %v8976 = vpop.f32.mrb[0].mxu0
    %v8977 = vadd.f32 %v8304, %v8976
    %v8978 = vpop.f32.mrb[0].mxu0
    %v8979 = vadd.f32 %v8306, %v8978
    %v8980 = vpop.f32.mrb[0].mxu0
    %v8981 = vadd.f32 %v8308, %v8980
    %8982 = vmatprep.mubr.bf16.mxu0 %v5696
    %8983 = vmatmul.mubr.bf16.gmra.mrb[0].mxu0 %v5695
    %v8984 = vpop.f32.mrb[0].mxu0
    %v8985 = vadd.f32 %v8312, %v8984
    %v8986 = vpop.f32.mrb[0].mxu0
    %v8987 = vadd.f32 %v8314, %v8986
    %v8988 = vpop.f32.mrb[0].mxu0
    %v8989 = vadd.f32 %v8316, %v8988
    %v8990 = vpop.f32.mrb[0].mxu0
    %v8991 = vadd.f32 %v8318, %v8990
    %8992 = vmatprep.mubr.bf16.mxu0 %v5700
    %8993 = vmatmul.mubr.bf16.gmra.mrb[0].mxu0 %v5699
    %v8994 = vpop.f32.mrb[0].mxu0
    %v8995 = vadd.f32 %v8322, %v8994
    %v8996 = vpop.f32.mrb[0].mxu0
    %v8997 = vadd.f32 %v8324, %v8996
    %v8998 = vpop.f32.mrb[0].mxu0
    %v8999 = vadd.f32 %v8326, %v8998
    %v9000 = vpop.f32.mrb[0].mxu0
    %v9001 = vadd.f32 %v8328, %v9000
    %9002 = vmatprep.mubr.bf16.mxu0 %v5704
    %9003 = vmatmul.mubr.bf16.gmra.mrb[0].mxu0 %v5703
    %v9004 = vpop.f32.mrb[0].mxu0
    %v9005 = vadd.f32 %v8332, %v9004
    %v9006 = vpop.f32.mrb[0].mxu0
    %v9007 = vadd.f32 %v8334, %v9006
    %v9008 = vpop.f32.mrb[0].mxu0
    %v9009 = vadd.f32 %v8336, %v9008
    %v9010 = vpop.f32.mrb[0].mxu0
    %v9011 = vadd.f32 %v8338, %v9010
    %9012 = vmatprep.mubr.bf16.mxu0 %v5708
    %9013 = vmatmul.mubr.bf16.gmra.mrb[0].mxu0 %v5707
    %v9014 = vpop.f32.mrb[0].mxu0
    %v9015 = vadd.f32 %v8342, %v9014
    %v9016 = vpop.f32.mrb[0].mxu0
    %v9017 = vadd.f32 %v8344, %v9016
    %v9018 = vpop.f32.mrb[0].mxu0
    %v9019 = vadd.f32 %v8346, %v9018
    %v9020 = vpop.f32.mrb[0].mxu0
    %v9021 = vadd.f32 %v8348, %v9020
    %9022 = vmatprep.mubr.bf16.mxu0 %v5712
    %9023 = vmatmul.mubr.bf16.gmra.mrb[0].mxu0 %v5711
    %v9024 = vpop.f32.mrb[0].mxu0
    %v9025 = vadd.f32 %v8352, %v9024
    %v9026 = vpop.f32.mrb[0].mxu0
    %v9027 = vadd.f32 %v8354, %v9026
    %v9028 = vpop.f32.mrb[0].mxu0
    %v9029 = vadd.f32 %v8356, %v9028
    %v9030 = vpop.f32.mrb[0].mxu0
    %v9031 = vadd.f32 %v8358, %v9030
    %9032 = vmatprep.mubr.bf16.mxu0 %v5716
    %9033 = vmatmul.mubr.bf16.gmra.mrb[0].mxu0 %v5715
    %v9034 = vpop.f32.mrb[0].mxu0
    %v9035 = vadd.f32 %v8362, %v9034
    %v9036 = vpop.f32.mrb[0].mxu0
    %v9037 = vadd.f32 %v8364, %v9036
    %v9038 = vpop.f32.mrb[0].mxu0
    %v9039 = vadd.f32 %v8366, %v9038
    %v9040 = vpop.f32.mrb[0].mxu0
    %v9041 = vadd.f32 %v8368, %v9040
    %9042 = vmatprep.mubr.bf16.mxu0 %v5720
    %9043 = vmatmul.mubr.bf16.gmra.mrb[0].mxu0 %v5719
    %v9044 = vpop.f32.mrb[0].mxu0
    %v9045 = vadd.f32 %v8372, %v9044
    %v9046 = vpop.f32.mrb[0].mxu0
    %v9047 = vadd.f32 %v8374, %v9046
    %v9048 = vpop.f32.mrb[0].mxu0
    %v9049 = vadd.f32 %v8376, %v9048
    %v9050 = vpop.f32.mrb[0].mxu0
    %v9051 = vadd.f32 %v8378, %v9050
    %9052 = vmatprep.mubr.bf16.mxu0 %v5724
    %9053 = vmatmul.mubr.bf16.gmra.mrb[0].mxu0 %v5723
    %v9054 = vpop.f32.mrb[0].mxu0
    %v9055 = vadd.f32 %v8382, %v9054
    %v9056 = vpop.f32.mrb[0].mxu0
    %v9057 = vadd.f32 %v8384, %v9056
    %v9058 = vpop.f32.mrb[0].mxu0
    %v9059 = vadd.f32 %v8386, %v9058
    %v9060 = vpop.f32.mrb[0].mxu0
    %v9061 = vadd.f32 %v8388, %v9060
    %9062 = vmatprep.mubr.bf16.mxu0 %v5728
    %9063 = vmatmul.mubr.bf16.gmra.mrb[0].mxu0 %v5727
    %v9064 = vpop.f32.mrb[0].mxu0
    %v9065 = vadd.f32 %v8392, %v9064
    %v9066 = vpop.f32.mrb[0].mxu0
    %v9067 = vadd.f32 %v8394, %v9066
    %v9068 = vpop.f32.mrb[0].mxu0
    %v9069 = vadd.f32 %v8396, %v9068
    %v9070 = vpop.f32.mrb[0].mxu0
    %v9071 = vadd.f32 %v8398, %v9070
    %9072 = vmatprep.mubr.bf16.mxu0 %v5732
    %9073 = vmatmul.mubr.bf16.gmra.mrb[0].mxu0 %v5731
    %v9074 = vpop.f32.mrb[0].mxu0
    %v9075 = vadd.f32 %v8402, %v9074
    %v9076 = vpop.f32.mrb[0].mxu0
    %v9077 = vadd.f32 %v8404, %v9076
    %v9078 = vpop.f32.mrb[0].mxu0
    %v9079 = vadd.f32 %v8406, %v9078
    %v9080 = vpop.f32.mrb[0].mxu0
    %v9081 = vadd.f32 %v8408, %v9080
    %9082 = vmatprep.mubr.bf16.mxu0 %v5736
    %9083 = vmatmul.mubr.bf16.gmra.mrb[0].mxu0 %v5735
    %v9084 = vpop.f32.mrb[0].mxu0
    %v9085 = vadd.f32 %v8412, %v9084
    %v9086 = vpop.f32.mrb[0].mxu0
    %v9087 = vadd.f32 %v8414, %v9086
    %v9088 = vpop.f32.mrb[0].mxu0
    %v9089 = vadd.f32 %v8416, %v9088
    %v9090 = vpop.f32.mrb[0].mxu0
    %v9091 = vadd.f32 %v8418, %v9090
    %9092 = vmatprep.mubr.bf16.mxu0 %v5740
    %9093 = vmatmul.mubr.bf16.gmra.mrb[0].mxu0 %v5739
    %v9094 = vpop.f32.mrb[0].mxu0
    %v9095 = vadd.f32 %v8422, %v9094
    %v9096 = vpop.f32.mrb[0].mxu0
    %v9097 = vadd.f32 %v8424, %v9096
    %v9098 = vpop.f32.mrb[0].mxu0
    %v9099 = vadd.f32 %v8426, %v9098
    %v9100 = vpop.f32.mrb[0].mxu0
    %v9101 = vadd.f32 %v8428, %v9100
    %9102 = vmatprep.mubr.bf16.mxu0 %v5744
    %9103 = vmatmul.mubr.bf16.gmra.mrb[0].mxu0 %v5743
    %v9104 = vpop.f32.mrb[0].mxu0
    %v9105 = vadd.f32 %v8432, %v9104
    %v9106 = vpop.f32.mrb[0].mxu0
    %v9107 = vadd.f32 %v8434, %v9106
    %v9108 = vpop.f32.mrb[0].mxu0
    %v9109 = vadd.f32 %v8436, %v9108
    %v9110 = vpop.f32.mrb[0].mxu0
    %v9111 = vadd.f32 %v8438, %v9110
    %9112 = vmatprep.mubr.bf16.mxu0 %v5748
    %9113 = vmatmul.mubr.bf16.gmra.mrb[0].mxu0 %v5747
    %v9114 = vpop.f32.mrb[0].mxu0
    %v9115 = vadd.f32 %v8442, %v9114
    %v9116 = vpop.f32.mrb[0].mxu0
    %v9117 = vadd.f32 %v8444, %v9116
    %v9118 = vpop.f32.mrb[0].mxu0
    %v9119 = vadd.f32 %v8446, %v9118
    %v9120 = vpop.f32.mrb[0].mxu0
    %v9121 = vadd.f32 %v8448, %v9120
    %9122 = vmatprep.mubr.bf16.mxu0 %v5752
    %9123 = vmatmul.mubr.bf16.gmra.mrb[0].mxu0 %v5751
    %v9124 = vpop.f32.mrb[0].mxu0
    %v9125 = vadd.f32 %v8452, %v9124
    %v9126 = vpop.f32.mrb[0].mxu0
    %v9127 = vadd.f32 %v8454, %v9126
    %v9128 = vpop.f32.mrb[0].mxu0
    %v9129 = vadd.f32 %v8456, %v9128
    %v9130 = vpop.f32.mrb[0].mxu0
    %v9131 = vadd.f32 %v8458, %v9130
    %9132 = vmatprep.mubr.bf16.mxu0 %v5756
    %9133 = vmatmul.mubr.bf16.gmra.mrb[0].mxu0 %v5755
    %v9134 = vpop.f32.mrb[0].mxu0
    %v9135 = vadd.f32 %v8462, %v9134
    %v9136 = vpop.f32.mrb[0].mxu0
    %v9137 = vadd.f32 %v8464, %v9136
    %v9138 = vpop.f32.mrb[0].mxu0
    %v9139 = vadd.f32 %v8466, %v9138
    %v9140 = vpop.f32.mrb[0].mxu0
    %v9141 = vadd.f32 %v8468, %v9140
    %9142 = vmatprep.mubr.bf16.mxu0 %v5760
    %9143 = vmatmul.mubr.bf16.gmra.mrb[0].mxu0 %v5759
    %v9144 = vpop.f32.mrb[0].mxu0
    %v9145 = vadd.f32 %v8472, %v9144
    %v9146 = vpop.f32.mrb[0].mxu0
    %v9147 = vadd.f32 %v8474, %v9146
    %v9148 = vpop.f32.mrb[0].mxu0
    %v9149 = vadd.f32 %v8476, %v9148
    %v9150 = vpop.f32.mrb[0].mxu0
    %v9151 = vadd.f32 %v8478, %v9150
    %9152 = vmatprep.mubr.bf16.mxu0 %v5764
    %9153 = vmatmul.mubr.bf16.gmra.mrb[0].mxu0 %v5763
    %v9154 = vpop.f32.mrb[0].mxu0
    %v9155 = vadd.f32 %v8482, %v9154
    %v9156 = vpop.f32.mrb[0].mxu0
    %v9157 = vadd.f32 %v8484, %v9156
    %v9158 = vpop.f32.mrb[0].mxu0
    %v9159 = vadd.f32 %v8486, %v9158
    %v9160 = vpop.f32.mrb[0].mxu0
    %v9161 = vadd.f32 %v8488, %v9160
    %9162 = vmatprep.mubr.bf16.mxu0 %v5768
    %9163 = vmatmul.mubr.bf16.gmra.mrb[0].mxu0 %v5767
    %v9164 = vpop.f32.mrb[0].mxu0
    %v9165 = vadd.f32 %v8492, %v9164
    %v9166 = vpop.f32.mrb[0].mxu0
    %v9167 = vadd.f32 %v8494, %v9166
    %v9168 = vpop.f32.mrb[0].mxu0
    %v9169 = vadd.f32 %v8496, %v9168
    %v9170 = vpop.f32.mrb[0].mxu0
    %v9171 = vadd.f32 %v8498, %v9170
    %9172 = vmatprep.mubr.bf16.mxu0 %v5772
    %9173 = vmatmul.mubr.bf16.gmra.mrb[0].mxu0 %v5771
    %v9174 = vpop.f32.mrb[0].mxu0
    %v9175 = vadd.f32 %v8502, %v9174
    %v9176 = vpop.f32.mrb[0].mxu0
    %v9177 = vadd.f32 %v8504, %v9176
    %v9178 = vpop.f32.mrb[0].mxu0
    %v9179 = vadd.f32 %v8506, %v9178
    %v9180 = vpop.f32.mrb[0].mxu0
    %v9181 = vadd.f32 %v8508, %v9180
    %9182 = vmatprep.mubr.bf16.mxu0 %v5776
    %9183 = vmatmul.mubr.bf16.gmra.mrb[0].mxu0 %v5775
    %v9184 = vpop.f32.mrb[0].mxu0
    %v9185 = vadd.f32 %v8512, %v9184
    %v9186 = vpop.f32.mrb[0].mxu0
    %v9187 = vadd.f32 %v8514, %v9186
    %v9188 = vpop.f32.mrb[0].mxu0
    %v9189 = vadd.f32 %v8516, %v9188
    %v9190 = vpop.f32.mrb[0].mxu0
    %v9191 = vadd.f32 %v8518, %v9190
    %9192 = vmatprep.mubr.bf16.mxu0 %v5780
    %9193 = vmatmul.mubr.bf16.gmra.mrb[0].mxu0 %v5779
    %v9194 = vpop.f32.mrb[0].mxu0
    %v9195 = vadd.f32 %v8522, %v9194
    %v9196 = vpop.f32.mrb[0].mxu0
    %v9197 = vadd.f32 %v8524, %v9196
    %v9198 = vpop.f32.mrb[0].mxu0
    %v9199 = vadd.f32 %v8526, %v9198
    %v9200 = vpop.f32.mrb[0].mxu0
    %v9201 = vadd.f32 %v8528, %v9200
    %9202 = vmatprep.mubr.bf16.mxu0 %v5784
    %9203 = vmatmul.mubr.bf16.gmra.mrb[0].mxu0 %v5783
    %v9204 = vpop.f32.mrb[0].mxu0
    %v9205 = vadd.f32 %v8532, %v9204
    %v9206 = vpop.f32.mrb[0].mxu0
    %v9207 = vadd.f32 %v8534, %v9206
    %v9208 = vpop.f32.mrb[0].mxu0
    %v9209 = vadd.f32 %v8536, %v9208
    %v9210 = vpop.f32.mrb[0].mxu0
    %v9211 = vadd.f32 %v8538, %v9210
    %9212 = vmatprep.mubr.bf16.mxu0 %v5788
    %9213 = vmatmul.mubr.bf16.gmra.mrb[0].mxu0 %v5787
    %v9214 = vpop.f32.mrb[0].mxu0
    %v9215 = vadd.f32 %v8542, %v9214
    %v9216 = vpop.f32.mrb[0].mxu0
    %v9217 = vadd.f32 %v8544, %v9216
    %v9218 = vpop.f32.mrb[0].mxu0
    %v9219 = vadd.f32 %v8546, %v9218
    %v9220 = vpop.f32.mrb[0].mxu0
    %v9221 = vadd.f32 %v8548, %v9220
    %9222 = vmatprep.mubr.bf16.mxu0 %v5792
    %9223 = vmatmul.mubr.bf16.gmra.mrb[0].mxu0 %v5791
    %v9224 = vpop.f32.mrb[0].mxu0
    %v9225 = vadd.f32 %v8552, %v9224
    %v9226 = vpop.f32.mrb[0].mxu0
    %v9227 = vadd.f32 %v8554, %v9226
    %v9228 = vpop.f32.mrb[0].mxu0
    %v9229 = vadd.f32 %v8556, %v9228
    %v9230 = vpop.f32.mrb[0].mxu0
    %v9231 = vadd.f32 %v8558, %v9230
    %9232 = vmatprep.mubr.bf16.mxu0 %v5796
    %9233 = vmatmul.mubr.bf16.gmra.mrb[0].mxu0 %v5795
    %v9234 = vpop.f32.mrb[0].mxu0
    %v9235 = vadd.f32 %v8562, %v9234
    %v9236 = vpop.f32.mrb[0].mxu0
    %v9237 = vadd.f32 %v8564, %v9236
    %v9238 = vpop.f32.mrb[0].mxu0
    %v9239 = vadd.f32 %v8566, %v9238
    %v9240 = vpop.f32.mrb[0].mxu0
    %v9241 = vadd.f32 %v8568, %v9240
    %9242 = vmatprep.mubr.bf16.mxu0 %v5800
    %9243 = vmatmul.mubr.bf16.gmra.mrb[0].mxu0 %v5799
    %v9244 = vpop.f32.mrb[0].mxu0
    %v9245 = vadd.f32 %v8572, %v9244
    %v9246 = vpop.f32.mrb[0].mxu0
    %v9247 = vadd.f32 %v8574, %v9246
    %v9248 = vpop.f32.mrb[0].mxu0
    %v9249 = vadd.f32 %v8576, %v9248
    %v9250 = vpop.f32.mrb[0].mxu0
    %v9251 = vadd.f32 %v8578, %v9250
    %9252 = vmatprep.mubr.bf16.mxu0 %v5804
    %9253 = vmatmul.mubr.bf16.gmra.mrb[0].mxu0 %v5803
    %v9254 = vpop.f32.mrb[0].mxu0
    %v9255 = vadd.f32 %v8582, %v9254
    %v9256 = vpop.f32.mrb[0].mxu0
    %v9257 = vadd.f32 %v8584, %v9256
    %v9258 = vpop.f32.mrb[0].mxu0
    %v9259 = vadd.f32 %v8586, %v9258
    %v9260 = vpop.f32.mrb[0].mxu0
    %v9261 = vadd.f32 %v8588, %v9260
    %9262 = vmatprep.mubr.bf16.mxu0 %v5808
    %9263 = vmatmul.mubr.bf16.gmra.mrb[0].mxu0 %v5807
    %v9264 = vpop.f32.mrb[0].mxu0
    %v9265 = vadd.f32 %v8592, %v9264
    %v9266 = vpop.f32.mrb[0].mxu0
    %v9267 = vadd.f32 %v8594, %v9266
    %v9268 = vpop.f32.mrb[0].mxu0
    %v9269 = vadd.f32 %v8596, %v9268
    %v9270 = vpop.f32.mrb[0].mxu0
    %v9271 = vadd.f32 %v8598, %v9270
    %9272 = vmatprep.mubr.bf16.mxu0 %v5812
    %9273 = vmatmul.mubr.bf16.gmra.mrb[0].mxu0 %v5811
    %v9274 = vpop.f32.mrb[0].mxu0
    %v9275 = vadd.f32 %v8602, %v9274
    %v9276 = vpop.f32.mrb[0].mxu0
    %v9277 = vadd.f32 %v8604, %v9276
    %v9278 = vpop.f32.mrb[0].mxu0
    %v9279 = vadd.f32 %v8606, %v9278
    %v9280 = vpop.f32.mrb[0].mxu0
    %v9281 = vadd.f32 %v8608, %v9280
    %9282 = vmatprep.mubr.bf16.mxu0 %v5816
    %9283 = vmatmul.mubr.bf16.gmra.mrb[0].mxu0 %v5815
    %v9284 = vpop.f32.mrb[0].mxu0
    %v9285 = vadd.f32 %v8612, %v9284
    %v9286 = vpop.f32.mrb[0].mxu0
    %v9287 = vadd.f32 %v8614, %v9286
    %v9288 = vpop.f32.mrb[0].mxu0
    %v9289 = vadd.f32 %v8616, %v9288
    %v9290 = vpop.f32.mrb[0].mxu0
    %v9291 = vadd.f32 %v8618, %v9290
    %9292 = vmatprep.mubr.bf16.mxu0 %v5820
    %9293 = vmatmul.mubr.bf16.gmra.mrb[0].mxu0 %v5819
    %v9294 = vpop.f32.mrb[0].mxu0
    %v9295 = vadd.f32 %v8622, %v9294
    %v9296 = vpop.f32.mrb[0].mxu0
    %v9297 = vadd.f32 %v8624, %v9296
    %v9298 = vpop.f32.mrb[0].mxu0
    %v9299 = vadd.f32 %v8626, %v9298
    %v9300 = vpop.f32.mrb[0].mxu0
    %v9301 = vadd.f32 %v8628, %v9300
    %9302 = vdwg.mxu0
    %v9303 = vmax.f32 %v7319, 0.0
    %v9304 = vmax.f32 %v7321, 0.0
    %v9305 = vmax.f32 %v8665, 0.0
    %v9306 = vmax.f32 %v8667, 0.0
    %v9307 = vmax.f32 %v7323, 0.0
    %v9308 = vmax.f32 %v7325, 0.0
    %v9309 = vmax.f32 %v8669, 0.0
    %v9310 = vmax.f32 %v8671, 0.0
    %v9311 = vmax.f32 %v7329, 0.0
    %v9312 = vmax.f32 %v7331, 0.0
    %v9313 = vmax.f32 %v8675, 0.0
    %v9314 = vmax.f32 %v8677, 0.0
    %v9315 = vmax.f32 %v7333, 0.0
    %v9316 = vmax.f32 %v7335, 0.0
    %v9317 = vmax.f32 %v8679, 0.0
    %v9318 = vmax.f32 %v8681, 0.0
    %v9319 = vmax.f32 %v7339, 0.0
    %v9320 = vmax.f32 %v7341, 0.0
    %v9321 = vmax.f32 %v8685, 0.0
    %v9322 = vmax.f32 %v8687, 0.0
    %v9323 = vmax.f32 %v7343, 0.0
    %v9324 = vmax.f32 %v7345, 0.0
    %v9325 = vmax.f32 %v8689, 0.0
    %v9326 = vmax.f32 %v8691, 0.0
    %v9327 = vmax.f32 %v7349, 0.0
    %v9328 = vmax.f32 %v7351, 0.0
    %v9329 = vmax.f32 %v8695, 0.0
    %v9330 = vmax.f32 %v8697, 0.0
    %v9331 = vmax.f32 %v7353, 0.0
    %v9332 = vmax.f32 %v7355, 0.0
    %v9333 = vmax.f32 %v8699, 0.0
    %v9334 = vmax.f32 %v8701, 0.0
    %v9335 = vmax.f32 %v7359, 0.0
    %v9336 = vmax.f32 %v7361, 0.0
    %v9337 = vmax.f32 %v8705, 0.0
    %v9338 = vmax.f32 %v8707, 0.0
    %v9339 = vmax.f32 %v7363, 0.0
    %v9340 = vmax.f32 %v7365, 0.0
    %v9341 = vmax.f32 %v8709, 0.0
    %v9342 = vmax.f32 %v8711, 0.0
    %v9343 = vmax.f32 %v7369, 0.0
    %v9344 = vmax.f32 %v7371, 0.0
    %v9345 = vmax.f32 %v8715, 0.0
    %v9346 = vmax.f32 %v8717, 0.0
    %v9347 = vmax.f32 %v7373, 0.0
    %v9348 = vmax.f32 %v7375, 0.0
    %v9349 = vmax.f32 %v8719, 0.0
    %v9350 = vmax.f32 %v8721, 0.0
    %v9351 = vmax.f32 %v7379, 0.0
    %v9352 = vmax.f32 %v7381, 0.0
    %v9353 = vmax.f32 %v8725, 0.0
    %v9354 = vmax.f32 %v8727, 0.0
    %v9355 = vmax.f32 %v7383, 0.0
    %v9356 = vmax.f32 %v7385, 0.0
    %v9357 = vmax.f32 %v8729, 0.0
    %v9358 = vmax.f32 %v8731, 0.0
    %v9359 = vmax.f32 %v7389, 0.0
    %v9360 = vmax.f32 %v7391, 0.0
    %v9361 = vmax.f32 %v8735, 0.0
    %v9362 = vmax.f32 %v8737, 0.0
    %v9363 = vmax.f32 %v7393, 0.0
    %v9364 = vmax.f32 %v7395, 0.0
    %v9365 = vmax.f32 %v8739, 0.0
    %v9366 = vmax.f32 %v8741, 0.0
    %v9367 = vmax.f32 %v7399, 0.0
    %v9368 = vmax.f32 %v7401, 0.0
    %v9369 = vmax.f32 %v8745, 0.0
    %v9370 = vmax.f32 %v8747, 0.0
    %v9371 = vmax.f32 %v7403, 0.0
    %v9372 = vmax.f32 %v7405, 0.0
    %v9373 = vmax.f32 %v8749, 0.0
    %v9374 = vmax.f32 %v8751, 0.0
    %v9375 = vmax.f32 %v7409, 0.0
    %v9376 = vmax.f32 %v7411, 0.0
    %v9377 = vmax.f32 %v8755, 0.0
    %v9378 = vmax.f32 %v8757, 0.0
    %v9379 = vmax.f32 %v7413, 0.0
    %v9380 = vmax.f32 %v7415, 0.0
    %v9381 = vmax.f32 %v8759, 0.0
    %v9382 = vmax.f32 %v8761, 0.0
    %v9383 = vmax.f32 %v7419, 0.0
    %v9384 = vmax.f32 %v7421, 0.0
    %v9385 = vmax.f32 %v8765, 0.0
    %v9386 = vmax.f32 %v8767, 0.0
    %v9387 = vmax.f32 %v7423, 0.0
    %v9388 = vmax.f32 %v7425, 0.0
    %v9389 = vmax.f32 %v8769, 0.0
    %v9390 = vmax.f32 %v8771, 0.0
    %v9391 = vmax.f32 %v7429, 0.0
    %v9392 = vmax.f32 %v7431, 0.0
    %v9393 = vmax.f32 %v8775, 0.0
    %v9394 = vmax.f32 %v8777, 0.0
    %v9395 = vmax.f32 %v7433, 0.0
    %v9396 = vmax.f32 %v7435, 0.0
    %v9397 = vmax.f32 %v8779, 0.0
    %v9398 = vmax.f32 %v8781, 0.0
    %v9399 = vmax.f32 %v7439, 0.0
    %v9400 = vmax.f32 %v7441, 0.0
    %v9401 = vmax.f32 %v8785, 0.0
    %v9402 = vmax.f32 %v8787, 0.0
    %v9403 = vmax.f32 %v7443, 0.0
    %v9404 = vmax.f32 %v7445, 0.0
    %v9405 = vmax.f32 %v8789, 0.0
    %v9406 = vmax.f32 %v8791, 0.0
    %v9407 = vmax.f32 %v7449, 0.0
    %v9408 = vmax.f32 %v7451, 0.0
    %v9409 = vmax.f32 %v8795, 0.0
    %v9410 = vmax.f32 %v8797, 0.0
    %v9411 = vmax.f32 %v7453, 0.0
    %v9412 = vmax.f32 %v7455, 0.0
    %v9413 = vmax.f32 %v8799, 0.0
    %v9414 = vmax.f32 %v8801, 0.0
    %v9415 = vmax.f32 %v7459, 0.0
    %v9416 = vmax.f32 %v7461, 0.0
    %v9417 = vmax.f32 %v8805, 0.0
    %v9418 = vmax.f32 %v8807, 0.0
    %v9419 = vmax.f32 %v7463, 0.0
    %v9420 = vmax.f32 %v7465, 0.0
    %v9421 = vmax.f32 %v8809, 0.0
    %v9422 = vmax.f32 %v8811, 0.0
    %v9423 = vmax.f32 %v7469, 0.0
    %v9424 = vmax.f32 %v7471, 0.0
    %v9425 = vmax.f32 %v8815, 0.0
    %v9426 = vmax.f32 %v8817, 0.0
    %v9427 = vmax.f32 %v7473, 0.0
    %v9428 = vmax.f32 %v7475, 0.0
    %v9429 = vmax.f32 %v8819, 0.0
    %v9430 = vmax.f32 %v8821, 0.0
    %v9431 = vmax.f32 %v7479, 0.0
    %v9432 = vmax.f32 %v7481, 0.0
    %v9433 = vmax.f32 %v8825, 0.0
    %v9434 = vmax.f32 %v8827, 0.0
    %v9435 = vmax.f32 %v7483, 0.0
    %v9436 = vmax.f32 %v7485, 0.0
    %v9437 = vmax.f32 %v8829, 0.0
    %v9438 = vmax.f32 %v8831, 0.0
    %v9439 = vmax.f32 %v7489, 0.0
    %v9440 = vmax.f32 %v7491, 0.0
    %v9441 = vmax.f32 %v8835, 0.0
    %v9442 = vmax.f32 %v8837, 0.0
    %v9443 = vmax.f32 %v7493, 0.0
    %v9444 = vmax.f32 %v7495, 0.0
    %v9445 = vmax.f32 %v8839, 0.0
    %v9446 = vmax.f32 %v8841, 0.0
    %v9447 = vmax.f32 %v7499, 0.0
    %v9448 = vmax.f32 %v7501, 0.0
    %v9449 = vmax.f32 %v8845, 0.0
    %v9450 = vmax.f32 %v8847, 0.0
    %v9451 = vmax.f32 %v7503, 0.0
    %v9452 = vmax.f32 %v7505, 0.0
    %v9453 = vmax.f32 %v8849, 0.0
    %v9454 = vmax.f32 %v8851, 0.0
    %v9455 = vmax.f32 %v7509, 0.0
    %v9456 = vmax.f32 %v7511, 0.0
    %v9457 = vmax.f32 %v8855, 0.0
    %v9458 = vmax.f32 %v8857, 0.0
    %v9459 = vmax.f32 %v7513, 0.0
    %v9460 = vmax.f32 %v7515, 0.0
    %v9461 = vmax.f32 %v8859, 0.0
    %v9462 = vmax.f32 %v8861, 0.0
    %v9463 = vmax.f32 %v7519, 0.0
    %v9464 = vmax.f32 %v7521, 0.0
    %v9465 = vmax.f32 %v8865, 0.0
    %v9466 = vmax.f32 %v8867, 0.0
    %v9467 = vmax.f32 %v7523, 0.0
    %v9468 = vmax.f32 %v7525, 0.0
    %v9469 = vmax.f32 %v8869, 0.0
    %v9470 = vmax.f32 %v8871, 0.0
    %v9471 = vmax.f32 %v7529, 0.0
    %v9472 = vmax.f32 %v7531, 0.0
    %v9473 = vmax.f32 %v8875, 0.0
    %v9474 = vmax.f32 %v8877, 0.0
    %v9475 = vmax.f32 %v7533, 0.0
    %v9476 = vmax.f32 %v7535, 0.0
    %v9477 = vmax.f32 %v8879, 0.0
    %v9478 = vmax.f32 %v8881, 0.0
    %v9479 = vmax.f32 %v7539, 0.0
    %v9480 = vmax.f32 %v7541, 0.0
    %v9481 = vmax.f32 %v8885, 0.0
    %v9482 = vmax.f32 %v8887, 0.0
    %v9483 = vmax.f32 %v7543, 0.0
    %v9484 = vmax.f32 %v7545, 0.0
    %v9485 = vmax.f32 %v8889, 0.0
    %v9486 = vmax.f32 %v8891, 0.0
    %v9487 = vmax.f32 %v7549, 0.0
    %v9488 = vmax.f32 %v7551, 0.0
    %v9489 = vmax.f32 %v8895, 0.0
    %v9490 = vmax.f32 %v8897, 0.0
    %v9491 = vmax.f32 %v7553, 0.0
    %v9492 = vmax.f32 %v7555, 0.0
    %v9493 = vmax.f32 %v8899, 0.0
    %v9494 = vmax.f32 %v8901, 0.0
    %v9495 = vmax.f32 %v7559, 0.0
    %v9496 = vmax.f32 %v7561, 0.0
    %v9497 = vmax.f32 %v8905, 0.0
    %v9498 = vmax.f32 %v8907, 0.0
    %v9499 = vmax.f32 %v7563, 0.0
    %v9500 = vmax.f32 %v7565, 0.0
    %v9501 = vmax.f32 %v8909, 0.0
    %v9502 = vmax.f32 %v8911, 0.0
    %v9503 = vmax.f32 %v7569, 0.0
    %v9504 = vmax.f32 %v7571, 0.0
    %v9505 = vmax.f32 %v8915, 0.0
    %v9506 = vmax.f32 %v8917, 0.0
    %v9507 = vmax.f32 %v7573, 0.0
    %v9508 = vmax.f32 %v7575, 0.0
    %v9509 = vmax.f32 %v8919, 0.0
    %v9510 = vmax.f32 %v8921, 0.0
    %v9511 = vmax.f32 %v7579, 0.0
    %v9512 = vmax.f32 %v7581, 0.0
    %v9513 = vmax.f32 %v8925, 0.0
    %v9514 = vmax.f32 %v8927, 0.0
    %v9515 = vmax.f32 %v7583, 0.0
    %v9516 = vmax.f32 %v7585, 0.0
    %v9517 = vmax.f32 %v8929, 0.0
    %v9518 = vmax.f32 %v8931, 0.0
    %v9519 = vmax.f32 %v7589, 0.0
    %v9520 = vmax.f32 %v7591, 0.0
    %v9521 = vmax.f32 %v8935, 0.0
    %v9522 = vmax.f32 %v8937, 0.0
    %v9523 = vmax.f32 %v7593, 0.0
    %v9524 = vmax.f32 %v7595, 0.0
    %v9525 = vmax.f32 %v8939, 0.0
    %v9526 = vmax.f32 %v8941, 0.0
    %v9527 = vmax.f32 %v7599, 0.0
    %v9528 = vmax.f32 %v7601, 0.0
    %v9529 = vmax.f32 %v8945, 0.0
    %v9530 = vmax.f32 %v8947, 0.0
    %v9531 = vmax.f32 %v7603, 0.0
    %v9532 = vmax.f32 %v7605, 0.0
    %v9533 = vmax.f32 %v8949, 0.0
    %v9534 = vmax.f32 %v8951, 0.0
    %v9535 = vmax.f32 %v7609, 0.0
    %v9536 = vmax.f32 %v7611, 0.0
    %v9537 = vmax.f32 %v8955, 0.0
    %v9538 = vmax.f32 %v8957, 0.0
    %v9539 = vmax.f32 %v7613, 0.0
    %v9540 = vmax.f32 %v7615, 0.0
    %v9541 = vmax.f32 %v8959, 0.0
    %v9542 = vmax.f32 %v8961, 0.0
    %v9543 = vmax.f32 %v7619, 0.0
    %v9544 = vmax.f32 %v7621, 0.0
    %v9545 = vmax.f32 %v8965, 0.0
    %v9546 = vmax.f32 %v8967, 0.0
    %v9547 = vmax.f32 %v7623, 0.0
    %v9548 = vmax.f32 %v7625, 0.0
    %v9549 = vmax.f32 %v8969, 0.0
    %v9550 = vmax.f32 %v8971, 0.0
    %v9551 = vmax.f32 %v7629, 0.0
    %v9552 = vmax.f32 %v7631, 0.0
    %v9553 = vmax.f32 %v8975, 0.0
    %v9554 = vmax.f32 %v8977, 0.0
    %v9555 = vmax.f32 %v7633, 0.0
    %v9556 = vmax.f32 %v7635, 0.0
    %v9557 = vmax.f32 %v8979, 0.0
    %v9558 = vmax.f32 %v8981, 0.0
    %v9559 = vmax.f32 %v7639, 0.0
    %v9560 = vmax.f32 %v7641, 0.0
    %v9561 = vmax.f32 %v8985, 0.0
    %v9562 = vmax.f32 %v8987, 0.0
    %v9563 = vmax.f32 %v7643, 0.0
    %v9564 = vmax.f32 %v7645, 0.0
    %v9565 = vmax.f32 %v8989, 0.0
    %v9566 = vmax.f32 %v8991, 0.0
    %v9567 = vmax.f32 %v7649, 0.0
    %v9568 = vmax.f32 %v7651, 0.0
    %v9569 = vmax.f32 %v8995, 0.0
    %v9570 = vmax.f32 %v8997, 0.0
    %v9571 = vmax.f32 %v7653, 0.0
    %v9572 = vmax.f32 %v7655, 0.0
    %v9573 = vmax.f32 %v8999, 0.0
    %v9574 = vmax.f32 %v9001, 0.0
    %v9575 = vmax.f32 %v7659, 0.0
    %v9576 = vmax.f32 %v7661, 0.0
    %v9577 = vmax.f32 %v9005, 0.0
    %v9578 = vmax.f32 %v9007, 0.0
    %v9579 = vmax.f32 %v7663, 0.0
    %v9580 = vmax.f32 %v7665, 0.0
    %v9581 = vmax.f32 %v9009, 0.0
    %v9582 = vmax.f32 %v9011, 0.0
    %v9583 = vmax.f32 %v7669, 0.0
    %v9584 = vmax.f32 %v7671, 0.0
    %v9585 = vmax.f32 %v9015, 0.0
    %v9586 = vmax.f32 %v9017, 0.0
    %v9587 = vmax.f32 %v7673, 0.0
    %v9588 = vmax.f32 %v7675, 0.0
    %v9589 = vmax.f32 %v9019, 0.0
    %v9590 = vmax.f32 %v9021, 0.0
    %v9591 = vmax.f32 %v7679, 0.0
    %v9592 = vmax.f32 %v7681, 0.0
    %v9593 = vmax.f32 %v9025, 0.0
    %v9594 = vmax.f32 %v9027, 0.0
    %v9595 = vmax.f32 %v7683, 0.0
    %v9596 = vmax.f32 %v7685, 0.0
    %v9597 = vmax.f32 %v9029, 0.0
    %v9598 = vmax.f32 %v9031, 0.0
    %v9599 = vmax.f32 %v7689, 0.0
    %v9600 = vmax.f32 %v7691, 0.0
    %v9601 = vmax.f32 %v9035, 0.0
    %v9602 = vmax.f32 %v9037, 0.0
    %v9603 = vmax.f32 %v7693, 0.0
    %v9604 = vmax.f32 %v7695, 0.0
    %v9605 = vmax.f32 %v9039, 0.0
    %v9606 = vmax.f32 %v9041, 0.0
    %v9607 = vmax.f32 %v7699, 0.0
    %v9608 = vmax.f32 %v7701, 0.0
    %v9609 = vmax.f32 %v9045, 0.0
    %v9610 = vmax.f32 %v9047, 0.0
    %v9611 = vmax.f32 %v7703, 0.0
    %v9612 = vmax.f32 %v7705, 0.0
    %v9613 = vmax.f32 %v9049, 0.0
    %v9614 = vmax.f32 %v9051, 0.0
    %v9615 = vmax.f32 %v7709, 0.0
    %v9616 = vmax.f32 %v7711, 0.0
    %v9617 = vmax.f32 %v9055, 0.0
    %v9618 = vmax.f32 %v9057, 0.0
    %v9619 = vmax.f32 %v7713, 0.0
    %v9620 = vmax.f32 %v7715, 0.0
    %v9621 = vmax.f32 %v9059, 0.0
    %v9622 = vmax.f32 %v9061, 0.0
    %v9623 = vmax.f32 %v7719, 0.0
    %v9624 = vmax.f32 %v7721, 0.0
    %v9625 = vmax.f32 %v9065, 0.0
    %v9626 = vmax.f32 %v9067, 0.0
    %v9627 = vmax.f32 %v7723, 0.0
    %v9628 = vmax.f32 %v7725, 0.0
    %v9629 = vmax.f32 %v9069, 0.0
    %v9630 = vmax.f32 %v9071, 0.0
    %v9631 = vmax.f32 %v7729, 0.0
    %v9632 = vmax.f32 %v7731, 0.0
    %v9633 = vmax.f32 %v9075, 0.0
    %v9634 = vmax.f32 %v9077, 0.0
    %v9635 = vmax.f32 %v7733, 0.0
    %v9636 = vmax.f32 %v7735, 0.0
    %v9637 = vmax.f32 %v9079, 0.0
    %v9638 = vmax.f32 %v9081, 0.0
    %v9639 = vmax.f32 %v7739, 0.0
    %v9640 = vmax.f32 %v7741, 0.0
    %v9641 = vmax.f32 %v9085, 0.0
    %v9642 = vmax.f32 %v9087, 0.0
    %v9643 = vmax.f32 %v7743, 0.0
    %v9644 = vmax.f32 %v7745, 0.0
    %v9645 = vmax.f32 %v9089, 0.0
    %v9646 = vmax.f32 %v9091, 0.0
    %v9647 = vmax.f32 %v7749, 0.0
    %v9648 = vmax.f32 %v7751, 0.0
    %v9649 = vmax.f32 %v9095, 0.0
    %v9650 = vmax.f32 %v9097, 0.0
    %v9651 = vmax.f32 %v7753, 0.0
    %v9652 = vmax.f32 %v7755, 0.0
    %v9653 = vmax.f32 %v9099, 0.0
    %v9654 = vmax.f32 %v9101, 0.0
    %v9655 = vmax.f32 %v7759, 0.0
    %v9656 = vmax.f32 %v7761, 0.0
    %v9657 = vmax.f32 %v9105, 0.0
    %v9658 = vmax.f32 %v9107, 0.0
    %v9659 = vmax.f32 %v7763, 0.0
    %v9660 = vmax.f32 %v7765, 0.0
    %v9661 = vmax.f32 %v9109, 0.0
    %v9662 = vmax.f32 %v9111, 0.0
    %v9663 = vmax.f32 %v7769, 0.0
    %v9664 = vmax.f32 %v7771, 0.0
    %v9665 = vmax.f32 %v9115, 0.0
    %v9666 = vmax.f32 %v9117, 0.0
    %v9667 = vmax.f32 %v7773, 0.0
    %v9668 = vmax.f32 %v7775, 0.0
    %v9669 = vmax.f32 %v9119, 0.0
    %v9670 = vmax.f32 %v9121, 0.0
    %v9671 = vmax.f32 %v7779, 0.0
    %v9672 = vmax.f32 %v7781, 0.0
    %v9673 = vmax.f32 %v9125, 0.0
    %v9674 = vmax.f32 %v9127, 0.0
    %v9675 = vmax.f32 %v7783, 0.0
    %v9676 = vmax.f32 %v7785, 0.0
    %v9677 = vmax.f32 %v9129, 0.0
    %v9678 = vmax.f32 %v9131, 0.0
    %v9679 = vmax.f32 %v7789, 0.0
    %v9680 = vmax.f32 %v7791, 0.0
    %v9681 = vmax.f32 %v9135, 0.0
    %v9682 = vmax.f32 %v9137, 0.0
    %v9683 = vmax.f32 %v7793, 0.0
    %v9684 = vmax.f32 %v7795, 0.0
    %v9685 = vmax.f32 %v9139, 0.0
    %v9686 = vmax.f32 %v9141, 0.0
    %v9687 = vmax.f32 %v7799, 0.0
    %v9688 = vmax.f32 %v7801, 0.0
    %v9689 = vmax.f32 %v9145, 0.0
    %v9690 = vmax.f32 %v9147, 0.0
    %v9691 = vmax.f32 %v7803, 0.0
    %v9692 = vmax.f32 %v7805, 0.0
    %v9693 = vmax.f32 %v9149, 0.0
    %v9694 = vmax.f32 %v9151, 0.0
    %v9695 = vmax.f32 %v7809, 0.0
    %v9696 = vmax.f32 %v7811, 0.0
    %v9697 = vmax.f32 %v9155, 0.0
    %v9698 = vmax.f32 %v9157, 0.0
    %v9699 = vmax.f32 %v7813, 0.0
    %v9700 = vmax.f32 %v7815, 0.0
    %v9701 = vmax.f32 %v9159, 0.0
    %v9702 = vmax.f32 %v9161, 0.0
    %v9703 = vmax.f32 %v7819, 0.0
    %v9704 = vmax.f32 %v7821, 0.0
    %v9705 = vmax.f32 %v9165, 0.0
    %v9706 = vmax.f32 %v9167, 0.0
    %v9707 = vmax.f32 %v7823, 0.0
    %v9708 = vmax.f32 %v7825, 0.0
    %v9709 = vmax.f32 %v9169, 0.0
    %v9710 = vmax.f32 %v9171, 0.0
    %v9711 = vmax.f32 %v7829, 0.0
    %v9712 = vmax.f32 %v7831, 0.0
    %v9713 = vmax.f32 %v9175, 0.0
    %v9714 = vmax.f32 %v9177, 0.0
    %v9715 = vmax.f32 %v7833, 0.0
    %v9716 = vmax.f32 %v7835, 0.0
    %v9717 = vmax.f32 %v9179, 0.0
    %v9718 = vmax.f32 %v9181, 0.0
    %v9719 = vmax.f32 %v7839, 0.0
    %v9720 = vmax.f32 %v7841, 0.0
    %v9721 = vmax.f32 %v9185, 0.0
    %v9722 = vmax.f32 %v9187, 0.0
    %v9723 = vmax.f32 %v7843, 0.0
    %v9724 = vmax.f32 %v7845, 0.0
    %v9725 = vmax.f32 %v9189, 0.0
    %v9726 = vmax.f32 %v9191, 0.0
    %v9727 = vmax.f32 %v7849, 0.0
    %v9728 = vmax.f32 %v7851, 0.0
    %v9729 = vmax.f32 %v9195, 0.0
    %v9730 = vmax.f32 %v9197, 0.0
    %v9731 = vmax.f32 %v7853, 0.0
    %v9732 = vmax.f32 %v7855, 0.0
    %v9733 = vmax.f32 %v9199, 0.0
    %v9734 = vmax.f32 %v9201, 0.0
    %v9735 = vmax.f32 %v7859, 0.0
    %v9736 = vmax.f32 %v7861, 0.0
    %v9737 = vmax.f32 %v9205, 0.0
    %v9738 = vmax.f32 %v9207, 0.0
    %v9739 = vmax.f32 %v7863, 0.0
    %v9740 = vmax.f32 %v7865, 0.0
    %v9741 = vmax.f32 %v9209, 0.0
    %v9742 = vmax.f32 %v9211, 0.0
    %v9743 = vmax.f32 %v7869, 0.0
    %v9744 = vmax.f32 %v7871, 0.0
    %v9745 = vmax.f32 %v9215, 0.0
    %v9746 = vmax.f32 %v9217, 0.0
    %v9747 = vmax.f32 %v7873, 0.0
    %v9748 = vmax.f32 %v7875, 0.0
    %v9749 = vmax.f32 %v9219, 0.0
    %v9750 = vmax.f32 %v9221, 0.0
    %v9751 = vmax.f32 %v7879, 0.0
    %v9752 = vmax.f32 %v7881, 0.0
    %v9753 = vmax.f32 %v9225, 0.0
    %v9754 = vmax.f32 %v9227, 0.0
    %v9755 = vmax.f32 %v7883, 0.0
    %v9756 = vmax.f32 %v7885, 0.0
    %v9757 = vmax.f32 %v9229, 0.0
    %v9758 = vmax.f32 %v9231, 0.0
    %v9759 = vmax.f32 %v7889, 0.0
    %v9760 = vmax.f32 %v7891, 0.0
    %v9761 = vmax.f32 %v9235, 0.0
    %v9762 = vmax.f32 %v9237, 0.0
    %v9763 = vmax.f32 %v7893, 0.0
    %v9764 = vmax.f32 %v7895, 0.0
    %v9765 = vmax.f32 %v9239, 0.0
    %v9766 = vmax.f32 %v9241, 0.0
    %v9767 = vmax.f32 %v7899, 0.0
    %v9768 = vmax.f32 %v7901, 0.0
    %v9769 = vmax.f32 %v9245, 0.0
    %v9770 = vmax.f32 %v9247, 0.0
    %v9771 = vmax.f32 %v7903, 0.0
    %v9772 = vmax.f32 %v7905, 0.0
    %v9773 = vmax.f32 %v9249, 0.0
    %v9774 = vmax.f32 %v9251, 0.0
    %v9775 = vmax.f32 %v7909, 0.0
    %v9776 = vmax.f32 %v7911, 0.0
    %v9777 = vmax.f32 %v9255, 0.0
    %v9778 = vmax.f32 %v9257, 0.0
    %v9779 = vmax.f32 %v7913, 0.0
    %v9780 = vmax.f32 %v7915, 0.0
    %v9781 = vmax.f32 %v9259, 0.0
    %v9782 = vmax.f32 %v9261, 0.0
    %v9783 = vmax.f32 %v7919, 0.0
    %v9784 = vmax.f32 %v7921, 0.0
    %v9785 = vmax.f32 %v9265, 0.0
    %v9786 = vmax.f32 %v9267, 0.0
    %v9787 = vmax.f32 %v7923, 0.0
    %v9788 = vmax.f32 %v7925, 0.0
    %v9789 = vmax.f32 %v9269, 0.0
    %v9790 = vmax.f32 %v9271, 0.0
    %v9791 = vmax.f32 %v7929, 0.0
    %v9792 = vmax.f32 %v7931, 0.0
    %v9793 = vmax.f32 %v9275, 0.0
    %v9794 = vmax.f32 %v9277, 0.0
    %v9795 = vmax.f32 %v7933, 0.0
    %v9796 = vmax.f32 %v7935, 0.0
    %v9797 = vmax.f32 %v9279, 0.0
    %v9798 = vmax.f32 %v9281, 0.0
    %v9799 = vmax.f32 %v7939, 0.0
    %v9800 = vmax.f32 %v7941, 0.0
    %v9801 = vmax.f32 %v9285, 0.0
    %v9802 = vmax.f32 %v9287, 0.0
    %v9803 = vmax.f32 %v7943, 0.0
    %v9804 = vmax.f32 %v7945, 0.0
    %v9805 = vmax.f32 %v9289, 0.0
    %v9806 = vmax.f32 %v9291, 0.0
    %v9807 = vmax.f32 %v7949, 0.0
    %v9808 = vmax.f32 %v7951, 0.0
    %v9809 = vmax.f32 %v9295, 0.0
    %v9810 = vmax.f32 %v9297, 0.0
    %v9811 = vmax.f32 %v7953, 0.0
    %v9812 = vmax.f32 %v7955, 0.0
    %v9813 = vmax.f32 %v9299, 0.0
    %v9814 = vmax.f32 %v9301, 0.0
    %v9815 = vpack.c.bf16 %v9307, %v9303
    %v9816 = vpack.c.bf16 %v9308, %v9304
    %v9817 = vpack.c.bf16 %v9309, %v9305
    %v9818 = vpack.c.bf16 %v9310, %v9306
    %v9819 = vpack.c.bf16 %v9315, %v9311
    %v9820 = vpack.c.bf16 %v9316, %v9312
    %v9821 = vpack.c.bf16 %v9317, %v9313
    %v9822 = vpack.c.bf16 %v9318, %v9314
    %v9823 = vpack.c.bf16 %v9323, %v9319
    %v9824 = vpack.c.bf16 %v9324, %v9320
    %v9825 = vpack.c.bf16 %v9325, %v9321
    %v9826 = vpack.c.bf16 %v9326, %v9322
    %v9827 = vpack.c.bf16 %v9331, %v9327
    %v9828 = vpack.c.bf16 %v9332, %v9328
    %v9829 = vpack.c.bf16 %v9333, %v9329
    %v9830 = vpack.c.bf16 %v9334, %v9330
    %v9831 = vpack.c.bf16 %v9339, %v9335
    %v9832 = vpack.c.bf16 %v9340, %v9336
    %v9833 = vpack.c.bf16 %v9341, %v9337
    %v9834 = vpack.c.bf16 %v9342, %v9338
    %v9835 = vpack.c.bf16 %v9347, %v9343
    %v9836 = vpack.c.bf16 %v9348, %v9344
    %v9837 = vpack.c.bf16 %v9349, %v9345
    %v9838 = vpack.c.bf16 %v9350, %v9346
    %v9839 = vpack.c.bf16 %v9355, %v9351
    %v9840 = vpack.c.bf16 %v9356, %v9352
    %v9841 = vpack.c.bf16 %v9357, %v9353
    %v9842 = vpack.c.bf16 %v9358, %v9354
    %v9843 = vpack.c.bf16 %v9363, %v9359
    %v9844 = vpack.c.bf16 %v9364, %v9360
    %v9845 = vpack.c.bf16 %v9365, %v9361
    %v9846 = vpack.c.bf16 %v9366, %v9362
    %v9847 = vpack.c.bf16 %v9371, %v9367
    %v9848 = vpack.c.bf16 %v9372, %v9368
    %v9849 = vpack.c.bf16 %v9373, %v9369
    %v9850 = vpack.c.bf16 %v9374, %v9370
    %v9851 = vpack.c.bf16 %v9379, %v9375
    %v9852 = vpack.c.bf16 %v9380, %v9376
    %v9853 = vpack.c.bf16 %v9381, %v9377
    %v9854 = vpack.c.bf16 %v9382, %v9378
    %v9855 = vpack.c.bf16 %v9387, %v9383
    %v9856 = vpack.c.bf16 %v9388, %v9384
    %v9857 = vpack.c.bf16 %v9389, %v9385
    %v9858 = vpack.c.bf16 %v9390, %v9386
    %v9859 = vpack.c.bf16 %v9395, %v9391
    %v9860 = vpack.c.bf16 %v9396, %v9392
    %v9861 = vpack.c.bf16 %v9397, %v9393
    %v9862 = vpack.c.bf16 %v9398, %v9394
    %v9863 = vpack.c.bf16 %v9403, %v9399
    %v9864 = vpack.c.bf16 %v9404, %v9400
    %v9865 = vpack.c.bf16 %v9405, %v9401
    %v9866 = vpack.c.bf16 %v9406, %v9402
    %v9867 = vpack.c.bf16 %v9411, %v9407
    %v9868 = vpack.c.bf16 %v9412, %v9408
    %v9869 = vpack.c.bf16 %v9413, %v9409
    %v9870 = vpack.c.bf16 %v9414, %v9410
    %v9871 = vpack.c.bf16 %v9419, %v9415
    %v9872 = vpack.c.bf16 %v9420, %v9416
    %v9873 = vpack.c.bf16 %v9421, %v9417
    %v9874 = vpack.c.bf16 %v9422, %v9418
    %v9875 = vpack.c.bf16 %v9427, %v9423
    %v9876 = vpack.c.bf16 %v9428, %v9424
    %v9877 = vpack.c.bf16 %v9429, %v9425
    %v9878 = vpack.c.bf16 %v9430, %v9426
    %v9879 = vpack.c.bf16 %v9435, %v9431
    %v9880 = vpack.c.bf16 %v9436, %v9432
    %v9881 = vpack.c.bf16 %v9437, %v9433
    %v9882 = vpack.c.bf16 %v9438, %v9434
    %v9883 = vpack.c.bf16 %v9443, %v9439
    %v9884 = vpack.c.bf16 %v9444, %v9440
    %v9885 = vpack.c.bf16 %v9445, %v9441
    %v9886 = vpack.c.bf16 %v9446, %v9442
    %v9887 = vpack.c.bf16 %v9451, %v9447
    %v9888 = vpack.c.bf16 %v9452, %v9448
    %v9889 = vpack.c.bf16 %v9453, %v9449
    %v9890 = vpack.c.bf16 %v9454, %v9450
    %v9891 = vpack.c.bf16 %v9459, %v9455
    %v9892 = vpack.c.bf16 %v9460, %v9456
    %v9893 = vpack.c.bf16 %v9461, %v9457
    %v9894 = vpack.c.bf16 %v9462, %v9458
    %v9895 = vpack.c.bf16 %v9467, %v9463
    %v9896 = vpack.c.bf16 %v9468, %v9464
    %v9897 = vpack.c.bf16 %v9469, %v9465
    %v9898 = vpack.c.bf16 %v9470, %v9466
    %v9899 = vpack.c.bf16 %v9475, %v9471
    %v9900 = vpack.c.bf16 %v9476, %v9472
    %v9901 = vpack.c.bf16 %v9477, %v9473
    %v9902 = vpack.c.bf16 %v9478, %v9474
    %v9903 = vpack.c.bf16 %v9483, %v9479
    %v9904 = vpack.c.bf16 %v9484, %v9480
    %v9905 = vpack.c.bf16 %v9485, %v9481
    %v9906 = vpack.c.bf16 %v9486, %v9482
    %v9907 = vpack.c.bf16 %v9491, %v9487
    %v9908 = vpack.c.bf16 %v9492, %v9488
    %v9909 = vpack.c.bf16 %v9493, %v9489
    %v9910 = vpack.c.bf16 %v9494, %v9490
    %v9911 = vpack.c.bf16 %v9499, %v9495
    %v9912 = vpack.c.bf16 %v9500, %v9496
    %v9913 = vpack.c.bf16 %v9501, %v9497
    %v9914 = vpack.c.bf16 %v9502, %v9498
    %v9915 = vpack.c.bf16 %v9507, %v9503
    %v9916 = vpack.c.bf16 %v9508, %v9504
    %v9917 = vpack.c.bf16 %v9509, %v9505
    %v9918 = vpack.c.bf16 %v9510, %v9506
    %v9919 = vpack.c.bf16 %v9515, %v9511
    %v9920 = vpack.c.bf16 %v9516, %v9512
    %v9921 = vpack.c.bf16 %v9517, %v9513
    %v9922 = vpack.c.bf16 %v9518, %v9514
    %v9923 = vpack.c.bf16 %v9523, %v9519
    %v9924 = vpack.c.bf16 %v9524, %v9520
    %v9925 = vpack.c.bf16 %v9525, %v9521
    %v9926 = vpack.c.bf16 %v9526, %v9522
    %v9927 = vpack.c.bf16 %v9531, %v9527
    %v9928 = vpack.c.bf16 %v9532, %v9528
    %v9929 = vpack.c.bf16 %v9533, %v9529
    %v9930 = vpack.c.bf16 %v9534, %v9530
    %v9931 = vpack.c.bf16 %v9539, %v9535
    %v9932 = vpack.c.bf16 %v9540, %v9536
    %v9933 = vpack.c.bf16 %v9541, %v9537
    %v9934 = vpack.c.bf16 %v9542, %v9538
    %v9935 = vpack.c.bf16 %v9547, %v9543
    %v9936 = vpack.c.bf16 %v9548, %v9544
    %v9937 = vpack.c.bf16 %v9549, %v9545
    %v9938 = vpack.c.bf16 %v9550, %v9546
    %v9939 = vpack.c.bf16 %v9555, %v9551
    %v9940 = vpack.c.bf16 %v9556, %v9552
    %v9941 = vpack.c.bf16 %v9557, %v9553
    %v9942 = vpack.c.bf16 %v9558, %v9554
    %v9943 = vpack.c.bf16 %v9563, %v9559
    %v9944 = vpack.c.bf16 %v9564, %v9560
    %v9945 = vpack.c.bf16 %v9565, %v9561
    %v9946 = vpack.c.bf16 %v9566, %v9562
    %v9947 = vpack.c.bf16 %v9571, %v9567
    %v9948 = vpack.c.bf16 %v9572, %v9568
    %v9949 = vpack.c.bf16 %v9573, %v9569
    %v9950 = vpack.c.bf16 %v9574, %v9570
    %v9951 = vpack.c.bf16 %v9579, %v9575
    %v9952 = vpack.c.bf16 %v9580, %v9576
    %v9953 = vpack.c.bf16 %v9581, %v9577
    %v9954 = vpack.c.bf16 %v9582, %v9578
    %v9955 = vpack.c.bf16 %v9587, %v9583
    %v9956 = vpack.c.bf16 %v9588, %v9584
    %v9957 = vpack.c.bf16 %v9589, %v9585
    %v9958 = vpack.c.bf16 %v9590, %v9586
    %v9959 = vpack.c.bf16 %v9595, %v9591
    %v9960 = vpack.c.bf16 %v9596, %v9592
    %v9961 = vpack.c.bf16 %v9597, %v9593
    %v9962 = vpack.c.bf16 %v9598, %v9594
    %v9963 = vpack.c.bf16 %v9603, %v9599
    %v9964 = vpack.c.bf16 %v9604, %v9600
    %v9965 = vpack.c.bf16 %v9605, %v9601
    %v9966 = vpack.c.bf16 %v9606, %v9602
    %v9967 = vpack.c.bf16 %v9611, %v9607
    %v9968 = vpack.c.bf16 %v9612, %v9608
    %v9969 = vpack.c.bf16 %v9613, %v9609
    %v9970 = vpack.c.bf16 %v9614, %v9610
    %v9971 = vpack.c.bf16 %v9619, %v9615
    %v9972 = vpack.c.bf16 %v9620, %v9616
    %v9973 = vpack.c.bf16 %v9621, %v9617
    %v9974 = vpack.c.bf16 %v9622, %v9618
    %v9975 = vpack.c.bf16 %v9627, %v9623
    %v9976 = vpack.c.bf16 %v9628, %v9624
    %v9977 = vpack.c.bf16 %v9629, %v9625
    %v9978 = vpack.c.bf16 %v9630, %v9626
    %v9979 = vpack.c.bf16 %v9635, %v9631
    %v9980 = vpack.c.bf16 %v9636, %v9632
    %v9981 = vpack.c.bf16 %v9637, %v9633
    %v9982 = vpack.c.bf16 %v9638, %v9634
    %v9983 = vpack.c.bf16 %v9643, %v9639
    %v9984 = vpack.c.bf16 %v9644, %v9640
    %v9985 = vpack.c.bf16 %v9645, %v9641
    %v9986 = vpack.c.bf16 %v9646, %v9642
    %v9987 = vpack.c.bf16 %v9651, %v9647
    %v9988 = vpack.c.bf16 %v9652, %v9648
    %v9989 = vpack.c.bf16 %v9653, %v9649
    %v9990 = vpack.c.bf16 %v9654, %v9650
    %v9991 = vpack.c.bf16 %v9659, %v9655
    %v9992 = vpack.c.bf16 %v9660, %v9656
    %v9993 = vpack.c.bf16 %v9661, %v9657
    %v9994 = vpack.c.bf16 %v9662, %v9658
    %v9995 = vpack.c.bf16 %v9667, %v9663
    %v9996 = vpack.c.bf16 %v9668, %v9664
    %v9997 = vpack.c.bf16 %v9669, %v9665
    %v9998 = vpack.c.bf16 %v9670, %v9666
    %v9999 = vpack.c.bf16 %v9675, %v9671
    %v10000 = vpack.c.bf16 %v9676, %v9672
    %v10001 = vpack.c.bf16 %v9677, %v9673
    %v10002 = vpack.c.bf16 %v9678, %v9674
    %v10003 = vpack.c.bf16 %v9683, %v9679
    %v10004 = vpack.c.bf16 %v9684, %v9680
    %v10005 = vpack.c.bf16 %v9685, %v9681
    %v10006 = vpack.c.bf16 %v9686, %v9682
    %v10007 = vpack.c.bf16 %v9691, %v9687
    %v10008 = vpack.c.bf16 %v9692, %v9688
    %v10009 = vpack.c.bf16 %v9693, %v9689
    %v10010 = vpack.c.bf16 %v9694, %v9690
    %v10011 = vpack.c.bf16 %v9699, %v9695
    %v10012 = vpack.c.bf16 %v9700, %v9696
    %v10013 = vpack.c.bf16 %v9701, %v9697
    %v10014 = vpack.c.bf16 %v9702, %v9698
    %v10015 = vpack.c.bf16 %v9707, %v9703
    %v10016 = vpack.c.bf16 %v9708, %v9704
    %v10017 = vpack.c.bf16 %v9709, %v9705
    %v10018 = vpack.c.bf16 %v9710, %v9706
    %v10019 = vpack.c.bf16 %v9715, %v9711
    %v10020 = vpack.c.bf16 %v9716, %v9712
    %v10021 = vpack.c.bf16 %v9717, %v9713
    %v10022 = vpack.c.bf16 %v9718, %v9714
    %v10023 = vpack.c.bf16 %v9723, %v9719
    %v10024 = vpack.c.bf16 %v9724, %v9720
    %v10025 = vpack.c.bf16 %v9725, %v9721
    %v10026 = vpack.c.bf16 %v9726, %v9722
    %v10027 = vpack.c.bf16 %v9731, %v9727
    %v10028 = vpack.c.bf16 %v9732, %v9728
    %v10029 = vpack.c.bf16 %v9733, %v9729
    %v10030 = vpack.c.bf16 %v9734, %v9730
    %v10031 = vpack.c.bf16 %v9739, %v9735
    %v10032 = vpack.c.bf16 %v9740, %v9736
    %v10033 = vpack.c.bf16 %v9741, %v9737
    %v10034 = vpack.c.bf16 %v9742, %v9738
    %v10035 = vpack.c.bf16 %v9747, %v9743
    %v10036 = vpack.c.bf16 %v9748, %v9744
    %v10037 = vpack.c.bf16 %v9749, %v9745
    %v10038 = vpack.c.bf16 %v9750, %v9746
    %v10039 = vpack.c.bf16 %v9755, %v9751
    %v10040 = vpack.c.bf16 %v9756, %v9752
    %v10041 = vpack.c.bf16 %v9757, %v9753
    %v10042 = vpack.c.bf16 %v9758, %v9754
    %v10043 = vpack.c.bf16 %v9763, %v9759
    %v10044 = vpack.c.bf16 %v9764, %v9760
    %v10045 = vpack.c.bf16 %v9765, %v9761
    %v10046 = vpack.c.bf16 %v9766, %v9762
    %v10047 = vpack.c.bf16 %v9771, %v9767
    %v10048 = vpack.c.bf16 %v9772, %v9768
    %v10049 = vpack.c.bf16 %v9773, %v9769
    %v10050 = vpack.c.bf16 %v9774, %v9770
    %v10051 = vpack.c.bf16 %v9779, %v9775
    %v10052 = vpack.c.bf16 %v9780, %v9776
    %v10053 = vpack.c.bf16 %v9781, %v9777
    %v10054 = vpack.c.bf16 %v9782, %v9778
    %v10055 = vpack.c.bf16 %v9787, %v9783
    %v10056 = vpack.c.bf16 %v9788, %v9784
    %v10057 = vpack.c.bf16 %v9789, %v9785
    %v10058 = vpack.c.bf16 %v9790, %v9786
    %v10059 = vpack.c.bf16 %v9795, %v9791
    %v10060 = vpack.c.bf16 %v9796, %v9792
    %v10061 = vpack.c.bf16 %v9797, %v9793
    %v10062 = vpack.c.bf16 %v9798, %v9794
    %v10063 = vpack.c.bf16 %v9803, %v9799
    %v10064 = vpack.c.bf16 %v9804, %v9800
    %v10065 = vpack.c.bf16 %v9805, %v9801
    %v10066 = vpack.c.bf16 %v9806, %v9802
    %v10067 = vpack.c.bf16 %v9811, %v9807
    %v10068 = vpack.c.bf16 %v9812, %v9808
    %v10069 = vpack.c.bf16 %v9813, %v9809
    %v10070 = vpack.c.bf16 %v9814, %v9810
    %v10071 = vld [vmem:[#allocation11] sm:$0xf]
    %v10072 = vld [vmem:[#allocation11 + $0x4] sm:$0xf]
    %v10073 = vld [vmem:[#allocation11 + $0x8] sm:$0xf]
    %v10074 = vld [vmem:[#allocation11 + $0xc] sm:$0xf]
    %v10075 = vld [vmem:[#allocation11 + $0x10] sm:$0xf]
    %v10076 = vld [vmem:[#allocation11 + $0x14] sm:$0xf]
    %v10077 = vld [vmem:[#allocation11 + $0x18] sm:$0xf]
    %v10078 = vld [vmem:[#allocation11 + $0x1c] sm:$0xf]
    %v10079 = vld [vmem:[#allocation11 + $0x20] sm:$0xf]
    %v10080 = vld [vmem:[#allocation11 + $0x24] sm:$0xf]
    %v10081 = vld [vmem:[#allocation11 + $0x28] sm:$0xf]
    %v10082 = vld [vmem:[#allocation11 + $0x2c] sm:$0xf]
    %v10083 = vld [vmem:[#allocation11 + $0x30] sm:$0xf]
    %v10084 = vld [vmem:[#allocation11 + $0x34] sm:$0xf]
    %v10085 = vld [vmem:[#allocation11 + $0x38] sm:$0xf]
    %v10086 = vld [vmem:[#allocation11 + $0x3c] sm:$0xf]
    %v10087 = vld [vmem:[#allocation11 + $0x40] sm:$0xf]
    %v10088 = vld [vmem:[#allocation11 + $0x44] sm:$0xf]
    %v10089 = vld [vmem:[#allocation11 + $0x48] sm:$0xf]
    %v10090 = vld [vmem:[#allocation11 + $0x4c] sm:$0xf]
    %v10091 = vld [vmem:[#allocation11 + $0x50] sm:$0xf]
    %v10092 = vld [vmem:[#allocation11 + $0x54] sm:$0xf]
    %v10093 = vld [vmem:[#allocation11 + $0x58] sm:$0xf]
    %v10094 = vld [vmem:[#allocation11 + $0x5c] sm:$0xf]
    %v10095 = vld [vmem:[#allocation11 + $0x60] sm:$0xf]
    %v10096 = vld [vmem:[#allocation11 + $0x64] sm:$0xf]
    %v10097 = vld [vmem:[#allocation11 + $0x68] sm:$0xf]
    %v10098 = vld [vmem:[#allocation11 + $0x6c] sm:$0xf]
    %v10099 = vld [vmem:[#allocation11 + $0x70] sm:$0xf]
    %v10100 = vld [vmem:[#allocation11 + $0x74] sm:$0xf]
    %v10101 = vld [vmem:[#allocation11 + $0x78] sm:$0xf]
    %v10102 = vld [vmem:[#allocation11 + $0x7c] sm:$0xf]
    %v10103 = vld [vmem:[#allocation11 + $0x80] sm:$0xf]
    %v10104 = vld [vmem:[#allocation11 + $0x84] sm:$0xf]
    %v10105 = vld [vmem:[#allocation11 + $0x88] sm:$0xf]
    %v10106 = vld [vmem:[#allocation11 + $0x8c] sm:$0xf]
    %v10107 = vld [vmem:[#allocation11 + $0x90] sm:$0xf]
    %v10108 = vld [vmem:[#allocation11 + $0x94] sm:$0xf]
    %v10109 = vld [vmem:[#allocation11 + $0x98] sm:$0xf]
    %v10110 = vld [vmem:[#allocation11 + $0x9c] sm:$0xf]
    %v10111 = vld [vmem:[#allocation11 + $0xa0] sm:$0xf]
    %v10112 = vld [vmem:[#allocation11 + $0xa4] sm:$0xf]
    %v10113 = vld [vmem:[#allocation11 + $0xa8] sm:$0xf]
    %v10114 = vld [vmem:[#allocation11 + $0xac] sm:$0xf]
    %v10115 = vld [vmem:[#allocation11 + $0xb0] sm:$0xf]
    %v10116 = vld [vmem:[#allocation11 + $0xb4] sm:$0xf]
    %v10117 = vld [vmem:[#allocation11 + $0xb8] sm:$0xf]
    %v10118 = vld [vmem:[#allocation11 + $0xbc] sm:$0xf]
    %v10119 = vld [vmem:[#allocation11 + $0xc0] sm:$0xf]
    %v10120 = vld [vmem:[#allocation11 + $0xc4] sm:$0xf]
    %v10121 = vld [vmem:[#allocation11 + $0xc8] sm:$0xf]
    %v10122 = vld [vmem:[#allocation11 + $0xcc] sm:$0xf]
    %v10123 = vld [vmem:[#allocation11 + $0xd0] sm:$0xf]
    %v10124 = vld [vmem:[#allocation11 + $0xd4] sm:$0xf]
    %v10125 = vld [vmem:[#allocation11 + $0xd8] sm:$0xf]
    %v10126 = vld [vmem:[#allocation11 + $0xdc] sm:$0xf]
    %v10127 = vld [vmem:[#allocation11 + $0xe0] sm:$0xf]
    %v10128 = vld [vmem:[#allocation11 + $0xe4] sm:$0xf]
    %v10129 = vld [vmem:[#allocation11 + $0xe8] sm:$0xf]
    %v10130 = vld [vmem:[#allocation11 + $0xec] sm:$0xf]
    %v10131 = vld [vmem:[#allocation11 + $0xf0] sm:$0xf]
    %v10132 = vld [vmem:[#allocation11 + $0xf4] sm:$0xf]
    %v10133 = vld [vmem:[#allocation11 + $0xf8] sm:$0xf]
    %v10134 = vld [vmem:[#allocation11 + $0xfc] sm:$0xf]
    %v10135 = vld [vmem:[#allocation13] sm:$0x1]
    %v10137 = vlaneseq
    %v10138 = vshrl.u32 %v10137, 7
    %v10139 = vsub.s32 0, %v10138
    %v10140 = vrot.slane %v10135, %v10139
    %v10206 = vunpack.c.l.b16 %v10071
    %v10207 = vunpack.c.l.b16 %v10072
    %v10208 = vunpack.c.l.b16 %v10073
    %v10209 = vunpack.c.l.b16 %v10074
    %v10210 = vunpack.c.l.b16 %v10075
    %v10211 = vunpack.c.l.b16 %v10076
    %v10212 = vunpack.c.l.b16 %v10077
    %v10213 = vunpack.c.l.b16 %v10078
    %v10214 = vunpack.c.l.b16 %v10079
    %v10215 = vunpack.c.l.b16 %v10080
    %v10216 = vunpack.c.l.b16 %v10081
    %v10217 = vunpack.c.l.b16 %v10082
    %v10218 = vunpack.c.l.b16 %v10083
    %v10219 = vunpack.c.l.b16 %v10084
    %v10220 = vunpack.c.l.b16 %v10085
    %v10221 = vunpack.c.l.b16 %v10086
    %v10222 = vunpack.c.l.b16 %v10087
    %v10223 = vunpack.c.l.b16 %v10088
    %v10224 = vunpack.c.l.b16 %v10089
    %v10225 = vunpack.c.l.b16 %v10090
    %v10226 = vunpack.c.l.b16 %v10091
    %v10227 = vunpack.c.l.b16 %v10092
    %v10228 = vunpack.c.l.b16 %v10093
    %v10229 = vunpack.c.l.b16 %v10094
    %v10230 = vunpack.c.l.b16 %v10095
    %v10231 = vunpack.c.l.b16 %v10096
    %v10232 = vunpack.c.l.b16 %v10097
    %v10233 = vunpack.c.l.b16 %v10098
    %v10234 = vunpack.c.l.b16 %v10099
    %v10235 = vunpack.c.l.b16 %v10100
    %v10236 = vunpack.c.l.b16 %v10101
    %v10237 = vunpack.c.l.b16 %v10102
    %v10238 = vunpack.c.l.b16 %v10103
    %v10239 = vunpack.c.l.b16 %v10104
    %v10240 = vunpack.c.l.b16 %v10105
    %v10241 = vunpack.c.l.b16 %v10106
    %v10242 = vunpack.c.l.b16 %v10107
    %v10243 = vunpack.c.l.b16 %v10108
    %v10244 = vunpack.c.l.b16 %v10109
    %v10245 = vunpack.c.l.b16 %v10110
    %v10246 = vunpack.c.l.b16 %v10111
    %v10247 = vunpack.c.l.b16 %v10112
    %v10248 = vunpack.c.l.b16 %v10113
    %v10249 = vunpack.c.l.b16 %v10114
    %v10250 = vunpack.c.l.b16 %v10115
    %v10251 = vunpack.c.l.b16 %v10116
    %v10252 = vunpack.c.l.b16 %v10117
    %v10253 = vunpack.c.l.b16 %v10118
    %v10254 = vunpack.c.l.b16 %v10119
    %v10255 = vunpack.c.l.b16 %v10120
    %v10256 = vunpack.c.l.b16 %v10121
    %v10257 = vunpack.c.l.b16 %v10122
    %v10258 = vunpack.c.l.b16 %v10123
    %v10259 = vunpack.c.l.b16 %v10124
    %v10260 = vunpack.c.l.b16 %v10125
    %v10261 = vunpack.c.l.b16 %v10126
    %v10262 = vunpack.c.l.b16 %v10127
    %v10263 = vunpack.c.l.b16 %v10128
    %v10264 = vunpack.c.l.b16 %v10129
    %v10265 = vunpack.c.l.b16 %v10130
    %v10266 = vunpack.c.l.b16 %v10131
    %v10267 = vunpack.c.l.b16 %v10132
    %v10268 = vunpack.c.l.b16 %v10133
    %v10269 = vunpack.c.l.b16 %v10134
    %v10270 = vpack.c.b16 %v10207, %v10206
    %v10271 = vpack.c.b16 %v10209, %v10208
    %v10272 = vpack.c.b16 %v10211, %v10210
    %v10273 = vpack.c.b16 %v10213, %v10212
    %v10274 = vpack.c.b16 %v10215, %v10214
    %v10275 = vpack.c.b16 %v10217, %v10216
    %v10276 = vpack.c.b16 %v10219, %v10218
    %v10277 = vpack.c.b16 %v10221, %v10220
    %v10278 = vpack.c.b16 %v10223, %v10222
    %v10279 = vpack.c.b16 %v10225, %v10224
    %v10280 = vpack.c.b16 %v10227, %v10226
    %v10281 = vpack.c.b16 %v10229, %v10228
    %v10282 = vpack.c.b16 %v10231, %v10230
    %v10283 = vpack.c.b16 %v10233, %v10232
    %v10284 = vpack.c.b16 %v10235, %v10234
    %v10285 = vpack.c.b16 %v10237, %v10236
    %v10286 = vpack.c.b16 %v10239, %v10238
    %v10287 = vpack.c.b16 %v10241, %v10240
    %v10288 = vpack.c.b16 %v10243, %v10242
    %v10289 = vpack.c.b16 %v10245, %v10244
    %v10290 = vpack.c.b16 %v10247, %v10246
    %v10291 = vpack.c.b16 %v10249, %v10248
    %v10292 = vpack.c.b16 %v10251, %v10250
    %v10293 = vpack.c.b16 %v10253, %v10252
    %v10294 = vpack.c.b16 %v10255, %v10254
    %v10295 = vpack.c.b16 %v10257, %v10256
    %v10296 = vpack.c.b16 %v10259, %v10258
    %v10297 = vpack.c.b16 %v10261, %v10260
    %v10298 = vpack.c.b16 %v10263, %v10262
    %v10299 = vpack.c.b16 %v10265, %v10264
    %v10300 = vpack.c.b16 %v10267, %v10266
    %v10301 = vpack.c.b16 %v10269, %v10268
    %10334 = vmatprep.subr.bf16.mxu0 0
    %10335 = vmatpush1.bf16.msra.mxu0 %v10270
    %10336 = vmatprep.subr.bf16.mxu0 0
    %10337 = vmatpush1.bf16.msra.mxu0 %v10271
    %10338 = vmatprep.subr.bf16.mxu0 0
    %10339 = vmatpush1.bf16.msra.mxu0 %v10272
    %10340 = vmatprep.subr.bf16.mxu0 0
    %10341 = vmatpush1.bf16.msra.mxu0 %v10273
    %10342 = vmatprep.subr.bf16.mxu0 0
    %10343 = vmatpush1.bf16.msra.mxu0 %v10274
    %10344 = vmatprep.subr.bf16.mxu0 0
    %10345 = vmatpush1.bf16.msra.mxu0 %v10275
    %10346 = vmatprep.subr.bf16.mxu0 0
    %10347 = vmatpush1.bf16.msra.mxu0 %v10276
    %10348 = vmatprep.subr.bf16.mxu0 0
    %10349 = vmatpush1.bf16.msra.mxu0 %v10277
    %10350 = vmatprep.subr.bf16.mxu0 0
    %10351 = vmatpush1.bf16.msra.mxu0 %v10278
    %10352 = vmatprep.subr.bf16.mxu0 0
    %10353 = vmatpush1.bf16.msra.mxu0 %v10279
    %10354 = vmatprep.subr.bf16.mxu0 0
    %10355 = vmatpush1.bf16.msra.mxu0 %v10280
    %10356 = vmatprep.subr.bf16.mxu0 0
    %10357 = vmatpush1.bf16.msra.mxu0 %v10281
    %10358 = vmatprep.subr.bf16.mxu0 0
    %10359 = vmatpush1.bf16.msra.mxu0 %v10282
    %10360 = vmatprep.subr.bf16.mxu0 0
    %10361 = vmatpush1.bf16.msra.mxu0 %v10283
    %10362 = vmatprep.subr.bf16.mxu0 0
    %10363 = vmatpush1.bf16.msra.mxu0 %v10284
    %10364 = vmatprep.subr.bf16.mxu0 0
    %10365 = vmatpush1.bf16.msra.mxu0 %v10285
    %10366 = vmatprep.mubr.bf16.mxu0 %v9816
    %10367 = vmatmul.mubr.bf16.gmra.mrb[0].mxu0 %v9815
    %v10368 = vpop.f32.mrb[0].mxu0
    %v10369 = vadd.f32 %v10140, %v10368
    %v10370 = vpop.f32.mrb[0].mxu0
    %v10371 = vpop.f32.mrb[0].mxu0
    %v10372 = vadd.f32 %v10140, %v10371
    %v10373 = vpop.f32.mrb[0].mxu0
    %10374 = vmatprep.mubr.bf16.mxu0 %v9820
    %10375 = vmatmul.mubr.bf16.gmra.mrb[0].mxu0 %v9819
    %v10376 = vpop.f32.mrb[0].mxu0
    %v10377 = vadd.f32 %v10140, %v10376
    %v10378 = vpop.f32.mrb[0].mxu0
    %v10379 = vpop.f32.mrb[0].mxu0
    %v10380 = vadd.f32 %v10140, %v10379
    %v10381 = vpop.f32.mrb[0].mxu0
    %10382 = vmatprep.mubr.bf16.mxu0 %v9824
    %10383 = vmatmul.mubr.bf16.gmra.mrb[0].mxu0 %v9823
    %v10384 = vpop.f32.mrb[0].mxu0
    %v10385 = vadd.f32 %v10140, %v10384
    %v10386 = vpop.f32.mrb[0].mxu0
    %v10387 = vpop.f32.mrb[0].mxu0
    %v10388 = vadd.f32 %v10140, %v10387
    %v10389 = vpop.f32.mrb[0].mxu0
    %10390 = vmatprep.mubr.bf16.mxu0 %v9828
    %10391 = vmatmul.mubr.bf16.gmra.mrb[0].mxu0 %v9827
    %v10392 = vpop.f32.mrb[0].mxu0
    %v10393 = vadd.f32 %v10140, %v10392
    %v10394 = vpop.f32.mrb[0].mxu0
    %v10395 = vpop.f32.mrb[0].mxu0
    %v10396 = vadd.f32 %v10140, %v10395
    %v10397 = vpop.f32.mrb[0].mxu0
    %10398 = vmatprep.mubr.bf16.mxu0 %v9832
    %10399 = vmatmul.mubr.bf16.gmra.mrb[0].mxu0 %v9831
    %v10400 = vpop.f32.mrb[0].mxu0
    %v10401 = vadd.f32 %v10140, %v10400
    %v10402 = vpop.f32.mrb[0].mxu0
    %v10403 = vpop.f32.mrb[0].mxu0
    %v10404 = vadd.f32 %v10140, %v10403
    %v10405 = vpop.f32.mrb[0].mxu0
    %10406 = vmatprep.mubr.bf16.mxu0 %v9836
    %10407 = vmatmul.mubr.bf16.gmra.mrb[0].mxu0 %v9835
    %v10408 = vpop.f32.mrb[0].mxu0
    %v10409 = vadd.f32 %v10140, %v10408
    %v10410 = vpop.f32.mrb[0].mxu0
    %v10411 = vpop.f32.mrb[0].mxu0
    %v10412 = vadd.f32 %v10140, %v10411
    %v10413 = vpop.f32.mrb[0].mxu0
    %10414 = vmatprep.mubr.bf16.mxu0 %v9840
    %10415 = vmatmul.mubr.bf16.gmra.mrb[0].mxu0 %v9839
    %v10416 = vpop.f32.mrb[0].mxu0
    %v10417 = vadd.f32 %v10140, %v10416
    %v10418 = vpop.f32.mrb[0].mxu0
    %v10419 = vpop.f32.mrb[0].mxu0
    %v10420 = vadd.f32 %v10140, %v10419
    %v10421 = vpop.f32.mrb[0].mxu0
    %10422 = vmatprep.mubr.bf16.mxu0 %v9844
    %10423 = vmatmul.mubr.bf16.gmra.mrb[0].mxu0 %v9843
    %v10424 = vpop.f32.mrb[0].mxu0
    %v10425 = vadd.f32 %v10140, %v10424
    %v10426 = vpop.f32.mrb[0].mxu0
    %v10427 = vpop.f32.mrb[0].mxu0
    %v10428 = vadd.f32 %v10140, %v10427
    %v10429 = vpop.f32.mrb[0].mxu0
    %10430 = vmatprep.mubr.bf16.mxu0 %v9848
    %10431 = vmatmul.mubr.bf16.gmra.mrb[0].mxu0 %v9847
    %v10432 = vpop.f32.mrb[0].mxu0
    %v10433 = vadd.f32 %v10140, %v10432
    %v10434 = vpop.f32.mrb[0].mxu0
    %v10435 = vpop.f32.mrb[0].mxu0
    %v10436 = vadd.f32 %v10140, %v10435
    %v10437 = vpop.f32.mrb[0].mxu0
    %10438 = vmatprep.mubr.bf16.mxu0 %v9852
    %10439 = vmatmul.mubr.bf16.gmra.mrb[0].mxu0 %v9851
    %v10440 = vpop.f32.mrb[0].mxu0
    %v10441 = vadd.f32 %v10140, %v10440
    %v10442 = vpop.f32.mrb[0].mxu0
    %v10443 = vpop.f32.mrb[0].mxu0
    %v10444 = vadd.f32 %v10140, %v10443
    %v10445 = vpop.f32.mrb[0].mxu0
    %10446 = vmatprep.mubr.bf16.mxu0 %v9856
    %10447 = vmatmul.mubr.bf16.gmra.mrb[0].mxu0 %v9855
    %v10448 = vpop.f32.mrb[0].mxu0
    %v10449 = vadd.f32 %v10140, %v10448
    %v10450 = vpop.f32.mrb[0].mxu0
    %v10451 = vpop.f32.mrb[0].mxu0
    %v10452 = vadd.f32 %v10140, %v10451
    %v10453 = vpop.f32.mrb[0].mxu0
    %10454 = vmatprep.mubr.bf16.mxu0 %v9860
    %10455 = vmatmul.mubr.bf16.gmra.mrb[0].mxu0 %v9859
    %v10456 = vpop.f32.mrb[0].mxu0
    %v10457 = vadd.f32 %v10140, %v10456
    %v10458 = vpop.f32.mrb[0].mxu0
    %v10459 = vpop.f32.mrb[0].mxu0
    %v10460 = vadd.f32 %v10140, %v10459
    %v10461 = vpop.f32.mrb[0].mxu0
    %10462 = vmatprep.mubr.bf16.mxu0 %v9864
    %10463 = vmatmul.mubr.bf16.gmra.mrb[0].mxu0 %v9863
    %v10464 = vpop.f32.mrb[0].mxu0
    %v10465 = vadd.f32 %v10140, %v10464
    %v10466 = vpop.f32.mrb[0].mxu0
    %v10467 = vpop.f32.mrb[0].mxu0
    %v10468 = vadd.f32 %v10140, %v10467
    %v10469 = vpop.f32.mrb[0].mxu0
    %10470 = vmatprep.mubr.bf16.mxu0 %v9868
    %10471 = vmatmul.mubr.bf16.gmra.mrb[0].mxu0 %v9867
    %v10472 = vpop.f32.mrb[0].mxu0
    %v10473 = vadd.f32 %v10140, %v10472
    %v10474 = vpop.f32.mrb[0].mxu0
    %v10475 = vpop.f32.mrb[0].mxu0
    %v10476 = vadd.f32 %v10140, %v10475
    %v10477 = vpop.f32.mrb[0].mxu0
    %10478 = vmatprep.mubr.bf16.mxu0 %v9872
    %10479 = vmatmul.mubr.bf16.gmra.mrb[0].mxu0 %v9871
    %v10480 = vpop.f32.mrb[0].mxu0
    %v10481 = vadd.f32 %v10140, %v10480
    %v10482 = vpop.f32.mrb[0].mxu0
    %v10483 = vpop.f32.mrb[0].mxu0
    %v10484 = vadd.f32 %v10140, %v10483
    %v10485 = vpop.f32.mrb[0].mxu0
    %10486 = vmatprep.mubr.bf16.mxu0 %v9876
    %10487 = vmatmul.mubr.bf16.gmra.mrb[0].mxu0 %v9875
    %v10488 = vpop.f32.mrb[0].mxu0
    %v10489 = vadd.f32 %v10140, %v10488
    %v10490 = vpop.f32.mrb[0].mxu0
    %v10491 = vpop.f32.mrb[0].mxu0
    %v10492 = vadd.f32 %v10140, %v10491
    %v10493 = vpop.f32.mrb[0].mxu0
    %10494 = vmatprep.mubr.bf16.mxu0 %v9880
    %10495 = vmatmul.mubr.bf16.gmra.mrb[0].mxu0 %v9879
    %v10496 = vpop.f32.mrb[0].mxu0
    %v10497 = vadd.f32 %v10140, %v10496
    %v10498 = vpop.f32.mrb[0].mxu0
    %v10499 = vpop.f32.mrb[0].mxu0
    %v10500 = vadd.f32 %v10140, %v10499
    %v10501 = vpop.f32.mrb[0].mxu0
    %10502 = vmatprep.mubr.bf16.mxu0 %v9884
    %10503 = vmatmul.mubr.bf16.gmra.mrb[0].mxu0 %v9883
    %v10504 = vpop.f32.mrb[0].mxu0
    %v10505 = vadd.f32 %v10140, %v10504
    %v10506 = vpop.f32.mrb[0].mxu0
    %v10507 = vpop.f32.mrb[0].mxu0
    %v10508 = vadd.f32 %v10140, %v10507
    %v10509 = vpop.f32.mrb[0].mxu0
    %10510 = vmatprep.mubr.bf16.mxu0 %v9888
    %10511 = vmatmul.mubr.bf16.gmra.mrb[0].mxu0 %v9887
    %v10512 = vpop.f32.mrb[0].mxu0
    %v10513 = vadd.f32 %v10140, %v10512
    %v10514 = vpop.f32.mrb[0].mxu0
    %v10515 = vpop.f32.mrb[0].mxu0
    %v10516 = vadd.f32 %v10140, %v10515
    %v10517 = vpop.f32.mrb[0].mxu0
    %10518 = vmatprep.mubr.bf16.mxu0 %v9892
    %10519 = vmatmul.mubr.bf16.gmra.mrb[0].mxu0 %v9891
    %v10520 = vpop.f32.mrb[0].mxu0
    %v10521 = vadd.f32 %v10140, %v10520
    %v10522 = vpop.f32.mrb[0].mxu0
    %v10523 = vpop.f32.mrb[0].mxu0
    %v10524 = vadd.f32 %v10140, %v10523
    %v10525 = vpop.f32.mrb[0].mxu0
    %10526 = vmatprep.mubr.bf16.mxu0 %v9896
    %10527 = vmatmul.mubr.bf16.gmra.mrb[0].mxu0 %v9895
    %v10528 = vpop.f32.mrb[0].mxu0
    %v10529 = vadd.f32 %v10140, %v10528
    %v10530 = vpop.f32.mrb[0].mxu0
    %v10531 = vpop.f32.mrb[0].mxu0
    %v10532 = vadd.f32 %v10140, %v10531
    %v10533 = vpop.f32.mrb[0].mxu0
    %10534 = vmatprep.mubr.bf16.mxu0 %v9900
    %10535 = vmatmul.mubr.bf16.gmra.mrb[0].mxu0 %v9899
    %v10536 = vpop.f32.mrb[0].mxu0
    %v10537 = vadd.f32 %v10140, %v10536
    %v10538 = vpop.f32.mrb[0].mxu0
    %v10539 = vpop.f32.mrb[0].mxu0
    %v10540 = vadd.f32 %v10140, %v10539
    %v10541 = vpop.f32.mrb[0].mxu0
    %10542 = vmatprep.mubr.bf16.mxu0 %v9904
    %10543 = vmatmul.mubr.bf16.gmra.mrb[0].mxu0 %v9903
    %v10544 = vpop.f32.mrb[0].mxu0
    %v10545 = vadd.f32 %v10140, %v10544
    %v10546 = vpop.f32.mrb[0].mxu0
    %v10547 = vpop.f32.mrb[0].mxu0
    %v10548 = vadd.f32 %v10140, %v10547
    %v10549 = vpop.f32.mrb[0].mxu0
    %10550 = vmatprep.mubr.bf16.mxu0 %v9908
    %10551 = vmatmul.mubr.bf16.gmra.mrb[0].mxu0 %v9907
    %v10552 = vpop.f32.mrb[0].mxu0
    %v10553 = vadd.f32 %v10140, %v10552
    %v10554 = vpop.f32.mrb[0].mxu0
    %v10555 = vpop.f32.mrb[0].mxu0
    %v10556 = vadd.f32 %v10140, %v10555
    %v10557 = vpop.f32.mrb[0].mxu0
    %10558 = vmatprep.mubr.bf16.mxu0 %v9912
    %10559 = vmatmul.mubr.bf16.gmra.mrb[0].mxu0 %v9911
    %v10560 = vpop.f32.mrb[0].mxu0
    %v10561 = vadd.f32 %v10140, %v10560
    %v10562 = vpop.f32.mrb[0].mxu0
    %v10563 = vpop.f32.mrb[0].mxu0
    %v10564 = vadd.f32 %v10140, %v10563
    %v10565 = vpop.f32.mrb[0].mxu0
    %10566 = vmatprep.mubr.bf16.mxu0 %v9916
    %10567 = vmatmul.mubr.bf16.gmra.mrb[0].mxu0 %v9915
    %v10568 = vpop.f32.mrb[0].mxu0
    %v10569 = vadd.f32 %v10140, %v10568
    %v10570 = vpop.f32.mrb[0].mxu0
    %v10571 = vpop.f32.mrb[0].mxu0
    %v10572 = vadd.f32 %v10140, %v10571
    %v10573 = vpop.f32.mrb[0].mxu0
    %10574 = vmatprep.mubr.bf16.mxu0 %v9920
    %10575 = vmatmul.mubr.bf16.gmra.mrb[0].mxu0 %v9919
    %v10576 = vpop.f32.mrb[0].mxu0
    %v10577 = vadd.f32 %v10140, %v10576
    %v10578 = vpop.f32.mrb[0].mxu0
    %v10579 = vpop.f32.mrb[0].mxu0
    %v10580 = vadd.f32 %v10140, %v10579
    %v10581 = vpop.f32.mrb[0].mxu0
    %10582 = vmatprep.mubr.bf16.mxu0 %v9924
    %10583 = vmatmul.mubr.bf16.gmra.mrb[0].mxu0 %v9923
    %v10584 = vpop.f32.mrb[0].mxu0
    %v10585 = vadd.f32 %v10140, %v10584
    %v10586 = vpop.f32.mrb[0].mxu0
    %v10587 = vpop.f32.mrb[0].mxu0
    %v10588 = vadd.f32 %v10140, %v10587
    %v10589 = vpop.f32.mrb[0].mxu0
    %10590 = vmatprep.mubr.bf16.mxu0 %v9928
    %10591 = vmatmul.mubr.bf16.gmra.mrb[0].mxu0 %v9927
    %v10592 = vpop.f32.mrb[0].mxu0
    %v10593 = vadd.f32 %v10140, %v10592
    %v10594 = vpop.f32.mrb[0].mxu0
    %v10595 = vpop.f32.mrb[0].mxu0
    %v10596 = vadd.f32 %v10140, %v10595
    %v10597 = vpop.f32.mrb[0].mxu0
    %10598 = vmatprep.mubr.bf16.mxu0 %v9932
    %10599 = vmatmul.mubr.bf16.gmra.mrb[0].mxu0 %v9931
    %v10600 = vpop.f32.mrb[0].mxu0
    %v10601 = vadd.f32 %v10140, %v10600
    %v10602 = vpop.f32.mrb[0].mxu0
    %v10603 = vpop.f32.mrb[0].mxu0
    %v10604 = vadd.f32 %v10140, %v10603
    %v10605 = vpop.f32.mrb[0].mxu0
    %10606 = vmatprep.mubr.bf16.mxu0 %v9936
    %10607 = vmatmul.mubr.bf16.gmra.mrb[0].mxu0 %v9935
    %v10608 = vpop.f32.mrb[0].mxu0
    %v10609 = vadd.f32 %v10140, %v10608
    %v10610 = vpop.f32.mrb[0].mxu0
    %v10611 = vpop.f32.mrb[0].mxu0
    %v10612 = vadd.f32 %v10140, %v10611
    %v10613 = vpop.f32.mrb[0].mxu0
    %10614 = vmatprep.mubr.bf16.mxu0 %v9940
    %10615 = vmatmul.mubr.bf16.gmra.mrb[0].mxu0 %v9939
    %v10616 = vpop.f32.mrb[0].mxu0
    %v10617 = vadd.f32 %v10140, %v10616
    %v10618 = vpop.f32.mrb[0].mxu0
    %v10619 = vpop.f32.mrb[0].mxu0
    %v10620 = vadd.f32 %v10140, %v10619
    %v10621 = vpop.f32.mrb[0].mxu0
    %10622 = vmatprep.mubr.bf16.mxu0 %v9944
    %10623 = vmatmul.mubr.bf16.gmra.mrb[0].mxu0 %v9943
    %v10624 = vpop.f32.mrb[0].mxu0
    %v10625 = vadd.f32 %v10140, %v10624
    %v10626 = vpop.f32.mrb[0].mxu0
    %v10627 = vpop.f32.mrb[0].mxu0
    %v10628 = vadd.f32 %v10140, %v10627
    %v10629 = vpop.f32.mrb[0].mxu0
    %10630 = vmatprep.mubr.bf16.mxu0 %v9948
    %10631 = vmatmul.mubr.bf16.gmra.mrb[0].mxu0 %v9947
    %v10632 = vpop.f32.mrb[0].mxu0
    %v10633 = vadd.f32 %v10140, %v10632
    %v10634 = vpop.f32.mrb[0].mxu0
    %v10635 = vpop.f32.mrb[0].mxu0
    %v10636 = vadd.f32 %v10140, %v10635
    %v10637 = vpop.f32.mrb[0].mxu0
    %10638 = vmatprep.mubr.bf16.mxu0 %v9952
    %10639 = vmatmul.mubr.bf16.gmra.mrb[0].mxu0 %v9951
    %v10640 = vpop.f32.mrb[0].mxu0
    %v10641 = vadd.f32 %v10140, %v10640
    %v10642 = vpop.f32.mrb[0].mxu0
    %v10643 = vpop.f32.mrb[0].mxu0
    %v10644 = vadd.f32 %v10140, %v10643
    %v10645 = vpop.f32.mrb[0].mxu0
    %10646 = vmatprep.mubr.bf16.mxu0 %v9956
    %10647 = vmatmul.mubr.bf16.gmra.mrb[0].mxu0 %v9955
    %v10648 = vpop.f32.mrb[0].mxu0
    %v10649 = vadd.f32 %v10140, %v10648
    %v10650 = vpop.f32.mrb[0].mxu0
    %v10651 = vpop.f32.mrb[0].mxu0
    %v10652 = vadd.f32 %v10140, %v10651
    %v10653 = vpop.f32.mrb[0].mxu0
    %10654 = vmatprep.mubr.bf16.mxu0 %v9960
    %10655 = vmatmul.mubr.bf16.gmra.mrb[0].mxu0 %v9959
    %v10656 = vpop.f32.mrb[0].mxu0
    %v10657 = vadd.f32 %v10140, %v10656
    %v10658 = vpop.f32.mrb[0].mxu0
    %v10659 = vpop.f32.mrb[0].mxu0
    %v10660 = vadd.f32 %v10140, %v10659
    %v10661 = vpop.f32.mrb[0].mxu0
    %10662 = vmatprep.mubr.bf16.mxu0 %v9964
    %10663 = vmatmul.mubr.bf16.gmra.mrb[0].mxu0 %v9963
    %v10664 = vpop.f32.mrb[0].mxu0
    %v10665 = vadd.f32 %v10140, %v10664
    %v10666 = vpop.f32.mrb[0].mxu0
    %v10667 = vpop.f32.mrb[0].mxu0
    %v10668 = vadd.f32 %v10140, %v10667
    %v10669 = vpop.f32.mrb[0].mxu0
    %10670 = vmatprep.mubr.bf16.mxu0 %v9968
    %10671 = vmatmul.mubr.bf16.gmra.mrb[0].mxu0 %v9967
    %v10672 = vpop.f32.mrb[0].mxu0
    %v10673 = vadd.f32 %v10140, %v10672
    %v10674 = vpop.f32.mrb[0].mxu0
    %v10675 = vpop.f32.mrb[0].mxu0
    %v10676 = vadd.f32 %v10140, %v10675
    %v10677 = vpop.f32.mrb[0].mxu0
    %10678 = vmatprep.mubr.bf16.mxu0 %v9972
    %10679 = vmatmul.mubr.bf16.gmra.mrb[0].mxu0 %v9971
    %v10680 = vpop.f32.mrb[0].mxu0
    %v10681 = vadd.f32 %v10140, %v10680
    %v10682 = vpop.f32.mrb[0].mxu0
    %v10683 = vpop.f32.mrb[0].mxu0
    %v10684 = vadd.f32 %v10140, %v10683
    %v10685 = vpop.f32.mrb[0].mxu0
    %10686 = vmatprep.mubr.bf16.mxu0 %v9976
    %10687 = vmatmul.mubr.bf16.gmra.mrb[0].mxu0 %v9975
    %v10688 = vpop.f32.mrb[0].mxu0
    %v10689 = vadd.f32 %v10140, %v10688
    %v10690 = vpop.f32.mrb[0].mxu0
    %v10691 = vpop.f32.mrb[0].mxu0
    %v10692 = vadd.f32 %v10140, %v10691
    %v10693 = vpop.f32.mrb[0].mxu0
    %10694 = vmatprep.mubr.bf16.mxu0 %v9980
    %10695 = vmatmul.mubr.bf16.gmra.mrb[0].mxu0 %v9979
    %v10696 = vpop.f32.mrb[0].mxu0
    %v10697 = vadd.f32 %v10140, %v10696
    %v10698 = vpop.f32.mrb[0].mxu0
    %v10699 = vpop.f32.mrb[0].mxu0
    %v10700 = vadd.f32 %v10140, %v10699
    %v10701 = vpop.f32.mrb[0].mxu0
    %10702 = vmatprep.mubr.bf16.mxu0 %v9984
    %10703 = vmatmul.mubr.bf16.gmra.mrb[0].mxu0 %v9983
    %v10704 = vpop.f32.mrb[0].mxu0
    %v10705 = vadd.f32 %v10140, %v10704
    %v10706 = vpop.f32.mrb[0].mxu0
    %v10707 = vpop.f32.mrb[0].mxu0
    %v10708 = vadd.f32 %v10140, %v10707
    %v10709 = vpop.f32.mrb[0].mxu0
    %10710 = vmatprep.mubr.bf16.mxu0 %v9988
    %10711 = vmatmul.mubr.bf16.gmra.mrb[0].mxu0 %v9987
    %v10712 = vpop.f32.mrb[0].mxu0
    %v10713 = vadd.f32 %v10140, %v10712
    %v10714 = vpop.f32.mrb[0].mxu0
    %v10715 = vpop.f32.mrb[0].mxu0
    %v10716 = vadd.f32 %v10140, %v10715
    %v10717 = vpop.f32.mrb[0].mxu0
    %10718 = vmatprep.mubr.bf16.mxu0 %v9992
    %10719 = vmatmul.mubr.bf16.gmra.mrb[0].mxu0 %v9991
    %v10720 = vpop.f32.mrb[0].mxu0
    %v10721 = vadd.f32 %v10140, %v10720
    %v10722 = vpop.f32.mrb[0].mxu0
    %v10723 = vpop.f32.mrb[0].mxu0
    %v10724 = vadd.f32 %v10140, %v10723
    %v10725 = vpop.f32.mrb[0].mxu0
    %10726 = vmatprep.mubr.bf16.mxu0 %v9996
    %10727 = vmatmul.mubr.bf16.gmra.mrb[0].mxu0 %v9995
    %v10728 = vpop.f32.mrb[0].mxu0
    %v10729 = vadd.f32 %v10140, %v10728
    %v10730 = vpop.f32.mrb[0].mxu0
    %v10731 = vpop.f32.mrb[0].mxu0
    %v10732 = vadd.f32 %v10140, %v10731
    %v10733 = vpop.f32.mrb[0].mxu0
    %10734 = vmatprep.mubr.bf16.mxu0 %v10000
    %10735 = vmatmul.mubr.bf16.gmra.mrb[0].mxu0 %v9999
    %v10736 = vpop.f32.mrb[0].mxu0
    %v10737 = vadd.f32 %v10140, %v10736
    %v10738 = vpop.f32.mrb[0].mxu0
    %v10739 = vpop.f32.mrb[0].mxu0
    %v10740 = vadd.f32 %v10140, %v10739
    %v10741 = vpop.f32.mrb[0].mxu0
    %10742 = vmatprep.mubr.bf16.mxu0 %v10004
    %10743 = vmatmul.mubr.bf16.gmra.mrb[0].mxu0 %v10003
    %v10744 = vpop.f32.mrb[0].mxu0
    %v10745 = vadd.f32 %v10140, %v10744
    %v10746 = vpop.f32.mrb[0].mxu0
    %v10747 = vpop.f32.mrb[0].mxu0
    %v10748 = vadd.f32 %v10140, %v10747
    %v10749 = vpop.f32.mrb[0].mxu0
    %10750 = vmatprep.mubr.bf16.mxu0 %v10008
    %10751 = vmatmul.mubr.bf16.gmra.mrb[0].mxu0 %v10007
    %v10752 = vpop.f32.mrb[0].mxu0
    %v10753 = vadd.f32 %v10140, %v10752
    %v10754 = vpop.f32.mrb[0].mxu0
    %v10755 = vpop.f32.mrb[0].mxu0
    %v10756 = vadd.f32 %v10140, %v10755
    %v10757 = vpop.f32.mrb[0].mxu0
    %10758 = vmatprep.mubr.bf16.mxu0 %v10012
    %10759 = vmatmul.mubr.bf16.gmra.mrb[0].mxu0 %v10011
    %v10760 = vpop.f32.mrb[0].mxu0
    %v10761 = vadd.f32 %v10140, %v10760
    %v10762 = vpop.f32.mrb[0].mxu0
    %v10763 = vpop.f32.mrb[0].mxu0
    %v10764 = vadd.f32 %v10140, %v10763
    %v10765 = vpop.f32.mrb[0].mxu0
    %10766 = vmatprep.mubr.bf16.mxu0 %v10016
    %10767 = vmatmul.mubr.bf16.gmra.mrb[0].mxu0 %v10015
    %v10768 = vpop.f32.mrb[0].mxu0
    %v10769 = vadd.f32 %v10140, %v10768
    %v10770 = vpop.f32.mrb[0].mxu0
    %v10771 = vpop.f32.mrb[0].mxu0
    %v10772 = vadd.f32 %v10140, %v10771
    %v10773 = vpop.f32.mrb[0].mxu0
    %10774 = vmatprep.mubr.bf16.mxu0 %v10020
    %10775 = vmatmul.mubr.bf16.gmra.mrb[0].mxu0 %v10019
    %v10776 = vpop.f32.mrb[0].mxu0
    %v10777 = vadd.f32 %v10140, %v10776
    %v10778 = vpop.f32.mrb[0].mxu0
    %v10779 = vpop.f32.mrb[0].mxu0
    %v10780 = vadd.f32 %v10140, %v10779
    %v10781 = vpop.f32.mrb[0].mxu0
    %10782 = vmatprep.mubr.bf16.mxu0 %v10024
    %10783 = vmatmul.mubr.bf16.gmra.mrb[0].mxu0 %v10023
    %v10784 = vpop.f32.mrb[0].mxu0
    %v10785 = vadd.f32 %v10140, %v10784
    %v10786 = vpop.f32.mrb[0].mxu0
    %v10787 = vpop.f32.mrb[0].mxu0
    %v10788 = vadd.f32 %v10140, %v10787
    %v10789 = vpop.f32.mrb[0].mxu0
    %10790 = vmatprep.mubr.bf16.mxu0 %v10028
    %10791 = vmatmul.mubr.bf16.gmra.mrb[0].mxu0 %v10027
    %v10792 = vpop.f32.mrb[0].mxu0
    %v10793 = vadd.f32 %v10140, %v10792
    %v10794 = vpop.f32.mrb[0].mxu0
    %v10795 = vpop.f32.mrb[0].mxu0
    %v10796 = vadd.f32 %v10140, %v10795
    %v10797 = vpop.f32.mrb[0].mxu0
    %10798 = vmatprep.mubr.bf16.mxu0 %v10032
    %10799 = vmatmul.mubr.bf16.gmra.mrb[0].mxu0 %v10031
    %v10800 = vpop.f32.mrb[0].mxu0
    %v10801 = vadd.f32 %v10140, %v10800
    %v10802 = vpop.f32.mrb[0].mxu0
    %v10803 = vpop.f32.mrb[0].mxu0
    %v10804 = vadd.f32 %v10140, %v10803
    %v10805 = vpop.f32.mrb[0].mxu0
    %10806 = vmatprep.mubr.bf16.mxu0 %v10036
    %10807 = vmatmul.mubr.bf16.gmra.mrb[0].mxu0 %v10035
    %v10808 = vpop.f32.mrb[0].mxu0
    %v10809 = vadd.f32 %v10140, %v10808
    %v10810 = vpop.f32.mrb[0].mxu0
    %v10811 = vpop.f32.mrb[0].mxu0
    %v10812 = vadd.f32 %v10140, %v10811
    %v10813 = vpop.f32.mrb[0].mxu0
    %10814 = vmatprep.mubr.bf16.mxu0 %v10040
    %10815 = vmatmul.mubr.bf16.gmra.mrb[0].mxu0 %v10039
    %v10816 = vpop.f32.mrb[0].mxu0
    %v10817 = vadd.f32 %v10140, %v10816
    %v10818 = vpop.f32.mrb[0].mxu0
    %v10819 = vpop.f32.mrb[0].mxu0
    %v10820 = vadd.f32 %v10140, %v10819
    %v10821 = vpop.f32.mrb[0].mxu0
    %10822 = vmatprep.mubr.bf16.mxu0 %v10044
    %10823 = vmatmul.mubr.bf16.gmra.mrb[0].mxu0 %v10043
    %v10824 = vpop.f32.mrb[0].mxu0
    %v10825 = vadd.f32 %v10140, %v10824
    %v10826 = vpop.f32.mrb[0].mxu0
    %v10827 = vpop.f32.mrb[0].mxu0
    %v10828 = vadd.f32 %v10140, %v10827
    %v10829 = vpop.f32.mrb[0].mxu0
    %10830 = vmatprep.mubr.bf16.mxu0 %v10048
    %10831 = vmatmul.mubr.bf16.gmra.mrb[0].mxu0 %v10047
    %v10832 = vpop.f32.mrb[0].mxu0
    %v10833 = vadd.f32 %v10140, %v10832
    %v10834 = vpop.f32.mrb[0].mxu0
    %v10835 = vpop.f32.mrb[0].mxu0
    %v10836 = vadd.f32 %v10140, %v10835
    %v10837 = vpop.f32.mrb[0].mxu0
    %10838 = vmatprep.mubr.bf16.mxu0 %v10052
    %10839 = vmatmul.mubr.bf16.gmra.mrb[0].mxu0 %v10051
    %v10840 = vpop.f32.mrb[0].mxu0
    %v10841 = vadd.f32 %v10140, %v10840
    %v10842 = vpop.f32.mrb[0].mxu0
    %v10843 = vpop.f32.mrb[0].mxu0
    %v10844 = vadd.f32 %v10140, %v10843
    %v10845 = vpop.f32.mrb[0].mxu0
    %10846 = vmatprep.mubr.bf16.mxu0 %v10056
    %10847 = vmatmul.mubr.bf16.gmra.mrb[0].mxu0 %v10055
    %v10848 = vpop.f32.mrb[0].mxu0
    %v10849 = vadd.f32 %v10140, %v10848
    %v10850 = vpop.f32.mrb[0].mxu0
    %v10851 = vpop.f32.mrb[0].mxu0
    %v10852 = vadd.f32 %v10140, %v10851
    %v10853 = vpop.f32.mrb[0].mxu0
    %10854 = vmatprep.mubr.bf16.mxu0 %v10060
    %10855 = vmatmul.mubr.bf16.gmra.mrb[0].mxu0 %v10059
    %v10856 = vpop.f32.mrb[0].mxu0
    %v10857 = vadd.f32 %v10140, %v10856
    %v10858 = vpop.f32.mrb[0].mxu0
    %v10859 = vpop.f32.mrb[0].mxu0
    %v10860 = vadd.f32 %v10140, %v10859
    %v10861 = vpop.f32.mrb[0].mxu0
    %10862 = vmatprep.mubr.bf16.mxu0 %v10064
    %10863 = vmatmul.mubr.bf16.gmra.mrb[0].mxu0 %v10063
    %v10864 = vpop.f32.mrb[0].mxu0
    %v10865 = vadd.f32 %v10140, %v10864
    %v10866 = vpop.f32.mrb[0].mxu0
    %v10867 = vpop.f32.mrb[0].mxu0
    %v10868 = vadd.f32 %v10140, %v10867
    %v10869 = vpop.f32.mrb[0].mxu0
    %10870 = vmatprep.mubr.bf16.mxu0 %v10068
    %10871 = vmatmul.mubr.bf16.gmra.mrb[0].mxu0 %v10067
    %v10872 = vpop.f32.mrb[0].mxu0
    %v10873 = vadd.f32 %v10140, %v10872
    %v10874 = vpop.f32.mrb[0].mxu0
    %v10875 = vpop.f32.mrb[0].mxu0
    %v10876 = vadd.f32 %v10140, %v10875
    %v10877 = vpop.f32.mrb[0].mxu0
    %10878 = vdwg.mxu0
    %10879 = vmatprep.subr.bf16.mxu0 0
    %10880 = vmatpush1.bf16.msra.mxu0 %v10286
    %10881 = vmatprep.subr.bf16.mxu0 0
    %10882 = vmatpush1.bf16.msra.mxu0 %v10287
    %10883 = vmatprep.subr.bf16.mxu0 0
    %10884 = vmatpush1.bf16.msra.mxu0 %v10288
    %10885 = vmatprep.subr.bf16.mxu0 0
    %10886 = vmatpush1.bf16.msra.mxu0 %v10289
    %10887 = vmatprep.subr.bf16.mxu0 0
    %10888 = vmatpush1.bf16.msra.mxu0 %v10290
    %10889 = vmatprep.subr.bf16.mxu0 0
    %10890 = vmatpush1.bf16.msra.mxu0 %v10291
    %10891 = vmatprep.subr.bf16.mxu0 0
    %10892 = vmatpush1.bf16.msra.mxu0 %v10292
    %10893 = vmatprep.subr.bf16.mxu0 0
    %10894 = vmatpush1.bf16.msra.mxu0 %v10293
    %10895 = vmatprep.subr.bf16.mxu0 0
    %10896 = vmatpush1.bf16.msra.mxu0 %v10294
    %10897 = vmatprep.subr.bf16.mxu0 0
    %10898 = vmatpush1.bf16.msra.mxu0 %v10295
    %10899 = vmatprep.subr.bf16.mxu0 0
    %10900 = vmatpush1.bf16.msra.mxu0 %v10296
    %10901 = vmatprep.subr.bf16.mxu0 0
    %10902 = vmatpush1.bf16.msra.mxu0 %v10297
    %10903 = vmatprep.subr.bf16.mxu0 0
    %10904 = vmatpush1.bf16.msra.mxu0 %v10298
    %10905 = vmatprep.subr.bf16.mxu0 0
    %10906 = vmatpush1.bf16.msra.mxu0 %v10299
    %10907 = vmatprep.subr.bf16.mxu0 0
    %10908 = vmatpush1.bf16.msra.mxu0 %v10300
    %10909 = vmatprep.subr.bf16.mxu0 0
    %10910 = vmatpush1.bf16.msra.mxu0 %v10301
    %10911 = vmatprep.mubr.bf16.mxu0 %v9818
    %10912 = vmatmul.mubr.bf16.gmra.mrb[0].mxu0 %v9817
    %v10913 = vpop.f32.mrb[0].mxu0
    %v10914 = vadd.f32 %v10369, %v10913
    %v10915 = vpop.f32.mrb[0].mxu0
    %v10916 = vpop.f32.mrb[0].mxu0
    %v10917 = vadd.f32 %v10372, %v10916
    %v10918 = vpop.f32.mrb[0].mxu0
    %10919 = vmatprep.mubr.bf16.mxu0 %v9822
    %10920 = vmatmul.mubr.bf16.gmra.mrb[0].mxu0 %v9821
    %v10921 = vpop.f32.mrb[0].mxu0
    %v10922 = vadd.f32 %v10377, %v10921
    %v10923 = vpop.f32.mrb[0].mxu0
    %v10924 = vpop.f32.mrb[0].mxu0
    %v10925 = vadd.f32 %v10380, %v10924
    %v10926 = vpop.f32.mrb[0].mxu0
    %10927 = vmatprep.mubr.bf16.mxu0 %v9826
    %10928 = vmatmul.mubr.bf16.gmra.mrb[0].mxu0 %v9825
    %v10929 = vpop.f32.mrb[0].mxu0
    %v10930 = vadd.f32 %v10385, %v10929
    %v10931 = vpop.f32.mrb[0].mxu0
    %v10932 = vpop.f32.mrb[0].mxu0
    %v10933 = vadd.f32 %v10388, %v10932
    %v10934 = vpop.f32.mrb[0].mxu0
    %10935 = vmatprep.mubr.bf16.mxu0 %v9830
    %10936 = vmatmul.mubr.bf16.gmra.mrb[0].mxu0 %v9829
    %v10937 = vpop.f32.mrb[0].mxu0
    %v10938 = vadd.f32 %v10393, %v10937
    %v10939 = vpop.f32.mrb[0].mxu0
    %v10940 = vpop.f32.mrb[0].mxu0
    %v10941 = vadd.f32 %v10396, %v10940
    %v10942 = vpop.f32.mrb[0].mxu0
    %10943 = vmatprep.mubr.bf16.mxu0 %v9834
    %10944 = vmatmul.mubr.bf16.gmra.mrb[0].mxu0 %v9833
    %v10945 = vpop.f32.mrb[0].mxu0
    %v10946 = vadd.f32 %v10401, %v10945
    %v10947 = vpop.f32.mrb[0].mxu0
    %v10948 = vpop.f32.mrb[0].mxu0
    %v10949 = vadd.f32 %v10404, %v10948
    %v10950 = vpop.f32.mrb[0].mxu0
    %10951 = vmatprep.mubr.bf16.mxu0 %v9838
    %10952 = vmatmul.mubr.bf16.gmra.mrb[0].mxu0 %v9837
    %v10953 = vpop.f32.mrb[0].mxu0
    %v10954 = vadd.f32 %v10409, %v10953
    %v10955 = vpop.f32.mrb[0].mxu0
    %v10956 = vpop.f32.mrb[0].mxu0
    %v10957 = vadd.f32 %v10412, %v10956
    %v10958 = vpop.f32.mrb[0].mxu0
    %10959 = vmatprep.mubr.bf16.mxu0 %v9842
    %10960 = vmatmul.mubr.bf16.gmra.mrb[0].mxu0 %v9841
    %v10961 = vpop.f32.mrb[0].mxu0
    %v10962 = vadd.f32 %v10417, %v10961
    %v10963 = vpop.f32.mrb[0].mxu0
    %v10964 = vpop.f32.mrb[0].mxu0
    %v10965 = vadd.f32 %v10420, %v10964
    %v10966 = vpop.f32.mrb[0].mxu0
    %10967 = vmatprep.mubr.bf16.mxu0 %v9846
    %10968 = vmatmul.mubr.bf16.gmra.mrb[0].mxu0 %v9845
    %v10969 = vpop.f32.mrb[0].mxu0
    %v10970 = vadd.f32 %v10425, %v10969
    %v10971 = vpop.f32.mrb[0].mxu0
    %v10972 = vpop.f32.mrb[0].mxu0
    %v10973 = vadd.f32 %v10428, %v10972
    %v10974 = vpop.f32.mrb[0].mxu0
    %10975 = vmatprep.mubr.bf16.mxu0 %v9850
    %10976 = vmatmul.mubr.bf16.gmra.mrb[0].mxu0 %v9849
    %v10977 = vpop.f32.mrb[0].mxu0
    %v10978 = vadd.f32 %v10433, %v10977
    %v10979 = vpop.f32.mrb[0].mxu0
    %v10980 = vpop.f32.mrb[0].mxu0
    %v10981 = vadd.f32 %v10436, %v10980
    %v10982 = vpop.f32.mrb[0].mxu0
    %10983 = vmatprep.mubr.bf16.mxu0 %v9854
    %10984 = vmatmul.mubr.bf16.gmra.mrb[0].mxu0 %v9853
    %v10985 = vpop.f32.mrb[0].mxu0
    %v10986 = vadd.f32 %v10441, %v10985
    %v10987 = vpop.f32.mrb[0].mxu0
    %v10988 = vpop.f32.mrb[0].mxu0
    %v10989 = vadd.f32 %v10444, %v10988
    %v10990 = vpop.f32.mrb[0].mxu0
    %10991 = vmatprep.mubr.bf16.mxu0 %v9858
    %10992 = vmatmul.mubr.bf16.gmra.mrb[0].mxu0 %v9857
    %v10993 = vpop.f32.mrb[0].mxu0
    %v10994 = vadd.f32 %v10449, %v10993
    %v10995 = vpop.f32.mrb[0].mxu0
    %v10996 = vpop.f32.mrb[0].mxu0
    %v10997 = vadd.f32 %v10452, %v10996
    %v10998 = vpop.f32.mrb[0].mxu0
    %10999 = vmatprep.mubr.bf16.mxu0 %v9862
    %11000 = vmatmul.mubr.bf16.gmra.mrb[0].mxu0 %v9861
    %v11001 = vpop.f32.mrb[0].mxu0
    %v11002 = vadd.f32 %v10457, %v11001
    %v11003 = vpop.f32.mrb[0].mxu0
    %v11004 = vpop.f32.mrb[0].mxu0
    %v11005 = vadd.f32 %v10460, %v11004
    %v11006 = vpop.f32.mrb[0].mxu0
    %11007 = vmatprep.mubr.bf16.mxu0 %v9866
    %11008 = vmatmul.mubr.bf16.gmra.mrb[0].mxu0 %v9865
    %v11009 = vpop.f32.mrb[0].mxu0
    %v11010 = vadd.f32 %v10465, %v11009
    %v11011 = vpop.f32.mrb[0].mxu0
    %v11012 = vpop.f32.mrb[0].mxu0
    %v11013 = vadd.f32 %v10468, %v11012
    %v11014 = vpop.f32.mrb[0].mxu0
    %11015 = vmatprep.mubr.bf16.mxu0 %v9870
    %11016 = vmatmul.mubr.bf16.gmra.mrb[0].mxu0 %v9869
    %v11017 = vpop.f32.mrb[0].mxu0
    %v11018 = vadd.f32 %v10473, %v11017
    %v11019 = vpop.f32.mrb[0].mxu0
    %v11020 = vpop.f32.mrb[0].mxu0
    %v11021 = vadd.f32 %v10476, %v11020
    %v11022 = vpop.f32.mrb[0].mxu0
    %11023 = vmatprep.mubr.bf16.mxu0 %v9874
    %11024 = vmatmul.mubr.bf16.gmra.mrb[0].mxu0 %v9873
    %v11025 = vpop.f32.mrb[0].mxu0
    %v11026 = vadd.f32 %v10481, %v11025
    %v11027 = vpop.f32.mrb[0].mxu0
    %v11028 = vpop.f32.mrb[0].mxu0
    %v11029 = vadd.f32 %v10484, %v11028
    %v11030 = vpop.f32.mrb[0].mxu0
    %11031 = vmatprep.mubr.bf16.mxu0 %v9878
    %11032 = vmatmul.mubr.bf16.gmra.mrb[0].mxu0 %v9877
    %v11033 = vpop.f32.mrb[0].mxu0
    %v11034 = vadd.f32 %v10489, %v11033
    %v11035 = vpop.f32.mrb[0].mxu0
    %v11036 = vpop.f32.mrb[0].mxu0
    %v11037 = vadd.f32 %v10492, %v11036
    %v11038 = vpop.f32.mrb[0].mxu0
    %11039 = vmatprep.mubr.bf16.mxu0 %v9882
    %11040 = vmatmul.mubr.bf16.gmra.mrb[0].mxu0 %v9881
    %v11041 = vpop.f32.mrb[0].mxu0
    %v11042 = vadd.f32 %v10497, %v11041
    %v11043 = vpop.f32.mrb[0].mxu0
    %v11044 = vpop.f32.mrb[0].mxu0
    %v11045 = vadd.f32 %v10500, %v11044
    %v11046 = vpop.f32.mrb[0].mxu0
    %11047 = vmatprep.mubr.bf16.mxu0 %v9886
    %11048 = vmatmul.mubr.bf16.gmra.mrb[0].mxu0 %v9885
    %v11049 = vpop.f32.mrb[0].mxu0
    %v11050 = vadd.f32 %v10505, %v11049
    %v11051 = vpop.f32.mrb[0].mxu0
    %v11052 = vpop.f32.mrb[0].mxu0
    %v11053 = vadd.f32 %v10508, %v11052
    %v11054 = vpop.f32.mrb[0].mxu0
    %11055 = vmatprep.mubr.bf16.mxu0 %v9890
    %11056 = vmatmul.mubr.bf16.gmra.mrb[0].mxu0 %v9889
    %v11057 = vpop.f32.mrb[0].mxu0
    %v11058 = vadd.f32 %v10513, %v11057
    %v11059 = vpop.f32.mrb[0].mxu0
    %v11060 = vpop.f32.mrb[0].mxu0
    %v11061 = vadd.f32 %v10516, %v11060
    %v11062 = vpop.f32.mrb[0].mxu0
    %11063 = vmatprep.mubr.bf16.mxu0 %v9894
    %11064 = vmatmul.mubr.bf16.gmra.mrb[0].mxu0 %v9893
    %v11065 = vpop.f32.mrb[0].mxu0
    %v11066 = vadd.f32 %v10521, %v11065
    %v11067 = vpop.f32.mrb[0].mxu0
    %v11068 = vpop.f32.mrb[0].mxu0
    %v11069 = vadd.f32 %v10524, %v11068
    %v11070 = vpop.f32.mrb[0].mxu0
    %11071 = vmatprep.mubr.bf16.mxu0 %v9898
    %11072 = vmatmul.mubr.bf16.gmra.mrb[0].mxu0 %v9897
    %v11073 = vpop.f32.mrb[0].mxu0
    %v11074 = vadd.f32 %v10529, %v11073
    %v11075 = vpop.f32.mrb[0].mxu0
    %v11076 = vpop.f32.mrb[0].mxu0
    %v11077 = vadd.f32 %v10532, %v11076
    %v11078 = vpop.f32.mrb[0].mxu0
    %11079 = vmatprep.mubr.bf16.mxu0 %v9902
    %11080 = vmatmul.mubr.bf16.gmra.mrb[0].mxu0 %v9901
    %v11081 = vpop.f32.mrb[0].mxu0
    %v11082 = vadd.f32 %v10537, %v11081
    %v11083 = vpop.f32.mrb[0].mxu0
    %v11084 = vpop.f32.mrb[0].mxu0
    %v11085 = vadd.f32 %v10540, %v11084
    %v11086 = vpop.f32.mrb[0].mxu0
    %11087 = vmatprep.mubr.bf16.mxu0 %v9906
    %11088 = vmatmul.mubr.bf16.gmra.mrb[0].mxu0 %v9905
    %v11089 = vpop.f32.mrb[0].mxu0
    %v11090 = vadd.f32 %v10545, %v11089
    %v11091 = vpop.f32.mrb[0].mxu0
    %v11092 = vpop.f32.mrb[0].mxu0
    %v11093 = vadd.f32 %v10548, %v11092
    %v11094 = vpop.f32.mrb[0].mxu0
    %11095 = vmatprep.mubr.bf16.mxu0 %v9910
    %11096 = vmatmul.mubr.bf16.gmra.mrb[0].mxu0 %v9909
    %v11097 = vpop.f32.mrb[0].mxu0
    %v11098 = vadd.f32 %v10553, %v11097
    %v11099 = vpop.f32.mrb[0].mxu0
    %v11100 = vpop.f32.mrb[0].mxu0
    %v11101 = vadd.f32 %v10556, %v11100
    %v11102 = vpop.f32.mrb[0].mxu0
    %11103 = vmatprep.mubr.bf16.mxu0 %v9914
    %11104 = vmatmul.mubr.bf16.gmra.mrb[0].mxu0 %v9913
    %v11105 = vpop.f32.mrb[0].mxu0
    %v11106 = vadd.f32 %v10561, %v11105
    %v11107 = vpop.f32.mrb[0].mxu0
    %v11108 = vpop.f32.mrb[0].mxu0
    %v11109 = vadd.f32 %v10564, %v11108
    %v11110 = vpop.f32.mrb[0].mxu0
    %11111 = vmatprep.mubr.bf16.mxu0 %v9918
    %11112 = vmatmul.mubr.bf16.gmra.mrb[0].mxu0 %v9917
    %v11113 = vpop.f32.mrb[0].mxu0
    %v11114 = vadd.f32 %v10569, %v11113
    %v11115 = vpop.f32.mrb[0].mxu0
    %v11116 = vpop.f32.mrb[0].mxu0
    %v11117 = vadd.f32 %v10572, %v11116
    %v11118 = vpop.f32.mrb[0].mxu0
    %11119 = vmatprep.mubr.bf16.mxu0 %v9922
    %11120 = vmatmul.mubr.bf16.gmra.mrb[0].mxu0 %v9921
    %v11121 = vpop.f32.mrb[0].mxu0
    %v11122 = vadd.f32 %v10577, %v11121
    %v11123 = vpop.f32.mrb[0].mxu0
    %v11124 = vpop.f32.mrb[0].mxu0
    %v11125 = vadd.f32 %v10580, %v11124
    %v11126 = vpop.f32.mrb[0].mxu0
    %11127 = vmatprep.mubr.bf16.mxu0 %v9926
    %11128 = vmatmul.mubr.bf16.gmra.mrb[0].mxu0 %v9925
    %v11129 = vpop.f32.mrb[0].mxu0
    %v11130 = vadd.f32 %v10585, %v11129
    %v11131 = vpop.f32.mrb[0].mxu0
    %v11132 = vpop.f32.mrb[0].mxu0
    %v11133 = vadd.f32 %v10588, %v11132
    %v11134 = vpop.f32.mrb[0].mxu0
    %11135 = vmatprep.mubr.bf16.mxu0 %v9930
    %11136 = vmatmul.mubr.bf16.gmra.mrb[0].mxu0 %v9929
    %v11137 = vpop.f32.mrb[0].mxu0
    %v11138 = vadd.f32 %v10593, %v11137
    %v11139 = vpop.f32.mrb[0].mxu0
    %v11140 = vpop.f32.mrb[0].mxu0
    %v11141 = vadd.f32 %v10596, %v11140
    %v11142 = vpop.f32.mrb[0].mxu0
    %11143 = vmatprep.mubr.bf16.mxu0 %v9934
    %11144 = vmatmul.mubr.bf16.gmra.mrb[0].mxu0 %v9933
    %v11145 = vpop.f32.mrb[0].mxu0
    %v11146 = vadd.f32 %v10601, %v11145
    %v11147 = vpop.f32.mrb[0].mxu0
    %v11148 = vpop.f32.mrb[0].mxu0
    %v11149 = vadd.f32 %v10604, %v11148
    %v11150 = vpop.f32.mrb[0].mxu0
    %11151 = vmatprep.mubr.bf16.mxu0 %v9938
    %11152 = vmatmul.mubr.bf16.gmra.mrb[0].mxu0 %v9937
    %v11153 = vpop.f32.mrb[0].mxu0
    %v11154 = vadd.f32 %v10609, %v11153
    %v11155 = vpop.f32.mrb[0].mxu0
    %v11156 = vpop.f32.mrb[0].mxu0
    %v11157 = vadd.f32 %v10612, %v11156
    %v11158 = vpop.f32.mrb[0].mxu0
    %11159 = vmatprep.mubr.bf16.mxu0 %v9942
    %11160 = vmatmul.mubr.bf16.gmra.mrb[0].mxu0 %v9941
    %v11161 = vpop.f32.mrb[0].mxu0
    %v11162 = vadd.f32 %v10617, %v11161
    %v11163 = vpop.f32.mrb[0].mxu0
    %v11164 = vpop.f32.mrb[0].mxu0
    %v11165 = vadd.f32 %v10620, %v11164
    %v11166 = vpop.f32.mrb[0].mxu0
    %11167 = vmatprep.mubr.bf16.mxu0 %v9946
    %11168 = vmatmul.mubr.bf16.gmra.mrb[0].mxu0 %v9945
    %v11169 = vpop.f32.mrb[0].mxu0
    %v11170 = vadd.f32 %v10625, %v11169
    %v11171 = vpop.f32.mrb[0].mxu0
    %v11172 = vpop.f32.mrb[0].mxu0
    %v11173 = vadd.f32 %v10628, %v11172
    %v11174 = vpop.f32.mrb[0].mxu0
    %11175 = vmatprep.mubr.bf16.mxu0 %v9950
    %11176 = vmatmul.mubr.bf16.gmra.mrb[0].mxu0 %v9949
    %v11177 = vpop.f32.mrb[0].mxu0
    %v11178 = vadd.f32 %v10633, %v11177
    %v11179 = vpop.f32.mrb[0].mxu0
    %v11180 = vpop.f32.mrb[0].mxu0
    %v11181 = vadd.f32 %v10636, %v11180
    %v11182 = vpop.f32.mrb[0].mxu0
    %11183 = vmatprep.mubr.bf16.mxu0 %v9954
    %11184 = vmatmul.mubr.bf16.gmra.mrb[0].mxu0 %v9953
    %v11185 = vpop.f32.mrb[0].mxu0
    %v11186 = vadd.f32 %v10641, %v11185
    %v11187 = vpop.f32.mrb[0].mxu0
    %v11188 = vpop.f32.mrb[0].mxu0
    %v11189 = vadd.f32 %v10644, %v11188
    %v11190 = vpop.f32.mrb[0].mxu0
    %11191 = vmatprep.mubr.bf16.mxu0 %v9958
    %11192 = vmatmul.mubr.bf16.gmra.mrb[0].mxu0 %v9957
    %v11193 = vpop.f32.mrb[0].mxu0
    %v11194 = vadd.f32 %v10649, %v11193
    %v11195 = vpop.f32.mrb[0].mxu0
    %v11196 = vpop.f32.mrb[0].mxu0
    %v11197 = vadd.f32 %v10652, %v11196
    %v11198 = vpop.f32.mrb[0].mxu0
    %11199 = vmatprep.mubr.bf16.mxu0 %v9962
    %11200 = vmatmul.mubr.bf16.gmra.mrb[0].mxu0 %v9961
    %v11201 = vpop.f32.mrb[0].mxu0
    %v11202 = vadd.f32 %v10657, %v11201
    %v11203 = vpop.f32.mrb[0].mxu0
    %v11204 = vpop.f32.mrb[0].mxu0
    %v11205 = vadd.f32 %v10660, %v11204
    %v11206 = vpop.f32.mrb[0].mxu0
    %11207 = vmatprep.mubr.bf16.mxu0 %v9966
    %11208 = vmatmul.mubr.bf16.gmra.mrb[0].mxu0 %v9965
    %v11209 = vpop.f32.mrb[0].mxu0
    %v11210 = vadd.f32 %v10665, %v11209
    %v11211 = vpop.f32.mrb[0].mxu0
    %v11212 = vpop.f32.mrb[0].mxu0
    %v11213 = vadd.f32 %v10668, %v11212
    %v11214 = vpop.f32.mrb[0].mxu0
    %11215 = vmatprep.mubr.bf16.mxu0 %v9970
    %11216 = vmatmul.mubr.bf16.gmra.mrb[0].mxu0 %v9969
    %v11217 = vpop.f32.mrb[0].mxu0
    %v11218 = vadd.f32 %v10673, %v11217
    %v11219 = vpop.f32.mrb[0].mxu0
    %v11220 = vpop.f32.mrb[0].mxu0
    %v11221 = vadd.f32 %v10676, %v11220
    %v11222 = vpop.f32.mrb[0].mxu0
    %11223 = vmatprep.mubr.bf16.mxu0 %v9974
    %11224 = vmatmul.mubr.bf16.gmra.mrb[0].mxu0 %v9973
    %v11225 = vpop.f32.mrb[0].mxu0
    %v11226 = vadd.f32 %v10681, %v11225
    %v11227 = vpop.f32.mrb[0].mxu0
    %v11228 = vpop.f32.mrb[0].mxu0
    %v11229 = vadd.f32 %v10684, %v11228
    %v11230 = vpop.f32.mrb[0].mxu0
    %11231 = vmatprep.mubr.bf16.mxu0 %v9978
    %11232 = vmatmul.mubr.bf16.gmra.mrb[0].mxu0 %v9977
    %v11233 = vpop.f32.mrb[0].mxu0
    %v11234 = vadd.f32 %v10689, %v11233
    %v11235 = vpop.f32.mrb[0].mxu0
    %v11236 = vpop.f32.mrb[0].mxu0
    %v11237 = vadd.f32 %v10692, %v11236
    %v11238 = vpop.f32.mrb[0].mxu0
    %11239 = vmatprep.mubr.bf16.mxu0 %v9982
    %11240 = vmatmul.mubr.bf16.gmra.mrb[0].mxu0 %v9981
    %v11241 = vpop.f32.mrb[0].mxu0
    %v11242 = vadd.f32 %v10697, %v11241
    %v11243 = vpop.f32.mrb[0].mxu0
    %v11244 = vpop.f32.mrb[0].mxu0
    %v11245 = vadd.f32 %v10700, %v11244
    %v11246 = vpop.f32.mrb[0].mxu0
    %11247 = vmatprep.mubr.bf16.mxu0 %v9986
    %11248 = vmatmul.mubr.bf16.gmra.mrb[0].mxu0 %v9985
    %v11249 = vpop.f32.mrb[0].mxu0
    %v11250 = vadd.f32 %v10705, %v11249
    %v11251 = vpop.f32.mrb[0].mxu0
    %v11252 = vpop.f32.mrb[0].mxu0
    %v11253 = vadd.f32 %v10708, %v11252
    %v11254 = vpop.f32.mrb[0].mxu0
    %11255 = vmatprep.mubr.bf16.mxu0 %v9990
    %11256 = vmatmul.mubr.bf16.gmra.mrb[0].mxu0 %v9989
    %v11257 = vpop.f32.mrb[0].mxu0
    %v11258 = vadd.f32 %v10713, %v11257
    %v11259 = vpop.f32.mrb[0].mxu0
    %v11260 = vpop.f32.mrb[0].mxu0
    %v11261 = vadd.f32 %v10716, %v11260
    %v11262 = vpop.f32.mrb[0].mxu0
    %11263 = vmatprep.mubr.bf16.mxu0 %v9994
    %11264 = vmatmul.mubr.bf16.gmra.mrb[0].mxu0 %v9993
    %v11265 = vpop.f32.mrb[0].mxu0
    %v11266 = vadd.f32 %v10721, %v11265
    %v11267 = vpop.f32.mrb[0].mxu0
    %v11268 = vpop.f32.mrb[0].mxu0
    %v11269 = vadd.f32 %v10724, %v11268
    %v11270 = vpop.f32.mrb[0].mxu0
    %11271 = vmatprep.mubr.bf16.mxu0 %v9998
    %11272 = vmatmul.mubr.bf16.gmra.mrb[0].mxu0 %v9997
    %v11273 = vpop.f32.mrb[0].mxu0
    %v11274 = vadd.f32 %v10729, %v11273
    %v11275 = vpop.f32.mrb[0].mxu0
    %v11276 = vpop.f32.mrb[0].mxu0
    %v11277 = vadd.f32 %v10732, %v11276
    %v11278 = vpop.f32.mrb[0].mxu0
    %11279 = vmatprep.mubr.bf16.mxu0 %v10002
    %11280 = vmatmul.mubr.bf16.gmra.mrb[0].mxu0 %v10001
    %v11281 = vpop.f32.mrb[0].mxu0
    %v11282 = vadd.f32 %v10737, %v11281
    %v11283 = vpop.f32.mrb[0].mxu0
    %v11284 = vpop.f32.mrb[0].mxu0
    %v11285 = vadd.f32 %v10740, %v11284
    %v11286 = vpop.f32.mrb[0].mxu0
    %11287 = vmatprep.mubr.bf16.mxu0 %v10006
    %11288 = vmatmul.mubr.bf16.gmra.mrb[0].mxu0 %v10005
    %v11289 = vpop.f32.mrb[0].mxu0
    %v11290 = vadd.f32 %v10745, %v11289
    %v11291 = vpop.f32.mrb[0].mxu0
    %v11292 = vpop.f32.mrb[0].mxu0
    %v11293 = vadd.f32 %v10748, %v11292
    %v11294 = vpop.f32.mrb[0].mxu0
    %11295 = vmatprep.mubr.bf16.mxu0 %v10010
    %11296 = vmatmul.mubr.bf16.gmra.mrb[0].mxu0 %v10009
    %v11297 = vpop.f32.mrb[0].mxu0
    %v11298 = vadd.f32 %v10753, %v11297
    %v11299 = vpop.f32.mrb[0].mxu0
    %v11300 = vpop.f32.mrb[0].mxu0
    %v11301 = vadd.f32 %v10756, %v11300
    %v11302 = vpop.f32.mrb[0].mxu0
    %11303 = vmatprep.mubr.bf16.mxu0 %v10014
    %11304 = vmatmul.mubr.bf16.gmra.mrb[0].mxu0 %v10013
    %v11305 = vpop.f32.mrb[0].mxu0
    %v11306 = vadd.f32 %v10761, %v11305
    %v11307 = vpop.f32.mrb[0].mxu0
    %v11308 = vpop.f32.mrb[0].mxu0
    %v11309 = vadd.f32 %v10764, %v11308
    %v11310 = vpop.f32.mrb[0].mxu0
    %11311 = vmatprep.mubr.bf16.mxu0 %v10018
    %11312 = vmatmul.mubr.bf16.gmra.mrb[0].mxu0 %v10017
    %v11313 = vpop.f32.mrb[0].mxu0
    %v11314 = vadd.f32 %v10769, %v11313
    %v11315 = vpop.f32.mrb[0].mxu0
    %v11316 = vpop.f32.mrb[0].mxu0
    %v11317 = vadd.f32 %v10772, %v11316
    %v11318 = vpop.f32.mrb[0].mxu0
    %11319 = vmatprep.mubr.bf16.mxu0 %v10022
    %11320 = vmatmul.mubr.bf16.gmra.mrb[0].mxu0 %v10021
    %v11321 = vpop.f32.mrb[0].mxu0
    %v11322 = vadd.f32 %v10777, %v11321
    %v11323 = vpop.f32.mrb[0].mxu0
    %v11324 = vpop.f32.mrb[0].mxu0
    %v11325 = vadd.f32 %v10780, %v11324
    %v11326 = vpop.f32.mrb[0].mxu0
    %11327 = vmatprep.mubr.bf16.mxu0 %v10026
    %11328 = vmatmul.mubr.bf16.gmra.mrb[0].mxu0 %v10025
    %v11329 = vpop.f32.mrb[0].mxu0
    %v11330 = vadd.f32 %v10785, %v11329
    %v11331 = vpop.f32.mrb[0].mxu0
    %v11332 = vpop.f32.mrb[0].mxu0
    %v11333 = vadd.f32 %v10788, %v11332
    %v11334 = vpop.f32.mrb[0].mxu0
    %11335 = vmatprep.mubr.bf16.mxu0 %v10030
    %11336 = vmatmul.mubr.bf16.gmra.mrb[0].mxu0 %v10029
    %v11337 = vpop.f32.mrb[0].mxu0
    %v11338 = vadd.f32 %v10793, %v11337
    %v11339 = vpop.f32.mrb[0].mxu0
    %v11340 = vpop.f32.mrb[0].mxu0
    %v11341 = vadd.f32 %v10796, %v11340
    %v11342 = vpop.f32.mrb[0].mxu0
    %11343 = vmatprep.mubr.bf16.mxu0 %v10034
    %11344 = vmatmul.mubr.bf16.gmra.mrb[0].mxu0 %v10033
    %v11345 = vpop.f32.mrb[0].mxu0
    %v11346 = vadd.f32 %v10801, %v11345
    %v11347 = vpop.f32.mrb[0].mxu0
    %v11348 = vpop.f32.mrb[0].mxu0
    %v11349 = vadd.f32 %v10804, %v11348
    %v11350 = vpop.f32.mrb[0].mxu0
    %11351 = vmatprep.mubr.bf16.mxu0 %v10038
    %11352 = vmatmul.mubr.bf16.gmra.mrb[0].mxu0 %v10037
    %v11353 = vpop.f32.mrb[0].mxu0
    %v11354 = vadd.f32 %v10809, %v11353
    %v11355 = vpop.f32.mrb[0].mxu0
    %v11356 = vpop.f32.mrb[0].mxu0
    %v11357 = vadd.f32 %v10812, %v11356
    %v11358 = vpop.f32.mrb[0].mxu0
    %11359 = vmatprep.mubr.bf16.mxu0 %v10042
    %11360 = vmatmul.mubr.bf16.gmra.mrb[0].mxu0 %v10041
    %v11361 = vpop.f32.mrb[0].mxu0
    %v11362 = vadd.f32 %v10817, %v11361
    %v11363 = vpop.f32.mrb[0].mxu0
    %v11364 = vpop.f32.mrb[0].mxu0
    %v11365 = vadd.f32 %v10820, %v11364
    %v11366 = vpop.f32.mrb[0].mxu0
    %11367 = vmatprep.mubr.bf16.mxu0 %v10046
    %11368 = vmatmul.mubr.bf16.gmra.mrb[0].mxu0 %v10045
    %v11369 = vpop.f32.mrb[0].mxu0
    %v11370 = vadd.f32 %v10825, %v11369
    %v11371 = vpop.f32.mrb[0].mxu0
    %v11372 = vpop.f32.mrb[0].mxu0
    %v11373 = vadd.f32 %v10828, %v11372
    %v11374 = vpop.f32.mrb[0].mxu0
    %11375 = vmatprep.mubr.bf16.mxu0 %v10050
    %11376 = vmatmul.mubr.bf16.gmra.mrb[0].mxu0 %v10049
    %v11377 = vpop.f32.mrb[0].mxu0
    %v11378 = vadd.f32 %v10833, %v11377
    %v11379 = vpop.f32.mrb[0].mxu0
    %v11380 = vpop.f32.mrb[0].mxu0
    %v11381 = vadd.f32 %v10836, %v11380
    %v11382 = vpop.f32.mrb[0].mxu0
    %11383 = vmatprep.mubr.bf16.mxu0 %v10054
    %11384 = vmatmul.mubr.bf16.gmra.mrb[0].mxu0 %v10053
    %v11385 = vpop.f32.mrb[0].mxu0
    %v11386 = vadd.f32 %v10841, %v11385
    %v11387 = vpop.f32.mrb[0].mxu0
    %v11388 = vpop.f32.mrb[0].mxu0
    %v11389 = vadd.f32 %v10844, %v11388
    %v11390 = vpop.f32.mrb[0].mxu0
    %11391 = vmatprep.mubr.bf16.mxu0 %v10058
    %11392 = vmatmul.mubr.bf16.gmra.mrb[0].mxu0 %v10057
    %v11393 = vpop.f32.mrb[0].mxu0
    %v11394 = vadd.f32 %v10849, %v11393
    %v11395 = vpop.f32.mrb[0].mxu0
    %v11396 = vpop.f32.mrb[0].mxu0
    %v11397 = vadd.f32 %v10852, %v11396
    %v11398 = vpop.f32.mrb[0].mxu0
    %11399 = vmatprep.mubr.bf16.mxu0 %v10062
    %11400 = vmatmul.mubr.bf16.gmra.mrb[0].mxu0 %v10061
    %v11401 = vpop.f32.mrb[0].mxu0
    %v11402 = vadd.f32 %v10857, %v11401
    %v11403 = vpop.f32.mrb[0].mxu0
    %v11404 = vpop.f32.mrb[0].mxu0
    %v11405 = vadd.f32 %v10860, %v11404
    %v11406 = vpop.f32.mrb[0].mxu0
    %11407 = vmatprep.mubr.bf16.mxu0 %v10066
    %11408 = vmatmul.mubr.bf16.gmra.mrb[0].mxu0 %v10065
    %v11409 = vpop.f32.mrb[0].mxu0
    %v11410 = vadd.f32 %v10865, %v11409
    %v11411 = vpop.f32.mrb[0].mxu0
    %v11412 = vpop.f32.mrb[0].mxu0
    %v11413 = vadd.f32 %v10868, %v11412
    %v11414 = vpop.f32.mrb[0].mxu0
    %11415 = vmatprep.mubr.bf16.mxu0 %v10070
    %11416 = vmatmul.mubr.bf16.gmra.mrb[0].mxu0 %v10069
    %v11417 = vpop.f32.mrb[0].mxu0
    %v11418 = vadd.f32 %v10873, %v11417
    %v11419 = vpop.f32.mrb[0].mxu0
    %v11420 = vpop.f32.mrb[0].mxu0
    %v11421 = vadd.f32 %v10876, %v11420
    %v11422 = vpop.f32.mrb[0].mxu0
    %11423 = vdwg.mxu0
    %vm11424 = vcmask 64512
    %11425 = vst.msk [vmem:[#allocation14] sm:$0xff] %vm11424, %v10914
    %11426 = vst.msk [vmem:[#allocation14 + $0x8] sm:$0xff] %vm11424, %v10917
    %11427 = vst.msk [vmem:[#allocation14 + $0x10] sm:$0xff] %vm11424, %v10922
    %11428 = vst.msk [vmem:[#allocation14 + $0x18] sm:$0xff] %vm11424, %v10925
    %11429 = vst.msk [vmem:[#allocation14 + $0x20] sm:$0xff] %vm11424, %v10930
    %11430 = vst.msk [vmem:[#allocation14 + $0x28] sm:$0xff] %vm11424, %v10933
    %11431 = vst.msk [vmem:[#allocation14 + $0x30] sm:$0xff] %vm11424, %v10938
    %11432 = vst.msk [vmem:[#allocation14 + $0x38] sm:$0xff] %vm11424, %v10941
    %11433 = vst.msk [vmem:[#allocation14 + $0x40] sm:$0xff] %vm11424, %v10946
    %11434 = vst.msk [vmem:[#allocation14 + $0x48] sm:$0xff] %vm11424, %v10949
    %11435 = vst.msk [vmem:[#allocation14 + $0x50] sm:$0xff] %vm11424, %v10954
    %11436 = vst.msk [vmem:[#allocation14 + $0x58] sm:$0xff] %vm11424, %v10957
    %11437 = vst.msk [vmem:[#allocation14 + $0x60] sm:$0xff] %vm11424, %v10962
    %11438 = vst.msk [vmem:[#allocation14 + $0x68] sm:$0xff] %vm11424, %v10965
    %11439 = vst.msk [vmem:[#allocation14 + $0x70] sm:$0xff] %vm11424, %v10970
    %11440 = vst.msk [vmem:[#allocation14 + $0x78] sm:$0xff] %vm11424, %v10973
    %11441 = vst.msk [vmem:[#allocation14 + $0x80] sm:$0xff] %vm11424, %v10978
    %11442 = vst.msk [vmem:[#allocation14 + $0x88] sm:$0xff] %vm11424, %v10981
    %11443 = vst.msk [vmem:[#allocation14 + $0x90] sm:$0xff] %vm11424, %v10986
    %11444 = vst.msk [vmem:[#allocation14 + $0x98] sm:$0xff] %vm11424, %v10989
    %11445 = vst.msk [vmem:[#allocation14 + $0xa0] sm:$0xff] %vm11424, %v10994
    %11446 = vst.msk [vmem:[#allocation14 + $0xa8] sm:$0xff] %vm11424, %v10997
    %11447 = vst.msk [vmem:[#allocation14 + $0xb0] sm:$0xff] %vm11424, %v11002
    %11448 = vst.msk [vmem:[#allocation14 + $0xb8] sm:$0xff] %vm11424, %v11005
    %11449 = vst.msk [vmem:[#allocation14 + $0xc0] sm:$0xff] %vm11424, %v11010
    %11450 = vst.msk [vmem:[#allocation14 + $0xc8] sm:$0xff] %vm11424, %v11013
    %11451 = vst.msk [vmem:[#allocation14 + $0xd0] sm:$0xff] %vm11424, %v11018
    %11452 = vst.msk [vmem:[#allocation14 + $0xd8] sm:$0xff] %vm11424, %v11021
    %11453 = vst.msk [vmem:[#allocation14 + $0xe0] sm:$0xff] %vm11424, %v11026
    %11454 = vst.msk [vmem:[#allocation14 + $0xe8] sm:$0xff] %vm11424, %v11029
    %11455 = vst.msk [vmem:[#allocation14 + $0xf0] sm:$0xff] %vm11424, %v11034
    %11456 = vst.msk [vmem:[#allocation14 + $0xf8] sm:$0xff] %vm11424, %v11037
    %11457 = vst.msk [vmem:[#allocation14 + $0x100] sm:$0xff] %vm11424, %v11042
    %11458 = vst.msk [vmem:[#allocation14 + $0x108] sm:$0xff] %vm11424, %v11045
    %11459 = vst.msk [vmem:[#allocation14 + $0x110] sm:$0xff] %vm11424, %v11050
    %11460 = vst.msk [vmem:[#allocation14 + $0x118] sm:$0xff] %vm11424, %v11053
    %11461 = vst.msk [vmem:[#allocation14 + $0x120] sm:$0xff] %vm11424, %v11058
    %11462 = vst.msk [vmem:[#allocation14 + $0x128] sm:$0xff] %vm11424, %v11061
    %11463 = vst.msk [vmem:[#allocation14 + $0x130] sm:$0xff] %vm11424, %v11066
    %11464 = vst.msk [vmem:[#allocation14 + $0x138] sm:$0xff] %vm11424, %v11069
    %11465 = vst.msk [vmem:[#allocation14 + $0x140] sm:$0xff] %vm11424, %v11074
    %11466 = vst.msk [vmem:[#allocation14 + $0x148] sm:$0xff] %vm11424, %v11077
    %11467 = vst.msk [vmem:[#allocation14 + $0x150] sm:$0xff] %vm11424, %v11082
    %11468 = vst.msk [vmem:[#allocation14 + $0x158] sm:$0xff] %vm11424, %v11085
    %11469 = vst.msk [vmem:[#allocation14 + $0x160] sm:$0xff] %vm11424, %v11090
    %11470 = vst.msk [vmem:[#allocation14 + $0x168] sm:$0xff] %vm11424, %v11093
    %11471 = vst.msk [vmem:[#allocation14 + $0x170] sm:$0xff] %vm11424, %v11098
    %11472 = vst.msk [vmem:[#allocation14 + $0x178] sm:$0xff] %vm11424, %v11101
    %11473 = vst.msk [vmem:[#allocation14 + $0x180] sm:$0xff] %vm11424, %v11106
    %11474 = vst.msk [vmem:[#allocation14 + $0x188] sm:$0xff] %vm11424, %v11109
    %11475 = vst.msk [vmem:[#allocation14 + $0x190] sm:$0xff] %vm11424, %v11114
    %11476 = vst.msk [vmem:[#allocation14 + $0x198] sm:$0xff] %vm11424, %v11117
    %11477 = vst.msk [vmem:[#allocation14 + $0x1a0] sm:$0xff] %vm11424, %v11122
    %11478 = vst.msk [vmem:[#allocation14 + $0x1a8] sm:$0xff] %vm11424, %v11125
    %11479 = vst.msk [vmem:[#allocation14 + $0x1b0] sm:$0xff] %vm11424, %v11130
    %11480 = vst.msk [vmem:[#allocation14 + $0x1b8] sm:$0xff] %vm11424, %v11133
    %11481 = vst.msk [vmem:[#allocation14 + $0x1c0] sm:$0xff] %vm11424, %v11138
    %11482 = vst.msk [vmem:[#allocation14 + $0x1c8] sm:$0xff] %vm11424, %v11141
    %11483 = vst.msk [vmem:[#allocation14 + $0x1d0] sm:$0xff] %vm11424, %v11146
    %11484 = vst.msk [vmem:[#allocation14 + $0x1d8] sm:$0xff] %vm11424, %v11149
    %11485 = vst.msk [vmem:[#allocation14 + $0x1e0] sm:$0xff] %vm11424, %v11154
    %11486 = vst.msk [vmem:[#allocation14 + $0x1e8] sm:$0xff] %vm11424, %v11157
    %11487 = vst.msk [vmem:[#allocation14 + $0x1f0] sm:$0xff] %vm11424, %v11162
    %11488 = vst.msk [vmem:[#allocation14 + $0x1f8] sm:$0xff] %vm11424, %v11165
    %11489 = vst.msk [vmem:[#allocation14 + $0x200] sm:$0xff] %vm11424, %v11170
    %11490 = vst.msk [vmem:[#allocation14 + $0x208] sm:$0xff] %vm11424, %v11173
    %11491 = vst.msk [vmem:[#allocation14 + $0x210] sm:$0xff] %vm11424, %v11178
    %11492 = vst.msk [vmem:[#allocation14 + $0x218] sm:$0xff] %vm11424, %v11181
    %11493 = vst.msk [vmem:[#allocation14 + $0x220] sm:$0xff] %vm11424, %v11186
    %11494 = vst.msk [vmem:[#allocation14 + $0x228] sm:$0xff] %vm11424, %v11189
    %11495 = vst.msk [vmem:[#allocation14 + $0x230] sm:$0xff] %vm11424, %v11194
    %11496 = vst.msk [vmem:[#allocation14 + $0x238] sm:$0xff] %vm11424, %v11197
    %11497 = vst.msk [vmem:[#allocation14 + $0x240] sm:$0xff] %vm11424, %v11202
    %11498 = vst.msk [vmem:[#allocation14 + $0x248] sm:$0xff] %vm11424, %v11205
    %11499 = vst.msk [vmem:[#allocation14 + $0x250] sm:$0xff] %vm11424, %v11210
    %11500 = vst.msk [vmem:[#allocation14 + $0x258] sm:$0xff] %vm11424, %v11213
    %11501 = vst.msk [vmem:[#allocation14 + $0x260] sm:$0xff] %vm11424, %v11218
    %11502 = vst.msk [vmem:[#allocation14 + $0x268] sm:$0xff] %vm11424, %v11221
    %11503 = vst.msk [vmem:[#allocation14 + $0x270] sm:$0xff] %vm11424, %v11226
    %11504 = vst.msk [vmem:[#allocation14 + $0x278] sm:$0xff] %vm11424, %v11229
    %11505 = vst.msk [vmem:[#allocation14 + $0x280] sm:$0xff] %vm11424, %v11234
    %11506 = vst.msk [vmem:[#allocation14 + $0x288] sm:$0xff] %vm11424, %v11237
    %11507 = vst.msk [vmem:[#allocation14 + $0x290] sm:$0xff] %vm11424, %v11242
    %11508 = vst.msk [vmem:[#allocation14 + $0x298] sm:$0xff] %vm11424, %v11245
    %11509 = vst.msk [vmem:[#allocation14 + $0x2a0] sm:$0xff] %vm11424, %v11250
    %11510 = vst.msk [vmem:[#allocation14 + $0x2a8] sm:$0xff] %vm11424, %v11253
    %11511 = vst.msk [vmem:[#allocation14 + $0x2b0] sm:$0xff] %vm11424, %v11258
    %11512 = vst.msk [vmem:[#allocation14 + $0x2b8] sm:$0xff] %vm11424, %v11261
    %11513 = vst.msk [vmem:[#allocation14 + $0x2c0] sm:$0xff] %vm11424, %v11266
    %11514 = vst.msk [vmem:[#allocation14 + $0x2c8] sm:$0xff] %vm11424, %v11269
    %11515 = vst.msk [vmem:[#allocation14 + $0x2d0] sm:$0xff] %vm11424, %v11274
    %11516 = vst.msk [vmem:[#allocation14 + $0x2d8] sm:$0xff] %vm11424, %v11277
    %11517 = vst.msk [vmem:[#allocation14 + $0x2e0] sm:$0xff] %vm11424, %v11282
    %11518 = vst.msk [vmem:[#allocation14 + $0x2e8] sm:$0xff] %vm11424, %v11285
    %11519 = vst.msk [vmem:[#allocation14 + $0x2f0] sm:$0xff] %vm11424, %v11290
    %11520 = vst.msk [vmem:[#allocation14 + $0x2f8] sm:$0xff] %vm11424, %v11293
    %11521 = vst.msk [vmem:[#allocation14 + $0x300] sm:$0xff] %vm11424, %v11298
    %11522 = vst.msk [vmem:[#allocation14 + $0x308] sm:$0xff] %vm11424, %v11301
    %11523 = vst.msk [vmem:[#allocation14 + $0x310] sm:$0xff] %vm11424, %v11306
    %11524 = vst.msk [vmem:[#allocation14 + $0x318] sm:$0xff] %vm11424, %v11309
    %11525 = vst.msk [vmem:[#allocation14 + $0x320] sm:$0xff] %vm11424, %v11314
    %11526 = vst.msk [vmem:[#allocation14 + $0x328] sm:$0xff] %vm11424, %v11317
    %11527 = vst.msk [vmem:[#allocation14 + $0x330] sm:$0xff] %vm11424, %v11322
    %11528 = vst.msk [vmem:[#allocation14 + $0x338] sm:$0xff] %vm11424, %v11325
    %11529 = vst.msk [vmem:[#allocation14 + $0x340] sm:$0xff] %vm11424, %v11330
    %11530 = vst.msk [vmem:[#allocation14 + $0x348] sm:$0xff] %vm11424, %v11333
    %11531 = vst.msk [vmem:[#allocation14 + $0x350] sm:$0xff] %vm11424, %v11338
    %11532 = vst.msk [vmem:[#allocation14 + $0x358] sm:$0xff] %vm11424, %v11341
    %11533 = vst.msk [vmem:[#allocation14 + $0x360] sm:$0xff] %vm11424, %v11346
    %11534 = vst.msk [vmem:[#allocation14 + $0x368] sm:$0xff] %vm11424, %v11349
    %11535 = vst.msk [vmem:[#allocation14 + $0x370] sm:$0xff] %vm11424, %v11354
    %11536 = vst.msk [vmem:[#allocation14 + $0x378] sm:$0xff] %vm11424, %v11357
    %11537 = vst.msk [vmem:[#allocation14 + $0x380] sm:$0xff] %vm11424, %v11362
    %11538 = vst.msk [vmem:[#allocation14 + $0x388] sm:$0xff] %vm11424, %v11365
    %11539 = vst.msk [vmem:[#allocation14 + $0x390] sm:$0xff] %vm11424, %v11370
    %11540 = vst.msk [vmem:[#allocation14 + $0x398] sm:$0xff] %vm11424, %v11373
    %11541 = vst.msk [vmem:[#allocation14 + $0x3a0] sm:$0xff] %vm11424, %v11378
    %11542 = vst.msk [vmem:[#allocation14 + $0x3a8] sm:$0xff] %vm11424, %v11381
    %11543 = vst.msk [vmem:[#allocation14 + $0x3b0] sm:$0xff] %vm11424, %v11386
    %11544 = vst.msk [vmem:[#allocation14 + $0x3b8] sm:$0xff] %vm11424, %v11389
    %11545 = vst.msk [vmem:[#allocation14 + $0x3c0] sm:$0xff] %vm11424, %v11394
    %11546 = vst.msk [vmem:[#allocation14 + $0x3c8] sm:$0xff] %vm11424, %v11397
    %11547 = vst.msk [vmem:[#allocation14 + $0x3d0] sm:$0xff] %vm11424, %v11402
    %11548 = vst.msk [vmem:[#allocation14 + $0x3d8] sm:$0xff] %vm11424, %v11405
    %11549 = vst.msk [vmem:[#allocation14 + $0x3e0] sm:$0xff] %vm11424, %v11410
    %11550 = vst.msk [vmem:[#allocation14 + $0x3e8] sm:$0xff] %vm11424, %v11413
    %11551 = vst.msk [vmem:[#allocation14 + $0x3f0] sm:$0xff] %vm11424, %v11418
    %11552 = vst.msk [vmem:[#allocation14 + $0x3f8] sm:$0xff] %vm11424, %v11421
    // Predicated region
    $region58: #{model_forward.1} parent=1 // pred_check
      _
    $region59: #{model_forward.1} parent=1 // pred_check_branch
      %11554 = sbr.rel (0) target = $region61
    $region60: #{model_forward.1} parent=1 // pred_region
      %s11556 = ssub.s32 16384, 16384
      %11557 = vsyncadd [#allocation4], %s11556
      %s11558 = sshll.u32 [#allocation14], 4
      %s11559 = int_to_ptr.vmem [resolvable:$true] %s11558
      %11564 = dma.vmem_to_hbm [thread:$0]  %s11559, 16384, %s7, [#allocation4], 128, 128, 8
    $region61: #{model_forward.1} parent=1 // pred_fallthru
      _
    // Predicated region
    $region62: #{model_forward.1} parent=1 // pred_check
      _
    $region63: #{model_forward.1} parent=1 // pred_check_branch
      %11566 = sbr.rel (0) target = $region65
    $region64: #{model_forward.1} parent=1 // pred_region
      %11567 = dma.done [#allocation4], 16384
    $region65: #{model_forward.1} parent=1 // pred_fallthru
      _
    %11568 = vsyncpa [#allocation3], 1
    %11569 = vsyncpa [#allocation6], 1
    %11570 = vsyncpa [#allocation9], 1
    %11571 = vsyncpa [#allocation12], 1
    %11572 = vsyncpa [#allocation4], 1

</llo_original>
